<compile_context>
chip_gen: v5e
topology: v5e:2x2
jax: 0.10.0
libtpu: 0.0.40
codegen_flags: <defaults>
</compile_context>

<pallas_src>
import functools

import jax
import jax.numpy as jnp
from jax.experimental import pallas as pl
from jax.experimental.pallas import tpu as pltpu

LN_EPS = 1e-5        # torch.nn.LayerNorm default
OUT_PAD = 128        # lane-dense packed output width (policy lanes + value lane)
NEG_INF = -1e30      # bias for padded softmax lanes -> exp underflows to exactly 0
TM = 128             # batch-tile rows per grid step (full MXU row occupancy on v5e)


def _layernorm(h):
    # Affine-free LayerNorm (gamma/beta are folded into the following Linear in glue).
    # Single-pass mean / variance: var = E[h^2] - mu^2  (biased, matches PyTorch).
    mu = jnp.mean(h, axis=-1, keepdims=True)
    var = jnp.maximum(jnp.mean(h * h, axis=-1, keepdims=True) - mu * mu, 0.0)
    return (h - mu) * jax.lax.rsqrt(var + LN_EPS)


def _bf16(v):
    return v.astype(jnp.bfloat16)


def _actor_critic_kernel(
    x_ref,
    w1f, b1f,               # fused actor|critic layer 1 (shared input x)
    aw2, ab2, aw3, ab3,     # actor trunk layers 2,3 (prev-LN affine folded in)
    awh, abh,               # actor head, padded to OUT_PAD lanes
    cw2, cb2, cw3, cb3,     # critic trunk layers 2,3 (spectral-normed + LN folded)
    cwh, cbh,               # critic head as a (1, h3) row -> VPU reduction
    out_ref,
):
    f32 = jnp.float32
    h1 = aw2.shape[0]       # fused z1 split point; asserted 128-aligned in glue
    x = _bf16(x_ref[...])

    # ---- fused layer 1: a single MXU push covers both trunks (shared input) ----
    z1 = jnp.maximum(jnp.dot(x, w1f[...], preferred_element_type=f32) + b1f[...], 0.0)
    # TODO(synk): nn.Dropout(p=0.5) is identity in eval mode; train-mode dropout not emitted.
    a = _layernorm(z1[:, :h1])
    c = _layernorm(z1[:, h1:])

    # ---- layer 2 (actor / critic interleaved) ----
    a = _layernorm(jnp.maximum(
        jnp.dot(_bf16(a), aw2[...], preferred_element_type=f32) + ab2[...], 0.0))
    c = _layernorm(jnp.maximum(
        jnp.dot(_bf16(c), cw2[...], preferred_element_type=f32) + cb2[...], 0.0))

    # ---- layer 3 (interleaved) ----
    a = _layernorm(jnp.maximum(
        jnp.dot(_bf16(a), aw3[...], preferred_element_type=f32) + ab3[...], 0.0))
    c = _layernorm(jnp.maximum(
        jnp.dot(_bf16(c), cw3[...], preferred_element_type=f32) + cb3[...], 0.0))

    # ---- actor head: 128-lane padded logits (pad bias = -1e30) + softmax ----
    logits = jnp.dot(_bf16(a), awh[...], preferred_element_type=f32) + abh[...]
    m = jnp.max(logits, axis=-1, keepdims=True)
    e = jnp.exp(logits - m)                          # pad lanes -> exactly 0
    # Exact f32 reciprocal of the (TM, 1) denominator. (approx=True lowers to a
    # bf16-precision estimate outside Mosaic -> rows summed to 1 +/- ~4e-3.)
    inv = 1.0 / jnp.sum(e, axis=-1, keepdims=True)
    policy = e * inv

    # ---- critic head: 1-wide output -> VPU multiply + lane reduction (no MXU) ----
    value = jnp.sum(c * cwh[...], axis=-1, keepdims=True) + cbh[...]

    # ---- single lane-dense store: policy in lanes [0:A], value at the last lane ----
    lane = jax.lax.broadcasted_iota(jnp.int32, policy.shape, 1)
    out_ref[...] = jnp.where(lane == (OUT_PAD - 1), value, policy)


# ----------------------------- JAX-side glue -----------------------------------

def _spectral_normalize(w):
    # TODO(synk): torch spectral_norm uses a persistent one-step power iteration;
    # here the exact sigma_max is used (equal once the power iteration has converged).
    return w / jnp.linalg.norm(w, ord=2)


def init_torch_params(key, action_size, input_size, h1, h2, h3, scale=0.05):
    """Torch-style params: transposed weights (in, out), 1-D biases / LN affine.
    LN gamma/beta are made non-trivial so the affine folding is actually exercised."""
    ks = iter(jax.random.split(key, 32))

    def lin(fan_in, fan_out):
        w = scale * jax.random.normal(next(ks), (fan_in, fan_out), jnp.float32)
        b = scale * jax.random.normal(next(ks), (fan_out,), jnp.float32)
        return w, b

    def ln(n):
        g = 1.0 + 0.1 * jax.random.normal(next(ks), (n,), jnp.float32)
        bt = 0.1 * jax.random.normal(next(ks), (n,), jnp.float32)
        return g, bt

    dims = [(input_size, h1), (h1, h2), (h2, h3)]
    actor = [lin(i, o) + ln(o) for i, o in dims]
    critic = [lin(i, o) + ln(o) for i, o in dims]
    awh, abh = lin(h3, action_size)
    cwh, cbh = lin(h3, 1)
    return dict(actor=actor, critic=critic, awh=awh, abh=abh, cwh=cwh, cbh=cbh)


def prepare_kernel_params(tp):
    """Spectral-normalize critic, fold LN affine forward, fuse layer 1, pad actor
    head to 128 lanes, and cast matmul weights to bfloat16."""

    def fold(w, b, g_prev, bt_prev):
        # (xhat*g + bt) @ W + b  ==  xhat @ (g[:,None]*W) + (bt @ W + b)
        return g_prev[:, None] * w, bt_prev @ w + b

    (aw1, ab1, ag1, abt1), (aw2, ab2, ag2, abt2), (aw3, ab3, ag3, abt3) = tp["actor"]
    (cw1, cb1, cg1, cbt1), (cw2, cb2, cg2, cbt2), (cw3, cb3, cg3, cbt3) = tp["critic"]
    awh, abh, cwh, cbh = tp["awh"], tp["abh"], tp["cwh"], tp["cbh"]

    h1 = aw1.shape[1]
    a_sz = awh.shape[1]
    # z1[:, :h1] / z1[:, h1:] must be lane-tile aligned (no VMEM relayout copies),
    # and the value lane must not clobber the last policy lane.
    assert h1 % 128 == 0, "hidden1 must be a multiple of 128 for the fused z1 split"
    assert a_sz < OUT_PAD, "action_size must be < 128 (lane 127 carries the value)"

    # critic trunk: spectral norm (weight reparam) first
    cw1, cw2, cw3 = map(_spectral_normalize, (cw1, cw2, cw3))

    # fold each LayerNorm's affine into the next Linear
    aw2, ab2 = fold(aw2, ab2, ag1, abt1)
    aw3, ab3 = fold(aw3, ab3, ag2, abt2)
    awh, abh = fold(awh, abh, ag3, abt3)
    cw2, cb2 = fold(cw2, cb2, cg1, cbt1)
    cw3, cb3 = fold(cw3, cb3, cg2, cbt2)
    cwh, cbh = fold(cwh, cbh, cg3, cbt3)

    # fuse the shared-input layer-1 matmul (actor | critic along output dim)
    w1f = jnp.concatenate([aw1, cw1], axis=1)
    b1f = jnp.concatenate([ab1, cb1], axis=0)[None, :]

    # pad the actor head to OUT_PAD lanes: zero weights, -1e30 bias -> pad probs = 0
    h3 = awh.shape[0]
    awh_pad = jnp.zeros((h3, OUT_PAD), jnp.float32).at[:, :a_sz].set(awh)
    abh_pad = jnp.full((1, OUT_PAD), NEG_INF, jnp.float32).at[:, :a_sz].set(abh)

    bf = jnp.bfloat16
    return (
        w1f.astype(bf), b1f,
        aw2.astype(bf), ab2[None, :], aw3.astype(bf), ab3[None, :],
        awh_pad.astype(bf), abh_pad,
        cw2.astype(bf), cb2[None, :], cw3.astype(bf), cb3[None, :],
        cwh[:, 0][None, :], cbh[None, :],          # (1, h3), (1, 1) f32 value head
    )


@functools.partial(jax.jit, static_argnames=("action_size", "tm"))
def actor_critic_forward(x, kernel_params, action_size, tm=TM):
    batch, in_dim = x.shape
    padded = ((batch + tm - 1) // tm) * tm
    if padded != batch:
        x = jnp.pad(x, ((0, padded - batch), (0, 0)))
    grid = (padded // tm,)

    # x and out are pipelined per batch tile; every weight/bias gets a constant
    # index_map so the ~weight stack is DMA'd HBM->VMEM once and stays resident
    # across the whole grid (total operands are far below the VMEM budget on
    # v5e/v6e/v7x, so no vmem_limit override is needed).
    x_spec = pl.BlockSpec((tm, in_dim), lambda i: (i, 0))
    w_specs = [pl.BlockSpec(p.shape, lambda i: (0, 0)) for p in kernel_params]
    out_spec = pl.BlockSpec((tm, OUT_PAD), lambda i: (i, 0))

    packed = pl.pallas_call(
        _actor_critic_kernel,
        out_shape=jax.ShapeDtypeStruct((padded, OUT_PAD), jnp.float32),
        grid=grid,
        in_specs=[x_spec] + w_specs,
        out_specs=out_spec,
        compiler_params=pltpu.CompilerParams(
            # batch tiles are independent -> shardable across both TCs on v7x
            dimension_semantics=("parallel",)),
    )(x, *kernel_params)

    policy = packed[:batch, :action_size]
    value = packed[:batch, OUT_PAD - 1:OUT_PAD]
    return policy, value


def reference_forward(x, tp):
    """Pure-JAX f32 mirror of the PyTorch module (eval mode)."""
    def ln(h, g, b):
        mu = jnp.mean(h, axis=-1, keepdims=True)
        var = jnp.mean((h - mu) ** 2, axis=-1, keepdims=True)
        return (h - mu) / jnp.sqrt(var + LN_EPS) * g + b

    h = x
    for w, b, g, bt in tp["actor"]:
        h = ln(jnp.maximum(h @ w + b, 0.0), g, bt)
    policy = jax.nn.softmax(h @ tp["awh"] + tp["abh"], axis=-1)

    c = x
    for w, b, g, bt in tp["critic"]:
        c = ln(jnp.maximum(c @ _spectral_normalize(w) + b, 0.0), g, bt)
    value = c @ tp["cwh"] + tp["cbh"]
    return policy, value


if __name__ == "__main__":
    # Small shapes consistent with the module: input_size=24, 128-aligned hiddens.
    # BATCH=256 -> grid of two 128-row tiles: exercises weight residency across
    # grid steps and the megacore-parallel batch axis.
    BATCH, INPUT, H1, H2, H3, ACTIONS = 256, 24, 512, 256, 128, 8

    key = jax.random.PRNGKey(0)
    kx, kp = jax.random.split(key)
    x = jax.random.normal(kx, (BATCH, INPUT), jnp.float32)

    torch_params = init_torch_params(kp, ACTIONS, INPUT, H1, H2, H3)
    kernel_params = prepare_kernel_params(torch_params)

    policy, value = jax.block_until_ready(
        actor_critic_forward(x, kernel_params, action_size=ACTIONS))

    assert policy.shape == (BATCH, ACTIONS) and value.shape == (BATCH, 1)
    assert bool(jnp.all(jnp.isfinite(policy))) and bool(jnp.all(jnp.isfinite(value)))
    # exact-division softmax: rows sum to 1 up to f32 rounding
    assert bool(jnp.allclose(jnp.sum(policy, axis=-1), 1.0, atol=1e-3))

    # compare against pure-JAX f32 reference (bf16 matmuls -> loose tolerance)
    ref_policy, ref_value = reference_forward(x, torch_params)
    assert float(jnp.max(jnp.abs(policy - ref_policy))) < 5e-2
    assert float(jnp.max(jnp.abs(value - ref_value))) < 1e-1

    print("KERNEL_OK")
</pallas_src>

<mosaic_0001>
module attributes {stable_mosaic.version = 11 : i64} {
  func.func @_actor_critic_kernel(%arg0: i32, %arg1: memref<128x24xf32, #tpu.memory_space<vmem>>, %arg2: memref<24x1024xbf16, #tpu.memory_space<vmem>>, %arg3: memref<1x1024xf32, #tpu.memory_space<vmem>>, %arg4: memref<512x256xbf16, #tpu.memory_space<vmem>>, %arg5: memref<1x256xf32, #tpu.memory_space<vmem>>, %arg6: memref<256x128xbf16, #tpu.memory_space<vmem>>, %arg7: memref<1x128xf32, #tpu.memory_space<vmem>>, %arg8: memref<128x128xbf16, #tpu.memory_space<vmem>>, %arg9: memref<1x128xf32, #tpu.memory_space<vmem>>, %arg10: memref<512x256xbf16, #tpu.memory_space<vmem>>, %arg11: memref<1x256xf32, #tpu.memory_space<vmem>>, %arg12: memref<256x128xbf16, #tpu.memory_space<vmem>>, %arg13: memref<1x128xf32, #tpu.memory_space<vmem>>, %arg14: memref<1x128xf32, #tpu.memory_space<vmem>>, %arg15: memref<1x1xf32, #tpu.memory_space<vmem>>, %arg16: memref<128x128xf32, #tpu.memory_space<vmem>>) attributes {dimension_semantics = [#tpu.dimension_semantics<parallel>], iteration_bounds = array<i64: 2>, scalar_prefetch = 0 : i64, scratch_operands = 0 : i64, tpu.core_type = #tpu.core_type<tc>, window_params = [{transform_indices = @transform_0, window_bounds = array<i64: 128, 24>}, {pipeline_mode = #tpu.pipeline_mode<synchronous>, transform_indices = @transform_1, window_bounds = array<i64: 24, 1024>}, {pipeline_mode = #tpu.pipeline_mode<synchronous>, transform_indices = @transform_2, window_bounds = array<i64: 1, 1024>}, {pipeline_mode = #tpu.pipeline_mode<synchronous>, transform_indices = @transform_3, window_bounds = array<i64: 512, 256>}, {pipeline_mode = #tpu.pipeline_mode<synchronous>, transform_indices = @transform_4, window_bounds = array<i64: 1, 256>}, {pipeline_mode = #tpu.pipeline_mode<synchronous>, transform_indices = @transform_5, window_bounds = array<i64: 256, 128>}, {pipeline_mode = #tpu.pipeline_mode<synchronous>, transform_indices = @transform_6, window_bounds = array<i64: 1, 128>}, {pipeline_mode = #tpu.pipeline_mode<synchronous>, transform_indices = @transform_7, window_bounds = array<i64: 128, 128>}, {pipeline_mode = #tpu.pipeline_mode<synchronous>, transform_indices = @transform_8, window_bounds = array<i64: 1, 128>}, {pipeline_mode = #tpu.pipeline_mode<synchronous>, transform_indices = @transform_9, window_bounds = array<i64: 512, 256>}, {pipeline_mode = #tpu.pipeline_mode<synchronous>, transform_indices = @transform_10, window_bounds = array<i64: 1, 256>}, {pipeline_mode = #tpu.pipeline_mode<synchronous>, transform_indices = @transform_11, window_bounds = array<i64: 256, 128>}, {pipeline_mode = #tpu.pipeline_mode<synchronous>, transform_indices = @transform_12, window_bounds = array<i64: 1, 128>}, {pipeline_mode = #tpu.pipeline_mode<synchronous>, transform_indices = @transform_13, window_bounds = array<i64: 1, 128>}, {pipeline_mode = #tpu.pipeline_mode<synchronous>, transform_indices = @transform_14, window_bounds = array<i64: 1, 1>}, {transform_indices = @transform_15, window_bounds = array<i64: 128, 128>}]} {
    %c0 = arith.constant 0 : index
    %c0_0 = arith.constant 0 : index
    %0 = vector.load %arg1[%c0, %c0_0] : memref<128x24xf32, #tpu.memory_space<vmem>>, vector<128x24xf32>
    %1 = arith.truncf %0 : vector<128x24xf32> to vector<128x24xbf16>
    %c0_1 = arith.constant 0 : index
    %c0_2 = arith.constant 0 : index
    %2 = vector.load %arg2[%c0_1, %c0_2] : memref<24x1024xbf16, #tpu.memory_space<vmem>>, vector<24x1024xbf16>
    %cst = arith.constant dense<0.000000e+00> : vector<128x1024xf32>
    %3 = tpu.matmul %1, %2, %cst {dimension_numbers = #tpu.dot_dimension_numbers<[1], [0], [0], [1], [0, 0, 1, 1], [], []>} : vector<128x24xbf16>, vector<24x1024xbf16>, vector<128x1024xf32> -> vector<128x1024xf32>
    %c0_3 = arith.constant 0 : index
    %c0_4 = arith.constant 0 : index
    %4 = vector.load %arg3[%c0_3, %c0_4] : memref<1x1024xf32, #tpu.memory_space<vmem>>, vector<1x1024xf32>
    %5 = vector.broadcast %4 : vector<1x1024xf32> to vector<128x1024xf32>
    %6 = arith.addf %3, %5 : vector<128x1024xf32>
    %cst_5 = arith.constant 0.000000e+00 : f32
    %7 = vector.broadcast %cst_5 : f32 to vector<128x1024xf32>
    %8 = arith.maximumf %6, %7 : vector<128x1024xf32>
    %9 = vector.extract_strided_slice %8 {offsets = [0, 0], sizes = [128, 512], strides = [1, 1]} : vector<128x1024xf32> to vector<128x512xf32>
    %cst_6 = arith.constant dense<0.000000e+00> : vector<128xf32>
    %10 = vector.multi_reduction <add>, %9, %cst_6 [1] : vector<128x512xf32> to vector<128xf32>
    %11 = vector.shape_cast %10 : vector<128xf32> to vector<128x1xf32>
    %cst_7 = arith.constant 5.120000e+02 : f32
    %12 = vector.broadcast %cst_7 : f32 to vector<128x1xf32>
    %13 = arith.divf %11, %12 : vector<128x1xf32>
    %14 = arith.mulf %9, %9 : vector<128x512xf32>
    %cst_8 = arith.constant dense<0.000000e+00> : vector<128xf32>
    %15 = vector.multi_reduction <add>, %14, %cst_8 [1] : vector<128x512xf32> to vector<128xf32>
    %16 = vector.shape_cast %15 : vector<128xf32> to vector<128x1xf32>
    %cst_9 = arith.constant 5.120000e+02 : f32
    %17 = vector.broadcast %cst_9 : f32 to vector<128x1xf32>
    %18 = arith.divf %16, %17 : vector<128x1xf32>
    %19 = arith.mulf %13, %13 : vector<128x1xf32>
    %20 = arith.subf %18, %19 : vector<128x1xf32>
    %cst_10 = arith.constant 0.000000e+00 : f32
    %21 = vector.broadcast %cst_10 : f32 to vector<128x1xf32>
    %22 = arith.maximumf %20, %21 : vector<128x1xf32>
    %23 = vector.broadcast %13 : vector<128x1xf32> to vector<128x512xf32>
    %24 = arith.subf %9, %23 : vector<128x512xf32>
    %cst_11 = arith.constant 9.99999974E-6 : f32
    %25 = vector.broadcast %cst_11 : f32 to vector<128x1xf32>
    %26 = arith.addf %22, %25 : vector<128x1xf32>
    %27 = math.rsqrt %26 : vector<128x1xf32>
    %28 = vector.broadcast %27 : vector<128x1xf32> to vector<128x512xf32>
    %29 = arith.mulf %24, %28 : vector<128x512xf32>
    %30 = vector.extract_strided_slice %8 {offsets = [0, 512], sizes = [128, 512], strides = [1, 1]} : vector<128x1024xf32> to vector<128x512xf32>
    %cst_12 = arith.constant dense<0.000000e+00> : vector<128xf32>
    %31 = vector.multi_reduction <add>, %30, %cst_12 [1] : vector<128x512xf32> to vector<128xf32>
    %32 = vector.shape_cast %31 : vector<128xf32> to vector<128x1xf32>
    %cst_13 = arith.constant 5.120000e+02 : f32
    %33 = vector.broadcast %cst_13 : f32 to vector<128x1xf32>
    %34 = arith.divf %32, %33 : vector<128x1xf32>
    %35 = arith.mulf %30, %30 : vector<128x512xf32>
    %cst_14 = arith.constant dense<0.000000e+00> : vector<128xf32>
    %36 = vector.multi_reduction <add>, %35, %cst_14 [1] : vector<128x512xf32> to vector<128xf32>
    %37 = vector.shape_cast %36 : vector<128xf32> to vector<128x1xf32>
    %cst_15 = arith.constant 5.120000e+02 : f32
    %38 = vector.broadcast %cst_15 : f32 to vector<128x1xf32>
    %39 = arith.divf %37, %38 : vector<128x1xf32>
    %40 = arith.mulf %34, %34 : vector<128x1xf32>
    %41 = arith.subf %39, %40 : vector<128x1xf32>
    %cst_16 = arith.constant 0.000000e+00 : f32
    %42 = vector.broadcast %cst_16 : f32 to vector<128x1xf32>
    %43 = arith.maximumf %41, %42 : vector<128x1xf32>
    %44 = vector.broadcast %34 : vector<128x1xf32> to vector<128x512xf32>
    %45 = arith.subf %30, %44 : vector<128x512xf32>
    %cst_17 = arith.constant 9.99999974E-6 : f32
    %46 = vector.broadcast %cst_17 : f32 to vector<128x1xf32>
    %47 = arith.addf %43, %46 : vector<128x1xf32>
    %48 = math.rsqrt %47 : vector<128x1xf32>
    %49 = vector.broadcast %48 : vector<128x1xf32> to vector<128x512xf32>
    %50 = arith.mulf %45, %49 : vector<128x512xf32>
    %51 = arith.truncf %29 : vector<128x512xf32> to vector<128x512xbf16>
    %c0_18 = arith.constant 0 : index
    %c0_19 = arith.constant 0 : index
    %52 = vector.load %arg4[%c0_18, %c0_19] : memref<512x256xbf16, #tpu.memory_space<vmem>>, vector<512x256xbf16>
    %cst_20 = arith.constant dense<0.000000e+00> : vector<128x256xf32>
    %53 = tpu.matmul %51, %52, %cst_20 {dimension_numbers = #tpu.dot_dimension_numbers<[1], [0], [0], [1], [0, 0, 1, 1], [], []>} : vector<128x512xbf16>, vector<512x256xbf16>, vector<128x256xf32> -> vector<128x256xf32>
    %c0_21 = arith.constant 0 : index
    %c0_22 = arith.constant 0 : index
    %54 = vector.load %arg5[%c0_21, %c0_22] : memref<1x256xf32, #tpu.memory_space<vmem>>, vector<1x256xf32>
    %55 = vector.broadcast %54 : vector<1x256xf32> to vector<128x256xf32>
    %56 = arith.addf %53, %55 : vector<128x256xf32>
    %cst_23 = arith.constant 0.000000e+00 : f32
    %57 = vector.broadcast %cst_23 : f32 to vector<128x256xf32>
    %58 = arith.maximumf %56, %57 : vector<128x256xf32>
    %cst_24 = arith.constant dense<0.000000e+00> : vector<128xf32>
    %59 = vector.multi_reduction <add>, %58, %cst_24 [1] : vector<128x256xf32> to vector<128xf32>
    %60 = vector.shape_cast %59 : vector<128xf32> to vector<128x1xf32>
    %cst_25 = arith.constant 2.560000e+02 : f32
    %61 = vector.broadcast %cst_25 : f32 to vector<128x1xf32>
    %62 = arith.divf %60, %61 : vector<128x1xf32>
    %63 = arith.mulf %58, %58 : vector<128x256xf32>
    %cst_26 = arith.constant dense<0.000000e+00> : vector<128xf32>
    %64 = vector.multi_reduction <add>, %63, %cst_26 [1] : vector<128x256xf32> to vector<128xf32>
    %65 = vector.shape_cast %64 : vector<128xf32> to vector<128x1xf32>
    %cst_27 = arith.constant 2.560000e+02 : f32
    %66 = vector.broadcast %cst_27 : f32 to vector<128x1xf32>
    %67 = arith.divf %65, %66 : vector<128x1xf32>
    %68 = arith.mulf %62, %62 : vector<128x1xf32>
    %69 = arith.subf %67, %68 : vector<128x1xf32>
    %cst_28 = arith.constant 0.000000e+00 : f32
    %70 = vector.broadcast %cst_28 : f32 to vector<128x1xf32>
    %71 = arith.maximumf %69, %70 : vector<128x1xf32>
    %72 = vector.broadcast %62 : vector<128x1xf32> to vector<128x256xf32>
    %73 = arith.subf %58, %72 : vector<128x256xf32>
    %cst_29 = arith.constant 9.99999974E-6 : f32
    %74 = vector.broadcast %cst_29 : f32 to vector<128x1xf32>
    %75 = arith.addf %71, %74 : vector<128x1xf32>
    %76 = math.rsqrt %75 : vector<128x1xf32>
    %77 = vector.broadcast %76 : vector<128x1xf32> to vector<128x256xf32>
    %78 = arith.mulf %73, %77 : vector<128x256xf32>
    %79 = arith.truncf %50 : vector<128x512xf32> to vector<128x512xbf16>
    %c0_30 = arith.constant 0 : index
    %c0_31 = arith.constant 0 : index
    %80 = vector.load %arg10[%c0_30, %c0_31] : memref<512x256xbf16, #tpu.memory_space<vmem>>, vector<512x256xbf16>
    %cst_32 = arith.constant dense<0.000000e+00> : vector<128x256xf32>
    %81 = tpu.matmul %79, %80, %cst_32 {dimension_numbers = #tpu.dot_dimension_numbers<[1], [0], [0], [1], [0, 0, 1, 1], [], []>} : vector<128x512xbf16>, vector<512x256xbf16>, vector<128x256xf32> -> vector<128x256xf32>
    %c0_33 = arith.constant 0 : index
    %c0_34 = arith.constant 0 : index
    %82 = vector.load %arg11[%c0_33, %c0_34] : memref<1x256xf32, #tpu.memory_space<vmem>>, vector<1x256xf32>
    %83 = vector.broadcast %82 : vector<1x256xf32> to vector<128x256xf32>
    %84 = arith.addf %81, %83 : vector<128x256xf32>
    %cst_35 = arith.constant 0.000000e+00 : f32
    %85 = vector.broadcast %cst_35 : f32 to vector<128x256xf32>
    %86 = arith.maximumf %84, %85 : vector<128x256xf32>
    %cst_36 = arith.constant dense<0.000000e+00> : vector<128xf32>
    %87 = vector.multi_reduction <add>, %86, %cst_36 [1] : vector<128x256xf32> to vector<128xf32>
    %88 = vector.shape_cast %87 : vector<128xf32> to vector<128x1xf32>
    %cst_37 = arith.constant 2.560000e+02 : f32
    %89 = vector.broadcast %cst_37 : f32 to vector<128x1xf32>
    %90 = arith.divf %88, %89 : vector<128x1xf32>
    %91 = arith.mulf %86, %86 : vector<128x256xf32>
    %cst_38 = arith.constant dense<0.000000e+00> : vector<128xf32>
    %92 = vector.multi_reduction <add>, %91, %cst_38 [1] : vector<128x256xf32> to vector<128xf32>
    %93 = vector.shape_cast %92 : vector<128xf32> to vector<128x1xf32>
    %cst_39 = arith.constant 2.560000e+02 : f32
    %94 = vector.broadcast %cst_39 : f32 to vector<128x1xf32>
    %95 = arith.divf %93, %94 : vector<128x1xf32>
    %96 = arith.mulf %90, %90 : vector<128x1xf32>
    %97 = arith.subf %95, %96 : vector<128x1xf32>
    %cst_40 = arith.constant 0.000000e+00 : f32
    %98 = vector.broadcast %cst_40 : f32 to vector<128x1xf32>
    %99 = arith.maximumf %97, %98 : vector<128x1xf32>
    %100 = vector.broadcast %90 : vector<128x1xf32> to vector<128x256xf32>
    %101 = arith.subf %86, %100 : vector<128x256xf32>
    %cst_41 = arith.constant 9.99999974E-6 : f32
    %102 = vector.broadcast %cst_41 : f32 to vector<128x1xf32>
    %103 = arith.addf %99, %102 : vector<128x1xf32>
    %104 = math.rsqrt %103 : vector<128x1xf32>
    %105 = vector.broadcast %104 : vector<128x1xf32> to vector<128x256xf32>
    %106 = arith.mulf %101, %105 : vector<128x256xf32>
    %107 = arith.truncf %78 : vector<128x256xf32> to vector<128x256xbf16>
    %c0_42 = arith.constant 0 : index
    %c0_43 = arith.constant 0 : index
    %108 = vector.load %arg6[%c0_42, %c0_43] : memref<256x128xbf16, #tpu.memory_space<vmem>>, vector<256x128xbf16>
    %cst_44 = arith.constant dense<0.000000e+00> : vector<128x128xf32>
    %109 = tpu.matmul %107, %108, %cst_44 {dimension_numbers = #tpu.dot_dimension_numbers<[1], [0], [0], [1], [0, 0, 1, 1], [], []>} : vector<128x256xbf16>, vector<256x128xbf16>, vector<128x128xf32> -> vector<128x128xf32>
    %c0_45 = arith.constant 0 : index
    %c0_46 = arith.constant 0 : index
    %110 = vector.load %arg7[%c0_45, %c0_46] : memref<1x128xf32, #tpu.memory_space<vmem>>, vector<1x128xf32>
    %111 = vector.broadcast %110 : vector<1x128xf32> to vector<128x128xf32>
    %112 = arith.addf %109, %111 : vector<128x128xf32>
    %cst_47 = arith.constant 0.000000e+00 : f32
    %113 = vector.broadcast %cst_47 : f32 to vector<128x128xf32>
    %114 = arith.maximumf %112, %113 : vector<128x128xf32>
    %cst_48 = arith.constant dense<0.000000e+00> : vector<128xf32>
    %115 = vector.multi_reduction <add>, %114, %cst_48 [1] : vector<128x128xf32> to vector<128xf32>
    %116 = vector.shape_cast %115 : vector<128xf32> to vector<128x1xf32>
    %cst_49 = arith.constant 1.280000e+02 : f32
    %117 = vector.broadcast %cst_49 : f32 to vector<128x1xf32>
    %118 = arith.divf %116, %117 : vector<128x1xf32>
    %119 = arith.mulf %114, %114 : vector<128x128xf32>
    %cst_50 = arith.constant dense<0.000000e+00> : vector<128xf32>
    %120 = vector.multi_reduction <add>, %119, %cst_50 [1] : vector<128x128xf32> to vector<128xf32>
    %121 = vector.shape_cast %120 : vector<128xf32> to vector<128x1xf32>
    %cst_51 = arith.constant 1.280000e+02 : f32
    %122 = vector.broadcast %cst_51 : f32 to vector<128x1xf32>
    %123 = arith.divf %121, %122 : vector<128x1xf32>
    %124 = arith.mulf %118, %118 : vector<128x1xf32>
    %125 = arith.subf %123, %124 : vector<128x1xf32>
    %cst_52 = arith.constant 0.000000e+00 : f32
    %126 = vector.broadcast %cst_52 : f32 to vector<128x1xf32>
    %127 = arith.maximumf %125, %126 : vector<128x1xf32>
    %128 = vector.broadcast %118 : vector<128x1xf32> to vector<128x128xf32>
    %129 = arith.subf %114, %128 : vector<128x128xf32>
    %cst_53 = arith.constant 9.99999974E-6 : f32
    %130 = vector.broadcast %cst_53 : f32 to vector<128x1xf32>
    %131 = arith.addf %127, %130 : vector<128x1xf32>
    %132 = math.rsqrt %131 : vector<128x1xf32>
    %133 = vector.broadcast %132 : vector<128x1xf32> to vector<128x128xf32>
    %134 = arith.mulf %129, %133 : vector<128x128xf32>
    %135 = arith.truncf %106 : vector<128x256xf32> to vector<128x256xbf16>
    %c0_54 = arith.constant 0 : index
    %c0_55 = arith.constant 0 : index
    %136 = vector.load %arg12[%c0_54, %c0_55] : memref<256x128xbf16, #tpu.memory_space<vmem>>, vector<256x128xbf16>
    %cst_56 = arith.constant dense<0.000000e+00> : vector<128x128xf32>
    %137 = tpu.matmul %135, %136, %cst_56 {dimension_numbers = #tpu.dot_dimension_numbers<[1], [0], [0], [1], [0, 0, 1, 1], [], []>} : vector<128x256xbf16>, vector<256x128xbf16>, vector<128x128xf32> -> vector<128x128xf32>
    %c0_57 = arith.constant 0 : index
    %c0_58 = arith.constant 0 : index
    %138 = vector.load %arg13[%c0_57, %c0_58] : memref<1x128xf32, #tpu.memory_space<vmem>>, vector<1x128xf32>
    %139 = vector.broadcast %138 : vector<1x128xf32> to vector<128x128xf32>
    %140 = arith.addf %137, %139 : vector<128x128xf32>
    %cst_59 = arith.constant 0.000000e+00 : f32
    %141 = vector.broadcast %cst_59 : f32 to vector<128x128xf32>
    %142 = arith.maximumf %140, %141 : vector<128x128xf32>
    %cst_60 = arith.constant dense<0.000000e+00> : vector<128xf32>
    %143 = vector.multi_reduction <add>, %142, %cst_60 [1] : vector<128x128xf32> to vector<128xf32>
    %144 = vector.shape_cast %143 : vector<128xf32> to vector<128x1xf32>
    %cst_61 = arith.constant 1.280000e+02 : f32
    %145 = vector.broadcast %cst_61 : f32 to vector<128x1xf32>
    %146 = arith.divf %144, %145 : vector<128x1xf32>
    %147 = arith.mulf %142, %142 : vector<128x128xf32>
    %cst_62 = arith.constant dense<0.000000e+00> : vector<128xf32>
    %148 = vector.multi_reduction <add>, %147, %cst_62 [1] : vector<128x128xf32> to vector<128xf32>
    %149 = vector.shape_cast %148 : vector<128xf32> to vector<128x1xf32>
    %cst_63 = arith.constant 1.280000e+02 : f32
    %150 = vector.broadcast %cst_63 : f32 to vector<128x1xf32>
    %151 = arith.divf %149, %150 : vector<128x1xf32>
    %152 = arith.mulf %146, %146 : vector<128x1xf32>
    %153 = arith.subf %151, %152 : vector<128x1xf32>
    %cst_64 = arith.constant 0.000000e+00 : f32
    %154 = vector.broadcast %cst_64 : f32 to vector<128x1xf32>
    %155 = arith.maximumf %153, %154 : vector<128x1xf32>
    %156 = vector.broadcast %146 : vector<128x1xf32> to vector<128x128xf32>
    %157 = arith.subf %142, %156 : vector<128x128xf32>
    %cst_65 = arith.constant 9.99999974E-6 : f32
    %158 = vector.broadcast %cst_65 : f32 to vector<128x1xf32>
    %159 = arith.addf %155, %158 : vector<128x1xf32>
    %160 = math.rsqrt %159 : vector<128x1xf32>
    %161 = vector.broadcast %160 : vector<128x1xf32> to vector<128x128xf32>
    %162 = arith.mulf %157, %161 : vector<128x128xf32>
    %163 = arith.truncf %134 : vector<128x128xf32> to vector<128x128xbf16>
    %c0_66 = arith.constant 0 : index
    %c0_67 = arith.constant 0 : index
    %164 = vector.load %arg8[%c0_66, %c0_67] : memref<128x128xbf16, #tpu.memory_space<vmem>>, vector<128x128xbf16>
    %cst_68 = arith.constant dense<0.000000e+00> : vector<128x128xf32>
    %165 = tpu.matmul %163, %164, %cst_68 {dimension_numbers = #tpu.dot_dimension_numbers<[1], [0], [0], [1], [0, 0, 1, 1], [], []>} : vector<128x128xbf16>, vector<128x128xbf16>, vector<128x128xf32> -> vector<128x128xf32>
    %c0_69 = arith.constant 0 : index
    %c0_70 = arith.constant 0 : index
    %166 = vector.load %arg9[%c0_69, %c0_70] : memref<1x128xf32, #tpu.memory_space<vmem>>, vector<1x128xf32>
    %167 = vector.broadcast %166 : vector<1x128xf32> to vector<128x128xf32>
    %168 = arith.addf %165, %167 : vector<128x128xf32>
    %cst_71 = arith.constant dense<0xFF800000> : vector<128xf32>
    %169 = vector.multi_reduction <maximumf>, %168, %cst_71 [1] : vector<128x128xf32> to vector<128xf32>
    %170 = vector.shape_cast %169 : vector<128xf32> to vector<128x1xf32>
    %171 = vector.broadcast %170 : vector<128x1xf32> to vector<128x128xf32>
    %172 = arith.subf %168, %171 : vector<128x128xf32>
    %173 = math.exp %172 : vector<128x128xf32>
    %cst_72 = arith.constant dense<0.000000e+00> : vector<128xf32>
    %174 = vector.multi_reduction <add>, %173, %cst_72 [1] : vector<128x128xf32> to vector<128xf32>
    %175 = vector.shape_cast %174 : vector<128xf32> to vector<128x1xf32>
    %cst_73 = arith.constant 1.000000e+00 : f32
    %176 = vector.broadcast %cst_73 : f32 to vector<128x1xf32>
    %177 = arith.divf %176, %175 : vector<128x1xf32>
    %178 = vector.broadcast %177 : vector<128x1xf32> to vector<128x128xf32>
    %179 = arith.mulf %173, %178 : vector<128x128xf32>
    %c0_74 = arith.constant 0 : index
    %c0_75 = arith.constant 0 : index
    %180 = vector.load %arg14[%c0_74, %c0_75] : memref<1x128xf32, #tpu.memory_space<vmem>>, vector<1x128xf32>
    %181 = vector.broadcast %180 : vector<1x128xf32> to vector<128x128xf32>
    %182 = arith.mulf %162, %181 : vector<128x128xf32>
    %cst_76 = arith.constant dense<0.000000e+00> : vector<128xf32>
    %183 = vector.multi_reduction <add>, %182, %cst_76 [1] : vector<128x128xf32> to vector<128xf32>
    %184 = vector.shape_cast %183 : vector<128xf32> to vector<128x1xf32>
    %c0_77 = arith.constant 0 : index
    %c0_78 = arith.constant 0 : index
    %185 = vector.load %arg15[%c0_77, %c0_78] : memref<1x1xf32, #tpu.memory_space<vmem>>, vector<1x1xf32>
    %186 = vector.broadcast %185 : vector<1x1xf32> to vector<128x1xf32>
    %187 = arith.addf %184, %186 : vector<128x1xf32>
    %188 = tpu.iota {dimensions = array<i32: 1>} : vector<128x128xi32>
    %c127_i32 = arith.constant 127 : i32
    %189 = vector.broadcast %c127_i32 : i32 to vector<128x128xi32>
    %190 = arith.cmpi eq, %188, %189 : vector<128x128xi32>
    %191 = vector.shape_cast %187 : vector<128x1xf32> to vector<128x1xf32>
    %192 = vector.broadcast %191 : vector<128x1xf32> to vector<128x128xf32>
    %193 = arith.select %190, %192, %179 : vector<128x128xi1>, vector<128x128xf32>
    %c0_79 = arith.constant 0 : index
    %c0_80 = arith.constant 0 : index
    %194 = vector.load %arg16[%c0_79, %c0_80] : memref<128x128xf32, #tpu.memory_space<vmem>>, vector<128x128xf32>
    tpu.vector_store %arg16[%c0_79, %c0_80], %193 {strides = array<i32>} : memref<128x128xf32, #tpu.memory_space<vmem>>, vector<128x128xf32>,
    return
  }
  func.func @transform_0(%arg0: i32) -> (i32, i32) {
    %c0_i32 = arith.constant 0 : i32
    %c0_i32_0 = arith.constant 0 : i32
    return %arg0, %c0_i32 : i32, i32
  }
  func.func @transform_1(%arg0: i32) -> (i32, i32) {
    %c0_i32 = arith.constant 0 : i32
    %c0_i32_0 = arith.constant 0 : i32
    %c0_i32_1 = arith.constant 0 : i32
    return %c0_i32, %c0_i32_0 : i32, i32
  }
  func.func @transform_2(%arg0: i32) -> (i32, i32) {
    %c0_i32 = arith.constant 0 : i32
    %c0_i32_0 = arith.constant 0 : i32
    %c0_i32_1 = arith.constant 0 : i32
    return %c0_i32, %c0_i32_0 : i32, i32
  }
  func.func @transform_3(%arg0: i32) -> (i32, i32) {
    %c0_i32 = arith.constant 0 : i32
    %c0_i32_0 = arith.constant 0 : i32
    %c0_i32_1 = arith.constant 0 : i32
    return %c0_i32, %c0_i32_0 : i32, i32
  }
  func.func @transform_4(%arg0: i32) -> (i32, i32) {
    %c0_i32 = arith.constant 0 : i32
    %c0_i32_0 = arith.constant 0 : i32
    %c0_i32_1 = arith.constant 0 : i32
    return %c0_i32, %c0_i32_0 : i32, i32
  }
  func.func @transform_5(%arg0: i32) -> (i32, i32) {
    %c0_i32 = arith.constant 0 : i32
    %c0_i32_0 = arith.constant 0 : i32
    %c0_i32_1 = arith.constant 0 : i32
    return %c0_i32, %c0_i32_0 : i32, i32
  }
  func.func @transform_6(%arg0: i32) -> (i32, i32) {
    %c0_i32 = arith.constant 0 : i32
    %c0_i32_0 = arith.constant 0 : i32
    %c0_i32_1 = arith.constant 0 : i32
    return %c0_i32, %c0_i32_0 : i32, i32
  }
  func.func @transform_7(%arg0: i32) -> (i32, i32) {
    %c0_i32 = arith.constant 0 : i32
    %c0_i32_0 = arith.constant 0 : i32
    %c0_i32_1 = arith.constant 0 : i32
    return %c0_i32, %c0_i32_0 : i32, i32
  }
  func.func @transform_8(%arg0: i32) -> (i32, i32) {
    %c0_i32 = arith.constant 0 : i32
    %c0_i32_0 = arith.constant 0 : i32
    %c0_i32_1 = arith.constant 0 : i32
    return %c0_i32, %c0_i32_0 : i32, i32
  }
  func.func @transform_9(%arg0: i32) -> (i32, i32) {
    %c0_i32 = arith.constant 0 : i32
    %c0_i32_0 = arith.constant 0 : i32
    %c0_i32_1 = arith.constant 0 : i32
    return %c0_i32, %c0_i32_0 : i32, i32
  }
  func.func @transform_10(%arg0: i32) -> (i32, i32) {
    %c0_i32 = arith.constant 0 : i32
    %c0_i32_0 = arith.constant 0 : i32
    %c0_i32_1 = arith.constant 0 : i32
    return %c0_i32, %c0_i32_0 : i32, i32
  }
  func.func @transform_11(%arg0: i32) -> (i32, i32) {
    %c0_i32 = arith.constant 0 : i32
    %c0_i32_0 = arith.constant 0 : i32
    %c0_i32_1 = arith.constant 0 : i32
    return %c0_i32, %c0_i32_0 : i32, i32
  }
  func.func @transform_12(%arg0: i32) -> (i32, i32) {
    %c0_i32 = arith.constant 0 : i32
    %c0_i32_0 = arith.constant 0 : i32
    %c0_i32_1 = arith.constant 0 : i32
    return %c0_i32, %c0_i32_0 : i32, i32
  }
  func.func @transform_13(%arg0: i32) -> (i32, i32) {
    %c0_i32 = arith.constant 0 : i32
    %c0_i32_0 = arith.constant 0 : i32
    %c0_i32_1 = arith.constant 0 : i32
    return %c0_i32, %c0_i32_0 : i32, i32
  }
  func.func @transform_14(%arg0: i32) -> (i32, i32) {
    %c0_i32 = arith.constant 0 : i32
    %c0_i32_0 = arith.constant 0 : i32
    %c0_i32_1 = arith.constant 0 : i32
    return %c0_i32, %c0_i32_0 : i32, i32
  }
  func.func @transform_15(%arg0: i32) -> (i32, i32) {
    %c0_i32 = arith.constant 0 : i32
    %c0_i32_0 = arith.constant 0 : i32
    return %arg0, %c0_i32 : i32, i32
  }
}

</mosaic_0001>

<llo_original>
// kernel: actor_critic_forward.1
$region0: #{actor_critic_forward.1}
  #allocation0 [shape = 'u32[]', space=smem, size = 0x4, offset = 0x4, fixed_abs, tag = 'smem constant byte address 0x4 - core index']
  #allocation1 [shape = 'u32[72,128]{1,0:T(1,128)}', space=vmem, size = 0x9000, scoped, tag = 'internal scratch']
  #allocation2 [shape = 'f32[1,1]{1,0:T(1,128)S(1)}', space=vmem, size = 0x200, scoped, tag = 'scoped memory for actor_critic_forward.1']
  %s0 = inlined_call_operand.vmem [shape: f32[256,24], index: 0, kind: input, shape index: {}]
  %s1 = inlined_call_operand.hbm [shape: bf16[24,1024], index: 1, kind: input, shape index: {}]
  %s2 = inlined_call_operand.vmem [shape: f32[1,1024], index: 2, kind: input, shape index: {}]
  %s3 = inlined_call_operand.hbm [shape: bf16[512,256], index: 3, kind: input, shape index: {}]
  %s4 = inlined_call_operand.vmem [shape: f32[1,256], index: 4, kind: input, shape index: {}]
  %s5 = inlined_call_operand.vmem [shape: bf16[256,128], index: 5, kind: input, shape index: {}]
  %s6 = inlined_call_operand.vmem [shape: f32[1,128], index: 6, kind: input, shape index: {}]
  %s7 = inlined_call_operand.hbm [shape: bf16[128,128], index: 7, kind: input, shape index: {}]
  %s8 = inlined_call_operand.vmem [shape: f32[1,128], index: 8, kind: input, shape index: {}]
  %s9 = inlined_call_operand.hbm [shape: bf16[512,256], index: 9, kind: input, shape index: {}]
  %s10 = inlined_call_operand.vmem [shape: f32[1,256], index: 10, kind: input, shape index: {}]
  %s11 = inlined_call_operand.vmem [shape: bf16[256,128], index: 11, kind: input, shape index: {}]
  %s12 = inlined_call_operand.vmem [shape: f32[1,128], index: 12, kind: input, shape index: {}]
  %s13 = inlined_call_operand.vmem [shape: f32[1,128], index: 13, kind: input, shape index: {}]
  %s14 = inlined_call_operand.<no memory space> [shape: f32[1,1], index: 14, kind: input, shape index: {}]
  %s15 = inlined_call_operand.vmem [shape: f32[256,128], index: 15, kind: output, shape index: {}]
  %s16 = sld [smem:[#allocation0]]
  $region109: #{actor_critic_forward.1} parent=0
    _
  %s18 = ssub.s32 1, %s16
  %s19 = scalar_select 0, %s18, %s16
  %v20 = vstv %s14
  %21 = vst [vmem:[#allocation2] sm:$0x1] %v20
  $region1: #{actor_critic_forward.1} parent=0
    #allocation3 [shape = 'u8[49152]{0}', space=vmem, size = 0xc000, scoped, tag = 'input window, operand 1, single buffered']
    #allocation4 [shape = 's32[2]{0}', space=sflag, size = 0x8, scoped, tag = 'scoped memory for actor_critic_forward.1']
    #allocation5 [shape = 'u8[262144]{0}', space=vmem, size = 0x40000, scoped, tag = 'input window, operand 3, single buffered']
    #allocation6 [shape = 's32[1]{0}', space=sflag, size = 0x4, scoped, tag = 'scoped memory for actor_critic_forward.1']
    #allocation7 [shape = 'u8[32768]{0}', space=vmem, size = 0x8000, scoped, tag = 'input window, operand 7, single buffered']
    #allocation8 [shape = 'u8[262144]{0}', space=vmem, size = 0x40000, scoped, tag = 'input window, operand 9, single buffered']
    #allocation9 [shape = 's32[1]{0}', space=sflag, size = 0x4, scoped, tag = 'scoped memory for actor_critic_forward.1']
    %22 = vsyncpa [#allocation4], 0
    %23 = vsyncpa [#allocation6], 0
    %24 = vsyncpa [#allocation9], 0
    loop: start=0, step=1, limit=4
    $region2: #{actor_critic_forward.1} parent=1 // loop_pre_header
      _
    $region3: #{actor_critic_forward.1} parent=1 // loop_header
      %s26 = sphi 0, %s30
      %p27 = scmp.ge.s32.totalorder %s26, 4
      %s36 = sphi 0, %s38
      %s39 = sphi 0, %s36
      %s40 = sphi 0, %s39
      %s56 = sphi 0, %s40
      %s60 = sphi 0, %s60
      %s62 = sphi 0, %s60
      %s63 = sphi 0, %s62
      %s77 = sphi 0, %s63
      %s81 = sphi 0, %s81
      %s83 = sphi 0, %s81
      %s84 = sphi 0, %s83
      %s98 = sphi 0, %s84
      %s102 = sphi 0, %s102
      %s104 = sphi 0, %s102
      %s105 = sphi 0, %s104
      %s119 = sphi 0, %s105
      %s123 = sphi 0, %s123
      %s125 = sphi 0, %s123
      %s126 = sphi 0, %s125
      %s140 = sphi 0, %s126
      %s144 = sphi 0, %s144
      %s146 = sphi 0, %s144
      %s147 = sphi 0, %s146
      %s161 = sphi 0, %s147
      %s165 = sphi 0, %s165
      %s167 = sphi 0, %s165
      %s168 = sphi 0, %s167
      %s182 = sphi 0, %s168
      %s186 = sphi 0, %s186
      %s188 = sphi 0, %s186
      %s189 = sphi 0, %s188
      %s203 = sphi 0, %s189
      %s207 = sphi 0, %s207
      %s209 = sphi 0, %s207
      %s210 = sphi 0, %s209
      %s224 = sphi 0, %s210
      %s228 = sphi 0, %s228
      %s230 = sphi 0, %s228
      %s231 = sphi 0, %s230
      %s245 = sphi 0, %s231
      %s249 = sphi 0, %s249
      %s251 = sphi 0, %s249
      %s252 = sphi 0, %s251
      %s266 = sphi 0, %s252
      %s270 = sphi 0, %s270
      %s272 = sphi 0, %s270
      %s273 = sphi 0, %s272
      %s287 = sphi 0, %s273
      %s291 = sphi 0, %s291
      %s293 = sphi 0, %s291
      %s294 = sphi 0, %s293
      %s308 = sphi 0, %s294
      %s312 = sphi 0, %s312
      %s314 = sphi 0, %s312
      %s315 = sphi 0, %s314
      %s329 = sphi 0, %s315
      %s333 = sphi 0, %s333
      %s335 = sphi 0, %s333
      %s336 = sphi 0, %s335
      %s350 = sphi 0, %s336
      %s356 = sphi 0, %s358
      %s359 = sphi 0, %s356
      %s360 = sphi 0, %s359
      %s376 = sphi 0, %s360
    $region4: #{actor_critic_forward.1} parent=1 // loop_header_branch
      %29 = sbr.rel (%p27) target = $region8
    $region5: #{actor_critic_forward.1} parent=1 // loop_body
      %s31 = ssub.s32 %s26, 1
      %s32 = ssub.s32 %s26, 2
      %s33 = sadd.s32 %s26, 1
      %s34 = ssub.s32 %s26, %s33
      %p35 = scmp.eq.s32.totalorder %s34, 0
      %s37 = sadd.s32 %s36, 1
      %s38 = scalar_select %p35, %s36, %s37
      %p41 = pneg %p35
      %p42 = scmp.eq.s32.totalorder %s26, 1
      %p43 = por %p41, %p42
      %p44 = scmp.ne.s32.totalorder %s36, %s39
      %p45 = scmp.eq.s32.totalorder %s26, 0
      %p46 = por %p44, %p45
      %p47 = scmp.ne.s32.totalorder %s36, %s39
      %p48 = scmp.eq.s32.totalorder %s31, 1
      %p49 = por %p47, %p48
      %p50 = scmp.ne.s32.totalorder %s39, %s40
      %p51 = scmp.eq.s32.totalorder %s31, 0
      %p52 = por %p50, %p51
      %p53 = scmp.ne.s32.totalorder %s39, %s40
      %p54 = scmp.eq.s32.totalorder %s32, 1
      %p55 = por %p53, %p54
      %p57 = scmp.ne.s32.totalorder %s40, %s56
      %p58 = scmp.eq.s32.totalorder %s32, 0
      %p59 = por %p57, %p58
      %s61 = sadd.s32 %s60, 1
      %p64 = scmp.eq.s32.totalorder %s26, 1
      %p65 = scmp.ne.s32.totalorder %s60, %s62
      %p66 = scmp.eq.s32.totalorder %s26, 0
      %p67 = por %p65, %p66
      %p68 = scmp.ne.s32.totalorder %s60, %s62
      %p69 = scmp.eq.s32.totalorder %s31, 1
      %p70 = por %p68, %p69
      %p71 = scmp.ne.s32.totalorder %s62, %s63
      %p72 = scmp.eq.s32.totalorder %s31, 0
      %p73 = por %p71, %p72
      %p74 = scmp.ne.s32.totalorder %s62, %s63
      %p75 = scmp.eq.s32.totalorder %s32, 1
      %p76 = por %p74, %p75
      %p78 = scmp.ne.s32.totalorder %s63, %s77
      %p79 = scmp.eq.s32.totalorder %s32, 0
      %p80 = por %p78, %p79
      %s82 = sadd.s32 %s81, 1
      %p85 = scmp.eq.s32.totalorder %s26, 1
      %p86 = scmp.ne.s32.totalorder %s81, %s83
      %p87 = scmp.eq.s32.totalorder %s26, 0
      %p88 = por %p86, %p87
      %p89 = scmp.ne.s32.totalorder %s81, %s83
      %p90 = scmp.eq.s32.totalorder %s31, 1
      %p91 = por %p89, %p90
      %p92 = scmp.ne.s32.totalorder %s83, %s84
      %p93 = scmp.eq.s32.totalorder %s31, 0
      %p94 = por %p92, %p93
      %p95 = scmp.ne.s32.totalorder %s83, %s84
      %p96 = scmp.eq.s32.totalorder %s32, 1
      %p97 = por %p95, %p96
      %p99 = scmp.ne.s32.totalorder %s84, %s98
      %p100 = scmp.eq.s32.totalorder %s32, 0
      %p101 = por %p99, %p100
      %s103 = sadd.s32 %s102, 1
      %p106 = scmp.eq.s32.totalorder %s26, 1
      %p107 = scmp.ne.s32.totalorder %s102, %s104
      %p108 = scmp.eq.s32.totalorder %s26, 0
      %p109 = por %p107, %p108
      %p110 = scmp.ne.s32.totalorder %s102, %s104
      %p111 = scmp.eq.s32.totalorder %s31, 1
      %p112 = por %p110, %p111
      %p113 = scmp.ne.s32.totalorder %s104, %s105
      %p114 = scmp.eq.s32.totalorder %s31, 0
      %p115 = por %p113, %p114
      %p116 = scmp.ne.s32.totalorder %s104, %s105
      %p117 = scmp.eq.s32.totalorder %s32, 1
      %p118 = por %p116, %p117
      %p120 = scmp.ne.s32.totalorder %s105, %s119
      %p121 = scmp.eq.s32.totalorder %s32, 0
      %p122 = por %p120, %p121
      %s124 = sadd.s32 %s123, 1
      %p127 = scmp.eq.s32.totalorder %s26, 1
      %p128 = scmp.ne.s32.totalorder %s123, %s125
      %p129 = scmp.eq.s32.totalorder %s26, 0
      %p130 = por %p128, %p129
      %p131 = scmp.ne.s32.totalorder %s123, %s125
      %p132 = scmp.eq.s32.totalorder %s31, 1
      %p133 = por %p131, %p132
      %p134 = scmp.ne.s32.totalorder %s125, %s126
      %p135 = scmp.eq.s32.totalorder %s31, 0
      %p136 = por %p134, %p135
      %p137 = scmp.ne.s32.totalorder %s125, %s126
      %p138 = scmp.eq.s32.totalorder %s32, 1
      %p139 = por %p137, %p138
      %p141 = scmp.ne.s32.totalorder %s126, %s140
      %p142 = scmp.eq.s32.totalorder %s32, 0
      %p143 = por %p141, %p142
      %s145 = sadd.s32 %s144, 1
      %p148 = scmp.eq.s32.totalorder %s26, 1
      %p149 = scmp.ne.s32.totalorder %s144, %s146
      %p150 = scmp.eq.s32.totalorder %s26, 0
      %p151 = por %p149, %p150
      %p152 = scmp.ne.s32.totalorder %s144, %s146
      %p153 = scmp.eq.s32.totalorder %s31, 1
      %p154 = por %p152, %p153
      %p155 = scmp.ne.s32.totalorder %s146, %s147
      %p156 = scmp.eq.s32.totalorder %s31, 0
      %p157 = por %p155, %p156
      %p158 = scmp.ne.s32.totalorder %s146, %s147
      %p159 = scmp.eq.s32.totalorder %s32, 1
      %p160 = por %p158, %p159
      %p162 = scmp.ne.s32.totalorder %s147, %s161
      %p163 = scmp.eq.s32.totalorder %s32, 0
      %p164 = por %p162, %p163
      %s166 = sadd.s32 %s165, 1
      %p169 = scmp.eq.s32.totalorder %s26, 1
      %p170 = scmp.ne.s32.totalorder %s165, %s167
      %p171 = scmp.eq.s32.totalorder %s26, 0
      %p172 = por %p170, %p171
      %p173 = scmp.ne.s32.totalorder %s165, %s167
      %p174 = scmp.eq.s32.totalorder %s31, 1
      %p175 = por %p173, %p174
      %p176 = scmp.ne.s32.totalorder %s167, %s168
      %p177 = scmp.eq.s32.totalorder %s31, 0
      %p178 = por %p176, %p177
      %p179 = scmp.ne.s32.totalorder %s167, %s168
      %p180 = scmp.eq.s32.totalorder %s32, 1
      %p181 = por %p179, %p180
      %p183 = scmp.ne.s32.totalorder %s168, %s182
      %p184 = scmp.eq.s32.totalorder %s32, 0
      %p185 = por %p183, %p184
      %s187 = sadd.s32 %s186, 1
      %p190 = scmp.eq.s32.totalorder %s26, 1
      %p191 = scmp.ne.s32.totalorder %s186, %s188
      %p192 = scmp.eq.s32.totalorder %s26, 0
      %p193 = por %p191, %p192
      %p194 = scmp.ne.s32.totalorder %s186, %s188
      %p195 = scmp.eq.s32.totalorder %s31, 1
      %p196 = por %p194, %p195
      %p197 = scmp.ne.s32.totalorder %s188, %s189
      %p198 = scmp.eq.s32.totalorder %s31, 0
      %p199 = por %p197, %p198
      %p200 = scmp.ne.s32.totalorder %s188, %s189
      %p201 = scmp.eq.s32.totalorder %s32, 1
      %p202 = por %p200, %p201
      %p204 = scmp.ne.s32.totalorder %s189, %s203
      %p205 = scmp.eq.s32.totalorder %s32, 0
      %p206 = por %p204, %p205
      %s208 = sadd.s32 %s207, 1
      %p211 = scmp.eq.s32.totalorder %s26, 1
      %p212 = scmp.ne.s32.totalorder %s207, %s209
      %p213 = scmp.eq.s32.totalorder %s26, 0
      %p214 = por %p212, %p213
      %p215 = scmp.ne.s32.totalorder %s207, %s209
      %p216 = scmp.eq.s32.totalorder %s31, 1
      %p217 = por %p215, %p216
      %p218 = scmp.ne.s32.totalorder %s209, %s210
      %p219 = scmp.eq.s32.totalorder %s31, 0
      %p220 = por %p218, %p219
      %p221 = scmp.ne.s32.totalorder %s209, %s210
      %p222 = scmp.eq.s32.totalorder %s32, 1
      %p223 = por %p221, %p222
      %p225 = scmp.ne.s32.totalorder %s210, %s224
      %p226 = scmp.eq.s32.totalorder %s32, 0
      %p227 = por %p225, %p226
      %s229 = sadd.s32 %s228, 1
      %p232 = scmp.eq.s32.totalorder %s26, 1
      %p233 = scmp.ne.s32.totalorder %s228, %s230
      %p234 = scmp.eq.s32.totalorder %s26, 0
      %p235 = por %p233, %p234
      %p236 = scmp.ne.s32.totalorder %s228, %s230
      %p237 = scmp.eq.s32.totalorder %s31, 1
      %p238 = por %p236, %p237
      %p239 = scmp.ne.s32.totalorder %s230, %s231
      %p240 = scmp.eq.s32.totalorder %s31, 0
      %p241 = por %p239, %p240
      %p242 = scmp.ne.s32.totalorder %s230, %s231
      %p243 = scmp.eq.s32.totalorder %s32, 1
      %p244 = por %p242, %p243
      %p246 = scmp.ne.s32.totalorder %s231, %s245
      %p247 = scmp.eq.s32.totalorder %s32, 0
      %p248 = por %p246, %p247
      %s250 = sadd.s32 %s249, 1
      %p253 = scmp.eq.s32.totalorder %s26, 1
      %p254 = scmp.ne.s32.totalorder %s249, %s251
      %p255 = scmp.eq.s32.totalorder %s26, 0
      %p256 = por %p254, %p255
      %p257 = scmp.ne.s32.totalorder %s249, %s251
      %p258 = scmp.eq.s32.totalorder %s31, 1
      %p259 = por %p257, %p258
      %p260 = scmp.ne.s32.totalorder %s251, %s252
      %p261 = scmp.eq.s32.totalorder %s31, 0
      %p262 = por %p260, %p261
      %p263 = scmp.ne.s32.totalorder %s251, %s252
      %p264 = scmp.eq.s32.totalorder %s32, 1
      %p265 = por %p263, %p264
      %p267 = scmp.ne.s32.totalorder %s252, %s266
      %p268 = scmp.eq.s32.totalorder %s32, 0
      %p269 = por %p267, %p268
      %s271 = sadd.s32 %s270, 1
      %p274 = scmp.eq.s32.totalorder %s26, 1
      %p275 = scmp.ne.s32.totalorder %s270, %s272
      %p276 = scmp.eq.s32.totalorder %s26, 0
      %p277 = por %p275, %p276
      %p278 = scmp.ne.s32.totalorder %s270, %s272
      %p279 = scmp.eq.s32.totalorder %s31, 1
      %p280 = por %p278, %p279
      %p281 = scmp.ne.s32.totalorder %s272, %s273
      %p282 = scmp.eq.s32.totalorder %s31, 0
      %p283 = por %p281, %p282
      %p284 = scmp.ne.s32.totalorder %s272, %s273
      %p285 = scmp.eq.s32.totalorder %s32, 1
      %p286 = por %p284, %p285
      %p288 = scmp.ne.s32.totalorder %s273, %s287
      %p289 = scmp.eq.s32.totalorder %s32, 0
      %p290 = por %p288, %p289
      %s292 = sadd.s32 %s291, 1
      %p295 = scmp.eq.s32.totalorder %s26, 1
      %p296 = scmp.ne.s32.totalorder %s291, %s293
      %p297 = scmp.eq.s32.totalorder %s26, 0
      %p298 = por %p296, %p297
      %p299 = scmp.ne.s32.totalorder %s291, %s293
      %p300 = scmp.eq.s32.totalorder %s31, 1
      %p301 = por %p299, %p300
      %p302 = scmp.ne.s32.totalorder %s293, %s294
      %p303 = scmp.eq.s32.totalorder %s31, 0
      %p304 = por %p302, %p303
      %p305 = scmp.ne.s32.totalorder %s293, %s294
      %p306 = scmp.eq.s32.totalorder %s32, 1
      %p307 = por %p305, %p306
      %p309 = scmp.ne.s32.totalorder %s294, %s308
      %p310 = scmp.eq.s32.totalorder %s32, 0
      %p311 = por %p309, %p310
      %s313 = sadd.s32 %s312, 1
      %p316 = scmp.eq.s32.totalorder %s26, 1
      %p317 = scmp.ne.s32.totalorder %s312, %s314
      %p318 = scmp.eq.s32.totalorder %s26, 0
      %p319 = por %p317, %p318
      %p320 = scmp.ne.s32.totalorder %s312, %s314
      %p321 = scmp.eq.s32.totalorder %s31, 1
      %p322 = por %p320, %p321
      %p323 = scmp.ne.s32.totalorder %s314, %s315
      %p324 = scmp.eq.s32.totalorder %s31, 0
      %p325 = por %p323, %p324
      %p326 = scmp.ne.s32.totalorder %s314, %s315
      %p327 = scmp.eq.s32.totalorder %s32, 1
      %p328 = por %p326, %p327
      %p330 = scmp.ne.s32.totalorder %s315, %s329
      %p331 = scmp.eq.s32.totalorder %s32, 0
      %p332 = por %p330, %p331
      %s334 = sadd.s32 %s333, 1
      %p337 = scmp.eq.s32.totalorder %s26, 1
      %p338 = scmp.ne.s32.totalorder %s333, %s335
      %p339 = scmp.eq.s32.totalorder %s26, 0
      %p340 = por %p338, %p339
      %p341 = scmp.ne.s32.totalorder %s333, %s335
      %p342 = scmp.eq.s32.totalorder %s31, 1
      %p343 = por %p341, %p342
      %p344 = scmp.ne.s32.totalorder %s335, %s336
      %p345 = scmp.eq.s32.totalorder %s31, 0
      %p346 = por %p344, %p345
      %p347 = scmp.ne.s32.totalorder %s335, %s336
      %p348 = scmp.eq.s32.totalorder %s32, 1
      %p349 = por %p347, %p348
      %p351 = scmp.ne.s32.totalorder %s336, %s350
      %p352 = scmp.eq.s32.totalorder %s32, 0
      %p353 = por %p351, %p352
      %s354 = ssub.s32 %s26, %s33
      %p355 = scmp.eq.s32.totalorder %s354, 0
      %s357 = sadd.s32 %s356, 1
      %s358 = scalar_select %p355, %s356, %s357
      %p361 = pneg %p355
      %p362 = scmp.eq.s32.totalorder %s26, 1
      %p363 = por %p361, %p362
      %p364 = scmp.ne.s32.totalorder %s356, %s359
      %p365 = scmp.eq.s32.totalorder %s26, 0
      %p366 = por %p364, %p365
      %p367 = scmp.ne.s32.totalorder %s356, %s359
      %p368 = scmp.eq.s32.totalorder %s31, 1
      %p369 = por %p367, %p368
      %p370 = scmp.ne.s32.totalorder %s359, %s360
      %p371 = scmp.eq.s32.totalorder %s31, 0
      %p372 = por %p370, %p371
      %p373 = scmp.ne.s32.totalorder %s359, %s360
      %p374 = scmp.eq.s32.totalorder %s32, 1
      %p375 = por %p373, %p374
      %p377 = scmp.ne.s32.totalorder %s360, %s376
      %p378 = scmp.eq.s32.totalorder %s32, 0
      %p379 = por %p377, %p378
      %p380 = scmp.le.s32.totalorder 1, %s26
      %p381 = scmp.lt.s32.totalorder %s26, 3
      %p382 = pnand %p380, %p381
      %p383 = pneg %p382
      // Predicated region
      $region9: #{actor_critic_forward.1} parent=5 // pred_check
        _
      $region10: #{actor_critic_forward.1} parent=5 // pred_check_branch
        %385 = sbr.rel (%p382) target = $region12
      $region11: #{actor_critic_forward.1} parent=5 // pred_region
        %s386 = ssub.s32 %s26, 1
        // Predicated region
        $region13: #{actor_critic_forward.1} parent=11 // pred_check
          %p387 = pneg %p73
        $region14: #{actor_critic_forward.1} parent=11 // pred_check_branch
          %389 = sbr.rel (%p387) target = $region16
        $region15: #{actor_critic_forward.1} parent=11 // pred_region
          %391 = vsyncadd [#allocation4], 0
          %s392 = sshll.u32 %s1, 4
          %s393 = int_to_ptr.hbm [resolvable:$true] %s392
          %s394 = sshll.u32 [#allocation3], 4
          %s395 = int_to_ptr.vmem [resolvable:$true] %s394
          %400 = dma.hbm_to_vmem [thread:$0]  %s393, 1536, %s395, [#allocation4], 512, 512, 32
        $region16: #{actor_critic_forward.1} parent=11 // pred_fallthru
          _
        // Predicated region
        $region17: #{actor_critic_forward.1} parent=11 // pred_check
          %p401 = pneg %p94
        $region18: #{actor_critic_forward.1} parent=11 // pred_check_branch
          %403 = sbr.rel (%p401) target = $region20
        $region19: #{actor_critic_forward.1} parent=11 // pred_region
          _
        $region20: #{actor_critic_forward.1} parent=11 // pred_fallthru
          _
        // Predicated region
        $region21: #{actor_critic_forward.1} parent=11 // pred_check
          %p404 = pneg %p115
        $region22: #{actor_critic_forward.1} parent=11 // pred_check_branch
          %406 = sbr.rel (%p404) target = $region24
        $region23: #{actor_critic_forward.1} parent=11 // pred_region
          %408 = vsyncadd [#allocation6], 0
          %s409 = sshll.u32 %s3, 4
          %s410 = int_to_ptr.hbm [resolvable:$true] %s409
          %s411 = sshll.u32 [#allocation5], 4
          %s412 = int_to_ptr.vmem [resolvable:$true] %s411
          %417 = dma.hbm_to_vmem [thread:$0]  %s410, 8192, %s412, [#allocation6], 128, 128, 8
        $region24: #{actor_critic_forward.1} parent=11 // pred_fallthru
          _
        // Predicated region
        $region25: #{actor_critic_forward.1} parent=11 // pred_check
          %p418 = pneg %p136
        $region26: #{actor_critic_forward.1} parent=11 // pred_check_branch
          %420 = sbr.rel (%p418) target = $region28
        $region27: #{actor_critic_forward.1} parent=11 // pred_region
          _
        $region28: #{actor_critic_forward.1} parent=11 // pred_fallthru
          _
        // Predicated region
        $region29: #{actor_critic_forward.1} parent=11 // pred_check
          %p421 = pneg %p157
        $region30: #{actor_critic_forward.1} parent=11 // pred_check_branch
          %423 = sbr.rel (%p421) target = $region32
        $region31: #{actor_critic_forward.1} parent=11 // pred_region
          _
        $region32: #{actor_critic_forward.1} parent=11 // pred_fallthru
          _
        // Predicated region
        $region33: #{actor_critic_forward.1} parent=11 // pred_check
          %p424 = pneg %p178
        $region34: #{actor_critic_forward.1} parent=11 // pred_check_branch
          %426 = sbr.rel (%p424) target = $region36
        $region35: #{actor_critic_forward.1} parent=11 // pred_region
          _
        $region36: #{actor_critic_forward.1} parent=11 // pred_fallthru
          _
        // Predicated region
        $region37: #{actor_critic_forward.1} parent=11 // pred_check
          %p427 = pneg %p199
        $region38: #{actor_critic_forward.1} parent=11 // pred_check_branch
          %429 = sbr.rel (%p427) target = $region40
        $region39: #{actor_critic_forward.1} parent=11 // pred_region
          %431 = vsyncadd [#allocation6], 0
          %s432 = sshll.u32 %s7, 4
          %s433 = int_to_ptr.hbm [resolvable:$true] %s432
          %s434 = sshll.u32 [#allocation7], 4
          %s435 = int_to_ptr.vmem [resolvable:$true] %s434
          %440 = dma.hbm_to_vmem [thread:$0]  %s433, 1024, %s435, [#allocation6], 64, 64, 4
        $region40: #{actor_critic_forward.1} parent=11 // pred_fallthru
          _
        // Predicated region
        $region41: #{actor_critic_forward.1} parent=11 // pred_check
          %p441 = pneg %p220
        $region42: #{actor_critic_forward.1} parent=11 // pred_check_branch
          %443 = sbr.rel (%p441) target = $region44
        $region43: #{actor_critic_forward.1} parent=11 // pred_region
          _
        $region44: #{actor_critic_forward.1} parent=11 // pred_fallthru
          _
        // Predicated region
        $region45: #{actor_critic_forward.1} parent=11 // pred_check
          %p444 = pneg %p241
        $region46: #{actor_critic_forward.1} parent=11 // pred_check_branch
          %446 = sbr.rel (%p444) target = $region48
        $region47: #{actor_critic_forward.1} parent=11 // pred_region
          %448 = vsyncadd [#allocation9], 0
          %s449 = sshll.u32 %s9, 4
          %s450 = int_to_ptr.hbm [resolvable:$true] %s449
          %s451 = sshll.u32 [#allocation8], 4
          %s452 = int_to_ptr.vmem [resolvable:$true] %s451
          %457 = dma.hbm_to_vmem [thread:$0]  %s450, 8192, %s452, [#allocation9], 128, 128, 8
        $region48: #{actor_critic_forward.1} parent=11 // pred_fallthru
          _
        // Predicated region
        $region49: #{actor_critic_forward.1} parent=11 // pred_check
          %p458 = pneg %p262
        $region50: #{actor_critic_forward.1} parent=11 // pred_check_branch
          %460 = sbr.rel (%p458) target = $region52
        $region51: #{actor_critic_forward.1} parent=11 // pred_region
          _
        $region52: #{actor_critic_forward.1} parent=11 // pred_fallthru
          _
        // Predicated region
        $region53: #{actor_critic_forward.1} parent=11 // pred_check
          %p461 = pneg %p283
        $region54: #{actor_critic_forward.1} parent=11 // pred_check_branch
          %463 = sbr.rel (%p461) target = $region56
        $region55: #{actor_critic_forward.1} parent=11 // pred_region
          _
        $region56: #{actor_critic_forward.1} parent=11 // pred_fallthru
          _
        // Predicated region
        $region57: #{actor_critic_forward.1} parent=11 // pred_check
          %p464 = pneg %p304
        $region58: #{actor_critic_forward.1} parent=11 // pred_check_branch
          %466 = sbr.rel (%p464) target = $region60
        $region59: #{actor_critic_forward.1} parent=11 // pred_region
          _
        $region60: #{actor_critic_forward.1} parent=11 // pred_fallthru
          _
        // Predicated region
        $region61: #{actor_critic_forward.1} parent=11 // pred_check
          %p467 = pneg %p325
        $region62: #{actor_critic_forward.1} parent=11 // pred_check_branch
          %469 = sbr.rel (%p467) target = $region64
        $region63: #{actor_critic_forward.1} parent=11 // pred_region
          _
        $region64: #{actor_critic_forward.1} parent=11 // pred_fallthru
          _
        // Predicated region
        $region65: #{actor_critic_forward.1} parent=11 // pred_check
          %p470 = pneg %p346
        $region66: #{actor_critic_forward.1} parent=11 // pred_check_branch
          %472 = sbr.rel (%p470) target = $region68
        $region67: #{actor_critic_forward.1} parent=11 // pred_region
          _
        $region68: #{actor_critic_forward.1} parent=11 // pred_fallthru
          _
      $region12: #{actor_critic_forward.1} parent=5 // pred_fallthru
        _
      %p473 = scmp.lt.s32.totalorder %s26, 2
      // Predicated region
      $region69: #{actor_critic_forward.1} parent=5 // pred_check
        %p474 = pneg %p473
      $region70: #{actor_critic_forward.1} parent=5 // pred_check_branch
        %476 = sbr.rel (%p474) target = $region72
      $region71: #{actor_critic_forward.1} parent=5 // pred_region
        // Predicated region
        $region73: #{actor_critic_forward.1} parent=71 // pred_check
          %p477 = pneg %p46
        $region74: #{actor_critic_forward.1} parent=71 // pred_check_branch
          %479 = sbr.rel (%p477) target = $region76
        $region75: #{actor_critic_forward.1} parent=71 // pred_region
          %s480 = smul.u32 16, %s26
          %p481 = scmp.lt.s32.totalorder %s480, 31
          %s482 = scalar_select %p481, %s480, 31
          %s483 = smul.addr %s482, 8
          %s484 = scalar_lea.vmem %s0, %s483
          %s485 = smul.u32 16, %s26
        $region76: #{actor_critic_forward.1} parent=71 // pred_fallthru
          _
      $region72: #{actor_critic_forward.1} parent=5 // pred_fallthru
        _
      %p486 = scmp.le.s32.totalorder 1, %s26
      %p487 = scmp.lt.s32.totalorder %s26, 3
      %p488 = pnand %p486, %p487
      %p489 = pneg %p488
      // Predicated region
      $region77: #{actor_critic_forward.1} parent=5 // pred_check
        _
      $region78: #{actor_critic_forward.1} parent=5 // pred_check_branch
        %491 = sbr.rel (%p488) target = $region80
      $region79: #{actor_critic_forward.1} parent=5 // pred_region
        %s492 = ssub.s32 %s26, 1
        // Predicated region
        $region81: #{actor_critic_forward.1} parent=79 // pred_check
          %p493 = pneg %p73
        $region82: #{actor_critic_forward.1} parent=79 // pred_check_branch
          %495 = sbr.rel (%p493) target = $region84
        $region83: #{actor_critic_forward.1} parent=79 // pred_region
          %497 = dma.done [#allocation4], 1536
        $region84: #{actor_critic_forward.1} parent=79 // pred_fallthru
          _
        // Predicated region
        $region85: #{actor_critic_forward.1} parent=79 // pred_check
          %p498 = pneg %p115
        $region86: #{actor_critic_forward.1} parent=79 // pred_check_branch
          %500 = sbr.rel (%p498) target = $region88
        $region87: #{actor_critic_forward.1} parent=79 // pred_region
          %502 = dma.done [#allocation6], 8192
        $region88: #{actor_critic_forward.1} parent=79 // pred_fallthru
          _
        // Predicated region
        $region89: #{actor_critic_forward.1} parent=79 // pred_check
          %p503 = pneg %p199
        $region90: #{actor_critic_forward.1} parent=79 // pred_check_branch
          %505 = sbr.rel (%p503) target = $region92
        $region91: #{actor_critic_forward.1} parent=79 // pred_region
          %507 = dma.done [#allocation6], 1024
        $region92: #{actor_critic_forward.1} parent=79 // pred_fallthru
          _
        // Predicated region
        $region93: #{actor_critic_forward.1} parent=79 // pred_check
          %p508 = pneg %p241
        $region94: #{actor_critic_forward.1} parent=79 // pred_check_branch
          %510 = sbr.rel (%p508) target = $region96
        $region95: #{actor_critic_forward.1} parent=79 // pred_region
          %512 = dma.done [#allocation9], 8192
        $region96: #{actor_critic_forward.1} parent=79 // pred_fallthru
          _
        %s513 = smul.u32 16, %s31
        %p514 = scmp.lt.s32.totalorder %s513, 31
        %s515 = scalar_select %p514, %s513, 31
        %s516 = smul.addr %s515, 8
        %s517 = scalar_lea.vmem %s0, %s516
        %p518 = pneg %p52
        %p519 = pneg %p49
        %p520 = pneg %p73
        %p521 = pneg %p70
        %p522 = pneg %p94
        %p523 = pneg %p91
        %p524 = pneg %p115
        %p525 = pneg %p112
        %p526 = pneg %p136
        %p527 = pneg %p133
        %p528 = pneg %p157
        %p529 = pneg %p154
        %p530 = pneg %p178
        %p531 = pneg %p175
        %p532 = pneg %p199
        %p533 = pneg %p196
        %p534 = pneg %p220
        %p535 = pneg %p217
        %p536 = pneg %p241
        %p537 = pneg %p238
        %p538 = pneg %p262
        %p539 = pneg %p259
        %p540 = pneg %p283
        %p541 = pneg %p280
        %p542 = pneg %p304
        %p543 = pneg %p301
        %p544 = pneg %p325
        %p545 = pneg %p322
        %p546 = pneg %p346
        %p547 = pneg %p343
        %p548 = pneg %p372
        %p549 = pneg %p369
        %s550 = smul.u32 16, %s31
        %p551 = scmp.lt.s32.totalorder %s550, 31
        %s552 = scalar_select %p551, %s550, 31
        %s553 = smul.addr %s552, 8
        %s554 = scalar_lea.vmem %s15, %s553
        %s555 = smul.u32 16, %s31
        %p556 = scmp.lt.s32.totalorder %s555, 31
        %s557 = scalar_select %p556, %s555, 31
        %s558 = smul.addr %s557, 8
        %s559 = scalar_lea.vmem %s0, %s558
        %s560 = smul.u32 16, %s31
        %s561 = smul.u32 16, %s31
        %p562 = scmp.lt.s32.totalorder %s561, 31
        %s563 = scalar_select %p562, %s561, 31
        %s564 = smul.addr %s563, 8
        %s565 = scalar_lea.vmem %s15, %s564
        %s566 = smul.u32 16, %s31
        %v568 = vld [vmem:[%s559] sm:$0xff]
        %v569 = vld [vmem:[%s559 + $0x8] sm:$0xff]
        %v570 = vld [vmem:[%s559 + $0x10] sm:$0xff]
        %v571 = vld [vmem:[%s559 + $0x18] sm:$0xff]
        %v572 = vld [vmem:[%s559 + $0x20] sm:$0xff]
        %v573 = vld [vmem:[%s559 + $0x28] sm:$0xff]
        %v574 = vld [vmem:[%s559 + $0x30] sm:$0xff]
        %v575 = vld [vmem:[%s559 + $0x38] sm:$0xff]
        %v576 = vld [vmem:[%s559 + $0x40] sm:$0xff]
        %v577 = vld [vmem:[%s559 + $0x48] sm:$0xff]
        %v578 = vld [vmem:[%s559 + $0x50] sm:$0xff]
        %v579 = vld [vmem:[%s559 + $0x58] sm:$0xff]
        %v580 = vld [vmem:[%s559 + $0x60] sm:$0xff]
        %v581 = vld [vmem:[%s559 + $0x68] sm:$0xff]
        %v582 = vld [vmem:[%s559 + $0x70] sm:$0xff]
        %v583 = vld [vmem:[%s559 + $0x78] sm:$0xff]
        %v584 = vpack.c.bf16 %v569, %v568
        %v585 = vpack.c.bf16 %v571, %v570
        %v586 = vpack.c.bf16 %v573, %v572
        %v587 = vpack.c.bf16 %v575, %v574
        %v588 = vpack.c.bf16 %v577, %v576
        %v589 = vpack.c.bf16 %v579, %v578
        %v590 = vpack.c.bf16 %v581, %v580
        %v591 = vpack.c.bf16 %v583, %v582
        %v592 = vld [vmem:[#allocation3] sm:$0xff]
        %v593 = vld [vmem:[#allocation3 + $0x8] sm:$0xff]
        %v594 = vld [vmem:[#allocation3 + $0x10] sm:$0xff]
        %v595 = vld [vmem:[#allocation3 + $0x18] sm:$0xff]
        %v596 = vld [vmem:[#allocation3 + $0x20] sm:$0xff]
        %v597 = vld [vmem:[#allocation3 + $0x28] sm:$0xff]
        %v598 = vld [vmem:[#allocation3 + $0x30] sm:$0xff]
        %v599 = vld [vmem:[#allocation3 + $0x38] sm:$0xff]
        %v600 = vld [vmem:[#allocation3 + $0x40] sm:$0xff]
        %v601 = vld [vmem:[#allocation3 + $0x48] sm:$0xff]
        %v602 = vld [vmem:[#allocation3 + $0x50] sm:$0xff]
        %v603 = vld [vmem:[#allocation3 + $0x58] sm:$0xff]
        %v604 = vld [vmem:[%s2] sm:$0xff]
        %v606 = vperm.slane %v604, 0
        %v607 = vperm.slane %v604, 1
        %v608 = vperm.slane %v604, 2
        %v609 = vperm.slane %v604, 3
        %v610 = vperm.slane %v604, 4
        %v611 = vperm.slane %v604, 5
        %v612 = vperm.slane %v604, 6
        %v613 = vperm.slane %v604, 7
        %v634 = vunpack.c.l.b16 %v592
        %v635 = vunpack.c.h.b16 %v592
        %v636 = vunpack.c.l.b16 %v593
        %v637 = vunpack.c.h.b16 %v593
        %v638 = vunpack.c.l.b16 %v594
        %v639 = vunpack.c.h.b16 %v594
        %v640 = vunpack.c.l.b16 %v595
        %v641 = vunpack.c.h.b16 %v595
        %v642 = vunpack.c.l.b16 %v596
        %v643 = vunpack.c.h.b16 %v596
        %v644 = vunpack.c.l.b16 %v597
        %v645 = vunpack.c.h.b16 %v597
        %v646 = vunpack.c.l.b16 %v598
        %v647 = vunpack.c.h.b16 %v598
        %v648 = vunpack.c.l.b16 %v599
        %v649 = vunpack.c.h.b16 %v599
        %v650 = vunpack.c.l.b16 %v600
        %v651 = vunpack.c.h.b16 %v600
        %v652 = vunpack.c.l.b16 %v601
        %v653 = vunpack.c.h.b16 %v601
        %v654 = vunpack.c.l.b16 %v602
        %v655 = vunpack.c.h.b16 %v602
        %v656 = vunpack.c.l.b16 %v603
        %v657 = vunpack.c.h.b16 %v603
        %v658 = vpack.c.b16 %v642, %v634
        %v659 = vpack.c.b16 %v643, %v635
        %v660 = vpack.c.b16 %v644, %v636
        %v661 = vpack.c.b16 %v645, %v637
        %v662 = vpack.c.b16 %v646, %v638
        %v663 = vpack.c.b16 %v647, %v639
        %v664 = vpack.c.b16 %v648, %v640
        %v665 = vpack.c.b16 %v649, %v641
        %v666 = vpack.c.b16 %v650, %v650
        %v667 = vpack.c.b16 %v651, %v651
        %v668 = vpack.c.b16 %v652, %v652
        %v669 = vpack.c.b16 %v653, %v653
        %v670 = vpack.c.b16 %v654, %v654
        %v671 = vpack.c.b16 %v655, %v655
        %v672 = vpack.c.b16 %v656, %v656
        %v673 = vpack.c.b16 %v657, %v657
        %vm682 = vcmask 195584
        %v684 = vsel %vm682, %v584, 0
        %v687 = vsel %vm682, %v585, 0
        %v690 = vsel %vm682, %v586, 0
        %v693 = vsel %vm682, %v587, 0
        %v696 = vsel %vm682, %v588, 0
        %v699 = vsel %vm682, %v589, 0
        %v702 = vsel %vm682, %v590, 0
        %v705 = vsel %vm682, %v591, 0
        %vm707 = vcmask 1043456
        %v709 = vsel %vm707, %v666, 0
        %v712 = vsel %vm707, %v667, 0
        %v715 = vsel %vm707, %v668, 0
        %v718 = vsel %vm707, %v669, 0
        %v721 = vsel %vm707, %v670, 0
        %v724 = vsel %vm707, %v671, 0
        %v727 = vsel %vm707, %v672, 0
        %v730 = vsel %vm707, %v673, 0
        %732 = vmatpush.bf16.msra.mxu0 0
        %733 = vmatpush.bf16.msra.mxu0 0
        %734 = vmatpush.bf16.msra.mxu0 0
        %735 = vmatpush.bf16.msra.mxu0 0
        %736 = vmatpush.bf16.msra.mxu0 0
        %737 = vmatpush.bf16.msra.mxu0 0
        %738 = vmatpush.bf16.msra.mxu0 %v709
        %739 = vmatpush.bf16.msra.mxu0 %v658
        %740 = vmatmul.bf16.gmra.mxu0 %v684
        %v741 = vpop.f32.mrf.mxu0
        %v742 = vadd.f32 %v606, %v741
        %v743 = vpop.f32.mrf.mxu0
        %v744 = vadd.f32 %v606, %v743
        %745 = vmatmul.bf16.gmra.mxu0 %v687
        %v746 = vpop.f32.mrf.mxu0
        %v747 = vadd.f32 %v606, %v746
        %v748 = vpop.f32.mrf.mxu0
        %v749 = vadd.f32 %v606, %v748
        %750 = vmatmul.bf16.gmra.mxu0 %v690
        %v751 = vpop.f32.mrf.mxu0
        %v752 = vadd.f32 %v606, %v751
        %v753 = vpop.f32.mrf.mxu0
        %v754 = vadd.f32 %v606, %v753
        %755 = vmatmul.bf16.gmra.mxu0 %v693
        %v756 = vpop.f32.mrf.mxu0
        %v757 = vadd.f32 %v606, %v756
        %v758 = vpop.f32.mrf.mxu0
        %v759 = vadd.f32 %v606, %v758
        %760 = vmatmul.bf16.gmra.mxu0 %v696
        %v761 = vpop.f32.mrf.mxu0
        %v762 = vadd.f32 %v606, %v761
        %v763 = vpop.f32.mrf.mxu0
        %v764 = vadd.f32 %v606, %v763
        %765 = vmatmul.bf16.gmra.mxu0 %v699
        %v766 = vpop.f32.mrf.mxu0
        %v767 = vadd.f32 %v606, %v766
        %v768 = vpop.f32.mrf.mxu0
        %v769 = vadd.f32 %v606, %v768
        %770 = vmatmul.bf16.gmra.mxu0 %v702
        %v771 = vpop.f32.mrf.mxu0
        %v772 = vadd.f32 %v606, %v771
        %v773 = vpop.f32.mrf.mxu0
        %v774 = vadd.f32 %v606, %v773
        %775 = vmatmul.bf16.gmra.mxu0 %v705
        %v776 = vpop.f32.mrf.mxu0
        %v777 = vadd.f32 %v606, %v776
        %v778 = vpop.f32.mrf.mxu0
        %v779 = vadd.f32 %v606, %v778
        %780 = vdwg.mxu0
        %781 = vmatpush.bf16.msra.mxu0 0
        %782 = vmatpush.bf16.msra.mxu0 0
        %783 = vmatpush.bf16.msra.mxu0 0
        %784 = vmatpush.bf16.msra.mxu0 0
        %785 = vmatpush.bf16.msra.mxu0 0
        %786 = vmatpush.bf16.msra.mxu0 0
        %787 = vmatpush.bf16.msra.mxu0 %v712
        %788 = vmatpush.bf16.msra.mxu0 %v659
        %789 = vmatmul.bf16.gmra.mxu0 %v684
        %v790 = vpop.f32.mrf.mxu0
        %v791 = vadd.f32 %v607, %v790
        %v792 = vpop.f32.mrf.mxu0
        %v793 = vadd.f32 %v607, %v792
        %794 = vmatmul.bf16.gmra.mxu0 %v687
        %v795 = vpop.f32.mrf.mxu0
        %v796 = vadd.f32 %v607, %v795
        %v797 = vpop.f32.mrf.mxu0
        %v798 = vadd.f32 %v607, %v797
        %799 = vmatmul.bf16.gmra.mxu0 %v690
        %v800 = vpop.f32.mrf.mxu0
        %v801 = vadd.f32 %v607, %v800
        %v802 = vpop.f32.mrf.mxu0
        %v803 = vadd.f32 %v607, %v802
        %804 = vmatmul.bf16.gmra.mxu0 %v693
        %v805 = vpop.f32.mrf.mxu0
        %v806 = vadd.f32 %v607, %v805
        %v807 = vpop.f32.mrf.mxu0
        %v808 = vadd.f32 %v607, %v807
        %809 = vmatmul.bf16.gmra.mxu0 %v696
        %v810 = vpop.f32.mrf.mxu0
        %v811 = vadd.f32 %v607, %v810
        %v812 = vpop.f32.mrf.mxu0
        %v813 = vadd.f32 %v607, %v812
        %814 = vmatmul.bf16.gmra.mxu0 %v699
        %v815 = vpop.f32.mrf.mxu0
        %v816 = vadd.f32 %v607, %v815
        %v817 = vpop.f32.mrf.mxu0
        %v818 = vadd.f32 %v607, %v817
        %819 = vmatmul.bf16.gmra.mxu0 %v702
        %v820 = vpop.f32.mrf.mxu0
        %v821 = vadd.f32 %v607, %v820
        %v822 = vpop.f32.mrf.mxu0
        %v823 = vadd.f32 %v607, %v822
        %824 = vmatmul.bf16.gmra.mxu0 %v705
        %v825 = vpop.f32.mrf.mxu0
        %v826 = vadd.f32 %v607, %v825
        %v827 = vpop.f32.mrf.mxu0
        %v828 = vadd.f32 %v607, %v827
        %829 = vdwg.mxu0
        %830 = vmatpush.bf16.msra.mxu0 0
        %831 = vmatpush.bf16.msra.mxu0 0
        %832 = vmatpush.bf16.msra.mxu0 0
        %833 = vmatpush.bf16.msra.mxu0 0
        %834 = vmatpush.bf16.msra.mxu0 0
        %835 = vmatpush.bf16.msra.mxu0 0
        %836 = vmatpush.bf16.msra.mxu0 %v715
        %837 = vmatpush.bf16.msra.mxu0 %v660
        %838 = vmatmul.bf16.gmra.mxu0 %v684
        %v839 = vpop.f32.mrf.mxu0
        %v840 = vadd.f32 %v608, %v839
        %v841 = vpop.f32.mrf.mxu0
        %v842 = vadd.f32 %v608, %v841
        %843 = vmatmul.bf16.gmra.mxu0 %v687
        %v844 = vpop.f32.mrf.mxu0
        %v845 = vadd.f32 %v608, %v844
        %v846 = vpop.f32.mrf.mxu0
        %v847 = vadd.f32 %v608, %v846
        %848 = vmatmul.bf16.gmra.mxu0 %v690
        %v849 = vpop.f32.mrf.mxu0
        %v850 = vadd.f32 %v608, %v849
        %v851 = vpop.f32.mrf.mxu0
        %v852 = vadd.f32 %v608, %v851
        %853 = vmatmul.bf16.gmra.mxu0 %v693
        %v854 = vpop.f32.mrf.mxu0
        %v855 = vadd.f32 %v608, %v854
        %v856 = vpop.f32.mrf.mxu0
        %v857 = vadd.f32 %v608, %v856
        %858 = vmatmul.bf16.gmra.mxu0 %v696
        %v859 = vpop.f32.mrf.mxu0
        %v860 = vadd.f32 %v608, %v859
        %v861 = vpop.f32.mrf.mxu0
        %v862 = vadd.f32 %v608, %v861
        %863 = vmatmul.bf16.gmra.mxu0 %v699
        %v864 = vpop.f32.mrf.mxu0
        %v865 = vadd.f32 %v608, %v864
        %v866 = vpop.f32.mrf.mxu0
        %v867 = vadd.f32 %v608, %v866
        %868 = vmatmul.bf16.gmra.mxu0 %v702
        %v869 = vpop.f32.mrf.mxu0
        %v870 = vadd.f32 %v608, %v869
        %v871 = vpop.f32.mrf.mxu0
        %v872 = vadd.f32 %v608, %v871
        %873 = vmatmul.bf16.gmra.mxu0 %v705
        %v874 = vpop.f32.mrf.mxu0
        %v875 = vadd.f32 %v608, %v874
        %v876 = vpop.f32.mrf.mxu0
        %v877 = vadd.f32 %v608, %v876
        %878 = vdwg.mxu0
        %879 = vmatpush.bf16.msra.mxu0 0
        %880 = vmatpush.bf16.msra.mxu0 0
        %881 = vmatpush.bf16.msra.mxu0 0
        %882 = vmatpush.bf16.msra.mxu0 0
        %883 = vmatpush.bf16.msra.mxu0 0
        %884 = vmatpush.bf16.msra.mxu0 0
        %885 = vmatpush.bf16.msra.mxu0 %v718
        %886 = vmatpush.bf16.msra.mxu0 %v661
        %887 = vmatmul.bf16.gmra.mxu0 %v684
        %v888 = vpop.f32.mrf.mxu0
        %v889 = vadd.f32 %v609, %v888
        %v890 = vpop.f32.mrf.mxu0
        %v891 = vadd.f32 %v609, %v890
        %892 = vmatmul.bf16.gmra.mxu0 %v687
        %v893 = vpop.f32.mrf.mxu0
        %v894 = vadd.f32 %v609, %v893
        %v895 = vpop.f32.mrf.mxu0
        %v896 = vadd.f32 %v609, %v895
        %897 = vmatmul.bf16.gmra.mxu0 %v690
        %v898 = vpop.f32.mrf.mxu0
        %v899 = vadd.f32 %v609, %v898
        %v900 = vpop.f32.mrf.mxu0
        %v901 = vadd.f32 %v609, %v900
        %902 = vmatmul.bf16.gmra.mxu0 %v693
        %v903 = vpop.f32.mrf.mxu0
        %v904 = vadd.f32 %v609, %v903
        %v905 = vpop.f32.mrf.mxu0
        %v906 = vadd.f32 %v609, %v905
        %907 = vmatmul.bf16.gmra.mxu0 %v696
        %v908 = vpop.f32.mrf.mxu0
        %v909 = vadd.f32 %v609, %v908
        %v910 = vpop.f32.mrf.mxu0
        %v911 = vadd.f32 %v609, %v910
        %912 = vmatmul.bf16.gmra.mxu0 %v699
        %v913 = vpop.f32.mrf.mxu0
        %v914 = vadd.f32 %v609, %v913
        %v915 = vpop.f32.mrf.mxu0
        %v916 = vadd.f32 %v609, %v915
        %917 = vmatmul.bf16.gmra.mxu0 %v702
        %v918 = vpop.f32.mrf.mxu0
        %v919 = vadd.f32 %v609, %v918
        %v920 = vpop.f32.mrf.mxu0
        %v921 = vadd.f32 %v609, %v920
        %922 = vmatmul.bf16.gmra.mxu0 %v705
        %v923 = vpop.f32.mrf.mxu0
        %v924 = vadd.f32 %v609, %v923
        %v925 = vpop.f32.mrf.mxu0
        %v926 = vadd.f32 %v609, %v925
        %927 = vdwg.mxu0
        %928 = vmatpush.bf16.msra.mxu0 0
        %929 = vmatpush.bf16.msra.mxu0 0
        %930 = vmatpush.bf16.msra.mxu0 0
        %931 = vmatpush.bf16.msra.mxu0 0
        %932 = vmatpush.bf16.msra.mxu0 0
        %933 = vmatpush.bf16.msra.mxu0 0
        %934 = vmatpush.bf16.msra.mxu0 %v721
        %935 = vmatpush.bf16.msra.mxu0 %v662
        %936 = vmatmul.bf16.gmra.mxu0 %v684
        %v937 = vpop.f32.mrf.mxu0
        %v938 = vadd.f32 %v610, %v937
        %v939 = vpop.f32.mrf.mxu0
        %v940 = vadd.f32 %v610, %v939
        %941 = vmatmul.bf16.gmra.mxu0 %v687
        %v942 = vpop.f32.mrf.mxu0
        %v943 = vadd.f32 %v610, %v942
        %v944 = vpop.f32.mrf.mxu0
        %v945 = vadd.f32 %v610, %v944
        %946 = vmatmul.bf16.gmra.mxu0 %v690
        %v947 = vpop.f32.mrf.mxu0
        %v948 = vadd.f32 %v610, %v947
        %v949 = vpop.f32.mrf.mxu0
        %v950 = vadd.f32 %v610, %v949
        %951 = vmatmul.bf16.gmra.mxu0 %v693
        %v952 = vpop.f32.mrf.mxu0
        %v953 = vadd.f32 %v610, %v952
        %v954 = vpop.f32.mrf.mxu0
        %v955 = vadd.f32 %v610, %v954
        %956 = vmatmul.bf16.gmra.mxu0 %v696
        %v957 = vpop.f32.mrf.mxu0
        %v958 = vadd.f32 %v610, %v957
        %v959 = vpop.f32.mrf.mxu0
        %v960 = vadd.f32 %v610, %v959
        %961 = vmatmul.bf16.gmra.mxu0 %v699
        %v962 = vpop.f32.mrf.mxu0
        %v963 = vadd.f32 %v610, %v962
        %v964 = vpop.f32.mrf.mxu0
        %v965 = vadd.f32 %v610, %v964
        %966 = vmatmul.bf16.gmra.mxu0 %v702
        %v967 = vpop.f32.mrf.mxu0
        %v968 = vadd.f32 %v610, %v967
        %v969 = vpop.f32.mrf.mxu0
        %v970 = vadd.f32 %v610, %v969
        %971 = vmatmul.bf16.gmra.mxu0 %v705
        %v972 = vpop.f32.mrf.mxu0
        %v973 = vadd.f32 %v610, %v972
        %v974 = vpop.f32.mrf.mxu0
        %v975 = vadd.f32 %v610, %v974
        %976 = vdwg.mxu0
        %977 = vmatpush.bf16.msra.mxu0 0
        %978 = vmatpush.bf16.msra.mxu0 0
        %979 = vmatpush.bf16.msra.mxu0 0
        %980 = vmatpush.bf16.msra.mxu0 0
        %981 = vmatpush.bf16.msra.mxu0 0
        %982 = vmatpush.bf16.msra.mxu0 0
        %983 = vmatpush.bf16.msra.mxu0 %v724
        %984 = vmatpush.bf16.msra.mxu0 %v663
        %985 = vmatmul.bf16.gmra.mxu0 %v684
        %v986 = vpop.f32.mrf.mxu0
        %v987 = vadd.f32 %v611, %v986
        %v988 = vpop.f32.mrf.mxu0
        %v989 = vadd.f32 %v611, %v988
        %990 = vmatmul.bf16.gmra.mxu0 %v687
        %v991 = vpop.f32.mrf.mxu0
        %v992 = vadd.f32 %v611, %v991
        %v993 = vpop.f32.mrf.mxu0
        %v994 = vadd.f32 %v611, %v993
        %995 = vmatmul.bf16.gmra.mxu0 %v690
        %v996 = vpop.f32.mrf.mxu0
        %v997 = vadd.f32 %v611, %v996
        %v998 = vpop.f32.mrf.mxu0
        %v999 = vadd.f32 %v611, %v998
        %1000 = vmatmul.bf16.gmra.mxu0 %v693
        %v1001 = vpop.f32.mrf.mxu0
        %v1002 = vadd.f32 %v611, %v1001
        %v1003 = vpop.f32.mrf.mxu0
        %v1004 = vadd.f32 %v611, %v1003
        %1005 = vmatmul.bf16.gmra.mxu0 %v696
        %v1006 = vpop.f32.mrf.mxu0
        %v1007 = vadd.f32 %v611, %v1006
        %v1008 = vpop.f32.mrf.mxu0
        %v1009 = vadd.f32 %v611, %v1008
        %1010 = vmatmul.bf16.gmra.mxu0 %v699
        %v1011 = vpop.f32.mrf.mxu0
        %v1012 = vadd.f32 %v611, %v1011
        %v1013 = vpop.f32.mrf.mxu0
        %v1014 = vadd.f32 %v611, %v1013
        %1015 = vmatmul.bf16.gmra.mxu0 %v702
        %v1016 = vpop.f32.mrf.mxu0
        %v1017 = vadd.f32 %v611, %v1016
        %v1018 = vpop.f32.mrf.mxu0
        %v1019 = vadd.f32 %v611, %v1018
        %1020 = vmatmul.bf16.gmra.mxu0 %v705
        %v1021 = vpop.f32.mrf.mxu0
        %v1022 = vadd.f32 %v611, %v1021
        %v1023 = vpop.f32.mrf.mxu0
        %v1024 = vadd.f32 %v611, %v1023
        %1025 = vdwg.mxu0
        %1026 = vmatpush.bf16.msra.mxu0 0
        %1027 = vmatpush.bf16.msra.mxu0 0
        %1028 = vmatpush.bf16.msra.mxu0 0
        %1029 = vmatpush.bf16.msra.mxu0 0
        %1030 = vmatpush.bf16.msra.mxu0 0
        %1031 = vmatpush.bf16.msra.mxu0 0
        %1032 = vmatpush.bf16.msra.mxu0 %v727
        %1033 = vmatpush.bf16.msra.mxu0 %v664
        %1034 = vmatmul.bf16.gmra.mxu0 %v684
        %v1035 = vpop.f32.mrf.mxu0
        %v1036 = vadd.f32 %v612, %v1035
        %v1037 = vpop.f32.mrf.mxu0
        %v1038 = vadd.f32 %v612, %v1037
        %1039 = vmatmul.bf16.gmra.mxu0 %v687
        %v1040 = vpop.f32.mrf.mxu0
        %v1041 = vadd.f32 %v612, %v1040
        %v1042 = vpop.f32.mrf.mxu0
        %v1043 = vadd.f32 %v612, %v1042
        %1044 = vmatmul.bf16.gmra.mxu0 %v690
        %v1045 = vpop.f32.mrf.mxu0
        %v1046 = vadd.f32 %v612, %v1045
        %v1047 = vpop.f32.mrf.mxu0
        %v1048 = vadd.f32 %v612, %v1047
        %1049 = vmatmul.bf16.gmra.mxu0 %v693
        %v1050 = vpop.f32.mrf.mxu0
        %v1051 = vadd.f32 %v612, %v1050
        %v1052 = vpop.f32.mrf.mxu0
        %v1053 = vadd.f32 %v612, %v1052
        %1054 = vmatmul.bf16.gmra.mxu0 %v696
        %v1055 = vpop.f32.mrf.mxu0
        %v1056 = vadd.f32 %v612, %v1055
        %v1057 = vpop.f32.mrf.mxu0
        %v1058 = vadd.f32 %v612, %v1057
        %1059 = vmatmul.bf16.gmra.mxu0 %v699
        %v1060 = vpop.f32.mrf.mxu0
        %v1061 = vadd.f32 %v612, %v1060
        %v1062 = vpop.f32.mrf.mxu0
        %v1063 = vadd.f32 %v612, %v1062
        %1064 = vmatmul.bf16.gmra.mxu0 %v702
        %v1065 = vpop.f32.mrf.mxu0
        %v1066 = vadd.f32 %v612, %v1065
        %v1067 = vpop.f32.mrf.mxu0
        %v1068 = vadd.f32 %v612, %v1067
        %1069 = vmatmul.bf16.gmra.mxu0 %v705
        %v1070 = vpop.f32.mrf.mxu0
        %v1071 = vadd.f32 %v612, %v1070
        %v1072 = vpop.f32.mrf.mxu0
        %v1073 = vadd.f32 %v612, %v1072
        %1074 = vdwg.mxu0
        %1075 = vmatpush.bf16.msra.mxu0 0
        %1076 = vmatpush.bf16.msra.mxu0 0
        %1077 = vmatpush.bf16.msra.mxu0 0
        %1078 = vmatpush.bf16.msra.mxu0 0
        %1079 = vmatpush.bf16.msra.mxu0 0
        %1080 = vmatpush.bf16.msra.mxu0 0
        %1081 = vmatpush.bf16.msra.mxu0 %v730
        %1082 = vmatpush.bf16.msra.mxu0 %v665
        %1083 = vmatmul.bf16.gmra.mxu0 %v684
        %v1084 = vpop.f32.mrf.mxu0
        %v1085 = vadd.f32 %v613, %v1084
        %v1086 = vpop.f32.mrf.mxu0
        %v1087 = vadd.f32 %v613, %v1086
        %1088 = vmatmul.bf16.gmra.mxu0 %v687
        %v1089 = vpop.f32.mrf.mxu0
        %v1090 = vadd.f32 %v613, %v1089
        %v1091 = vpop.f32.mrf.mxu0
        %v1092 = vadd.f32 %v613, %v1091
        %1093 = vmatmul.bf16.gmra.mxu0 %v690
        %v1094 = vpop.f32.mrf.mxu0
        %v1095 = vadd.f32 %v613, %v1094
        %v1096 = vpop.f32.mrf.mxu0
        %v1097 = vadd.f32 %v613, %v1096
        %1098 = vmatmul.bf16.gmra.mxu0 %v693
        %v1099 = vpop.f32.mrf.mxu0
        %v1100 = vadd.f32 %v613, %v1099
        %v1101 = vpop.f32.mrf.mxu0
        %v1102 = vadd.f32 %v613, %v1101
        %1103 = vmatmul.bf16.gmra.mxu0 %v696
        %v1104 = vpop.f32.mrf.mxu0
        %v1105 = vadd.f32 %v613, %v1104
        %v1106 = vpop.f32.mrf.mxu0
        %v1107 = vadd.f32 %v613, %v1106
        %1108 = vmatmul.bf16.gmra.mxu0 %v699
        %v1109 = vpop.f32.mrf.mxu0
        %v1110 = vadd.f32 %v613, %v1109
        %v1111 = vpop.f32.mrf.mxu0
        %v1112 = vadd.f32 %v613, %v1111
        %1113 = vmatmul.bf16.gmra.mxu0 %v702
        %v1114 = vpop.f32.mrf.mxu0
        %v1115 = vadd.f32 %v613, %v1114
        %v1116 = vpop.f32.mrf.mxu0
        %v1117 = vadd.f32 %v613, %v1116
        %1118 = vmatmul.bf16.gmra.mxu0 %v705
        %v1119 = vpop.f32.mrf.mxu0
        %v1120 = vadd.f32 %v613, %v1119
        %v1121 = vpop.f32.mrf.mxu0
        %v1122 = vadd.f32 %v613, %v1121
        %1123 = vdwg.mxu0
        %v1124 = vmax.f32 %v742, 0.0
        %v1125 = vmax.f32 %v791, 0.0
        %v1126 = vmax.f32 %v840, 0.0
        %v1127 = vmax.f32 %v889, 0.0
        %v1128 = vmax.f32 %v938, 0.0
        %v1129 = vmax.f32 %v987, 0.0
        %v1130 = vmax.f32 %v1036, 0.0
        %v1131 = vmax.f32 %v1085, 0.0
        %v1132 = vmax.f32 %v744, 0.0
        %v1133 = vmax.f32 %v793, 0.0
        %v1134 = vmax.f32 %v842, 0.0
        %v1135 = vmax.f32 %v891, 0.0
        %v1136 = vmax.f32 %v940, 0.0
        %v1137 = vmax.f32 %v989, 0.0
        %v1138 = vmax.f32 %v1038, 0.0
        %v1139 = vmax.f32 %v1087, 0.0
        %v1140 = vmax.f32 %v747, 0.0
        %v1141 = vmax.f32 %v796, 0.0
        %v1142 = vmax.f32 %v845, 0.0
        %v1143 = vmax.f32 %v894, 0.0
        %v1144 = vmax.f32 %v943, 0.0
        %v1145 = vmax.f32 %v992, 0.0
        %v1146 = vmax.f32 %v1041, 0.0
        %v1147 = vmax.f32 %v1090, 0.0
        %v1148 = vmax.f32 %v749, 0.0
        %v1149 = vmax.f32 %v798, 0.0
        %v1150 = vmax.f32 %v847, 0.0
        %v1151 = vmax.f32 %v896, 0.0
        %v1152 = vmax.f32 %v945, 0.0
        %v1153 = vmax.f32 %v994, 0.0
        %v1154 = vmax.f32 %v1043, 0.0
        %v1155 = vmax.f32 %v1092, 0.0
        %v1156 = vmax.f32 %v752, 0.0
        %v1157 = vmax.f32 %v801, 0.0
        %v1158 = vmax.f32 %v850, 0.0
        %v1159 = vmax.f32 %v899, 0.0
        %v1160 = vmax.f32 %v948, 0.0
        %v1161 = vmax.f32 %v997, 0.0
        %v1162 = vmax.f32 %v1046, 0.0
        %v1163 = vmax.f32 %v1095, 0.0
        %v1164 = vmax.f32 %v754, 0.0
        %v1165 = vmax.f32 %v803, 0.0
        %v1166 = vmax.f32 %v852, 0.0
        %v1167 = vmax.f32 %v901, 0.0
        %v1168 = vmax.f32 %v950, 0.0
        %v1169 = vmax.f32 %v999, 0.0
        %v1170 = vmax.f32 %v1048, 0.0
        %v1171 = vmax.f32 %v1097, 0.0
        %v1172 = vmax.f32 %v757, 0.0
        %v1173 = vmax.f32 %v806, 0.0
        %v1174 = vmax.f32 %v855, 0.0
        %v1175 = vmax.f32 %v904, 0.0
        %v1176 = vmax.f32 %v953, 0.0
        %v1177 = vmax.f32 %v1002, 0.0
        %v1178 = vmax.f32 %v1051, 0.0
        %v1179 = vmax.f32 %v1100, 0.0
        %v1180 = vmax.f32 %v759, 0.0
        %v1181 = vmax.f32 %v808, 0.0
        %v1182 = vmax.f32 %v857, 0.0
        %v1183 = vmax.f32 %v906, 0.0
        %v1184 = vmax.f32 %v955, 0.0
        %v1185 = vmax.f32 %v1004, 0.0
        %v1186 = vmax.f32 %v1053, 0.0
        %v1187 = vmax.f32 %v1102, 0.0
        %v1188 = vmax.f32 %v762, 0.0
        %v1189 = vmax.f32 %v811, 0.0
        %v1190 = vmax.f32 %v860, 0.0
        %v1191 = vmax.f32 %v909, 0.0
        %v1192 = vmax.f32 %v958, 0.0
        %v1193 = vmax.f32 %v1007, 0.0
        %v1194 = vmax.f32 %v1056, 0.0
        %v1195 = vmax.f32 %v1105, 0.0
        %v1196 = vmax.f32 %v764, 0.0
        %v1197 = vmax.f32 %v813, 0.0
        %v1198 = vmax.f32 %v862, 0.0
        %v1199 = vmax.f32 %v911, 0.0
        %v1200 = vmax.f32 %v960, 0.0
        %v1201 = vmax.f32 %v1009, 0.0
        %v1202 = vmax.f32 %v1058, 0.0
        %v1203 = vmax.f32 %v1107, 0.0
        %v1204 = vmax.f32 %v767, 0.0
        %v1205 = vmax.f32 %v816, 0.0
        %v1206 = vmax.f32 %v865, 0.0
        %v1207 = vmax.f32 %v914, 0.0
        %v1208 = vmax.f32 %v963, 0.0
        %v1209 = vmax.f32 %v1012, 0.0
        %v1210 = vmax.f32 %v1061, 0.0
        %v1211 = vmax.f32 %v1110, 0.0
        %v1212 = vmax.f32 %v769, 0.0
        %v1213 = vmax.f32 %v818, 0.0
        %v1214 = vmax.f32 %v867, 0.0
        %v1215 = vmax.f32 %v916, 0.0
        %v1216 = vmax.f32 %v965, 0.0
        %v1217 = vmax.f32 %v1014, 0.0
        %v1218 = vmax.f32 %v1063, 0.0
        %v1219 = vmax.f32 %v1112, 0.0
        %v1220 = vmax.f32 %v772, 0.0
        %v1221 = vmax.f32 %v821, 0.0
        %v1222 = vmax.f32 %v870, 0.0
        %v1223 = vmax.f32 %v919, 0.0
        %v1224 = vmax.f32 %v968, 0.0
        %v1225 = vmax.f32 %v1017, 0.0
        %v1226 = vmax.f32 %v1066, 0.0
        %v1227 = vmax.f32 %v1115, 0.0
        %v1228 = vmax.f32 %v774, 0.0
        %v1229 = vmax.f32 %v823, 0.0
        %v1230 = vmax.f32 %v872, 0.0
        %v1231 = vmax.f32 %v921, 0.0
        %v1232 = vmax.f32 %v970, 0.0
        %v1233 = vmax.f32 %v1019, 0.0
        %v1234 = vmax.f32 %v1068, 0.0
        %v1235 = vmax.f32 %v1117, 0.0
        %v1236 = vmax.f32 %v777, 0.0
        %v1237 = vmax.f32 %v826, 0.0
        %v1238 = vmax.f32 %v875, 0.0
        %v1239 = vmax.f32 %v924, 0.0
        %v1240 = vmax.f32 %v973, 0.0
        %v1241 = vmax.f32 %v1022, 0.0
        %v1242 = vmax.f32 %v1071, 0.0
        %v1243 = vmax.f32 %v1120, 0.0
        %v1244 = vmax.f32 %v779, 0.0
        %v1245 = vmax.f32 %v828, 0.0
        %v1246 = vmax.f32 %v877, 0.0
        %v1247 = vmax.f32 %v926, 0.0
        %v1248 = vmax.f32 %v975, 0.0
        %v1249 = vmax.f32 %v1024, 0.0
        %v1250 = vmax.f32 %v1073, 0.0
        %v1251 = vmax.f32 %v1122, 0.0
        %v1252 = vadd.f32 %v1124, %v1125
        %v1253 = vadd.f32 %v1252, %v1126
        %v1254 = vadd.f32 %v1253, %v1127
        %1255 = vadd.xlane.f32.xlu0 %v1254
        %v1256 = vpop.xlane.xlu0 %1255
        %v1257 = vadd.f32 %v1132, %v1133
        %v1258 = vadd.f32 %v1257, %v1134
        %v1259 = vadd.f32 %v1258, %v1135
        %1260 = vadd.xlane.f32.xlu0 %v1259
        %v1261 = vpop.xlane.xlu0 %1260
        %v1262 = vadd.f32 %v1140, %v1141
        %v1263 = vadd.f32 %v1262, %v1142
        %v1264 = vadd.f32 %v1263, %v1143
        %1265 = vadd.xlane.f32.xlu0 %v1264
        %v1266 = vpop.xlane.xlu0 %1265
        %v1267 = vadd.f32 %v1148, %v1149
        %v1268 = vadd.f32 %v1267, %v1150
        %v1269 = vadd.f32 %v1268, %v1151
        %1270 = vadd.xlane.f32.xlu0 %v1269
        %v1271 = vpop.xlane.xlu0 %1270
        %v1272 = vadd.f32 %v1156, %v1157
        %v1273 = vadd.f32 %v1272, %v1158
        %v1274 = vadd.f32 %v1273, %v1159
        %1275 = vadd.xlane.f32.xlu0 %v1274
        %v1276 = vpop.xlane.xlu0 %1275
        %v1277 = vadd.f32 %v1164, %v1165
        %v1278 = vadd.f32 %v1277, %v1166
        %v1279 = vadd.f32 %v1278, %v1167
        %1280 = vadd.xlane.f32.xlu0 %v1279
        %v1281 = vpop.xlane.xlu0 %1280
        %v1282 = vadd.f32 %v1172, %v1173
        %v1283 = vadd.f32 %v1282, %v1174
        %v1284 = vadd.f32 %v1283, %v1175
        %1285 = vadd.xlane.f32.xlu0 %v1284
        %v1286 = vpop.xlane.xlu0 %1285
        %v1287 = vadd.f32 %v1180, %v1181
        %v1288 = vadd.f32 %v1287, %v1182
        %v1289 = vadd.f32 %v1288, %v1183
        %1290 = vadd.xlane.f32.xlu0 %v1289
        %v1291 = vpop.xlane.xlu0 %1290
        %v1292 = vadd.f32 %v1188, %v1189
        %v1293 = vadd.f32 %v1292, %v1190
        %v1294 = vadd.f32 %v1293, %v1191
        %1295 = vadd.xlane.f32.xlu0 %v1294
        %v1296 = vpop.xlane.xlu0 %1295
        %v1297 = vadd.f32 %v1196, %v1197
        %v1298 = vadd.f32 %v1297, %v1198
        %v1299 = vadd.f32 %v1298, %v1199
        %1300 = vadd.xlane.f32.xlu0 %v1299
        %v1301 = vpop.xlane.xlu0 %1300
        %v1302 = vadd.f32 %v1204, %v1205
        %v1303 = vadd.f32 %v1302, %v1206
        %v1304 = vadd.f32 %v1303, %v1207
        %1305 = vadd.xlane.f32.xlu0 %v1304
        %v1306 = vpop.xlane.xlu0 %1305
        %v1307 = vadd.f32 %v1212, %v1213
        %v1308 = vadd.f32 %v1307, %v1214
        %v1309 = vadd.f32 %v1308, %v1215
        %1310 = vadd.xlane.f32.xlu0 %v1309
        %v1311 = vpop.xlane.xlu0 %1310
        %v1312 = vadd.f32 %v1220, %v1221
        %v1313 = vadd.f32 %v1312, %v1222
        %v1314 = vadd.f32 %v1313, %v1223
        %1315 = vadd.xlane.f32.xlu0 %v1314
        %v1316 = vpop.xlane.xlu0 %1315
        %v1317 = vadd.f32 %v1228, %v1229
        %v1318 = vadd.f32 %v1317, %v1230
        %v1319 = vadd.f32 %v1318, %v1231
        %1320 = vadd.xlane.f32.xlu0 %v1319
        %v1321 = vpop.xlane.xlu0 %1320
        %v1322 = vadd.f32 %v1236, %v1237
        %v1323 = vadd.f32 %v1322, %v1238
        %v1324 = vadd.f32 %v1323, %v1239
        %1325 = vadd.xlane.f32.xlu0 %v1324
        %v1326 = vpop.xlane.xlu0 %1325
        %v1327 = vadd.f32 %v1244, %v1245
        %v1328 = vadd.f32 %v1327, %v1246
        %v1329 = vadd.f32 %v1328, %v1247
        %1330 = vadd.xlane.f32.xlu0 %v1329
        %v1331 = vpop.xlane.xlu0 %1330
        %v1332 = vrcp.pop 512.0
        %v1333 = vmul.f32 512.0, %v1332
        %v1334 = vsub.f32 1.0, %v1333
        %v1335 = vmul.f32 %v1332, %v1334
        %v1336 = vadd.f32 %v1332, %v1335
        %vm1337 = vweird.f32 %v1332
        %v1338 = vsel %vm1337, %v1332, %v1336
        %v1339 = vmul.f32 %v1256, %v1338
        %v1340 = vmul.f32 %v1261, %v1338
        %v1341 = vmul.f32 %v1266, %v1338
        %v1342 = vmul.f32 %v1271, %v1338
        %v1343 = vmul.f32 %v1276, %v1338
        %v1344 = vmul.f32 %v1281, %v1338
        %v1345 = vmul.f32 %v1286, %v1338
        %v1346 = vmul.f32 %v1291, %v1338
        %v1347 = vmul.f32 %v1296, %v1338
        %v1348 = vmul.f32 %v1301, %v1338
        %v1349 = vmul.f32 %v1306, %v1338
        %v1350 = vmul.f32 %v1311, %v1338
        %v1351 = vmul.f32 %v1316, %v1338
        %v1352 = vmul.f32 %v1321, %v1338
        %v1353 = vmul.f32 %v1326, %v1338
        %v1354 = vmul.f32 %v1331, %v1338
        %v1355 = vmul.f32 %v1124, %v1124
        %v1356 = vmul.f32 %v1125, %v1125
        %v1357 = vmul.f32 %v1126, %v1126
        %v1358 = vmul.f32 %v1127, %v1127
        %v1359 = vmul.f32 %v1132, %v1132
        %v1360 = vmul.f32 %v1133, %v1133
        %v1361 = vmul.f32 %v1134, %v1134
        %v1362 = vmul.f32 %v1135, %v1135
        %v1363 = vmul.f32 %v1140, %v1140
        %v1364 = vmul.f32 %v1141, %v1141
        %v1365 = vmul.f32 %v1142, %v1142
        %v1366 = vmul.f32 %v1143, %v1143
        %v1367 = vmul.f32 %v1148, %v1148
        %v1368 = vmul.f32 %v1149, %v1149
        %v1369 = vmul.f32 %v1150, %v1150
        %v1370 = vmul.f32 %v1151, %v1151
        %v1371 = vmul.f32 %v1156, %v1156
        %v1372 = vmul.f32 %v1157, %v1157
        %v1373 = vmul.f32 %v1158, %v1158
        %v1374 = vmul.f32 %v1159, %v1159
        %v1375 = vmul.f32 %v1164, %v1164
        %v1376 = vmul.f32 %v1165, %v1165
        %v1377 = vmul.f32 %v1166, %v1166
        %v1378 = vmul.f32 %v1167, %v1167
        %v1379 = vmul.f32 %v1172, %v1172
        %v1380 = vmul.f32 %v1173, %v1173
        %v1381 = vmul.f32 %v1174, %v1174
        %v1382 = vmul.f32 %v1175, %v1175
        %v1383 = vmul.f32 %v1180, %v1180
        %v1384 = vmul.f32 %v1181, %v1181
        %v1385 = vmul.f32 %v1182, %v1182
        %v1386 = vmul.f32 %v1183, %v1183
        %v1387 = vmul.f32 %v1188, %v1188
        %v1388 = vmul.f32 %v1189, %v1189
        %v1389 = vmul.f32 %v1190, %v1190
        %v1390 = vmul.f32 %v1191, %v1191
        %v1391 = vmul.f32 %v1196, %v1196
        %v1392 = vmul.f32 %v1197, %v1197
        %v1393 = vmul.f32 %v1198, %v1198
        %v1394 = vmul.f32 %v1199, %v1199
        %v1395 = vmul.f32 %v1204, %v1204
        %v1396 = vmul.f32 %v1205, %v1205
        %v1397 = vmul.f32 %v1206, %v1206
        %v1398 = vmul.f32 %v1207, %v1207
        %v1399 = vmul.f32 %v1212, %v1212
        %v1400 = vmul.f32 %v1213, %v1213
        %v1401 = vmul.f32 %v1214, %v1214
        %v1402 = vmul.f32 %v1215, %v1215
        %v1403 = vmul.f32 %v1220, %v1220
        %v1404 = vmul.f32 %v1221, %v1221
        %v1405 = vmul.f32 %v1222, %v1222
        %v1406 = vmul.f32 %v1223, %v1223
        %v1407 = vmul.f32 %v1228, %v1228
        %v1408 = vmul.f32 %v1229, %v1229
        %v1409 = vmul.f32 %v1230, %v1230
        %v1410 = vmul.f32 %v1231, %v1231
        %v1411 = vmul.f32 %v1236, %v1236
        %v1412 = vmul.f32 %v1237, %v1237
        %v1413 = vmul.f32 %v1238, %v1238
        %v1414 = vmul.f32 %v1239, %v1239
        %v1415 = vmul.f32 %v1244, %v1244
        %v1416 = vmul.f32 %v1245, %v1245
        %v1417 = vmul.f32 %v1246, %v1246
        %v1418 = vmul.f32 %v1247, %v1247
        %v1419 = vadd.f32 %v1355, %v1356
        %v1420 = vadd.f32 %v1419, %v1357
        %v1421 = vadd.f32 %v1420, %v1358
        %1422 = vadd.xlane.f32.xlu0 %v1421
        %v1423 = vpop.xlane.xlu0 %1422
        %v1424 = vadd.f32 %v1359, %v1360
        %v1425 = vadd.f32 %v1424, %v1361
        %v1426 = vadd.f32 %v1425, %v1362
        %1427 = vadd.xlane.f32.xlu0 %v1426
        %v1428 = vpop.xlane.xlu0 %1427
        %v1429 = vadd.f32 %v1363, %v1364
        %v1430 = vadd.f32 %v1429, %v1365
        %v1431 = vadd.f32 %v1430, %v1366
        %1432 = vadd.xlane.f32.xlu0 %v1431
        %v1433 = vpop.xlane.xlu0 %1432
        %v1434 = vadd.f32 %v1367, %v1368
        %v1435 = vadd.f32 %v1434, %v1369
        %v1436 = vadd.f32 %v1435, %v1370
        %1437 = vadd.xlane.f32.xlu0 %v1436
        %v1438 = vpop.xlane.xlu0 %1437
        %v1439 = vadd.f32 %v1371, %v1372
        %v1440 = vadd.f32 %v1439, %v1373
        %v1441 = vadd.f32 %v1440, %v1374
        %1442 = vadd.xlane.f32.xlu0 %v1441
        %v1443 = vpop.xlane.xlu0 %1442
        %v1444 = vadd.f32 %v1375, %v1376
        %v1445 = vadd.f32 %v1444, %v1377
        %v1446 = vadd.f32 %v1445, %v1378
        %1447 = vadd.xlane.f32.xlu0 %v1446
        %v1448 = vpop.xlane.xlu0 %1447
        %v1449 = vadd.f32 %v1379, %v1380
        %v1450 = vadd.f32 %v1449, %v1381
        %v1451 = vadd.f32 %v1450, %v1382
        %1452 = vadd.xlane.f32.xlu0 %v1451
        %v1453 = vpop.xlane.xlu0 %1452
        %v1454 = vadd.f32 %v1383, %v1384
        %v1455 = vadd.f32 %v1454, %v1385
        %v1456 = vadd.f32 %v1455, %v1386
        %1457 = vadd.xlane.f32.xlu0 %v1456
        %v1458 = vpop.xlane.xlu0 %1457
        %v1459 = vadd.f32 %v1387, %v1388
        %v1460 = vadd.f32 %v1459, %v1389
        %v1461 = vadd.f32 %v1460, %v1390
        %1462 = vadd.xlane.f32.xlu0 %v1461
        %v1463 = vpop.xlane.xlu0 %1462
        %v1464 = vadd.f32 %v1391, %v1392
        %v1465 = vadd.f32 %v1464, %v1393
        %v1466 = vadd.f32 %v1465, %v1394
        %1467 = vadd.xlane.f32.xlu0 %v1466
        %v1468 = vpop.xlane.xlu0 %1467
        %v1469 = vadd.f32 %v1395, %v1396
        %v1470 = vadd.f32 %v1469, %v1397
        %v1471 = vadd.f32 %v1470, %v1398
        %1472 = vadd.xlane.f32.xlu0 %v1471
        %v1473 = vpop.xlane.xlu0 %1472
        %v1474 = vadd.f32 %v1399, %v1400
        %v1475 = vadd.f32 %v1474, %v1401
        %v1476 = vadd.f32 %v1475, %v1402
        %1477 = vadd.xlane.f32.xlu0 %v1476
        %v1478 = vpop.xlane.xlu0 %1477
        %v1479 = vadd.f32 %v1403, %v1404
        %v1480 = vadd.f32 %v1479, %v1405
        %v1481 = vadd.f32 %v1480, %v1406
        %1482 = vadd.xlane.f32.xlu0 %v1481
        %v1483 = vpop.xlane.xlu0 %1482
        %v1484 = vadd.f32 %v1407, %v1408
        %v1485 = vadd.f32 %v1484, %v1409
        %v1486 = vadd.f32 %v1485, %v1410
        %1487 = vadd.xlane.f32.xlu0 %v1486
        %v1488 = vpop.xlane.xlu0 %1487
        %v1489 = vadd.f32 %v1411, %v1412
        %v1490 = vadd.f32 %v1489, %v1413
        %v1491 = vadd.f32 %v1490, %v1414
        %1492 = vadd.xlane.f32.xlu0 %v1491
        %v1493 = vpop.xlane.xlu0 %1492
        %v1494 = vadd.f32 %v1415, %v1416
        %v1495 = vadd.f32 %v1494, %v1417
        %v1496 = vadd.f32 %v1495, %v1418
        %1497 = vadd.xlane.f32.xlu0 %v1496
        %v1498 = vpop.xlane.xlu0 %1497
        %v1499 = vmul.f32 %v1423, %v1338
        %v1500 = vmul.f32 %v1428, %v1338
        %v1501 = vmul.f32 %v1433, %v1338
        %v1502 = vmul.f32 %v1438, %v1338
        %v1503 = vmul.f32 %v1443, %v1338
        %v1504 = vmul.f32 %v1448, %v1338
        %v1505 = vmul.f32 %v1453, %v1338
        %v1506 = vmul.f32 %v1458, %v1338
        %v1507 = vmul.f32 %v1463, %v1338
        %v1508 = vmul.f32 %v1468, %v1338
        %v1509 = vmul.f32 %v1473, %v1338
        %v1510 = vmul.f32 %v1478, %v1338
        %v1511 = vmul.f32 %v1483, %v1338
        %v1512 = vmul.f32 %v1488, %v1338
        %v1513 = vmul.f32 %v1493, %v1338
        %v1514 = vmul.f32 %v1498, %v1338
        %v1515 = vmul.f32 %v1339, %v1339
        %v1516 = vmul.f32 %v1340, %v1340
        %v1517 = vmul.f32 %v1341, %v1341
        %v1518 = vmul.f32 %v1342, %v1342
        %v1519 = vmul.f32 %v1343, %v1343
        %v1520 = vmul.f32 %v1344, %v1344
        %v1521 = vmul.f32 %v1345, %v1345
        %v1522 = vmul.f32 %v1346, %v1346
        %v1523 = vmul.f32 %v1347, %v1347
        %v1524 = vmul.f32 %v1348, %v1348
        %v1525 = vmul.f32 %v1349, %v1349
        %v1526 = vmul.f32 %v1350, %v1350
        %v1527 = vmul.f32 %v1351, %v1351
        %v1528 = vmul.f32 %v1352, %v1352
        %v1529 = vmul.f32 %v1353, %v1353
        %v1530 = vmul.f32 %v1354, %v1354
        %v1531 = vsub.f32 %v1499, %v1515
        %v1532 = vsub.f32 %v1500, %v1516
        %v1533 = vsub.f32 %v1501, %v1517
        %v1534 = vsub.f32 %v1502, %v1518
        %v1535 = vsub.f32 %v1503, %v1519
        %v1536 = vsub.f32 %v1504, %v1520
        %v1537 = vsub.f32 %v1505, %v1521
        %v1538 = vsub.f32 %v1506, %v1522
        %v1539 = vsub.f32 %v1507, %v1523
        %v1540 = vsub.f32 %v1508, %v1524
        %v1541 = vsub.f32 %v1509, %v1525
        %v1542 = vsub.f32 %v1510, %v1526
        %v1543 = vsub.f32 %v1511, %v1527
        %v1544 = vsub.f32 %v1512, %v1528
        %v1545 = vsub.f32 %v1513, %v1529
        %v1546 = vsub.f32 %v1514, %v1530
        %v1547 = vmax.f32 %v1531, 0.0
        %v1548 = vmax.f32 %v1532, 0.0
        %v1549 = vmax.f32 %v1533, 0.0
        %v1550 = vmax.f32 %v1534, 0.0
        %v1551 = vmax.f32 %v1535, 0.0
        %v1552 = vmax.f32 %v1536, 0.0
        %v1553 = vmax.f32 %v1537, 0.0
        %v1554 = vmax.f32 %v1538, 0.0
        %v1555 = vmax.f32 %v1539, 0.0
        %v1556 = vmax.f32 %v1540, 0.0
        %v1557 = vmax.f32 %v1541, 0.0
        %v1558 = vmax.f32 %v1542, 0.0
        %v1559 = vmax.f32 %v1543, 0.0
        %v1560 = vmax.f32 %v1544, 0.0
        %v1561 = vmax.f32 %v1545, 0.0
        %v1562 = vmax.f32 %v1546, 0.0
        %v1563 = vsub.f32 %v1124, %v1339
        %v1564 = vsub.f32 %v1125, %v1339
        %v1565 = vsub.f32 %v1126, %v1339
        %v1566 = vsub.f32 %v1127, %v1339
        %v1567 = vsub.f32 %v1132, %v1340
        %v1568 = vsub.f32 %v1133, %v1340
        %v1569 = vsub.f32 %v1134, %v1340
        %v1570 = vsub.f32 %v1135, %v1340
        %v1571 = vsub.f32 %v1140, %v1341
        %v1572 = vsub.f32 %v1141, %v1341
        %v1573 = vsub.f32 %v1142, %v1341
        %v1574 = vsub.f32 %v1143, %v1341
        %v1575 = vsub.f32 %v1148, %v1342
        %v1576 = vsub.f32 %v1149, %v1342
        %v1577 = vsub.f32 %v1150, %v1342
        %v1578 = vsub.f32 %v1151, %v1342
        %v1579 = vsub.f32 %v1156, %v1343
        %v1580 = vsub.f32 %v1157, %v1343
        %v1581 = vsub.f32 %v1158, %v1343
        %v1582 = vsub.f32 %v1159, %v1343
        %v1583 = vsub.f32 %v1164, %v1344
        %v1584 = vsub.f32 %v1165, %v1344
        %v1585 = vsub.f32 %v1166, %v1344
        %v1586 = vsub.f32 %v1167, %v1344
        %v1587 = vsub.f32 %v1172, %v1345
        %v1588 = vsub.f32 %v1173, %v1345
        %v1589 = vsub.f32 %v1174, %v1345
        %v1590 = vsub.f32 %v1175, %v1345
        %v1591 = vsub.f32 %v1180, %v1346
        %v1592 = vsub.f32 %v1181, %v1346
        %v1593 = vsub.f32 %v1182, %v1346
        %v1594 = vsub.f32 %v1183, %v1346
        %v1595 = vsub.f32 %v1188, %v1347
        %v1596 = vsub.f32 %v1189, %v1347
        %v1597 = vsub.f32 %v1190, %v1347
        %v1598 = vsub.f32 %v1191, %v1347
        %v1599 = vsub.f32 %v1196, %v1348
        %v1600 = vsub.f32 %v1197, %v1348
        %v1601 = vsub.f32 %v1198, %v1348
        %v1602 = vsub.f32 %v1199, %v1348
        %v1603 = vsub.f32 %v1204, %v1349
        %v1604 = vsub.f32 %v1205, %v1349
        %v1605 = vsub.f32 %v1206, %v1349
        %v1606 = vsub.f32 %v1207, %v1349
        %v1607 = vsub.f32 %v1212, %v1350
        %v1608 = vsub.f32 %v1213, %v1350
        %v1609 = vsub.f32 %v1214, %v1350
        %v1610 = vsub.f32 %v1215, %v1350
        %v1611 = vsub.f32 %v1220, %v1351
        %v1612 = vsub.f32 %v1221, %v1351
        %v1613 = vsub.f32 %v1222, %v1351
        %v1614 = vsub.f32 %v1223, %v1351
        %v1615 = vsub.f32 %v1228, %v1352
        %v1616 = vsub.f32 %v1229, %v1352
        %v1617 = vsub.f32 %v1230, %v1352
        %v1618 = vsub.f32 %v1231, %v1352
        %v1619 = vsub.f32 %v1236, %v1353
        %v1620 = vsub.f32 %v1237, %v1353
        %v1621 = vsub.f32 %v1238, %v1353
        %v1622 = vsub.f32 %v1239, %v1353
        %v1623 = vsub.f32 %v1244, %v1354
        %v1624 = vsub.f32 %v1245, %v1354
        %v1625 = vsub.f32 %v1246, %v1354
        %v1626 = vsub.f32 %v1247, %v1354
        %v1627 = vadd.f32 %v1547, 1e-05
        %v1628 = vadd.f32 %v1548, 1e-05
        %v1629 = vadd.f32 %v1549, 1e-05
        %v1630 = vadd.f32 %v1550, 1e-05
        %v1631 = vadd.f32 %v1551, 1e-05
        %v1632 = vadd.f32 %v1552, 1e-05
        %v1633 = vadd.f32 %v1553, 1e-05
        %v1634 = vadd.f32 %v1554, 1e-05
        %v1635 = vadd.f32 %v1555, 1e-05
        %v1636 = vadd.f32 %v1556, 1e-05
        %v1637 = vadd.f32 %v1557, 1e-05
        %v1638 = vadd.f32 %v1558, 1e-05
        %v1639 = vadd.f32 %v1559, 1e-05
        %v1640 = vadd.f32 %v1560, 1e-05
        %v1641 = vadd.f32 %v1561, 1e-05
        %v1642 = vadd.f32 %v1562, 1e-05
        %v1643 = vrsqrt.pop %v1627
        %v1644 = vmul.f32 %v1643, %v1627
        %v1645 = vmul.f32 %v1644, %v1643
        %v1646 = vmul.f32 0.5, %v1645
        %v1647 = vsub.f32 1.5, %v1646
        %v1648 = vmul.f32 %v1643, %v1647
        %vm1649 = vweird.f32 %v1627
        %vm1650 = vweird.f32 %v1643
        %vm1651 = vmor %vm1649, %vm1650
        %v1652 = vsel %vm1651, %v1643, %v1648
        %v1653 = vrsqrt.pop %v1628
        %v1654 = vmul.f32 %v1653, %v1628
        %v1655 = vmul.f32 %v1654, %v1653
        %v1656 = vmul.f32 0.5, %v1655
        %v1657 = vsub.f32 1.5, %v1656
        %v1658 = vmul.f32 %v1653, %v1657
        %vm1659 = vweird.f32 %v1628
        %vm1660 = vweird.f32 %v1653
        %vm1661 = vmor %vm1659, %vm1660
        %v1662 = vsel %vm1661, %v1653, %v1658
        %v1663 = vrsqrt.pop %v1629
        %v1664 = vmul.f32 %v1663, %v1629
        %v1665 = vmul.f32 %v1664, %v1663
        %v1666 = vmul.f32 0.5, %v1665
        %v1667 = vsub.f32 1.5, %v1666
        %v1668 = vmul.f32 %v1663, %v1667
        %vm1669 = vweird.f32 %v1629
        %vm1670 = vweird.f32 %v1663
        %vm1671 = vmor %vm1669, %vm1670
        %v1672 = vsel %vm1671, %v1663, %v1668
        %v1673 = vrsqrt.pop %v1630
        %v1674 = vmul.f32 %v1673, %v1630
        %v1675 = vmul.f32 %v1674, %v1673
        %v1676 = vmul.f32 0.5, %v1675
        %v1677 = vsub.f32 1.5, %v1676
        %v1678 = vmul.f32 %v1673, %v1677
        %vm1679 = vweird.f32 %v1630
        %vm1680 = vweird.f32 %v1673
        %vm1681 = vmor %vm1679, %vm1680
        %v1682 = vsel %vm1681, %v1673, %v1678
        %v1683 = vrsqrt.pop %v1631
        %v1684 = vmul.f32 %v1683, %v1631
        %v1685 = vmul.f32 %v1684, %v1683
        %v1686 = vmul.f32 0.5, %v1685
        %v1687 = vsub.f32 1.5, %v1686
        %v1688 = vmul.f32 %v1683, %v1687
        %vm1689 = vweird.f32 %v1631
        %vm1690 = vweird.f32 %v1683
        %vm1691 = vmor %vm1689, %vm1690
        %v1692 = vsel %vm1691, %v1683, %v1688
        %v1693 = vrsqrt.pop %v1632
        %v1694 = vmul.f32 %v1693, %v1632
        %v1695 = vmul.f32 %v1694, %v1693
        %v1696 = vmul.f32 0.5, %v1695
        %v1697 = vsub.f32 1.5, %v1696
        %v1698 = vmul.f32 %v1693, %v1697
        %vm1699 = vweird.f32 %v1632
        %vm1700 = vweird.f32 %v1693
        %vm1701 = vmor %vm1699, %vm1700
        %v1702 = vsel %vm1701, %v1693, %v1698
        %v1703 = vrsqrt.pop %v1633
        %v1704 = vmul.f32 %v1703, %v1633
        %v1705 = vmul.f32 %v1704, %v1703
        %v1706 = vmul.f32 0.5, %v1705
        %v1707 = vsub.f32 1.5, %v1706
        %v1708 = vmul.f32 %v1703, %v1707
        %vm1709 = vweird.f32 %v1633
        %vm1710 = vweird.f32 %v1703
        %vm1711 = vmor %vm1709, %vm1710
        %v1712 = vsel %vm1711, %v1703, %v1708
        %v1713 = vrsqrt.pop %v1634
        %v1714 = vmul.f32 %v1713, %v1634
        %v1715 = vmul.f32 %v1714, %v1713
        %v1716 = vmul.f32 0.5, %v1715
        %v1717 = vsub.f32 1.5, %v1716
        %v1718 = vmul.f32 %v1713, %v1717
        %vm1719 = vweird.f32 %v1634
        %vm1720 = vweird.f32 %v1713
        %vm1721 = vmor %vm1719, %vm1720
        %v1722 = vsel %vm1721, %v1713, %v1718
        %v1723 = vrsqrt.pop %v1635
        %v1724 = vmul.f32 %v1723, %v1635
        %v1725 = vmul.f32 %v1724, %v1723
        %v1726 = vmul.f32 0.5, %v1725
        %v1727 = vsub.f32 1.5, %v1726
        %v1728 = vmul.f32 %v1723, %v1727
        %vm1729 = vweird.f32 %v1635
        %vm1730 = vweird.f32 %v1723
        %vm1731 = vmor %vm1729, %vm1730
        %v1732 = vsel %vm1731, %v1723, %v1728
        %v1733 = vrsqrt.pop %v1636
        %v1734 = vmul.f32 %v1733, %v1636
        %v1735 = vmul.f32 %v1734, %v1733
        %v1736 = vmul.f32 0.5, %v1735
        %v1737 = vsub.f32 1.5, %v1736
        %v1738 = vmul.f32 %v1733, %v1737
        %vm1739 = vweird.f32 %v1636
        %vm1740 = vweird.f32 %v1733
        %vm1741 = vmor %vm1739, %vm1740
        %v1742 = vsel %vm1741, %v1733, %v1738
        %v1743 = vrsqrt.pop %v1637
        %v1744 = vmul.f32 %v1743, %v1637
        %v1745 = vmul.f32 %v1744, %v1743
        %v1746 = vmul.f32 0.5, %v1745
        %v1747 = vsub.f32 1.5, %v1746
        %v1748 = vmul.f32 %v1743, %v1747
        %vm1749 = vweird.f32 %v1637
        %vm1750 = vweird.f32 %v1743
        %vm1751 = vmor %vm1749, %vm1750
        %v1752 = vsel %vm1751, %v1743, %v1748
        %v1753 = vrsqrt.pop %v1638
        %v1754 = vmul.f32 %v1753, %v1638
        %v1755 = vmul.f32 %v1754, %v1753
        %v1756 = vmul.f32 0.5, %v1755
        %v1757 = vsub.f32 1.5, %v1756
        %v1758 = vmul.f32 %v1753, %v1757
        %vm1759 = vweird.f32 %v1638
        %vm1760 = vweird.f32 %v1753
        %vm1761 = vmor %vm1759, %vm1760
        %v1762 = vsel %vm1761, %v1753, %v1758
        %v1763 = vrsqrt.pop %v1639
        %v1764 = vmul.f32 %v1763, %v1639
        %v1765 = vmul.f32 %v1764, %v1763
        %v1766 = vmul.f32 0.5, %v1765
        %v1767 = vsub.f32 1.5, %v1766
        %v1768 = vmul.f32 %v1763, %v1767
        %vm1769 = vweird.f32 %v1639
        %vm1770 = vweird.f32 %v1763
        %vm1771 = vmor %vm1769, %vm1770
        %v1772 = vsel %vm1771, %v1763, %v1768
        %v1773 = vrsqrt.pop %v1640
        %v1774 = vmul.f32 %v1773, %v1640
        %v1775 = vmul.f32 %v1774, %v1773
        %v1776 = vmul.f32 0.5, %v1775
        %v1777 = vsub.f32 1.5, %v1776
        %v1778 = vmul.f32 %v1773, %v1777
        %vm1779 = vweird.f32 %v1640
        %vm1780 = vweird.f32 %v1773
        %vm1781 = vmor %vm1779, %vm1780
        %v1782 = vsel %vm1781, %v1773, %v1778
        %v1783 = vrsqrt.pop %v1641
        %v1784 = vmul.f32 %v1783, %v1641
        %v1785 = vmul.f32 %v1784, %v1783
        %v1786 = vmul.f32 0.5, %v1785
        %v1787 = vsub.f32 1.5, %v1786
        %v1788 = vmul.f32 %v1783, %v1787
        %vm1789 = vweird.f32 %v1641
        %vm1790 = vweird.f32 %v1783
        %vm1791 = vmor %vm1789, %vm1790
        %v1792 = vsel %vm1791, %v1783, %v1788
        %v1793 = vrsqrt.pop %v1642
        %v1794 = vmul.f32 %v1793, %v1642
        %v1795 = vmul.f32 %v1794, %v1793
        %v1796 = vmul.f32 0.5, %v1795
        %v1797 = vsub.f32 1.5, %v1796
        %v1798 = vmul.f32 %v1793, %v1797
        %vm1799 = vweird.f32 %v1642
        %vm1800 = vweird.f32 %v1793
        %vm1801 = vmor %vm1799, %vm1800
        %v1802 = vsel %vm1801, %v1793, %v1798
        %v1803 = vmul.f32 %v1563, %v1652
        %v1804 = vmul.f32 %v1564, %v1652
        %v1805 = vmul.f32 %v1565, %v1652
        %v1806 = vmul.f32 %v1566, %v1652
        %v1807 = vmul.f32 %v1567, %v1662
        %v1808 = vmul.f32 %v1568, %v1662
        %v1809 = vmul.f32 %v1569, %v1662
        %v1810 = vmul.f32 %v1570, %v1662
        %v1811 = vmul.f32 %v1571, %v1672
        %v1812 = vmul.f32 %v1572, %v1672
        %v1813 = vmul.f32 %v1573, %v1672
        %v1814 = vmul.f32 %v1574, %v1672
        %v1815 = vmul.f32 %v1575, %v1682
        %v1816 = vmul.f32 %v1576, %v1682
        %v1817 = vmul.f32 %v1577, %v1682
        %v1818 = vmul.f32 %v1578, %v1682
        %v1819 = vmul.f32 %v1579, %v1692
        %v1820 = vmul.f32 %v1580, %v1692
        %v1821 = vmul.f32 %v1581, %v1692
        %v1822 = vmul.f32 %v1582, %v1692
        %v1823 = vmul.f32 %v1583, %v1702
        %v1824 = vmul.f32 %v1584, %v1702
        %v1825 = vmul.f32 %v1585, %v1702
        %v1826 = vmul.f32 %v1586, %v1702
        %v1827 = vmul.f32 %v1587, %v1712
        %v1828 = vmul.f32 %v1588, %v1712
        %v1829 = vmul.f32 %v1589, %v1712
        %v1830 = vmul.f32 %v1590, %v1712
        %v1831 = vmul.f32 %v1591, %v1722
        %v1832 = vmul.f32 %v1592, %v1722
        %v1833 = vmul.f32 %v1593, %v1722
        %v1834 = vmul.f32 %v1594, %v1722
        %v1835 = vmul.f32 %v1595, %v1732
        %v1836 = vmul.f32 %v1596, %v1732
        %v1837 = vmul.f32 %v1597, %v1732
        %v1838 = vmul.f32 %v1598, %v1732
        %v1839 = vmul.f32 %v1599, %v1742
        %v1840 = vmul.f32 %v1600, %v1742
        %v1841 = vmul.f32 %v1601, %v1742
        %v1842 = vmul.f32 %v1602, %v1742
        %v1843 = vmul.f32 %v1603, %v1752
        %v1844 = vmul.f32 %v1604, %v1752
        %v1845 = vmul.f32 %v1605, %v1752
        %v1846 = vmul.f32 %v1606, %v1752
        %v1847 = vmul.f32 %v1607, %v1762
        %v1848 = vmul.f32 %v1608, %v1762
        %v1849 = vmul.f32 %v1609, %v1762
        %v1850 = vmul.f32 %v1610, %v1762
        %v1851 = vmul.f32 %v1611, %v1772
        %v1852 = vmul.f32 %v1612, %v1772
        %v1853 = vmul.f32 %v1613, %v1772
        %v1854 = vmul.f32 %v1614, %v1772
        %v1855 = vmul.f32 %v1615, %v1782
        %v1856 = vmul.f32 %v1616, %v1782
        %v1857 = vmul.f32 %v1617, %v1782
        %v1858 = vmul.f32 %v1618, %v1782
        %v1859 = vmul.f32 %v1619, %v1792
        %v1860 = vmul.f32 %v1620, %v1792
        %v1861 = vmul.f32 %v1621, %v1792
        %v1862 = vmul.f32 %v1622, %v1792
        %v1863 = vmul.f32 %v1623, %v1802
        %v1864 = vmul.f32 %v1624, %v1802
        %v1865 = vmul.f32 %v1625, %v1802
        %v1866 = vmul.f32 %v1626, %v1802
        %v1867 = vadd.f32 %v1128, %v1129
        %v1868 = vadd.f32 %v1867, %v1130
        %v1869 = vadd.f32 %v1868, %v1131
        %1870 = vadd.xlane.f32.xlu0 %v1869
        %v1871 = vpop.xlane.xlu0 %1870
        %v1872 = vadd.f32 %v1136, %v1137
        %v1873 = vadd.f32 %v1872, %v1138
        %v1874 = vadd.f32 %v1873, %v1139
        %1875 = vadd.xlane.f32.xlu0 %v1874
        %v1876 = vpop.xlane.xlu0 %1875
        %v1877 = vadd.f32 %v1144, %v1145
        %v1878 = vadd.f32 %v1877, %v1146
        %v1879 = vadd.f32 %v1878, %v1147
        %1880 = vadd.xlane.f32.xlu0 %v1879
        %v1881 = vpop.xlane.xlu0 %1880
        %v1882 = vadd.f32 %v1152, %v1153
        %v1883 = vadd.f32 %v1882, %v1154
        %v1884 = vadd.f32 %v1883, %v1155
        %1885 = vadd.xlane.f32.xlu0 %v1884
        %v1886 = vpop.xlane.xlu0 %1885
        %v1887 = vadd.f32 %v1160, %v1161
        %v1888 = vadd.f32 %v1887, %v1162
        %v1889 = vadd.f32 %v1888, %v1163
        %1890 = vadd.xlane.f32.xlu0 %v1889
        %v1891 = vpop.xlane.xlu0 %1890
        %v1892 = vadd.f32 %v1168, %v1169
        %v1893 = vadd.f32 %v1892, %v1170
        %v1894 = vadd.f32 %v1893, %v1171
        %1895 = vadd.xlane.f32.xlu0 %v1894
        %v1896 = vpop.xlane.xlu0 %1895
        %v1897 = vadd.f32 %v1176, %v1177
        %v1898 = vadd.f32 %v1897, %v1178
        %v1899 = vadd.f32 %v1898, %v1179
        %1900 = vadd.xlane.f32.xlu0 %v1899
        %v1901 = vpop.xlane.xlu0 %1900
        %v1902 = vadd.f32 %v1184, %v1185
        %v1903 = vadd.f32 %v1902, %v1186
        %v1904 = vadd.f32 %v1903, %v1187
        %1905 = vadd.xlane.f32.xlu0 %v1904
        %v1906 = vpop.xlane.xlu0 %1905
        %v1907 = vadd.f32 %v1192, %v1193
        %v1908 = vadd.f32 %v1907, %v1194
        %v1909 = vadd.f32 %v1908, %v1195
        %1910 = vadd.xlane.f32.xlu0 %v1909
        %v1911 = vpop.xlane.xlu0 %1910
        %v1912 = vadd.f32 %v1200, %v1201
        %v1913 = vadd.f32 %v1912, %v1202
        %v1914 = vadd.f32 %v1913, %v1203
        %1915 = vadd.xlane.f32.xlu0 %v1914
        %v1916 = vpop.xlane.xlu0 %1915
        %v1917 = vadd.f32 %v1208, %v1209
        %v1918 = vadd.f32 %v1917, %v1210
        %v1919 = vadd.f32 %v1918, %v1211
        %1920 = vadd.xlane.f32.xlu0 %v1919
        %v1921 = vpop.xlane.xlu0 %1920
        %v1922 = vadd.f32 %v1216, %v1217
        %v1923 = vadd.f32 %v1922, %v1218
        %v1924 = vadd.f32 %v1923, %v1219
        %1925 = vadd.xlane.f32.xlu0 %v1924
        %v1926 = vpop.xlane.xlu0 %1925
        %v1927 = vadd.f32 %v1224, %v1225
        %v1928 = vadd.f32 %v1927, %v1226
        %v1929 = vadd.f32 %v1928, %v1227
        %1930 = vadd.xlane.f32.xlu0 %v1929
        %v1931 = vpop.xlane.xlu0 %1930
        %v1932 = vadd.f32 %v1232, %v1233
        %v1933 = vadd.f32 %v1932, %v1234
        %v1934 = vadd.f32 %v1933, %v1235
        %1935 = vadd.xlane.f32.xlu0 %v1934
        %v1936 = vpop.xlane.xlu0 %1935
        %v1937 = vadd.f32 %v1240, %v1241
        %v1938 = vadd.f32 %v1937, %v1242
        %v1939 = vadd.f32 %v1938, %v1243
        %1940 = vadd.xlane.f32.xlu0 %v1939
        %v1941 = vpop.xlane.xlu0 %1940
        %v1942 = vadd.f32 %v1248, %v1249
        %v1943 = vadd.f32 %v1942, %v1250
        %v1944 = vadd.f32 %v1943, %v1251
        %1945 = vadd.xlane.f32.xlu0 %v1944
        %v1946 = vpop.xlane.xlu0 %1945
        %v1947 = vmul.f32 %v1871, %v1338
        %v1948 = vmul.f32 %v1876, %v1338
        %v1949 = vmul.f32 %v1881, %v1338
        %v1950 = vmul.f32 %v1886, %v1338
        %v1951 = vmul.f32 %v1891, %v1338
        %v1952 = vmul.f32 %v1896, %v1338
        %v1953 = vmul.f32 %v1901, %v1338
        %v1954 = vmul.f32 %v1906, %v1338
        %v1955 = vmul.f32 %v1911, %v1338
        %v1956 = vmul.f32 %v1916, %v1338
        %v1957 = vmul.f32 %v1921, %v1338
        %v1958 = vmul.f32 %v1926, %v1338
        %v1959 = vmul.f32 %v1931, %v1338
        %v1960 = vmul.f32 %v1936, %v1338
        %v1961 = vmul.f32 %v1941, %v1338
        %v1962 = vmul.f32 %v1946, %v1338
        %v1963 = vmul.f32 %v1128, %v1128
        %v1964 = vmul.f32 %v1129, %v1129
        %v1965 = vmul.f32 %v1130, %v1130
        %v1966 = vmul.f32 %v1131, %v1131
        %v1967 = vmul.f32 %v1136, %v1136
        %v1968 = vmul.f32 %v1137, %v1137
        %v1969 = vmul.f32 %v1138, %v1138
        %v1970 = vmul.f32 %v1139, %v1139
        %v1971 = vmul.f32 %v1144, %v1144
        %v1972 = vmul.f32 %v1145, %v1145
        %v1973 = vmul.f32 %v1146, %v1146
        %v1974 = vmul.f32 %v1147, %v1147
        %v1975 = vmul.f32 %v1152, %v1152
        %v1976 = vmul.f32 %v1153, %v1153
        %v1977 = vmul.f32 %v1154, %v1154
        %v1978 = vmul.f32 %v1155, %v1155
        %v1979 = vmul.f32 %v1160, %v1160
        %v1980 = vmul.f32 %v1161, %v1161
        %v1981 = vmul.f32 %v1162, %v1162
        %v1982 = vmul.f32 %v1163, %v1163
        %v1983 = vmul.f32 %v1168, %v1168
        %v1984 = vmul.f32 %v1169, %v1169
        %v1985 = vmul.f32 %v1170, %v1170
        %v1986 = vmul.f32 %v1171, %v1171
        %v1987 = vmul.f32 %v1176, %v1176
        %v1988 = vmul.f32 %v1177, %v1177
        %v1989 = vmul.f32 %v1178, %v1178
        %v1990 = vmul.f32 %v1179, %v1179
        %v1991 = vmul.f32 %v1184, %v1184
        %v1992 = vmul.f32 %v1185, %v1185
        %v1993 = vmul.f32 %v1186, %v1186
        %v1994 = vmul.f32 %v1187, %v1187
        %v1995 = vmul.f32 %v1192, %v1192
        %v1996 = vmul.f32 %v1193, %v1193
        %v1997 = vmul.f32 %v1194, %v1194
        %v1998 = vmul.f32 %v1195, %v1195
        %v1999 = vmul.f32 %v1200, %v1200
        %v2000 = vmul.f32 %v1201, %v1201
        %v2001 = vmul.f32 %v1202, %v1202
        %v2002 = vmul.f32 %v1203, %v1203
        %v2003 = vmul.f32 %v1208, %v1208
        %v2004 = vmul.f32 %v1209, %v1209
        %v2005 = vmul.f32 %v1210, %v1210
        %v2006 = vmul.f32 %v1211, %v1211
        %v2007 = vmul.f32 %v1216, %v1216
        %v2008 = vmul.f32 %v1217, %v1217
        %v2009 = vmul.f32 %v1218, %v1218
        %v2010 = vmul.f32 %v1219, %v1219
        %v2011 = vmul.f32 %v1224, %v1224
        %v2012 = vmul.f32 %v1225, %v1225
        %v2013 = vmul.f32 %v1226, %v1226
        %v2014 = vmul.f32 %v1227, %v1227
        %v2015 = vmul.f32 %v1232, %v1232
        %v2016 = vmul.f32 %v1233, %v1233
        %v2017 = vmul.f32 %v1234, %v1234
        %v2018 = vmul.f32 %v1235, %v1235
        %v2019 = vmul.f32 %v1240, %v1240
        %v2020 = vmul.f32 %v1241, %v1241
        %v2021 = vmul.f32 %v1242, %v1242
        %v2022 = vmul.f32 %v1243, %v1243
        %v2023 = vmul.f32 %v1248, %v1248
        %v2024 = vmul.f32 %v1249, %v1249
        %v2025 = vmul.f32 %v1250, %v1250
        %v2026 = vmul.f32 %v1251, %v1251
        %v2027 = vadd.f32 %v1963, %v1964
        %v2028 = vadd.f32 %v2027, %v1965
        %v2029 = vadd.f32 %v2028, %v1966
        %2030 = vadd.xlane.f32.xlu0 %v2029
        %v2031 = vpop.xlane.xlu0 %2030
        %v2032 = vadd.f32 %v1967, %v1968
        %v2033 = vadd.f32 %v2032, %v1969
        %v2034 = vadd.f32 %v2033, %v1970
        %2035 = vadd.xlane.f32.xlu0 %v2034
        %v2036 = vpop.xlane.xlu0 %2035
        %v2037 = vadd.f32 %v1971, %v1972
        %v2038 = vadd.f32 %v2037, %v1973
        %v2039 = vadd.f32 %v2038, %v1974
        %2040 = vadd.xlane.f32.xlu0 %v2039
        %v2041 = vpop.xlane.xlu0 %2040
        %v2042 = vadd.f32 %v1975, %v1976
        %v2043 = vadd.f32 %v2042, %v1977
        %v2044 = vadd.f32 %v2043, %v1978
        %2045 = vadd.xlane.f32.xlu0 %v2044
        %v2046 = vpop.xlane.xlu0 %2045
        %v2047 = vadd.f32 %v1979, %v1980
        %v2048 = vadd.f32 %v2047, %v1981
        %v2049 = vadd.f32 %v2048, %v1982
        %2050 = vadd.xlane.f32.xlu0 %v2049
        %v2051 = vpop.xlane.xlu0 %2050
        %v2052 = vadd.f32 %v1983, %v1984
        %v2053 = vadd.f32 %v2052, %v1985
        %v2054 = vadd.f32 %v2053, %v1986
        %2055 = vadd.xlane.f32.xlu0 %v2054
        %v2056 = vpop.xlane.xlu0 %2055
        %v2057 = vadd.f32 %v1987, %v1988
        %v2058 = vadd.f32 %v2057, %v1989
        %v2059 = vadd.f32 %v2058, %v1990
        %2060 = vadd.xlane.f32.xlu0 %v2059
        %v2061 = vpop.xlane.xlu0 %2060
        %v2062 = vadd.f32 %v1991, %v1992
        %v2063 = vadd.f32 %v2062, %v1993
        %v2064 = vadd.f32 %v2063, %v1994
        %2065 = vadd.xlane.f32.xlu0 %v2064
        %v2066 = vpop.xlane.xlu0 %2065
        %v2067 = vadd.f32 %v1995, %v1996
        %v2068 = vadd.f32 %v2067, %v1997
        %v2069 = vadd.f32 %v2068, %v1998
        %2070 = vadd.xlane.f32.xlu0 %v2069
        %v2071 = vpop.xlane.xlu0 %2070
        %v2072 = vadd.f32 %v1999, %v2000
        %v2073 = vadd.f32 %v2072, %v2001
        %v2074 = vadd.f32 %v2073, %v2002
        %2075 = vadd.xlane.f32.xlu0 %v2074
        %v2076 = vpop.xlane.xlu0 %2075
        %v2077 = vadd.f32 %v2003, %v2004
        %v2078 = vadd.f32 %v2077, %v2005
        %v2079 = vadd.f32 %v2078, %v2006
        %2080 = vadd.xlane.f32.xlu0 %v2079
        %v2081 = vpop.xlane.xlu0 %2080
        %v2082 = vadd.f32 %v2007, %v2008
        %v2083 = vadd.f32 %v2082, %v2009
        %v2084 = vadd.f32 %v2083, %v2010
        %2085 = vadd.xlane.f32.xlu0 %v2084
        %v2086 = vpop.xlane.xlu0 %2085
        %v2087 = vadd.f32 %v2011, %v2012
        %v2088 = vadd.f32 %v2087, %v2013
        %v2089 = vadd.f32 %v2088, %v2014
        %2090 = vadd.xlane.f32.xlu0 %v2089
        %v2091 = vpop.xlane.xlu0 %2090
        %v2092 = vadd.f32 %v2015, %v2016
        %v2093 = vadd.f32 %v2092, %v2017
        %v2094 = vadd.f32 %v2093, %v2018
        %2095 = vadd.xlane.f32.xlu0 %v2094
        %v2096 = vpop.xlane.xlu0 %2095
        %v2097 = vadd.f32 %v2019, %v2020
        %v2098 = vadd.f32 %v2097, %v2021
        %v2099 = vadd.f32 %v2098, %v2022
        %2100 = vadd.xlane.f32.xlu0 %v2099
        %v2101 = vpop.xlane.xlu0 %2100
        %v2102 = vadd.f32 %v2023, %v2024
        %v2103 = vadd.f32 %v2102, %v2025
        %v2104 = vadd.f32 %v2103, %v2026
        %2105 = vadd.xlane.f32.xlu0 %v2104
        %v2106 = vpop.xlane.xlu0 %2105
        %v2107 = vmul.f32 %v2031, %v1338
        %v2108 = vmul.f32 %v2036, %v1338
        %v2109 = vmul.f32 %v2041, %v1338
        %v2110 = vmul.f32 %v2046, %v1338
        %v2111 = vmul.f32 %v2051, %v1338
        %v2112 = vmul.f32 %v2056, %v1338
        %v2113 = vmul.f32 %v2061, %v1338
        %v2114 = vmul.f32 %v2066, %v1338
        %v2115 = vmul.f32 %v2071, %v1338
        %v2116 = vmul.f32 %v2076, %v1338
        %v2117 = vmul.f32 %v2081, %v1338
        %v2118 = vmul.f32 %v2086, %v1338
        %v2119 = vmul.f32 %v2091, %v1338
        %v2120 = vmul.f32 %v2096, %v1338
        %v2121 = vmul.f32 %v2101, %v1338
        %v2122 = vmul.f32 %v2106, %v1338
        %v2123 = vmul.f32 %v1947, %v1947
        %v2124 = vmul.f32 %v1948, %v1948
        %v2125 = vmul.f32 %v1949, %v1949
        %v2126 = vmul.f32 %v1950, %v1950
        %v2127 = vmul.f32 %v1951, %v1951
        %v2128 = vmul.f32 %v1952, %v1952
        %v2129 = vmul.f32 %v1953, %v1953
        %v2130 = vmul.f32 %v1954, %v1954
        %v2131 = vmul.f32 %v1955, %v1955
        %v2132 = vmul.f32 %v1956, %v1956
        %v2133 = vmul.f32 %v1957, %v1957
        %v2134 = vmul.f32 %v1958, %v1958
        %v2135 = vmul.f32 %v1959, %v1959
        %v2136 = vmul.f32 %v1960, %v1960
        %v2137 = vmul.f32 %v1961, %v1961
        %v2138 = vmul.f32 %v1962, %v1962
        %v2139 = vsub.f32 %v2107, %v2123
        %v2140 = vsub.f32 %v2108, %v2124
        %v2141 = vsub.f32 %v2109, %v2125
        %v2142 = vsub.f32 %v2110, %v2126
        %v2143 = vsub.f32 %v2111, %v2127
        %v2144 = vsub.f32 %v2112, %v2128
        %v2145 = vsub.f32 %v2113, %v2129
        %v2146 = vsub.f32 %v2114, %v2130
        %v2147 = vsub.f32 %v2115, %v2131
        %v2148 = vsub.f32 %v2116, %v2132
        %v2149 = vsub.f32 %v2117, %v2133
        %v2150 = vsub.f32 %v2118, %v2134
        %v2151 = vsub.f32 %v2119, %v2135
        %v2152 = vsub.f32 %v2120, %v2136
        %v2153 = vsub.f32 %v2121, %v2137
        %v2154 = vsub.f32 %v2122, %v2138
        %v2155 = vmax.f32 %v2139, 0.0
        %v2156 = vmax.f32 %v2140, 0.0
        %v2157 = vmax.f32 %v2141, 0.0
        %v2158 = vmax.f32 %v2142, 0.0
        %v2159 = vmax.f32 %v2143, 0.0
        %v2160 = vmax.f32 %v2144, 0.0
        %v2161 = vmax.f32 %v2145, 0.0
        %v2162 = vmax.f32 %v2146, 0.0
        %v2163 = vmax.f32 %v2147, 0.0
        %v2164 = vmax.f32 %v2148, 0.0
        %v2165 = vmax.f32 %v2149, 0.0
        %v2166 = vmax.f32 %v2150, 0.0
        %v2167 = vmax.f32 %v2151, 0.0
        %v2168 = vmax.f32 %v2152, 0.0
        %v2169 = vmax.f32 %v2153, 0.0
        %v2170 = vmax.f32 %v2154, 0.0
        %v2171 = vsub.f32 %v1128, %v1947
        %v2172 = vsub.f32 %v1129, %v1947
        %v2173 = vsub.f32 %v1130, %v1947
        %v2174 = vsub.f32 %v1131, %v1947
        %v2175 = vsub.f32 %v1136, %v1948
        %v2176 = vsub.f32 %v1137, %v1948
        %v2177 = vsub.f32 %v1138, %v1948
        %v2178 = vsub.f32 %v1139, %v1948
        %v2179 = vsub.f32 %v1144, %v1949
        %v2180 = vsub.f32 %v1145, %v1949
        %v2181 = vsub.f32 %v1146, %v1949
        %v2182 = vsub.f32 %v1147, %v1949
        %v2183 = vsub.f32 %v1152, %v1950
        %v2184 = vsub.f32 %v1153, %v1950
        %v2185 = vsub.f32 %v1154, %v1950
        %v2186 = vsub.f32 %v1155, %v1950
        %v2187 = vsub.f32 %v1160, %v1951
        %v2188 = vsub.f32 %v1161, %v1951
        %v2189 = vsub.f32 %v1162, %v1951
        %v2190 = vsub.f32 %v1163, %v1951
        %v2191 = vsub.f32 %v1168, %v1952
        %v2192 = vsub.f32 %v1169, %v1952
        %v2193 = vsub.f32 %v1170, %v1952
        %v2194 = vsub.f32 %v1171, %v1952
        %v2195 = vsub.f32 %v1176, %v1953
        %v2196 = vsub.f32 %v1177, %v1953
        %v2197 = vsub.f32 %v1178, %v1953
        %v2198 = vsub.f32 %v1179, %v1953
        %v2199 = vsub.f32 %v1184, %v1954
        %v2200 = vsub.f32 %v1185, %v1954
        %v2201 = vsub.f32 %v1186, %v1954
        %v2202 = vsub.f32 %v1187, %v1954
        %v2203 = vsub.f32 %v1192, %v1955
        %v2204 = vsub.f32 %v1193, %v1955
        %v2205 = vsub.f32 %v1194, %v1955
        %v2206 = vsub.f32 %v1195, %v1955
        %v2207 = vsub.f32 %v1200, %v1956
        %v2208 = vsub.f32 %v1201, %v1956
        %v2209 = vsub.f32 %v1202, %v1956
        %v2210 = vsub.f32 %v1203, %v1956
        %v2211 = vsub.f32 %v1208, %v1957
        %v2212 = vsub.f32 %v1209, %v1957
        %v2213 = vsub.f32 %v1210, %v1957
        %v2214 = vsub.f32 %v1211, %v1957
        %v2215 = vsub.f32 %v1216, %v1958
        %v2216 = vsub.f32 %v1217, %v1958
        %v2217 = vsub.f32 %v1218, %v1958
        %v2218 = vsub.f32 %v1219, %v1958
        %v2219 = vsub.f32 %v1224, %v1959
        %v2220 = vsub.f32 %v1225, %v1959
        %v2221 = vsub.f32 %v1226, %v1959
        %v2222 = vsub.f32 %v1227, %v1959
        %v2223 = vsub.f32 %v1232, %v1960
        %v2224 = vsub.f32 %v1233, %v1960
        %v2225 = vsub.f32 %v1234, %v1960
        %v2226 = vsub.f32 %v1235, %v1960
        %v2227 = vsub.f32 %v1240, %v1961
        %v2228 = vsub.f32 %v1241, %v1961
        %v2229 = vsub.f32 %v1242, %v1961
        %v2230 = vsub.f32 %v1243, %v1961
        %v2231 = vsub.f32 %v1248, %v1962
        %v2232 = vsub.f32 %v1249, %v1962
        %v2233 = vsub.f32 %v1250, %v1962
        %v2234 = vsub.f32 %v1251, %v1962
        %v2235 = vadd.f32 %v2155, 1e-05
        %v2236 = vadd.f32 %v2156, 1e-05
        %v2237 = vadd.f32 %v2157, 1e-05
        %v2238 = vadd.f32 %v2158, 1e-05
        %v2239 = vadd.f32 %v2159, 1e-05
        %v2240 = vadd.f32 %v2160, 1e-05
        %v2241 = vadd.f32 %v2161, 1e-05
        %v2242 = vadd.f32 %v2162, 1e-05
        %v2243 = vadd.f32 %v2163, 1e-05
        %v2244 = vadd.f32 %v2164, 1e-05
        %v2245 = vadd.f32 %v2165, 1e-05
        %v2246 = vadd.f32 %v2166, 1e-05
        %v2247 = vadd.f32 %v2167, 1e-05
        %v2248 = vadd.f32 %v2168, 1e-05
        %v2249 = vadd.f32 %v2169, 1e-05
        %v2250 = vadd.f32 %v2170, 1e-05
        %v2251 = vrsqrt.pop %v2235
        %v2252 = vmul.f32 %v2251, %v2235
        %v2253 = vmul.f32 %v2252, %v2251
        %v2254 = vmul.f32 0.5, %v2253
        %v2255 = vsub.f32 1.5, %v2254
        %v2256 = vmul.f32 %v2251, %v2255
        %vm2257 = vweird.f32 %v2235
        %vm2258 = vweird.f32 %v2251
        %vm2259 = vmor %vm2257, %vm2258
        %v2260 = vsel %vm2259, %v2251, %v2256
        %v2261 = vrsqrt.pop %v2236
        %v2262 = vmul.f32 %v2261, %v2236
        %v2263 = vmul.f32 %v2262, %v2261
        %v2264 = vmul.f32 0.5, %v2263
        %v2265 = vsub.f32 1.5, %v2264
        %v2266 = vmul.f32 %v2261, %v2265
        %vm2267 = vweird.f32 %v2236
        %vm2268 = vweird.f32 %v2261
        %vm2269 = vmor %vm2267, %vm2268
        %v2270 = vsel %vm2269, %v2261, %v2266
        %v2271 = vrsqrt.pop %v2237
        %v2272 = vmul.f32 %v2271, %v2237
        %v2273 = vmul.f32 %v2272, %v2271
        %v2274 = vmul.f32 0.5, %v2273
        %v2275 = vsub.f32 1.5, %v2274
        %v2276 = vmul.f32 %v2271, %v2275
        %vm2277 = vweird.f32 %v2237
        %vm2278 = vweird.f32 %v2271
        %vm2279 = vmor %vm2277, %vm2278
        %v2280 = vsel %vm2279, %v2271, %v2276
        %v2281 = vrsqrt.pop %v2238
        %v2282 = vmul.f32 %v2281, %v2238
        %v2283 = vmul.f32 %v2282, %v2281
        %v2284 = vmul.f32 0.5, %v2283
        %v2285 = vsub.f32 1.5, %v2284
        %v2286 = vmul.f32 %v2281, %v2285
        %vm2287 = vweird.f32 %v2238
        %vm2288 = vweird.f32 %v2281
        %vm2289 = vmor %vm2287, %vm2288
        %v2290 = vsel %vm2289, %v2281, %v2286
        %v2291 = vrsqrt.pop %v2239
        %v2292 = vmul.f32 %v2291, %v2239
        %v2293 = vmul.f32 %v2292, %v2291
        %v2294 = vmul.f32 0.5, %v2293
        %v2295 = vsub.f32 1.5, %v2294
        %v2296 = vmul.f32 %v2291, %v2295
        %vm2297 = vweird.f32 %v2239
        %vm2298 = vweird.f32 %v2291
        %vm2299 = vmor %vm2297, %vm2298
        %v2300 = vsel %vm2299, %v2291, %v2296
        %v2301 = vrsqrt.pop %v2240
        %v2302 = vmul.f32 %v2301, %v2240
        %v2303 = vmul.f32 %v2302, %v2301
        %v2304 = vmul.f32 0.5, %v2303
        %v2305 = vsub.f32 1.5, %v2304
        %v2306 = vmul.f32 %v2301, %v2305
        %vm2307 = vweird.f32 %v2240
        %vm2308 = vweird.f32 %v2301
        %vm2309 = vmor %vm2307, %vm2308
        %v2310 = vsel %vm2309, %v2301, %v2306
        %v2311 = vrsqrt.pop %v2241
        %v2312 = vmul.f32 %v2311, %v2241
        %v2313 = vmul.f32 %v2312, %v2311
        %v2314 = vmul.f32 0.5, %v2313
        %v2315 = vsub.f32 1.5, %v2314
        %v2316 = vmul.f32 %v2311, %v2315
        %vm2317 = vweird.f32 %v2241
        %vm2318 = vweird.f32 %v2311
        %vm2319 = vmor %vm2317, %vm2318
        %v2320 = vsel %vm2319, %v2311, %v2316
        %v2321 = vrsqrt.pop %v2242
        %v2322 = vmul.f32 %v2321, %v2242
        %v2323 = vmul.f32 %v2322, %v2321
        %v2324 = vmul.f32 0.5, %v2323
        %v2325 = vsub.f32 1.5, %v2324
        %v2326 = vmul.f32 %v2321, %v2325
        %vm2327 = vweird.f32 %v2242
        %vm2328 = vweird.f32 %v2321
        %vm2329 = vmor %vm2327, %vm2328
        %v2330 = vsel %vm2329, %v2321, %v2326
        %v2331 = vrsqrt.pop %v2243
        %v2332 = vmul.f32 %v2331, %v2243
        %v2333 = vmul.f32 %v2332, %v2331
        %v2334 = vmul.f32 0.5, %v2333
        %v2335 = vsub.f32 1.5, %v2334
        %v2336 = vmul.f32 %v2331, %v2335
        %vm2337 = vweird.f32 %v2243
        %vm2338 = vweird.f32 %v2331
        %vm2339 = vmor %vm2337, %vm2338
        %v2340 = vsel %vm2339, %v2331, %v2336
        %v2341 = vrsqrt.pop %v2244
        %v2342 = vmul.f32 %v2341, %v2244
        %v2343 = vmul.f32 %v2342, %v2341
        %v2344 = vmul.f32 0.5, %v2343
        %v2345 = vsub.f32 1.5, %v2344
        %v2346 = vmul.f32 %v2341, %v2345
        %vm2347 = vweird.f32 %v2244
        %vm2348 = vweird.f32 %v2341
        %vm2349 = vmor %vm2347, %vm2348
        %v2350 = vsel %vm2349, %v2341, %v2346
        %v2351 = vrsqrt.pop %v2245
        %v2352 = vmul.f32 %v2351, %v2245
        %v2353 = vmul.f32 %v2352, %v2351
        %v2354 = vmul.f32 0.5, %v2353
        %v2355 = vsub.f32 1.5, %v2354
        %v2356 = vmul.f32 %v2351, %v2355
        %vm2357 = vweird.f32 %v2245
        %vm2358 = vweird.f32 %v2351
        %vm2359 = vmor %vm2357, %vm2358
        %v2360 = vsel %vm2359, %v2351, %v2356
        %v2361 = vrsqrt.pop %v2246
        %v2362 = vmul.f32 %v2361, %v2246
        %v2363 = vmul.f32 %v2362, %v2361
        %v2364 = vmul.f32 0.5, %v2363
        %v2365 = vsub.f32 1.5, %v2364
        %v2366 = vmul.f32 %v2361, %v2365
        %vm2367 = vweird.f32 %v2246
        %vm2368 = vweird.f32 %v2361
        %vm2369 = vmor %vm2367, %vm2368
        %v2370 = vsel %vm2369, %v2361, %v2366
        %v2371 = vrsqrt.pop %v2247
        %v2372 = vmul.f32 %v2371, %v2247
        %v2373 = vmul.f32 %v2372, %v2371
        %v2374 = vmul.f32 0.5, %v2373
        %v2375 = vsub.f32 1.5, %v2374
        %v2376 = vmul.f32 %v2371, %v2375
        %vm2377 = vweird.f32 %v2247
        %vm2378 = vweird.f32 %v2371
        %vm2379 = vmor %vm2377, %vm2378
        %v2380 = vsel %vm2379, %v2371, %v2376
        %v2381 = vrsqrt.pop %v2248
        %v2382 = vmul.f32 %v2381, %v2248
        %v2383 = vmul.f32 %v2382, %v2381
        %v2384 = vmul.f32 0.5, %v2383
        %v2385 = vsub.f32 1.5, %v2384
        %v2386 = vmul.f32 %v2381, %v2385
        %vm2387 = vweird.f32 %v2248
        %vm2388 = vweird.f32 %v2381
        %vm2389 = vmor %vm2387, %vm2388
        %v2390 = vsel %vm2389, %v2381, %v2386
        %v2391 = vrsqrt.pop %v2249
        %v2392 = vmul.f32 %v2391, %v2249
        %v2393 = vmul.f32 %v2392, %v2391
        %v2394 = vmul.f32 0.5, %v2393
        %v2395 = vsub.f32 1.5, %v2394
        %v2396 = vmul.f32 %v2391, %v2395
        %vm2397 = vweird.f32 %v2249
        %vm2398 = vweird.f32 %v2391
        %vm2399 = vmor %vm2397, %vm2398
        %v2400 = vsel %vm2399, %v2391, %v2396
        %v2401 = vrsqrt.pop %v2250
        %v2402 = vmul.f32 %v2401, %v2250
        %v2403 = vmul.f32 %v2402, %v2401
        %v2404 = vmul.f32 0.5, %v2403
        %v2405 = vsub.f32 1.5, %v2404
        %v2406 = vmul.f32 %v2401, %v2405
        %vm2407 = vweird.f32 %v2250
        %vm2408 = vweird.f32 %v2401
        %vm2409 = vmor %vm2407, %vm2408
        %v2410 = vsel %vm2409, %v2401, %v2406
        %v2411 = vmul.f32 %v2171, %v2260
        %v2412 = vmul.f32 %v2172, %v2260
        %v2413 = vmul.f32 %v2173, %v2260
        %v2414 = vmul.f32 %v2174, %v2260
        %v2415 = vmul.f32 %v2175, %v2270
        %v2416 = vmul.f32 %v2176, %v2270
        %v2417 = vmul.f32 %v2177, %v2270
        %v2418 = vmul.f32 %v2178, %v2270
        %v2419 = vmul.f32 %v2179, %v2280
        %v2420 = vmul.f32 %v2180, %v2280
        %v2421 = vmul.f32 %v2181, %v2280
        %v2422 = vmul.f32 %v2182, %v2280
        %v2423 = vmul.f32 %v2183, %v2290
        %v2424 = vmul.f32 %v2184, %v2290
        %v2425 = vmul.f32 %v2185, %v2290
        %v2426 = vmul.f32 %v2186, %v2290
        %v2427 = vmul.f32 %v2187, %v2300
        %v2428 = vmul.f32 %v2188, %v2300
        %v2429 = vmul.f32 %v2189, %v2300
        %v2430 = vmul.f32 %v2190, %v2300
        %v2431 = vmul.f32 %v2191, %v2310
        %v2432 = vmul.f32 %v2192, %v2310
        %v2433 = vmul.f32 %v2193, %v2310
        %v2434 = vmul.f32 %v2194, %v2310
        %v2435 = vmul.f32 %v2195, %v2320
        %v2436 = vmul.f32 %v2196, %v2320
        %v2437 = vmul.f32 %v2197, %v2320
        %v2438 = vmul.f32 %v2198, %v2320
        %v2439 = vmul.f32 %v2199, %v2330
        %v2440 = vmul.f32 %v2200, %v2330
        %v2441 = vmul.f32 %v2201, %v2330
        %v2442 = vmul.f32 %v2202, %v2330
        %v2443 = vmul.f32 %v2203, %v2340
        %v2444 = vmul.f32 %v2204, %v2340
        %v2445 = vmul.f32 %v2205, %v2340
        %v2446 = vmul.f32 %v2206, %v2340
        %v2447 = vmul.f32 %v2207, %v2350
        %v2448 = vmul.f32 %v2208, %v2350
        %v2449 = vmul.f32 %v2209, %v2350
        %v2450 = vmul.f32 %v2210, %v2350
        %v2451 = vmul.f32 %v2211, %v2360
        %v2452 = vmul.f32 %v2212, %v2360
        %v2453 = vmul.f32 %v2213, %v2360
        %v2454 = vmul.f32 %v2214, %v2360
        %v2455 = vmul.f32 %v2215, %v2370
        %v2456 = vmul.f32 %v2216, %v2370
        %v2457 = vmul.f32 %v2217, %v2370
        %v2458 = vmul.f32 %v2218, %v2370
        %v2459 = vmul.f32 %v2219, %v2380
        %v2460 = vmul.f32 %v2220, %v2380
        %v2461 = vmul.f32 %v2221, %v2380
        %v2462 = vmul.f32 %v2222, %v2380
        %v2463 = vmul.f32 %v2223, %v2390
        %v2464 = vmul.f32 %v2224, %v2390
        %v2465 = vmul.f32 %v2225, %v2390
        %v2466 = vmul.f32 %v2226, %v2390
        %v2467 = vmul.f32 %v2227, %v2400
        %v2468 = vmul.f32 %v2228, %v2400
        %v2469 = vmul.f32 %v2229, %v2400
        %v2470 = vmul.f32 %v2230, %v2400
        %v2471 = vmul.f32 %v2231, %v2410
        %v2472 = vmul.f32 %v2232, %v2410
        %v2473 = vmul.f32 %v2233, %v2410
        %v2474 = vmul.f32 %v2234, %v2410
        %v2475 = vpack.c.bf16 %v1807, %v1803
        %v2476 = vpack.c.bf16 %v1808, %v1804
        %v2477 = vpack.c.bf16 %v1809, %v1805
        %v2478 = vpack.c.bf16 %v1810, %v1806
        %v2479 = vpack.c.bf16 %v1815, %v1811
        %v2480 = vpack.c.bf16 %v1816, %v1812
        %v2481 = vpack.c.bf16 %v1817, %v1813
        %v2482 = vpack.c.bf16 %v1818, %v1814
        %v2483 = vpack.c.bf16 %v1823, %v1819
        %v2484 = vpack.c.bf16 %v1824, %v1820
        %v2485 = vpack.c.bf16 %v1825, %v1821
        %v2486 = vpack.c.bf16 %v1826, %v1822
        %v2487 = vpack.c.bf16 %v1831, %v1827
        %v2488 = vpack.c.bf16 %v1832, %v1828
        %v2489 = vpack.c.bf16 %v1833, %v1829
        %v2490 = vpack.c.bf16 %v1834, %v1830
        %v2491 = vpack.c.bf16 %v1839, %v1835
        %v2492 = vpack.c.bf16 %v1840, %v1836
        %v2493 = vpack.c.bf16 %v1841, %v1837
        %v2494 = vpack.c.bf16 %v1842, %v1838
        %v2495 = vpack.c.bf16 %v1847, %v1843
        %v2496 = vpack.c.bf16 %v1848, %v1844
        %v2497 = vpack.c.bf16 %v1849, %v1845
        %v2498 = vpack.c.bf16 %v1850, %v1846
        %v2499 = vpack.c.bf16 %v1855, %v1851
        %v2500 = vpack.c.bf16 %v1856, %v1852
        %v2501 = vpack.c.bf16 %v1857, %v1853
        %v2502 = vpack.c.bf16 %v1858, %v1854
        %v2503 = vpack.c.bf16 %v1863, %v1859
        %v2504 = vpack.c.bf16 %v1864, %v1860
        %v2505 = vpack.c.bf16 %v1865, %v1861
        %v2506 = vpack.c.bf16 %v1866, %v1862
        %v2507 = vld [vmem:[#allocation5] sm:$0xff]
        %v2508 = vld [vmem:[#allocation5 + $0x8] sm:$0xff]
        %v2509 = vld [vmem:[#allocation5 + $0x10] sm:$0xff]
        %v2510 = vld [vmem:[#allocation5 + $0x18] sm:$0xff]
        %v2511 = vld [vmem:[#allocation5 + $0x20] sm:$0xff]
        %v2512 = vld [vmem:[#allocation5 + $0x28] sm:$0xff]
        %v2513 = vld [vmem:[#allocation5 + $0x30] sm:$0xff]
        %v2514 = vld [vmem:[#allocation5 + $0x38] sm:$0xff]
        %v2515 = vld [vmem:[#allocation5 + $0x40] sm:$0xff]
        %v2516 = vld [vmem:[#allocation5 + $0x48] sm:$0xff]
        %v2517 = vld [vmem:[#allocation5 + $0x50] sm:$0xff]
        %v2518 = vld [vmem:[#allocation5 + $0x58] sm:$0xff]
        %v2519 = vld [vmem:[#allocation5 + $0x60] sm:$0xff]
        %v2520 = vld [vmem:[#allocation5 + $0x68] sm:$0xff]
        %v2521 = vld [vmem:[#allocation5 + $0x70] sm:$0xff]
        %v2522 = vld [vmem:[#allocation5 + $0x78] sm:$0xff]
        %v2523 = vld [vmem:[#allocation5 + $0x80] sm:$0xff]
        %v2524 = vld [vmem:[#allocation5 + $0x88] sm:$0xff]
        %v2525 = vld [vmem:[#allocation5 + $0x90] sm:$0xff]
        %v2526 = vld [vmem:[#allocation5 + $0x98] sm:$0xff]
        %v2527 = vld [vmem:[#allocation5 + $0xa0] sm:$0xff]
        %v2528 = vld [vmem:[#allocation5 + $0xa8] sm:$0xff]
        %v2529 = vld [vmem:[#allocation5 + $0xb0] sm:$0xff]
        %v2530 = vld [vmem:[#allocation5 + $0xb8] sm:$0xff]
        %v2531 = vld [vmem:[#allocation5 + $0xc0] sm:$0xff]
        %v2532 = vld [vmem:[#allocation5 + $0xc8] sm:$0xff]
        %v2533 = vld [vmem:[#allocation5 + $0xd0] sm:$0xff]
        %v2534 = vld [vmem:[#allocation5 + $0xd8] sm:$0xff]
        %v2535 = vld [vmem:[#allocation5 + $0xe0] sm:$0xff]
        %v2536 = vld [vmem:[#allocation5 + $0xe8] sm:$0xff]
        %v2537 = vld [vmem:[#allocation5 + $0xf0] sm:$0xff]
        %v2538 = vld [vmem:[#allocation5 + $0xf8] sm:$0xff]
        %v2539 = vld [vmem:[#allocation5 + $0x100] sm:$0xff]
        %v2540 = vld [vmem:[#allocation5 + $0x108] sm:$0xff]
        %v2541 = vld [vmem:[#allocation5 + $0x110] sm:$0xff]
        %v2542 = vld [vmem:[#allocation5 + $0x118] sm:$0xff]
        %v2543 = vld [vmem:[#allocation5 + $0x120] sm:$0xff]
        %v2544 = vld [vmem:[#allocation5 + $0x128] sm:$0xff]
        %v2545 = vld [vmem:[#allocation5 + $0x130] sm:$0xff]
        %v2546 = vld [vmem:[#allocation5 + $0x138] sm:$0xff]
        %v2547 = vld [vmem:[#allocation5 + $0x140] sm:$0xff]
        %v2548 = vld [vmem:[#allocation5 + $0x148] sm:$0xff]
        %v2549 = vld [vmem:[#allocation5 + $0x150] sm:$0xff]
        %v2550 = vld [vmem:[#allocation5 + $0x158] sm:$0xff]
        %v2551 = vld [vmem:[#allocation5 + $0x160] sm:$0xff]
        %v2552 = vld [vmem:[#allocation5 + $0x168] sm:$0xff]
        %v2553 = vld [vmem:[#allocation5 + $0x170] sm:$0xff]
        %v2554 = vld [vmem:[#allocation5 + $0x178] sm:$0xff]
        %v2555 = vld [vmem:[#allocation5 + $0x180] sm:$0xff]
        %v2556 = vld [vmem:[#allocation5 + $0x188] sm:$0xff]
        %v2557 = vld [vmem:[#allocation5 + $0x190] sm:$0xff]
        %v2558 = vld [vmem:[#allocation5 + $0x198] sm:$0xff]
        %v2559 = vld [vmem:[#allocation5 + $0x1a0] sm:$0xff]
        %v2560 = vld [vmem:[#allocation5 + $0x1a8] sm:$0xff]
        %v2561 = vld [vmem:[#allocation5 + $0x1b0] sm:$0xff]
        %v2562 = vld [vmem:[#allocation5 + $0x1b8] sm:$0xff]
        %v2563 = vld [vmem:[#allocation5 + $0x1c0] sm:$0xff]
        %v2564 = vld [vmem:[#allocation5 + $0x1c8] sm:$0xff]
        %v2565 = vld [vmem:[#allocation5 + $0x1d0] sm:$0xff]
        %v2566 = vld [vmem:[#allocation5 + $0x1d8] sm:$0xff]
        %v2567 = vld [vmem:[#allocation5 + $0x1e0] sm:$0xff]
        %v2568 = vld [vmem:[#allocation5 + $0x1e8] sm:$0xff]
        %v2569 = vld [vmem:[#allocation5 + $0x1f0] sm:$0xff]
        %v2570 = vld [vmem:[#allocation5 + $0x1f8] sm:$0xff]
        %v2571 = vld [vmem:[%s4] sm:$0x3]
        %v2573 = vperm.slane %v2571, 0
        %v2574 = vperm.slane %v2571, 1
        %v2641 = vunpack.c.l.b16 %v2507
        %v2642 = vunpack.c.h.b16 %v2507
        %v2643 = vunpack.c.l.b16 %v2508
        %v2644 = vunpack.c.h.b16 %v2508
        %v2645 = vunpack.c.l.b16 %v2509
        %v2646 = vunpack.c.h.b16 %v2509
        %v2647 = vunpack.c.l.b16 %v2510
        %v2648 = vunpack.c.h.b16 %v2510
        %v2649 = vunpack.c.l.b16 %v2511
        %v2650 = vunpack.c.h.b16 %v2511
        %v2651 = vunpack.c.l.b16 %v2512
        %v2652 = vunpack.c.h.b16 %v2512
        %v2653 = vunpack.c.l.b16 %v2513
        %v2654 = vunpack.c.h.b16 %v2513
        %v2655 = vunpack.c.l.b16 %v2514
        %v2656 = vunpack.c.h.b16 %v2514
        %v2657 = vunpack.c.l.b16 %v2515
        %v2658 = vunpack.c.h.b16 %v2515
        %v2659 = vunpack.c.l.b16 %v2516
        %v2660 = vunpack.c.h.b16 %v2516
        %v2661 = vunpack.c.l.b16 %v2517
        %v2662 = vunpack.c.h.b16 %v2517
        %v2663 = vunpack.c.l.b16 %v2518
        %v2664 = vunpack.c.h.b16 %v2518
        %v2665 = vunpack.c.l.b16 %v2519
        %v2666 = vunpack.c.h.b16 %v2519
        %v2667 = vunpack.c.l.b16 %v2520
        %v2668 = vunpack.c.h.b16 %v2520
        %v2669 = vunpack.c.l.b16 %v2521
        %v2670 = vunpack.c.h.b16 %v2521
        %v2671 = vunpack.c.l.b16 %v2522
        %v2672 = vunpack.c.h.b16 %v2522
        %v2673 = vunpack.c.l.b16 %v2523
        %v2674 = vunpack.c.h.b16 %v2523
        %v2675 = vunpack.c.l.b16 %v2524
        %v2676 = vunpack.c.h.b16 %v2524
        %v2677 = vunpack.c.l.b16 %v2525
        %v2678 = vunpack.c.h.b16 %v2525
        %v2679 = vunpack.c.l.b16 %v2526
        %v2680 = vunpack.c.h.b16 %v2526
        %v2681 = vunpack.c.l.b16 %v2527
        %v2682 = vunpack.c.h.b16 %v2527
        %v2683 = vunpack.c.l.b16 %v2528
        %v2684 = vunpack.c.h.b16 %v2528
        %v2685 = vunpack.c.l.b16 %v2529
        %v2686 = vunpack.c.h.b16 %v2529
        %v2687 = vunpack.c.l.b16 %v2530
        %v2688 = vunpack.c.h.b16 %v2530
        %v2689 = vunpack.c.l.b16 %v2531
        %v2690 = vunpack.c.h.b16 %v2531
        %v2691 = vunpack.c.l.b16 %v2532
        %v2692 = vunpack.c.h.b16 %v2532
        %v2693 = vunpack.c.l.b16 %v2533
        %v2694 = vunpack.c.h.b16 %v2533
        %v2695 = vunpack.c.l.b16 %v2534
        %v2696 = vunpack.c.h.b16 %v2534
        %v2697 = vunpack.c.l.b16 %v2535
        %v2698 = vunpack.c.h.b16 %v2535
        %v2699 = vunpack.c.l.b16 %v2536
        %v2700 = vunpack.c.h.b16 %v2536
        %v2701 = vunpack.c.l.b16 %v2537
        %v2702 = vunpack.c.h.b16 %v2537
        %v2703 = vunpack.c.l.b16 %v2538
        %v2704 = vunpack.c.h.b16 %v2538
        %v2705 = vunpack.c.l.b16 %v2539
        %v2706 = vunpack.c.h.b16 %v2539
        %v2707 = vunpack.c.l.b16 %v2540
        %v2708 = vunpack.c.h.b16 %v2540
        %v2709 = vunpack.c.l.b16 %v2541
        %v2710 = vunpack.c.h.b16 %v2541
        %v2711 = vunpack.c.l.b16 %v2542
        %v2712 = vunpack.c.h.b16 %v2542
        %v2713 = vunpack.c.l.b16 %v2543
        %v2714 = vunpack.c.h.b16 %v2543
        %v2715 = vunpack.c.l.b16 %v2544
        %v2716 = vunpack.c.h.b16 %v2544
        %v2717 = vunpack.c.l.b16 %v2545
        %v2718 = vunpack.c.h.b16 %v2545
        %v2719 = vunpack.c.l.b16 %v2546
        %v2720 = vunpack.c.h.b16 %v2546
        %v2721 = vunpack.c.l.b16 %v2547
        %v2722 = vunpack.c.h.b16 %v2547
        %v2723 = vunpack.c.l.b16 %v2548
        %v2724 = vunpack.c.h.b16 %v2548
        %v2725 = vunpack.c.l.b16 %v2549
        %v2726 = vunpack.c.h.b16 %v2549
        %v2727 = vunpack.c.l.b16 %v2550
        %v2728 = vunpack.c.h.b16 %v2550
        %v2729 = vunpack.c.l.b16 %v2551
        %v2730 = vunpack.c.h.b16 %v2551
        %v2731 = vunpack.c.l.b16 %v2552
        %v2732 = vunpack.c.h.b16 %v2552
        %v2733 = vunpack.c.l.b16 %v2553
        %v2734 = vunpack.c.h.b16 %v2553
        %v2735 = vunpack.c.l.b16 %v2554
        %v2736 = vunpack.c.h.b16 %v2554
        %v2737 = vunpack.c.l.b16 %v2555
        %v2738 = vunpack.c.h.b16 %v2555
        %v2739 = vunpack.c.l.b16 %v2556
        %v2740 = vunpack.c.h.b16 %v2556
        %v2741 = vunpack.c.l.b16 %v2557
        %v2742 = vunpack.c.h.b16 %v2557
        %v2743 = vunpack.c.l.b16 %v2558
        %v2744 = vunpack.c.h.b16 %v2558
        %v2745 = vunpack.c.l.b16 %v2559
        %v2746 = vunpack.c.h.b16 %v2559
        %v2747 = vunpack.c.l.b16 %v2560
        %v2748 = vunpack.c.h.b16 %v2560
        %v2749 = vunpack.c.l.b16 %v2561
        %v2750 = vunpack.c.h.b16 %v2561
        %v2751 = vunpack.c.l.b16 %v2562
        %v2752 = vunpack.c.h.b16 %v2562
        %v2753 = vunpack.c.l.b16 %v2563
        %v2754 = vunpack.c.h.b16 %v2563
        %v2755 = vunpack.c.l.b16 %v2564
        %v2756 = vunpack.c.h.b16 %v2564
        %v2757 = vunpack.c.l.b16 %v2565
        %v2758 = vunpack.c.h.b16 %v2565
        %v2759 = vunpack.c.l.b16 %v2566
        %v2760 = vunpack.c.h.b16 %v2566
        %v2761 = vunpack.c.l.b16 %v2567
        %v2762 = vunpack.c.h.b16 %v2567
        %v2763 = vunpack.c.l.b16 %v2568
        %v2764 = vunpack.c.h.b16 %v2568
        %v2765 = vunpack.c.l.b16 %v2569
        %v2766 = vunpack.c.h.b16 %v2569
        %v2767 = vunpack.c.l.b16 %v2570
        %v2768 = vunpack.c.h.b16 %v2570
        %v2769 = vpack.c.b16 %v2643, %v2641
        %v2770 = vpack.c.b16 %v2644, %v2642
        %v2771 = vpack.c.b16 %v2647, %v2645
        %v2772 = vpack.c.b16 %v2648, %v2646
        %v2773 = vpack.c.b16 %v2651, %v2649
        %v2774 = vpack.c.b16 %v2652, %v2650
        %v2775 = vpack.c.b16 %v2655, %v2653
        %v2776 = vpack.c.b16 %v2656, %v2654
        %v2777 = vpack.c.b16 %v2659, %v2657
        %v2778 = vpack.c.b16 %v2660, %v2658
        %v2779 = vpack.c.b16 %v2663, %v2661
        %v2780 = vpack.c.b16 %v2664, %v2662
        %v2781 = vpack.c.b16 %v2667, %v2665
        %v2782 = vpack.c.b16 %v2668, %v2666
        %v2783 = vpack.c.b16 %v2671, %v2669
        %v2784 = vpack.c.b16 %v2672, %v2670
        %v2785 = vpack.c.b16 %v2675, %v2673
        %v2786 = vpack.c.b16 %v2676, %v2674
        %v2787 = vpack.c.b16 %v2679, %v2677
        %v2788 = vpack.c.b16 %v2680, %v2678
        %v2789 = vpack.c.b16 %v2683, %v2681
        %v2790 = vpack.c.b16 %v2684, %v2682
        %v2791 = vpack.c.b16 %v2687, %v2685
        %v2792 = vpack.c.b16 %v2688, %v2686
        %v2793 = vpack.c.b16 %v2691, %v2689
        %v2794 = vpack.c.b16 %v2692, %v2690
        %v2795 = vpack.c.b16 %v2695, %v2693
        %v2796 = vpack.c.b16 %v2696, %v2694
        %v2797 = vpack.c.b16 %v2699, %v2697
        %v2798 = vpack.c.b16 %v2700, %v2698
        %v2799 = vpack.c.b16 %v2703, %v2701
        %v2800 = vpack.c.b16 %v2704, %v2702
        %v2801 = vpack.c.b16 %v2707, %v2705
        %v2802 = vpack.c.b16 %v2708, %v2706
        %v2803 = vpack.c.b16 %v2711, %v2709
        %v2804 = vpack.c.b16 %v2712, %v2710
        %v2805 = vpack.c.b16 %v2715, %v2713
        %v2806 = vpack.c.b16 %v2716, %v2714
        %v2807 = vpack.c.b16 %v2719, %v2717
        %v2808 = vpack.c.b16 %v2720, %v2718
        %v2809 = vpack.c.b16 %v2723, %v2721
        %v2810 = vpack.c.b16 %v2724, %v2722
        %v2811 = vpack.c.b16 %v2727, %v2725
        %v2812 = vpack.c.b16 %v2728, %v2726
        %v2813 = vpack.c.b16 %v2731, %v2729
        %v2814 = vpack.c.b16 %v2732, %v2730
        %v2815 = vpack.c.b16 %v2735, %v2733
        %v2816 = vpack.c.b16 %v2736, %v2734
        %v2817 = vpack.c.b16 %v2739, %v2737
        %v2818 = vpack.c.b16 %v2740, %v2738
        %v2819 = vpack.c.b16 %v2743, %v2741
        %v2820 = vpack.c.b16 %v2744, %v2742
        %v2821 = vpack.c.b16 %v2747, %v2745
        %v2822 = vpack.c.b16 %v2748, %v2746
        %v2823 = vpack.c.b16 %v2751, %v2749
        %v2824 = vpack.c.b16 %v2752, %v2750
        %v2825 = vpack.c.b16 %v2755, %v2753
        %v2826 = vpack.c.b16 %v2756, %v2754
        %v2827 = vpack.c.b16 %v2759, %v2757
        %v2828 = vpack.c.b16 %v2760, %v2758
        %v2829 = vpack.c.b16 %v2763, %v2761
        %v2830 = vpack.c.b16 %v2764, %v2762
        %v2831 = vpack.c.b16 %v2767, %v2765
        %v2832 = vpack.c.b16 %v2768, %v2766
        %2897 = vmatpush.bf16.msra.mxu0 %v2783
        %2898 = vmatpush.bf16.msra.mxu0 %v2781
        %2899 = vmatpush.bf16.msra.mxu0 %v2779
        %2900 = vmatpush.bf16.msra.mxu0 %v2777
        %2901 = vmatpush.bf16.msra.mxu0 %v2775
        %2902 = vmatpush.bf16.msra.mxu0 %v2773
        %2903 = vmatpush.bf16.msra.mxu0 %v2771
        %2904 = vmatpush.bf16.msra.mxu0 %v2769
        %2905 = vmatmul.bf16.gmra.mxu0 %v2475
        %v2906 = vpop.f32.mrf.mxu0
        %v2907 = vadd.f32 %v2573, %v2906
        %v2908 = vpop.f32.mrf.mxu0
        %v2909 = vadd.f32 %v2573, %v2908
        %2910 = vmatmul.bf16.gmra.mxu0 %v2479
        %v2911 = vpop.f32.mrf.mxu0
        %v2912 = vadd.f32 %v2573, %v2911
        %v2913 = vpop.f32.mrf.mxu0
        %v2914 = vadd.f32 %v2573, %v2913
        %2915 = vmatmul.bf16.gmra.mxu0 %v2483
        %v2916 = vpop.f32.mrf.mxu0
        %v2917 = vadd.f32 %v2573, %v2916
        %v2918 = vpop.f32.mrf.mxu0
        %v2919 = vadd.f32 %v2573, %v2918
        %2920 = vmatmul.bf16.gmra.mxu0 %v2487
        %v2921 = vpop.f32.mrf.mxu0
        %v2922 = vadd.f32 %v2573, %v2921
        %v2923 = vpop.f32.mrf.mxu0
        %v2924 = vadd.f32 %v2573, %v2923
        %2925 = vmatmul.bf16.gmra.mxu0 %v2491
        %v2926 = vpop.f32.mrf.mxu0
        %v2927 = vadd.f32 %v2573, %v2926
        %v2928 = vpop.f32.mrf.mxu0
        %v2929 = vadd.f32 %v2573, %v2928
        %2930 = vmatmul.bf16.gmra.mxu0 %v2495
        %v2931 = vpop.f32.mrf.mxu0
        %v2932 = vadd.f32 %v2573, %v2931
        %v2933 = vpop.f32.mrf.mxu0
        %v2934 = vadd.f32 %v2573, %v2933
        %2935 = vmatmul.bf16.gmra.mxu0 %v2499
        %v2936 = vpop.f32.mrf.mxu0
        %v2937 = vadd.f32 %v2573, %v2936
        %v2938 = vpop.f32.mrf.mxu0
        %v2939 = vadd.f32 %v2573, %v2938
        %2940 = vmatmul.bf16.gmra.mxu0 %v2503
        %v2941 = vpop.f32.mrf.mxu0
        %v2942 = vadd.f32 %v2573, %v2941
        %v2943 = vpop.f32.mrf.mxu0
        %v2944 = vadd.f32 %v2573, %v2943
        %2945 = vdwg.mxu0
        %2946 = vmatpush.bf16.msra.mxu0 %v2799
        %2947 = vmatpush.bf16.msra.mxu0 %v2797
        %2948 = vmatpush.bf16.msra.mxu0 %v2795
        %2949 = vmatpush.bf16.msra.mxu0 %v2793
        %2950 = vmatpush.bf16.msra.mxu0 %v2791
        %2951 = vmatpush.bf16.msra.mxu0 %v2789
        %2952 = vmatpush.bf16.msra.mxu0 %v2787
        %2953 = vmatpush.bf16.msra.mxu0 %v2785
        %2954 = vmatmul.bf16.gmra.mxu0 %v2476
        %v2955 = vpop.f32.mrf.mxu0
        %v2956 = vadd.f32 %v2907, %v2955
        %v2957 = vpop.f32.mrf.mxu0
        %v2958 = vadd.f32 %v2909, %v2957
        %2959 = vmatmul.bf16.gmra.mxu0 %v2480
        %v2960 = vpop.f32.mrf.mxu0
        %v2961 = vadd.f32 %v2912, %v2960
        %v2962 = vpop.f32.mrf.mxu0
        %v2963 = vadd.f32 %v2914, %v2962
        %2964 = vmatmul.bf16.gmra.mxu0 %v2484
        %v2965 = vpop.f32.mrf.mxu0
        %v2966 = vadd.f32 %v2917, %v2965
        %v2967 = vpop.f32.mrf.mxu0
        %v2968 = vadd.f32 %v2919, %v2967
        %2969 = vmatmul.bf16.gmra.mxu0 %v2488
        %v2970 = vpop.f32.mrf.mxu0
        %v2971 = vadd.f32 %v2922, %v2970
        %v2972 = vpop.f32.mrf.mxu0
        %v2973 = vadd.f32 %v2924, %v2972
        %2974 = vmatmul.bf16.gmra.mxu0 %v2492
        %v2975 = vpop.f32.mrf.mxu0
        %v2976 = vadd.f32 %v2927, %v2975
        %v2977 = vpop.f32.mrf.mxu0
        %v2978 = vadd.f32 %v2929, %v2977
        %2979 = vmatmul.bf16.gmra.mxu0 %v2496
        %v2980 = vpop.f32.mrf.mxu0
        %v2981 = vadd.f32 %v2932, %v2980
        %v2982 = vpop.f32.mrf.mxu0
        %v2983 = vadd.f32 %v2934, %v2982
        %2984 = vmatmul.bf16.gmra.mxu0 %v2500
        %v2985 = vpop.f32.mrf.mxu0
        %v2986 = vadd.f32 %v2937, %v2985
        %v2987 = vpop.f32.mrf.mxu0
        %v2988 = vadd.f32 %v2939, %v2987
        %2989 = vmatmul.bf16.gmra.mxu0 %v2504
        %v2990 = vpop.f32.mrf.mxu0
        %v2991 = vadd.f32 %v2942, %v2990
        %v2992 = vpop.f32.mrf.mxu0
        %v2993 = vadd.f32 %v2944, %v2992
        %2994 = vdwg.mxu0
        %2995 = vmatpush.bf16.msra.mxu0 %v2815
        %2996 = vmatpush.bf16.msra.mxu0 %v2813
        %2997 = vmatpush.bf16.msra.mxu0 %v2811
        %2998 = vmatpush.bf16.msra.mxu0 %v2809
        %2999 = vmatpush.bf16.msra.mxu0 %v2807
        %3000 = vmatpush.bf16.msra.mxu0 %v2805
        %3001 = vmatpush.bf16.msra.mxu0 %v2803
        %3002 = vmatpush.bf16.msra.mxu0 %v2801
        %3003 = vmatmul.bf16.gmra.mxu0 %v2477
        %v3004 = vpop.f32.mrf.mxu0
        %v3005 = vadd.f32 %v2956, %v3004
        %v3006 = vpop.f32.mrf.mxu0
        %v3007 = vadd.f32 %v2958, %v3006
        %3008 = vmatmul.bf16.gmra.mxu0 %v2481
        %v3009 = vpop.f32.mrf.mxu0
        %v3010 = vadd.f32 %v2961, %v3009
        %v3011 = vpop.f32.mrf.mxu0
        %v3012 = vadd.f32 %v2963, %v3011
        %3013 = vmatmul.bf16.gmra.mxu0 %v2485
        %v3014 = vpop.f32.mrf.mxu0
        %v3015 = vadd.f32 %v2966, %v3014
        %v3016 = vpop.f32.mrf.mxu0
        %v3017 = vadd.f32 %v2968, %v3016
        %3018 = vmatmul.bf16.gmra.mxu0 %v2489
        %v3019 = vpop.f32.mrf.mxu0
        %v3020 = vadd.f32 %v2971, %v3019
        %v3021 = vpop.f32.mrf.mxu0
        %v3022 = vadd.f32 %v2973, %v3021
        %3023 = vmatmul.bf16.gmra.mxu0 %v2493
        %v3024 = vpop.f32.mrf.mxu0
        %v3025 = vadd.f32 %v2976, %v3024
        %v3026 = vpop.f32.mrf.mxu0
        %v3027 = vadd.f32 %v2978, %v3026
        %3028 = vmatmul.bf16.gmra.mxu0 %v2497
        %v3029 = vpop.f32.mrf.mxu0
        %v3030 = vadd.f32 %v2981, %v3029
        %v3031 = vpop.f32.mrf.mxu0
        %v3032 = vadd.f32 %v2983, %v3031
        %3033 = vmatmul.bf16.gmra.mxu0 %v2501
        %v3034 = vpop.f32.mrf.mxu0
        %v3035 = vadd.f32 %v2986, %v3034
        %v3036 = vpop.f32.mrf.mxu0
        %v3037 = vadd.f32 %v2988, %v3036
        %3038 = vmatmul.bf16.gmra.mxu0 %v2505
        %v3039 = vpop.f32.mrf.mxu0
        %v3040 = vadd.f32 %v2991, %v3039
        %v3041 = vpop.f32.mrf.mxu0
        %v3042 = vadd.f32 %v2993, %v3041
        %3043 = vdwg.mxu0
        %3044 = vmatpush.bf16.msra.mxu0 %v2831
        %3045 = vmatpush.bf16.msra.mxu0 %v2829
        %3046 = vmatpush.bf16.msra.mxu0 %v2827
        %3047 = vmatpush.bf16.msra.mxu0 %v2825
        %3048 = vmatpush.bf16.msra.mxu0 %v2823
        %3049 = vmatpush.bf16.msra.mxu0 %v2821
        %3050 = vmatpush.bf16.msra.mxu0 %v2819
        %3051 = vmatpush.bf16.msra.mxu0 %v2817
        %3052 = vmatmul.bf16.gmra.mxu0 %v2478
        %v3053 = vpop.f32.mrf.mxu0
        %v3054 = vadd.f32 %v3005, %v3053
        %v3055 = vpop.f32.mrf.mxu0
        %v3056 = vadd.f32 %v3007, %v3055
        %3057 = vmatmul.bf16.gmra.mxu0 %v2482
        %v3058 = vpop.f32.mrf.mxu0
        %v3059 = vadd.f32 %v3010, %v3058
        %v3060 = vpop.f32.mrf.mxu0
        %v3061 = vadd.f32 %v3012, %v3060
        %3062 = vmatmul.bf16.gmra.mxu0 %v2486
        %v3063 = vpop.f32.mrf.mxu0
        %v3064 = vadd.f32 %v3015, %v3063
        %v3065 = vpop.f32.mrf.mxu0
        %v3066 = vadd.f32 %v3017, %v3065
        %3067 = vmatmul.bf16.gmra.mxu0 %v2490
        %v3068 = vpop.f32.mrf.mxu0
        %v3069 = vadd.f32 %v3020, %v3068
        %v3070 = vpop.f32.mrf.mxu0
        %v3071 = vadd.f32 %v3022, %v3070
        %3072 = vmatmul.bf16.gmra.mxu0 %v2494
        %v3073 = vpop.f32.mrf.mxu0
        %v3074 = vadd.f32 %v3025, %v3073
        %v3075 = vpop.f32.mrf.mxu0
        %v3076 = vadd.f32 %v3027, %v3075
        %3077 = vmatmul.bf16.gmra.mxu0 %v2498
        %v3078 = vpop.f32.mrf.mxu0
        %v3079 = vadd.f32 %v3030, %v3078
        %v3080 = vpop.f32.mrf.mxu0
        %v3081 = vadd.f32 %v3032, %v3080
        %3082 = vmatmul.bf16.gmra.mxu0 %v2502
        %v3083 = vpop.f32.mrf.mxu0
        %v3084 = vadd.f32 %v3035, %v3083
        %v3085 = vpop.f32.mrf.mxu0
        %v3086 = vadd.f32 %v3037, %v3085
        %3087 = vmatmul.bf16.gmra.mxu0 %v2506
        %v3088 = vpop.f32.mrf.mxu0
        %v3089 = vadd.f32 %v3040, %v3088
        %v3090 = vpop.f32.mrf.mxu0
        %v3091 = vadd.f32 %v3042, %v3090
        %3092 = vdwg.mxu0
        %3093 = vmatpush.bf16.msra.mxu0 %v2784
        %3094 = vmatpush.bf16.msra.mxu0 %v2782
        %3095 = vmatpush.bf16.msra.mxu0 %v2780
        %3096 = vmatpush.bf16.msra.mxu0 %v2778
        %3097 = vmatpush.bf16.msra.mxu0 %v2776
        %3098 = vmatpush.bf16.msra.mxu0 %v2774
        %3099 = vmatpush.bf16.msra.mxu0 %v2772
        %3100 = vmatpush.bf16.msra.mxu0 %v2770
        %3101 = vmatmul.bf16.gmra.mxu0 %v2475
        %v3102 = vpop.f32.mrf.mxu0
        %v3103 = vadd.f32 %v2574, %v3102
        %v3104 = vpop.f32.mrf.mxu0
        %v3105 = vadd.f32 %v2574, %v3104
        %3106 = vmatmul.bf16.gmra.mxu0 %v2479
        %v3107 = vpop.f32.mrf.mxu0
        %v3108 = vadd.f32 %v2574, %v3107
        %v3109 = vpop.f32.mrf.mxu0
        %v3110 = vadd.f32 %v2574, %v3109
        %3111 = vmatmul.bf16.gmra.mxu0 %v2483
        %v3112 = vpop.f32.mrf.mxu0
        %v3113 = vadd.f32 %v2574, %v3112
        %v3114 = vpop.f32.mrf.mxu0
        %v3115 = vadd.f32 %v2574, %v3114
        %3116 = vmatmul.bf16.gmra.mxu0 %v2487
        %v3117 = vpop.f32.mrf.mxu0
        %v3118 = vadd.f32 %v2574, %v3117
        %v3119 = vpop.f32.mrf.mxu0
        %v3120 = vadd.f32 %v2574, %v3119
        %3121 = vmatmul.bf16.gmra.mxu0 %v2491
        %v3122 = vpop.f32.mrf.mxu0
        %v3123 = vadd.f32 %v2574, %v3122
        %v3124 = vpop.f32.mrf.mxu0
        %v3125 = vadd.f32 %v2574, %v3124
        %3126 = vmatmul.bf16.gmra.mxu0 %v2495
        %v3127 = vpop.f32.mrf.mxu0
        %v3128 = vadd.f32 %v2574, %v3127
        %v3129 = vpop.f32.mrf.mxu0
        %v3130 = vadd.f32 %v2574, %v3129
        %3131 = vmatmul.bf16.gmra.mxu0 %v2499
        %v3132 = vpop.f32.mrf.mxu0
        %v3133 = vadd.f32 %v2574, %v3132
        %v3134 = vpop.f32.mrf.mxu0
        %v3135 = vadd.f32 %v2574, %v3134
        %3136 = vmatmul.bf16.gmra.mxu0 %v2503
        %v3137 = vpop.f32.mrf.mxu0
        %v3138 = vadd.f32 %v2574, %v3137
        %v3139 = vpop.f32.mrf.mxu0
        %v3140 = vadd.f32 %v2574, %v3139
        %3141 = vdwg.mxu0
        %3142 = vmatpush.bf16.msra.mxu0 %v2800
        %3143 = vmatpush.bf16.msra.mxu0 %v2798
        %3144 = vmatpush.bf16.msra.mxu0 %v2796
        %3145 = vmatpush.bf16.msra.mxu0 %v2794
        %3146 = vmatpush.bf16.msra.mxu0 %v2792
        %3147 = vmatpush.bf16.msra.mxu0 %v2790
        %3148 = vmatpush.bf16.msra.mxu0 %v2788
        %3149 = vmatpush.bf16.msra.mxu0 %v2786
        %3150 = vmatmul.bf16.gmra.mxu0 %v2476
        %v3151 = vpop.f32.mrf.mxu0
        %v3152 = vadd.f32 %v3103, %v3151
        %v3153 = vpop.f32.mrf.mxu0
        %v3154 = vadd.f32 %v3105, %v3153
        %3155 = vmatmul.bf16.gmra.mxu0 %v2480
        %v3156 = vpop.f32.mrf.mxu0
        %v3157 = vadd.f32 %v3108, %v3156
        %v3158 = vpop.f32.mrf.mxu0
        %v3159 = vadd.f32 %v3110, %v3158
        %3160 = vmatmul.bf16.gmra.mxu0 %v2484
        %v3161 = vpop.f32.mrf.mxu0
        %v3162 = vadd.f32 %v3113, %v3161
        %v3163 = vpop.f32.mrf.mxu0
        %v3164 = vadd.f32 %v3115, %v3163
        %3165 = vmatmul.bf16.gmra.mxu0 %v2488
        %v3166 = vpop.f32.mrf.mxu0
        %v3167 = vadd.f32 %v3118, %v3166
        %v3168 = vpop.f32.mrf.mxu0
        %v3169 = vadd.f32 %v3120, %v3168
        %3170 = vmatmul.bf16.gmra.mxu0 %v2492
        %v3171 = vpop.f32.mrf.mxu0
        %v3172 = vadd.f32 %v3123, %v3171
        %v3173 = vpop.f32.mrf.mxu0
        %v3174 = vadd.f32 %v3125, %v3173
        %3175 = vmatmul.bf16.gmra.mxu0 %v2496
        %v3176 = vpop.f32.mrf.mxu0
        %v3177 = vadd.f32 %v3128, %v3176
        %v3178 = vpop.f32.mrf.mxu0
        %v3179 = vadd.f32 %v3130, %v3178
        %3180 = vmatmul.bf16.gmra.mxu0 %v2500
        %v3181 = vpop.f32.mrf.mxu0
        %v3182 = vadd.f32 %v3133, %v3181
        %v3183 = vpop.f32.mrf.mxu0
        %v3184 = vadd.f32 %v3135, %v3183
        %3185 = vmatmul.bf16.gmra.mxu0 %v2504
        %v3186 = vpop.f32.mrf.mxu0
        %v3187 = vadd.f32 %v3138, %v3186
        %v3188 = vpop.f32.mrf.mxu0
        %v3189 = vadd.f32 %v3140, %v3188
        %3190 = vdwg.mxu0
        %3191 = vmatpush.bf16.msra.mxu0 %v2816
        %3192 = vmatpush.bf16.msra.mxu0 %v2814
        %3193 = vmatpush.bf16.msra.mxu0 %v2812
        %3194 = vmatpush.bf16.msra.mxu0 %v2810
        %3195 = vmatpush.bf16.msra.mxu0 %v2808
        %3196 = vmatpush.bf16.msra.mxu0 %v2806
        %3197 = vmatpush.bf16.msra.mxu0 %v2804
        %3198 = vmatpush.bf16.msra.mxu0 %v2802
        %3199 = vmatmul.bf16.gmra.mxu0 %v2477
        %v3200 = vpop.f32.mrf.mxu0
        %v3201 = vadd.f32 %v3152, %v3200
        %v3202 = vpop.f32.mrf.mxu0
        %v3203 = vadd.f32 %v3154, %v3202
        %3204 = vmatmul.bf16.gmra.mxu0 %v2481
        %v3205 = vpop.f32.mrf.mxu0
        %v3206 = vadd.f32 %v3157, %v3205
        %v3207 = vpop.f32.mrf.mxu0
        %v3208 = vadd.f32 %v3159, %v3207
        %3209 = vmatmul.bf16.gmra.mxu0 %v2485
        %v3210 = vpop.f32.mrf.mxu0
        %v3211 = vadd.f32 %v3162, %v3210
        %v3212 = vpop.f32.mrf.mxu0
        %v3213 = vadd.f32 %v3164, %v3212
        %3214 = vmatmul.bf16.gmra.mxu0 %v2489
        %v3215 = vpop.f32.mrf.mxu0
        %v3216 = vadd.f32 %v3167, %v3215
        %v3217 = vpop.f32.mrf.mxu0
        %v3218 = vadd.f32 %v3169, %v3217
        %3219 = vmatmul.bf16.gmra.mxu0 %v2493
        %v3220 = vpop.f32.mrf.mxu0
        %v3221 = vadd.f32 %v3172, %v3220
        %v3222 = vpop.f32.mrf.mxu0
        %v3223 = vadd.f32 %v3174, %v3222
        %3224 = vmatmul.bf16.gmra.mxu0 %v2497
        %v3225 = vpop.f32.mrf.mxu0
        %v3226 = vadd.f32 %v3177, %v3225
        %v3227 = vpop.f32.mrf.mxu0
        %v3228 = vadd.f32 %v3179, %v3227
        %3229 = vmatmul.bf16.gmra.mxu0 %v2501
        %v3230 = vpop.f32.mrf.mxu0
        %v3231 = vadd.f32 %v3182, %v3230
        %v3232 = vpop.f32.mrf.mxu0
        %v3233 = vadd.f32 %v3184, %v3232
        %3234 = vmatmul.bf16.gmra.mxu0 %v2505
        %v3235 = vpop.f32.mrf.mxu0
        %v3236 = vadd.f32 %v3187, %v3235
        %v3237 = vpop.f32.mrf.mxu0
        %v3238 = vadd.f32 %v3189, %v3237
        %3239 = vdwg.mxu0
        %3240 = vmatpush.bf16.msra.mxu0 %v2832
        %3241 = vmatpush.bf16.msra.mxu0 %v2830
        %3242 = vmatpush.bf16.msra.mxu0 %v2828
        %3243 = vmatpush.bf16.msra.mxu0 %v2826
        %3244 = vmatpush.bf16.msra.mxu0 %v2824
        %3245 = vmatpush.bf16.msra.mxu0 %v2822
        %3246 = vmatpush.bf16.msra.mxu0 %v2820
        %3247 = vmatpush.bf16.msra.mxu0 %v2818
        %3248 = vmatmul.bf16.gmra.mxu0 %v2478
        %v3249 = vpop.f32.mrf.mxu0
        %v3250 = vadd.f32 %v3201, %v3249
        %v3251 = vpop.f32.mrf.mxu0
        %v3252 = vadd.f32 %v3203, %v3251
        %3253 = vmatmul.bf16.gmra.mxu0 %v2482
        %v3254 = vpop.f32.mrf.mxu0
        %v3255 = vadd.f32 %v3206, %v3254
        %v3256 = vpop.f32.mrf.mxu0
        %v3257 = vadd.f32 %v3208, %v3256
        %3258 = vmatmul.bf16.gmra.mxu0 %v2486
        %v3259 = vpop.f32.mrf.mxu0
        %v3260 = vadd.f32 %v3211, %v3259
        %v3261 = vpop.f32.mrf.mxu0
        %v3262 = vadd.f32 %v3213, %v3261
        %3263 = vmatmul.bf16.gmra.mxu0 %v2490
        %v3264 = vpop.f32.mrf.mxu0
        %v3265 = vadd.f32 %v3216, %v3264
        %v3266 = vpop.f32.mrf.mxu0
        %v3267 = vadd.f32 %v3218, %v3266
        %3268 = vmatmul.bf16.gmra.mxu0 %v2494
        %v3269 = vpop.f32.mrf.mxu0
        %v3270 = vadd.f32 %v3221, %v3269
        %v3271 = vpop.f32.mrf.mxu0
        %v3272 = vadd.f32 %v3223, %v3271
        %3273 = vmatmul.bf16.gmra.mxu0 %v2498
        %v3274 = vpop.f32.mrf.mxu0
        %v3275 = vadd.f32 %v3226, %v3274
        %v3276 = vpop.f32.mrf.mxu0
        %v3277 = vadd.f32 %v3228, %v3276
        %3278 = vmatmul.bf16.gmra.mxu0 %v2502
        %v3279 = vpop.f32.mrf.mxu0
        %v3280 = vadd.f32 %v3231, %v3279
        %v3281 = vpop.f32.mrf.mxu0
        %v3282 = vadd.f32 %v3233, %v3281
        %3283 = vmatmul.bf16.gmra.mxu0 %v2506
        %v3284 = vpop.f32.mrf.mxu0
        %v3285 = vadd.f32 %v3236, %v3284
        %v3286 = vpop.f32.mrf.mxu0
        %v3287 = vadd.f32 %v3238, %v3286
        %3288 = vdwg.mxu0
        %v3289 = vmax.f32 %v3054, 0.0
        %v3290 = vmax.f32 %v3250, 0.0
        %v3291 = vmax.f32 %v3056, 0.0
        %v3292 = vmax.f32 %v3252, 0.0
        %v3293 = vmax.f32 %v3059, 0.0
        %v3294 = vmax.f32 %v3255, 0.0
        %v3295 = vmax.f32 %v3061, 0.0
        %v3296 = vmax.f32 %v3257, 0.0
        %v3297 = vmax.f32 %v3064, 0.0
        %v3298 = vmax.f32 %v3260, 0.0
        %v3299 = vmax.f32 %v3066, 0.0
        %v3300 = vmax.f32 %v3262, 0.0
        %v3301 = vmax.f32 %v3069, 0.0
        %v3302 = vmax.f32 %v3265, 0.0
        %v3303 = vmax.f32 %v3071, 0.0
        %v3304 = vmax.f32 %v3267, 0.0
        %v3305 = vmax.f32 %v3074, 0.0
        %v3306 = vmax.f32 %v3270, 0.0
        %v3307 = vmax.f32 %v3076, 0.0
        %v3308 = vmax.f32 %v3272, 0.0
        %v3309 = vmax.f32 %v3079, 0.0
        %v3310 = vmax.f32 %v3275, 0.0
        %v3311 = vmax.f32 %v3081, 0.0
        %v3312 = vmax.f32 %v3277, 0.0
        %v3313 = vmax.f32 %v3084, 0.0
        %v3314 = vmax.f32 %v3280, 0.0
        %v3315 = vmax.f32 %v3086, 0.0
        %v3316 = vmax.f32 %v3282, 0.0
        %v3317 = vmax.f32 %v3089, 0.0
        %v3318 = vmax.f32 %v3285, 0.0
        %v3319 = vmax.f32 %v3091, 0.0
        %v3320 = vmax.f32 %v3287, 0.0
        %v3321 = vadd.f32 %v3289, %v3290
        %3322 = vadd.xlane.f32.xlu0 %v3321
        %v3323 = vpop.xlane.xlu0 %3322
        %v3324 = vadd.f32 %v3291, %v3292
        %3325 = vadd.xlane.f32.xlu0 %v3324
        %v3326 = vpop.xlane.xlu0 %3325
        %v3327 = vadd.f32 %v3293, %v3294
        %3328 = vadd.xlane.f32.xlu0 %v3327
        %v3329 = vpop.xlane.xlu0 %3328
        %v3330 = vadd.f32 %v3295, %v3296
        %3331 = vadd.xlane.f32.xlu0 %v3330
        %v3332 = vpop.xlane.xlu0 %3331
        %v3333 = vadd.f32 %v3297, %v3298
        %3334 = vadd.xlane.f32.xlu0 %v3333
        %v3335 = vpop.xlane.xlu0 %3334
        %v3336 = vadd.f32 %v3299, %v3300
        %3337 = vadd.xlane.f32.xlu0 %v3336
        %v3338 = vpop.xlane.xlu0 %3337
        %v3339 = vadd.f32 %v3301, %v3302
        %3340 = vadd.xlane.f32.xlu0 %v3339
        %v3341 = vpop.xlane.xlu0 %3340
        %v3342 = vadd.f32 %v3303, %v3304
        %3343 = vadd.xlane.f32.xlu0 %v3342
        %v3344 = vpop.xlane.xlu0 %3343
        %v3345 = vadd.f32 %v3305, %v3306
        %3346 = vadd.xlane.f32.xlu0 %v3345
        %v3347 = vpop.xlane.xlu0 %3346
        %v3348 = vadd.f32 %v3307, %v3308
        %3349 = vadd.xlane.f32.xlu0 %v3348
        %v3350 = vpop.xlane.xlu0 %3349
        %v3351 = vadd.f32 %v3309, %v3310
        %3352 = vadd.xlane.f32.xlu0 %v3351
        %v3353 = vpop.xlane.xlu0 %3352
        %v3354 = vadd.f32 %v3311, %v3312
        %3355 = vadd.xlane.f32.xlu0 %v3354
        %v3356 = vpop.xlane.xlu0 %3355
        %v3357 = vadd.f32 %v3313, %v3314
        %3358 = vadd.xlane.f32.xlu0 %v3357
        %v3359 = vpop.xlane.xlu0 %3358
        %v3360 = vadd.f32 %v3315, %v3316
        %3361 = vadd.xlane.f32.xlu0 %v3360
        %v3362 = vpop.xlane.xlu0 %3361
        %v3363 = vadd.f32 %v3317, %v3318
        %3364 = vadd.xlane.f32.xlu0 %v3363
        %v3365 = vpop.xlane.xlu0 %3364
        %v3366 = vadd.f32 %v3319, %v3320
        %3367 = vadd.xlane.f32.xlu0 %v3366
        %v3368 = vpop.xlane.xlu0 %3367
        %v3369 = vrcp.pop 256.0
        %v3370 = vmul.f32 256.0, %v3369
        %v3371 = vsub.f32 1.0, %v3370
        %v3372 = vmul.f32 %v3369, %v3371
        %v3373 = vadd.f32 %v3369, %v3372
        %vm3374 = vweird.f32 %v3369
        %v3375 = vsel %vm3374, %v3369, %v3373
        %v3376 = vmul.f32 %v3323, %v3375
        %v3377 = vmul.f32 %v3326, %v3375
        %v3378 = vmul.f32 %v3329, %v3375
        %v3379 = vmul.f32 %v3332, %v3375
        %v3380 = vmul.f32 %v3335, %v3375
        %v3381 = vmul.f32 %v3338, %v3375
        %v3382 = vmul.f32 %v3341, %v3375
        %v3383 = vmul.f32 %v3344, %v3375
        %v3384 = vmul.f32 %v3347, %v3375
        %v3385 = vmul.f32 %v3350, %v3375
        %v3386 = vmul.f32 %v3353, %v3375
        %v3387 = vmul.f32 %v3356, %v3375
        %v3388 = vmul.f32 %v3359, %v3375
        %v3389 = vmul.f32 %v3362, %v3375
        %v3390 = vmul.f32 %v3365, %v3375
        %v3391 = vmul.f32 %v3368, %v3375
        %v3392 = vmul.f32 %v3289, %v3289
        %v3393 = vmul.f32 %v3290, %v3290
        %v3394 = vmul.f32 %v3291, %v3291
        %v3395 = vmul.f32 %v3292, %v3292
        %v3396 = vmul.f32 %v3293, %v3293
        %v3397 = vmul.f32 %v3294, %v3294
        %v3398 = vmul.f32 %v3295, %v3295
        %v3399 = vmul.f32 %v3296, %v3296
        %v3400 = vmul.f32 %v3297, %v3297
        %v3401 = vmul.f32 %v3298, %v3298
        %v3402 = vmul.f32 %v3299, %v3299
        %v3403 = vmul.f32 %v3300, %v3300
        %v3404 = vmul.f32 %v3301, %v3301
        %v3405 = vmul.f32 %v3302, %v3302
        %v3406 = vmul.f32 %v3303, %v3303
        %v3407 = vmul.f32 %v3304, %v3304
        %v3408 = vmul.f32 %v3305, %v3305
        %v3409 = vmul.f32 %v3306, %v3306
        %v3410 = vmul.f32 %v3307, %v3307
        %v3411 = vmul.f32 %v3308, %v3308
        %v3412 = vmul.f32 %v3309, %v3309
        %v3413 = vmul.f32 %v3310, %v3310
        %v3414 = vmul.f32 %v3311, %v3311
        %v3415 = vmul.f32 %v3312, %v3312
        %v3416 = vmul.f32 %v3313, %v3313
        %v3417 = vmul.f32 %v3314, %v3314
        %v3418 = vmul.f32 %v3315, %v3315
        %v3419 = vmul.f32 %v3316, %v3316
        %v3420 = vmul.f32 %v3317, %v3317
        %v3421 = vmul.f32 %v3318, %v3318
        %v3422 = vmul.f32 %v3319, %v3319
        %v3423 = vmul.f32 %v3320, %v3320
        %v3424 = vadd.f32 %v3392, %v3393
        %3425 = vadd.xlane.f32.xlu0 %v3424
        %v3426 = vpop.xlane.xlu0 %3425
        %v3427 = vadd.f32 %v3394, %v3395
        %3428 = vadd.xlane.f32.xlu0 %v3427
        %v3429 = vpop.xlane.xlu0 %3428
        %v3430 = vadd.f32 %v3396, %v3397
        %3431 = vadd.xlane.f32.xlu0 %v3430
        %v3432 = vpop.xlane.xlu0 %3431
        %v3433 = vadd.f32 %v3398, %v3399
        %3434 = vadd.xlane.f32.xlu0 %v3433
        %v3435 = vpop.xlane.xlu0 %3434
        %v3436 = vadd.f32 %v3400, %v3401
        %3437 = vadd.xlane.f32.xlu0 %v3436
        %v3438 = vpop.xlane.xlu0 %3437
        %v3439 = vadd.f32 %v3402, %v3403
        %3440 = vadd.xlane.f32.xlu0 %v3439
        %v3441 = vpop.xlane.xlu0 %3440
        %v3442 = vadd.f32 %v3404, %v3405
        %3443 = vadd.xlane.f32.xlu0 %v3442
        %v3444 = vpop.xlane.xlu0 %3443
        %v3445 = vadd.f32 %v3406, %v3407
        %3446 = vadd.xlane.f32.xlu0 %v3445
        %v3447 = vpop.xlane.xlu0 %3446
        %v3448 = vadd.f32 %v3408, %v3409
        %3449 = vadd.xlane.f32.xlu0 %v3448
        %v3450 = vpop.xlane.xlu0 %3449
        %v3451 = vadd.f32 %v3410, %v3411
        %3452 = vadd.xlane.f32.xlu0 %v3451
        %v3453 = vpop.xlane.xlu0 %3452
        %v3454 = vadd.f32 %v3412, %v3413
        %3455 = vadd.xlane.f32.xlu0 %v3454
        %v3456 = vpop.xlane.xlu0 %3455
        %v3457 = vadd.f32 %v3414, %v3415
        %3458 = vadd.xlane.f32.xlu0 %v3457
        %v3459 = vpop.xlane.xlu0 %3458
        %v3460 = vadd.f32 %v3416, %v3417
        %3461 = vadd.xlane.f32.xlu0 %v3460
        %v3462 = vpop.xlane.xlu0 %3461
        %v3463 = vadd.f32 %v3418, %v3419
        %3464 = vadd.xlane.f32.xlu0 %v3463
        %v3465 = vpop.xlane.xlu0 %3464
        %v3466 = vadd.f32 %v3420, %v3421
        %3467 = vadd.xlane.f32.xlu0 %v3466
        %v3468 = vpop.xlane.xlu0 %3467
        %v3469 = vadd.f32 %v3422, %v3423
        %3470 = vadd.xlane.f32.xlu0 %v3469
        %v3471 = vpop.xlane.xlu0 %3470
        %v3472 = vmul.f32 %v3426, %v3375
        %v3473 = vmul.f32 %v3429, %v3375
        %v3474 = vmul.f32 %v3432, %v3375
        %v3475 = vmul.f32 %v3435, %v3375
        %v3476 = vmul.f32 %v3438, %v3375
        %v3477 = vmul.f32 %v3441, %v3375
        %v3478 = vmul.f32 %v3444, %v3375
        %v3479 = vmul.f32 %v3447, %v3375
        %v3480 = vmul.f32 %v3450, %v3375
        %v3481 = vmul.f32 %v3453, %v3375
        %v3482 = vmul.f32 %v3456, %v3375
        %v3483 = vmul.f32 %v3459, %v3375
        %v3484 = vmul.f32 %v3462, %v3375
        %v3485 = vmul.f32 %v3465, %v3375
        %v3486 = vmul.f32 %v3468, %v3375
        %v3487 = vmul.f32 %v3471, %v3375
        %v3488 = vmul.f32 %v3376, %v3376
        %v3489 = vmul.f32 %v3377, %v3377
        %v3490 = vmul.f32 %v3378, %v3378
        %v3491 = vmul.f32 %v3379, %v3379
        %v3492 = vmul.f32 %v3380, %v3380
        %v3493 = vmul.f32 %v3381, %v3381
        %v3494 = vmul.f32 %v3382, %v3382
        %v3495 = vmul.f32 %v3383, %v3383
        %v3496 = vmul.f32 %v3384, %v3384
        %v3497 = vmul.f32 %v3385, %v3385
        %v3498 = vmul.f32 %v3386, %v3386
        %v3499 = vmul.f32 %v3387, %v3387
        %v3500 = vmul.f32 %v3388, %v3388
        %v3501 = vmul.f32 %v3389, %v3389
        %v3502 = vmul.f32 %v3390, %v3390
        %v3503 = vmul.f32 %v3391, %v3391
        %v3504 = vsub.f32 %v3472, %v3488
        %v3505 = vsub.f32 %v3473, %v3489
        %v3506 = vsub.f32 %v3474, %v3490
        %v3507 = vsub.f32 %v3475, %v3491
        %v3508 = vsub.f32 %v3476, %v3492
        %v3509 = vsub.f32 %v3477, %v3493
        %v3510 = vsub.f32 %v3478, %v3494
        %v3511 = vsub.f32 %v3479, %v3495
        %v3512 = vsub.f32 %v3480, %v3496
        %v3513 = vsub.f32 %v3481, %v3497
        %v3514 = vsub.f32 %v3482, %v3498
        %v3515 = vsub.f32 %v3483, %v3499
        %v3516 = vsub.f32 %v3484, %v3500
        %v3517 = vsub.f32 %v3485, %v3501
        %v3518 = vsub.f32 %v3486, %v3502
        %v3519 = vsub.f32 %v3487, %v3503
        %v3520 = vmax.f32 %v3504, 0.0
        %v3521 = vmax.f32 %v3505, 0.0
        %v3522 = vmax.f32 %v3506, 0.0
        %v3523 = vmax.f32 %v3507, 0.0
        %v3524 = vmax.f32 %v3508, 0.0
        %v3525 = vmax.f32 %v3509, 0.0
        %v3526 = vmax.f32 %v3510, 0.0
        %v3527 = vmax.f32 %v3511, 0.0
        %v3528 = vmax.f32 %v3512, 0.0
        %v3529 = vmax.f32 %v3513, 0.0
        %v3530 = vmax.f32 %v3514, 0.0
        %v3531 = vmax.f32 %v3515, 0.0
        %v3532 = vmax.f32 %v3516, 0.0
        %v3533 = vmax.f32 %v3517, 0.0
        %v3534 = vmax.f32 %v3518, 0.0
        %v3535 = vmax.f32 %v3519, 0.0
        %v3536 = vsub.f32 %v3289, %v3376
        %v3537 = vsub.f32 %v3290, %v3376
        %v3538 = vsub.f32 %v3291, %v3377
        %v3539 = vsub.f32 %v3292, %v3377
        %v3540 = vsub.f32 %v3293, %v3378
        %v3541 = vsub.f32 %v3294, %v3378
        %v3542 = vsub.f32 %v3295, %v3379
        %v3543 = vsub.f32 %v3296, %v3379
        %v3544 = vsub.f32 %v3297, %v3380
        %v3545 = vsub.f32 %v3298, %v3380
        %v3546 = vsub.f32 %v3299, %v3381
        %v3547 = vsub.f32 %v3300, %v3381
        %v3548 = vsub.f32 %v3301, %v3382
        %v3549 = vsub.f32 %v3302, %v3382
        %v3550 = vsub.f32 %v3303, %v3383
        %v3551 = vsub.f32 %v3304, %v3383
        %v3552 = vsub.f32 %v3305, %v3384
        %v3553 = vsub.f32 %v3306, %v3384
        %v3554 = vsub.f32 %v3307, %v3385
        %v3555 = vsub.f32 %v3308, %v3385
        %v3556 = vsub.f32 %v3309, %v3386
        %v3557 = vsub.f32 %v3310, %v3386
        %v3558 = vsub.f32 %v3311, %v3387
        %v3559 = vsub.f32 %v3312, %v3387
        %v3560 = vsub.f32 %v3313, %v3388
        %v3561 = vsub.f32 %v3314, %v3388
        %v3562 = vsub.f32 %v3315, %v3389
        %v3563 = vsub.f32 %v3316, %v3389
        %v3564 = vsub.f32 %v3317, %v3390
        %v3565 = vsub.f32 %v3318, %v3390
        %v3566 = vsub.f32 %v3319, %v3391
        %v3567 = vsub.f32 %v3320, %v3391
        %v3568 = vadd.f32 %v3520, 1e-05
        %v3569 = vadd.f32 %v3521, 1e-05
        %v3570 = vadd.f32 %v3522, 1e-05
        %v3571 = vadd.f32 %v3523, 1e-05
        %v3572 = vadd.f32 %v3524, 1e-05
        %v3573 = vadd.f32 %v3525, 1e-05
        %v3574 = vadd.f32 %v3526, 1e-05
        %v3575 = vadd.f32 %v3527, 1e-05
        %v3576 = vadd.f32 %v3528, 1e-05
        %v3577 = vadd.f32 %v3529, 1e-05
        %v3578 = vadd.f32 %v3530, 1e-05
        %v3579 = vadd.f32 %v3531, 1e-05
        %v3580 = vadd.f32 %v3532, 1e-05
        %v3581 = vadd.f32 %v3533, 1e-05
        %v3582 = vadd.f32 %v3534, 1e-05
        %v3583 = vadd.f32 %v3535, 1e-05
        %v3584 = vrsqrt.pop %v3568
        %v3585 = vmul.f32 %v3584, %v3568
        %v3586 = vmul.f32 %v3585, %v3584
        %v3587 = vmul.f32 0.5, %v3586
        %v3588 = vsub.f32 1.5, %v3587
        %v3589 = vmul.f32 %v3584, %v3588
        %vm3590 = vweird.f32 %v3568
        %vm3591 = vweird.f32 %v3584
        %vm3592 = vmor %vm3590, %vm3591
        %v3593 = vsel %vm3592, %v3584, %v3589
        %v3594 = vrsqrt.pop %v3569
        %v3595 = vmul.f32 %v3594, %v3569
        %v3596 = vmul.f32 %v3595, %v3594
        %v3597 = vmul.f32 0.5, %v3596
        %v3598 = vsub.f32 1.5, %v3597
        %v3599 = vmul.f32 %v3594, %v3598
        %vm3600 = vweird.f32 %v3569
        %vm3601 = vweird.f32 %v3594
        %vm3602 = vmor %vm3600, %vm3601
        %v3603 = vsel %vm3602, %v3594, %v3599
        %v3604 = vrsqrt.pop %v3570
        %v3605 = vmul.f32 %v3604, %v3570
        %v3606 = vmul.f32 %v3605, %v3604
        %v3607 = vmul.f32 0.5, %v3606
        %v3608 = vsub.f32 1.5, %v3607
        %v3609 = vmul.f32 %v3604, %v3608
        %vm3610 = vweird.f32 %v3570
        %vm3611 = vweird.f32 %v3604
        %vm3612 = vmor %vm3610, %vm3611
        %v3613 = vsel %vm3612, %v3604, %v3609
        %v3614 = vrsqrt.pop %v3571
        %v3615 = vmul.f32 %v3614, %v3571
        %v3616 = vmul.f32 %v3615, %v3614
        %v3617 = vmul.f32 0.5, %v3616
        %v3618 = vsub.f32 1.5, %v3617
        %v3619 = vmul.f32 %v3614, %v3618
        %vm3620 = vweird.f32 %v3571
        %vm3621 = vweird.f32 %v3614
        %vm3622 = vmor %vm3620, %vm3621
        %v3623 = vsel %vm3622, %v3614, %v3619
        %v3624 = vrsqrt.pop %v3572
        %v3625 = vmul.f32 %v3624, %v3572
        %v3626 = vmul.f32 %v3625, %v3624
        %v3627 = vmul.f32 0.5, %v3626
        %v3628 = vsub.f32 1.5, %v3627
        %v3629 = vmul.f32 %v3624, %v3628
        %vm3630 = vweird.f32 %v3572
        %vm3631 = vweird.f32 %v3624
        %vm3632 = vmor %vm3630, %vm3631
        %v3633 = vsel %vm3632, %v3624, %v3629
        %v3634 = vrsqrt.pop %v3573
        %v3635 = vmul.f32 %v3634, %v3573
        %v3636 = vmul.f32 %v3635, %v3634
        %v3637 = vmul.f32 0.5, %v3636
        %v3638 = vsub.f32 1.5, %v3637
        %v3639 = vmul.f32 %v3634, %v3638
        %vm3640 = vweird.f32 %v3573
        %vm3641 = vweird.f32 %v3634
        %vm3642 = vmor %vm3640, %vm3641
        %v3643 = vsel %vm3642, %v3634, %v3639
        %v3644 = vrsqrt.pop %v3574
        %v3645 = vmul.f32 %v3644, %v3574
        %v3646 = vmul.f32 %v3645, %v3644
        %v3647 = vmul.f32 0.5, %v3646
        %v3648 = vsub.f32 1.5, %v3647
        %v3649 = vmul.f32 %v3644, %v3648
        %vm3650 = vweird.f32 %v3574
        %vm3651 = vweird.f32 %v3644
        %vm3652 = vmor %vm3650, %vm3651
        %v3653 = vsel %vm3652, %v3644, %v3649
        %v3654 = vrsqrt.pop %v3575
        %v3655 = vmul.f32 %v3654, %v3575
        %v3656 = vmul.f32 %v3655, %v3654
        %v3657 = vmul.f32 0.5, %v3656
        %v3658 = vsub.f32 1.5, %v3657
        %v3659 = vmul.f32 %v3654, %v3658
        %vm3660 = vweird.f32 %v3575
        %vm3661 = vweird.f32 %v3654
        %vm3662 = vmor %vm3660, %vm3661
        %v3663 = vsel %vm3662, %v3654, %v3659
        %v3664 = vrsqrt.pop %v3576
        %v3665 = vmul.f32 %v3664, %v3576
        %v3666 = vmul.f32 %v3665, %v3664
        %v3667 = vmul.f32 0.5, %v3666
        %v3668 = vsub.f32 1.5, %v3667
        %v3669 = vmul.f32 %v3664, %v3668
        %vm3670 = vweird.f32 %v3576
        %vm3671 = vweird.f32 %v3664
        %vm3672 = vmor %vm3670, %vm3671
        %v3673 = vsel %vm3672, %v3664, %v3669
        %v3674 = vrsqrt.pop %v3577
        %v3675 = vmul.f32 %v3674, %v3577
        %v3676 = vmul.f32 %v3675, %v3674
        %v3677 = vmul.f32 0.5, %v3676
        %v3678 = vsub.f32 1.5, %v3677
        %v3679 = vmul.f32 %v3674, %v3678
        %vm3680 = vweird.f32 %v3577
        %vm3681 = vweird.f32 %v3674
        %vm3682 = vmor %vm3680, %vm3681
        %v3683 = vsel %vm3682, %v3674, %v3679
        %v3684 = vrsqrt.pop %v3578
        %v3685 = vmul.f32 %v3684, %v3578
        %v3686 = vmul.f32 %v3685, %v3684
        %v3687 = vmul.f32 0.5, %v3686
        %v3688 = vsub.f32 1.5, %v3687
        %v3689 = vmul.f32 %v3684, %v3688
        %vm3690 = vweird.f32 %v3578
        %vm3691 = vweird.f32 %v3684
        %vm3692 = vmor %vm3690, %vm3691
        %v3693 = vsel %vm3692, %v3684, %v3689
        %v3694 = vrsqrt.pop %v3579
        %v3695 = vmul.f32 %v3694, %v3579
        %v3696 = vmul.f32 %v3695, %v3694
        %v3697 = vmul.f32 0.5, %v3696
        %v3698 = vsub.f32 1.5, %v3697
        %v3699 = vmul.f32 %v3694, %v3698
        %vm3700 = vweird.f32 %v3579
        %vm3701 = vweird.f32 %v3694
        %vm3702 = vmor %vm3700, %vm3701
        %v3703 = vsel %vm3702, %v3694, %v3699
        %v3704 = vrsqrt.pop %v3580
        %v3705 = vmul.f32 %v3704, %v3580
        %v3706 = vmul.f32 %v3705, %v3704
        %v3707 = vmul.f32 0.5, %v3706
        %v3708 = vsub.f32 1.5, %v3707
        %v3709 = vmul.f32 %v3704, %v3708
        %vm3710 = vweird.f32 %v3580
        %vm3711 = vweird.f32 %v3704
        %vm3712 = vmor %vm3710, %vm3711
        %v3713 = vsel %vm3712, %v3704, %v3709
        %v3714 = vrsqrt.pop %v3581
        %v3715 = vmul.f32 %v3714, %v3581
        %v3716 = vmul.f32 %v3715, %v3714
        %v3717 = vmul.f32 0.5, %v3716
        %v3718 = vsub.f32 1.5, %v3717
        %v3719 = vmul.f32 %v3714, %v3718
        %vm3720 = vweird.f32 %v3581
        %vm3721 = vweird.f32 %v3714
        %vm3722 = vmor %vm3720, %vm3721
        %v3723 = vsel %vm3722, %v3714, %v3719
        %v3724 = vrsqrt.pop %v3582
        %v3725 = vmul.f32 %v3724, %v3582
        %v3726 = vmul.f32 %v3725, %v3724
        %v3727 = vmul.f32 0.5, %v3726
        %v3728 = vsub.f32 1.5, %v3727
        %v3729 = vmul.f32 %v3724, %v3728
        %vm3730 = vweird.f32 %v3582
        %vm3731 = vweird.f32 %v3724
        %vm3732 = vmor %vm3730, %vm3731
        %v3733 = vsel %vm3732, %v3724, %v3729
        %v3734 = vrsqrt.pop %v3583
        %v3735 = vmul.f32 %v3734, %v3583
        %v3736 = vmul.f32 %v3735, %v3734
        %v3737 = vmul.f32 0.5, %v3736
        %v3738 = vsub.f32 1.5, %v3737
        %v3739 = vmul.f32 %v3734, %v3738
        %vm3740 = vweird.f32 %v3583
        %vm3741 = vweird.f32 %v3734
        %vm3742 = vmor %vm3740, %vm3741
        %v3743 = vsel %vm3742, %v3734, %v3739
        %v3744 = vmul.f32 %v3536, %v3593
        %v3745 = vmul.f32 %v3537, %v3593
        %v3746 = vmul.f32 %v3538, %v3603
        %v3747 = vmul.f32 %v3539, %v3603
        %v3748 = vmul.f32 %v3540, %v3613
        %v3749 = vmul.f32 %v3541, %v3613
        %v3750 = vmul.f32 %v3542, %v3623
        %v3751 = vmul.f32 %v3543, %v3623
        %v3752 = vmul.f32 %v3544, %v3633
        %v3753 = vmul.f32 %v3545, %v3633
        %v3754 = vmul.f32 %v3546, %v3643
        %v3755 = vmul.f32 %v3547, %v3643
        %v3756 = vmul.f32 %v3548, %v3653
        %v3757 = vmul.f32 %v3549, %v3653
        %v3758 = vmul.f32 %v3550, %v3663
        %v3759 = vmul.f32 %v3551, %v3663
        %v3760 = vmul.f32 %v3552, %v3673
        %v3761 = vmul.f32 %v3553, %v3673
        %v3762 = vmul.f32 %v3554, %v3683
        %v3763 = vmul.f32 %v3555, %v3683
        %v3764 = vmul.f32 %v3556, %v3693
        %v3765 = vmul.f32 %v3557, %v3693
        %v3766 = vmul.f32 %v3558, %v3703
        %v3767 = vmul.f32 %v3559, %v3703
        %v3768 = vmul.f32 %v3560, %v3713
        %v3769 = vmul.f32 %v3561, %v3713
        %v3770 = vmul.f32 %v3562, %v3723
        %v3771 = vmul.f32 %v3563, %v3723
        %v3772 = vmul.f32 %v3564, %v3733
        %v3773 = vmul.f32 %v3565, %v3733
        %v3774 = vmul.f32 %v3566, %v3743
        %v3775 = vmul.f32 %v3567, %v3743
        %v3776 = vpack.c.bf16 %v2415, %v2411
        %v3777 = vpack.c.bf16 %v2416, %v2412
        %v3778 = vpack.c.bf16 %v2417, %v2413
        %v3779 = vpack.c.bf16 %v2418, %v2414
        %v3780 = vpack.c.bf16 %v2423, %v2419
        %v3781 = vpack.c.bf16 %v2424, %v2420
        %v3782 = vpack.c.bf16 %v2425, %v2421
        %v3783 = vpack.c.bf16 %v2426, %v2422
        %v3784 = vpack.c.bf16 %v2431, %v2427
        %v3785 = vpack.c.bf16 %v2432, %v2428
        %v3786 = vpack.c.bf16 %v2433, %v2429
        %v3787 = vpack.c.bf16 %v2434, %v2430
        %v3788 = vpack.c.bf16 %v2439, %v2435
        %v3789 = vpack.c.bf16 %v2440, %v2436
        %v3790 = vpack.c.bf16 %v2441, %v2437
        %v3791 = vpack.c.bf16 %v2442, %v2438
        %v3792 = vpack.c.bf16 %v2447, %v2443
        %v3793 = vpack.c.bf16 %v2448, %v2444
        %v3794 = vpack.c.bf16 %v2449, %v2445
        %v3795 = vpack.c.bf16 %v2450, %v2446
        %v3796 = vpack.c.bf16 %v2455, %v2451
        %v3797 = vpack.c.bf16 %v2456, %v2452
        %v3798 = vpack.c.bf16 %v2457, %v2453
        %v3799 = vpack.c.bf16 %v2458, %v2454
        %v3800 = vpack.c.bf16 %v2463, %v2459
        %v3801 = vpack.c.bf16 %v2464, %v2460
        %v3802 = vpack.c.bf16 %v2465, %v2461
        %v3803 = vpack.c.bf16 %v2466, %v2462
        %v3804 = vpack.c.bf16 %v2471, %v2467
        %v3805 = vpack.c.bf16 %v2472, %v2468
        %v3806 = vpack.c.bf16 %v2473, %v2469
        %v3807 = vpack.c.bf16 %v2474, %v2470
        %v3808 = vld [vmem:[#allocation8] sm:$0xff]
        %v3809 = vld [vmem:[#allocation8 + $0x8] sm:$0xff]
        %v3810 = vld [vmem:[#allocation8 + $0x10] sm:$0xff]
        %v3811 = vld [vmem:[#allocation8 + $0x18] sm:$0xff]
        %v3812 = vld [vmem:[#allocation8 + $0x20] sm:$0xff]
        %v3813 = vld [vmem:[#allocation8 + $0x28] sm:$0xff]
        %v3814 = vld [vmem:[#allocation8 + $0x30] sm:$0xff]
        %v3815 = vld [vmem:[#allocation8 + $0x38] sm:$0xff]
        %v3816 = vld [vmem:[#allocation8 + $0x40] sm:$0xff]
        %v3817 = vld [vmem:[#allocation8 + $0x48] sm:$0xff]
        %v3818 = vld [vmem:[#allocation8 + $0x50] sm:$0xff]
        %v3819 = vld [vmem:[#allocation8 + $0x58] sm:$0xff]
        %v3820 = vld [vmem:[#allocation8 + $0x60] sm:$0xff]
        %v3821 = vld [vmem:[#allocation8 + $0x68] sm:$0xff]
        %v3822 = vld [vmem:[#allocation8 + $0x70] sm:$0xff]
        %v3823 = vld [vmem:[#allocation8 + $0x78] sm:$0xff]
        %v3824 = vld [vmem:[#allocation8 + $0x80] sm:$0xff]
        %v3825 = vld [vmem:[#allocation8 + $0x88] sm:$0xff]
        %v3826 = vld [vmem:[#allocation8 + $0x90] sm:$0xff]
        %v3827 = vld [vmem:[#allocation8 + $0x98] sm:$0xff]
        %v3828 = vld [vmem:[#allocation8 + $0xa0] sm:$0xff]
        %v3829 = vld [vmem:[#allocation8 + $0xa8] sm:$0xff]
        %v3830 = vld [vmem:[#allocation8 + $0xb0] sm:$0xff]
        %v3831 = vld [vmem:[#allocation8 + $0xb8] sm:$0xff]
        %v3832 = vld [vmem:[#allocation8 + $0xc0] sm:$0xff]
        %v3833 = vld [vmem:[#allocation8 + $0xc8] sm:$0xff]
        %v3834 = vld [vmem:[#allocation8 + $0xd0] sm:$0xff]
        %v3835 = vld [vmem:[#allocation8 + $0xd8] sm:$0xff]
        %v3836 = vld [vmem:[#allocation8 + $0xe0] sm:$0xff]
        %v3837 = vld [vmem:[#allocation8 + $0xe8] sm:$0xff]
        %v3838 = vld [vmem:[#allocation8 + $0xf0] sm:$0xff]
        %v3839 = vld [vmem:[#allocation8 + $0xf8] sm:$0xff]
        %v3840 = vld [vmem:[#allocation8 + $0x100] sm:$0xff]
        %v3841 = vld [vmem:[#allocation8 + $0x108] sm:$0xff]
        %v3842 = vld [vmem:[#allocation8 + $0x110] sm:$0xff]
        %v3843 = vld [vmem:[#allocation8 + $0x118] sm:$0xff]
        %v3844 = vld [vmem:[#allocation8 + $0x120] sm:$0xff]
        %v3845 = vld [vmem:[#allocation8 + $0x128] sm:$0xff]
        %v3846 = vld [vmem:[#allocation8 + $0x130] sm:$0xff]
        %v3847 = vld [vmem:[#allocation8 + $0x138] sm:$0xff]
        %v3848 = vld [vmem:[#allocation8 + $0x140] sm:$0xff]
        %v3849 = vld [vmem:[#allocation8 + $0x148] sm:$0xff]
        %v3850 = vld [vmem:[#allocation8 + $0x150] sm:$0xff]
        %v3851 = vld [vmem:[#allocation8 + $0x158] sm:$0xff]
        %v3852 = vld [vmem:[#allocation8 + $0x160] sm:$0xff]
        %v3853 = vld [vmem:[#allocation8 + $0x168] sm:$0xff]
        %v3854 = vld [vmem:[#allocation8 + $0x170] sm:$0xff]
        %v3855 = vld [vmem:[#allocation8 + $0x178] sm:$0xff]
        %v3856 = vld [vmem:[#allocation8 + $0x180] sm:$0xff]
        %v3857 = vld [vmem:[#allocation8 + $0x188] sm:$0xff]
        %v3858 = vld [vmem:[#allocation8 + $0x190] sm:$0xff]
        %v3859 = vld [vmem:[#allocation8 + $0x198] sm:$0xff]
        %v3860 = vld [vmem:[#allocation8 + $0x1a0] sm:$0xff]
        %v3861 = vld [vmem:[#allocation8 + $0x1a8] sm:$0xff]
        %v3862 = vld [vmem:[#allocation8 + $0x1b0] sm:$0xff]
        %v3863 = vld [vmem:[#allocation8 + $0x1b8] sm:$0xff]
        %v3864 = vld [vmem:[#allocation8 + $0x1c0] sm:$0xff]
        %v3865 = vld [vmem:[#allocation8 + $0x1c8] sm:$0xff]
        %v3866 = vld [vmem:[#allocation8 + $0x1d0] sm:$0xff]
        %v3867 = vld [vmem:[#allocation8 + $0x1d8] sm:$0xff]
        %v3868 = vld [vmem:[#allocation8 + $0x1e0] sm:$0xff]
        %v3869 = vld [vmem:[#allocation8 + $0x1e8] sm:$0xff]
        %v3870 = vld [vmem:[#allocation8 + $0x1f0] sm:$0xff]
        %v3871 = vld [vmem:[#allocation8 + $0x1f8] sm:$0xff]
        %v3872 = vld [vmem:[%s10] sm:$0x3]
        %v3874 = vperm.slane %v3872, 0
        %v3875 = vperm.slane %v3872, 1
        %v3942 = vunpack.c.l.b16 %v3808
        %v3943 = vunpack.c.h.b16 %v3808
        %v3944 = vunpack.c.l.b16 %v3809
        %v3945 = vunpack.c.h.b16 %v3809
        %v3946 = vunpack.c.l.b16 %v3810
        %v3947 = vunpack.c.h.b16 %v3810
        %v3948 = vunpack.c.l.b16 %v3811
        %v3949 = vunpack.c.h.b16 %v3811
        %v3950 = vunpack.c.l.b16 %v3812
        %v3951 = vunpack.c.h.b16 %v3812
        %v3952 = vunpack.c.l.b16 %v3813
        %v3953 = vunpack.c.h.b16 %v3813
        %v3954 = vunpack.c.l.b16 %v3814
        %v3955 = vunpack.c.h.b16 %v3814
        %v3956 = vunpack.c.l.b16 %v3815
        %v3957 = vunpack.c.h.b16 %v3815
        %v3958 = vunpack.c.l.b16 %v3816
        %v3959 = vunpack.c.h.b16 %v3816
        %v3960 = vunpack.c.l.b16 %v3817
        %v3961 = vunpack.c.h.b16 %v3817
        %v3962 = vunpack.c.l.b16 %v3818
        %v3963 = vunpack.c.h.b16 %v3818
        %v3964 = vunpack.c.l.b16 %v3819
        %v3965 = vunpack.c.h.b16 %v3819
        %v3966 = vunpack.c.l.b16 %v3820
        %v3967 = vunpack.c.h.b16 %v3820
        %v3968 = vunpack.c.l.b16 %v3821
        %v3969 = vunpack.c.h.b16 %v3821
        %v3970 = vunpack.c.l.b16 %v3822
        %v3971 = vunpack.c.h.b16 %v3822
        %v3972 = vunpack.c.l.b16 %v3823
        %v3973 = vunpack.c.h.b16 %v3823
        %v3974 = vunpack.c.l.b16 %v3824
        %v3975 = vunpack.c.h.b16 %v3824
        %v3976 = vunpack.c.l.b16 %v3825
        %v3977 = vunpack.c.h.b16 %v3825
        %v3978 = vunpack.c.l.b16 %v3826
        %v3979 = vunpack.c.h.b16 %v3826
        %v3980 = vunpack.c.l.b16 %v3827
        %v3981 = vunpack.c.h.b16 %v3827
        %v3982 = vunpack.c.l.b16 %v3828
        %v3983 = vunpack.c.h.b16 %v3828
        %v3984 = vunpack.c.l.b16 %v3829
        %v3985 = vunpack.c.h.b16 %v3829
        %v3986 = vunpack.c.l.b16 %v3830
        %v3987 = vunpack.c.h.b16 %v3830
        %v3988 = vunpack.c.l.b16 %v3831
        %v3989 = vunpack.c.h.b16 %v3831
        %v3990 = vunpack.c.l.b16 %v3832
        %v3991 = vunpack.c.h.b16 %v3832
        %v3992 = vunpack.c.l.b16 %v3833
        %v3993 = vunpack.c.h.b16 %v3833
        %v3994 = vunpack.c.l.b16 %v3834
        %v3995 = vunpack.c.h.b16 %v3834
        %v3996 = vunpack.c.l.b16 %v3835
        %v3997 = vunpack.c.h.b16 %v3835
        %v3998 = vunpack.c.l.b16 %v3836
        %v3999 = vunpack.c.h.b16 %v3836
        %v4000 = vunpack.c.l.b16 %v3837
        %v4001 = vunpack.c.h.b16 %v3837
        %v4002 = vunpack.c.l.b16 %v3838
        %v4003 = vunpack.c.h.b16 %v3838
        %v4004 = vunpack.c.l.b16 %v3839
        %v4005 = vunpack.c.h.b16 %v3839
        %v4006 = vunpack.c.l.b16 %v3840
        %v4007 = vunpack.c.h.b16 %v3840
        %v4008 = vunpack.c.l.b16 %v3841
        %v4009 = vunpack.c.h.b16 %v3841
        %v4010 = vunpack.c.l.b16 %v3842
        %v4011 = vunpack.c.h.b16 %v3842
        %v4012 = vunpack.c.l.b16 %v3843
        %v4013 = vunpack.c.h.b16 %v3843
        %v4014 = vunpack.c.l.b16 %v3844
        %v4015 = vunpack.c.h.b16 %v3844
        %v4016 = vunpack.c.l.b16 %v3845
        %v4017 = vunpack.c.h.b16 %v3845
        %v4018 = vunpack.c.l.b16 %v3846
        %v4019 = vunpack.c.h.b16 %v3846
        %v4020 = vunpack.c.l.b16 %v3847
        %v4021 = vunpack.c.h.b16 %v3847
        %v4022 = vunpack.c.l.b16 %v3848
        %v4023 = vunpack.c.h.b16 %v3848
        %v4024 = vunpack.c.l.b16 %v3849
        %v4025 = vunpack.c.h.b16 %v3849
        %v4026 = vunpack.c.l.b16 %v3850
        %v4027 = vunpack.c.h.b16 %v3850
        %v4028 = vunpack.c.l.b16 %v3851
        %v4029 = vunpack.c.h.b16 %v3851
        %v4030 = vunpack.c.l.b16 %v3852
        %v4031 = vunpack.c.h.b16 %v3852
        %v4032 = vunpack.c.l.b16 %v3853
        %v4033 = vunpack.c.h.b16 %v3853
        %v4034 = vunpack.c.l.b16 %v3854
        %v4035 = vunpack.c.h.b16 %v3854
        %v4036 = vunpack.c.l.b16 %v3855
        %v4037 = vunpack.c.h.b16 %v3855
        %v4038 = vunpack.c.l.b16 %v3856
        %v4039 = vunpack.c.h.b16 %v3856
        %v4040 = vunpack.c.l.b16 %v3857
        %v4041 = vunpack.c.h.b16 %v3857
        %v4042 = vunpack.c.l.b16 %v3858
        %v4043 = vunpack.c.h.b16 %v3858
        %v4044 = vunpack.c.l.b16 %v3859
        %v4045 = vunpack.c.h.b16 %v3859
        %v4046 = vunpack.c.l.b16 %v3860
        %v4047 = vunpack.c.h.b16 %v3860
        %v4048 = vunpack.c.l.b16 %v3861
        %v4049 = vunpack.c.h.b16 %v3861
        %v4050 = vunpack.c.l.b16 %v3862
        %v4051 = vunpack.c.h.b16 %v3862
        %v4052 = vunpack.c.l.b16 %v3863
        %v4053 = vunpack.c.h.b16 %v3863
        %v4054 = vunpack.c.l.b16 %v3864
        %v4055 = vunpack.c.h.b16 %v3864
        %v4056 = vunpack.c.l.b16 %v3865
        %v4057 = vunpack.c.h.b16 %v3865
        %v4058 = vunpack.c.l.b16 %v3866
        %v4059 = vunpack.c.h.b16 %v3866
        %v4060 = vunpack.c.l.b16 %v3867
        %v4061 = vunpack.c.h.b16 %v3867
        %v4062 = vunpack.c.l.b16 %v3868
        %v4063 = vunpack.c.h.b16 %v3868
        %v4064 = vunpack.c.l.b16 %v3869
        %v4065 = vunpack.c.h.b16 %v3869
        %v4066 = vunpack.c.l.b16 %v3870
        %v4067 = vunpack.c.h.b16 %v3870
        %v4068 = vunpack.c.l.b16 %v3871
        %v4069 = vunpack.c.h.b16 %v3871
        %v4070 = vpack.c.b16 %v3944, %v3942
        %v4071 = vpack.c.b16 %v3945, %v3943
        %v4072 = vpack.c.b16 %v3948, %v3946
        %v4073 = vpack.c.b16 %v3949, %v3947
        %v4074 = vpack.c.b16 %v3952, %v3950
        %v4075 = vpack.c.b16 %v3953, %v3951
        %v4076 = vpack.c.b16 %v3956, %v3954
        %v4077 = vpack.c.b16 %v3957, %v3955
        %v4078 = vpack.c.b16 %v3960, %v3958
        %v4079 = vpack.c.b16 %v3961, %v3959
        %v4080 = vpack.c.b16 %v3964, %v3962
        %v4081 = vpack.c.b16 %v3965, %v3963
        %v4082 = vpack.c.b16 %v3968, %v3966
        %v4083 = vpack.c.b16 %v3969, %v3967
        %v4084 = vpack.c.b16 %v3972, %v3970
        %v4085 = vpack.c.b16 %v3973, %v3971
        %v4086 = vpack.c.b16 %v3976, %v3974
        %v4087 = vpack.c.b16 %v3977, %v3975
        %v4088 = vpack.c.b16 %v3980, %v3978
        %v4089 = vpack.c.b16 %v3981, %v3979
        %v4090 = vpack.c.b16 %v3984, %v3982
        %v4091 = vpack.c.b16 %v3985, %v3983
        %v4092 = vpack.c.b16 %v3988, %v3986
        %v4093 = vpack.c.b16 %v3989, %v3987
        %v4094 = vpack.c.b16 %v3992, %v3990
        %v4095 = vpack.c.b16 %v3993, %v3991
        %v4096 = vpack.c.b16 %v3996, %v3994
        %v4097 = vpack.c.b16 %v3997, %v3995
        %v4098 = vpack.c.b16 %v4000, %v3998
        %v4099 = vpack.c.b16 %v4001, %v3999
        %v4100 = vpack.c.b16 %v4004, %v4002
        %v4101 = vpack.c.b16 %v4005, %v4003
        %v4102 = vpack.c.b16 %v4008, %v4006
        %v4103 = vpack.c.b16 %v4009, %v4007
        %v4104 = vpack.c.b16 %v4012, %v4010
        %v4105 = vpack.c.b16 %v4013, %v4011
        %v4106 = vpack.c.b16 %v4016, %v4014
        %v4107 = vpack.c.b16 %v4017, %v4015
        %v4108 = vpack.c.b16 %v4020, %v4018
        %v4109 = vpack.c.b16 %v4021, %v4019
        %v4110 = vpack.c.b16 %v4024, %v4022
        %v4111 = vpack.c.b16 %v4025, %v4023
        %v4112 = vpack.c.b16 %v4028, %v4026
        %v4113 = vpack.c.b16 %v4029, %v4027
        %v4114 = vpack.c.b16 %v4032, %v4030
        %v4115 = vpack.c.b16 %v4033, %v4031
        %v4116 = vpack.c.b16 %v4036, %v4034
        %v4117 = vpack.c.b16 %v4037, %v4035
        %v4118 = vpack.c.b16 %v4040, %v4038
        %v4119 = vpack.c.b16 %v4041, %v4039
        %v4120 = vpack.c.b16 %v4044, %v4042
        %v4121 = vpack.c.b16 %v4045, %v4043
        %v4122 = vpack.c.b16 %v4048, %v4046
        %v4123 = vpack.c.b16 %v4049, %v4047
        %v4124 = vpack.c.b16 %v4052, %v4050
        %v4125 = vpack.c.b16 %v4053, %v4051
        %v4126 = vpack.c.b16 %v4056, %v4054
        %v4127 = vpack.c.b16 %v4057, %v4055
        %v4128 = vpack.c.b16 %v4060, %v4058
        %v4129 = vpack.c.b16 %v4061, %v4059
        %v4130 = vpack.c.b16 %v4064, %v4062
        %v4131 = vpack.c.b16 %v4065, %v4063
        %v4132 = vpack.c.b16 %v4068, %v4066
        %v4133 = vpack.c.b16 %v4069, %v4067
        %4198 = vmatpush.bf16.msra.mxu0 %v4084
        %4199 = vmatpush.bf16.msra.mxu0 %v4082
        %4200 = vmatpush.bf16.msra.mxu0 %v4080
        %4201 = vmatpush.bf16.msra.mxu0 %v4078
        %4202 = vmatpush.bf16.msra.mxu0 %v4076
        %4203 = vmatpush.bf16.msra.mxu0 %v4074
        %4204 = vmatpush.bf16.msra.mxu0 %v4072
        %4205 = vmatpush.bf16.msra.mxu0 %v4070
        %4206 = vmatmul.bf16.gmra.mxu0 %v3776
        %v4207 = vpop.f32.mrf.mxu0
        %v4208 = vadd.f32 %v3874, %v4207
        %v4209 = vpop.f32.mrf.mxu0
        %v4210 = vadd.f32 %v3874, %v4209
        %4211 = vmatmul.bf16.gmra.mxu0 %v3780
        %v4212 = vpop.f32.mrf.mxu0
        %v4213 = vadd.f32 %v3874, %v4212
        %v4214 = vpop.f32.mrf.mxu0
        %v4215 = vadd.f32 %v3874, %v4214
        %4216 = vmatmul.bf16.gmra.mxu0 %v3784
        %v4217 = vpop.f32.mrf.mxu0
        %v4218 = vadd.f32 %v3874, %v4217
        %v4219 = vpop.f32.mrf.mxu0
        %v4220 = vadd.f32 %v3874, %v4219
        %4221 = vmatmul.bf16.gmra.mxu0 %v3788
        %v4222 = vpop.f32.mrf.mxu0
        %v4223 = vadd.f32 %v3874, %v4222
        %v4224 = vpop.f32.mrf.mxu0
        %v4225 = vadd.f32 %v3874, %v4224
        %4226 = vmatmul.bf16.gmra.mxu0 %v3792
        %v4227 = vpop.f32.mrf.mxu0
        %v4228 = vadd.f32 %v3874, %v4227
        %v4229 = vpop.f32.mrf.mxu0
        %v4230 = vadd.f32 %v3874, %v4229
        %4231 = vmatmul.bf16.gmra.mxu0 %v3796
        %v4232 = vpop.f32.mrf.mxu0
        %v4233 = vadd.f32 %v3874, %v4232
        %v4234 = vpop.f32.mrf.mxu0
        %v4235 = vadd.f32 %v3874, %v4234
        %4236 = vmatmul.bf16.gmra.mxu0 %v3800
        %v4237 = vpop.f32.mrf.mxu0
        %v4238 = vadd.f32 %v3874, %v4237
        %v4239 = vpop.f32.mrf.mxu0
        %v4240 = vadd.f32 %v3874, %v4239
        %4241 = vmatmul.bf16.gmra.mxu0 %v3804
        %v4242 = vpop.f32.mrf.mxu0
        %v4243 = vadd.f32 %v3874, %v4242
        %v4244 = vpop.f32.mrf.mxu0
        %v4245 = vadd.f32 %v3874, %v4244
        %4246 = vdwg.mxu0
        %4247 = vmatpush.bf16.msra.mxu0 %v4100
        %4248 = vmatpush.bf16.msra.mxu0 %v4098
        %4249 = vmatpush.bf16.msra.mxu0 %v4096
        %4250 = vmatpush.bf16.msra.mxu0 %v4094
        %4251 = vmatpush.bf16.msra.mxu0 %v4092
        %4252 = vmatpush.bf16.msra.mxu0 %v4090
        %4253 = vmatpush.bf16.msra.mxu0 %v4088
        %4254 = vmatpush.bf16.msra.mxu0 %v4086
        %4255 = vmatmul.bf16.gmra.mxu0 %v3777
        %v4256 = vpop.f32.mrf.mxu0
        %v4257 = vadd.f32 %v4208, %v4256
        %v4258 = vpop.f32.mrf.mxu0
        %v4259 = vadd.f32 %v4210, %v4258
        %4260 = vmatmul.bf16.gmra.mxu0 %v3781
        %v4261 = vpop.f32.mrf.mxu0
        %v4262 = vadd.f32 %v4213, %v4261
        %v4263 = vpop.f32.mrf.mxu0
        %v4264 = vadd.f32 %v4215, %v4263
        %4265 = vmatmul.bf16.gmra.mxu0 %v3785
        %v4266 = vpop.f32.mrf.mxu0
        %v4267 = vadd.f32 %v4218, %v4266
        %v4268 = vpop.f32.mrf.mxu0
        %v4269 = vadd.f32 %v4220, %v4268
        %4270 = vmatmul.bf16.gmra.mxu0 %v3789
        %v4271 = vpop.f32.mrf.mxu0
        %v4272 = vadd.f32 %v4223, %v4271
        %v4273 = vpop.f32.mrf.mxu0
        %v4274 = vadd.f32 %v4225, %v4273
        %4275 = vmatmul.bf16.gmra.mxu0 %v3793
        %v4276 = vpop.f32.mrf.mxu0
        %v4277 = vadd.f32 %v4228, %v4276
        %v4278 = vpop.f32.mrf.mxu0
        %v4279 = vadd.f32 %v4230, %v4278
        %4280 = vmatmul.bf16.gmra.mxu0 %v3797
        %v4281 = vpop.f32.mrf.mxu0
        %v4282 = vadd.f32 %v4233, %v4281
        %v4283 = vpop.f32.mrf.mxu0
        %v4284 = vadd.f32 %v4235, %v4283
        %4285 = vmatmul.bf16.gmra.mxu0 %v3801
        %v4286 = vpop.f32.mrf.mxu0
        %v4287 = vadd.f32 %v4238, %v4286
        %v4288 = vpop.f32.mrf.mxu0
        %v4289 = vadd.f32 %v4240, %v4288
        %4290 = vmatmul.bf16.gmra.mxu0 %v3805
        %v4291 = vpop.f32.mrf.mxu0
        %v4292 = vadd.f32 %v4243, %v4291
        %v4293 = vpop.f32.mrf.mxu0
        %v4294 = vadd.f32 %v4245, %v4293
        %4295 = vdwg.mxu0
        %4296 = vmatpush.bf16.msra.mxu0 %v4116
        %4297 = vmatpush.bf16.msra.mxu0 %v4114
        %4298 = vmatpush.bf16.msra.mxu0 %v4112
        %4299 = vmatpush.bf16.msra.mxu0 %v4110
        %4300 = vmatpush.bf16.msra.mxu0 %v4108
        %4301 = vmatpush.bf16.msra.mxu0 %v4106
        %4302 = vmatpush.bf16.msra.mxu0 %v4104
        %4303 = vmatpush.bf16.msra.mxu0 %v4102
        %4304 = vmatmul.bf16.gmra.mxu0 %v3778
        %v4305 = vpop.f32.mrf.mxu0
        %v4306 = vadd.f32 %v4257, %v4305
        %v4307 = vpop.f32.mrf.mxu0
        %v4308 = vadd.f32 %v4259, %v4307
        %4309 = vmatmul.bf16.gmra.mxu0 %v3782
        %v4310 = vpop.f32.mrf.mxu0
        %v4311 = vadd.f32 %v4262, %v4310
        %v4312 = vpop.f32.mrf.mxu0
        %v4313 = vadd.f32 %v4264, %v4312
        %4314 = vmatmul.bf16.gmra.mxu0 %v3786
        %v4315 = vpop.f32.mrf.mxu0
        %v4316 = vadd.f32 %v4267, %v4315
        %v4317 = vpop.f32.mrf.mxu0
        %v4318 = vadd.f32 %v4269, %v4317
        %4319 = vmatmul.bf16.gmra.mxu0 %v3790
        %v4320 = vpop.f32.mrf.mxu0
        %v4321 = vadd.f32 %v4272, %v4320
        %v4322 = vpop.f32.mrf.mxu0
        %v4323 = vadd.f32 %v4274, %v4322
        %4324 = vmatmul.bf16.gmra.mxu0 %v3794
        %v4325 = vpop.f32.mrf.mxu0
        %v4326 = vadd.f32 %v4277, %v4325
        %v4327 = vpop.f32.mrf.mxu0
        %v4328 = vadd.f32 %v4279, %v4327
        %4329 = vmatmul.bf16.gmra.mxu0 %v3798
        %v4330 = vpop.f32.mrf.mxu0
        %v4331 = vadd.f32 %v4282, %v4330
        %v4332 = vpop.f32.mrf.mxu0
        %v4333 = vadd.f32 %v4284, %v4332
        %4334 = vmatmul.bf16.gmra.mxu0 %v3802
        %v4335 = vpop.f32.mrf.mxu0
        %v4336 = vadd.f32 %v4287, %v4335
        %v4337 = vpop.f32.mrf.mxu0
        %v4338 = vadd.f32 %v4289, %v4337
        %4339 = vmatmul.bf16.gmra.mxu0 %v3806
        %v4340 = vpop.f32.mrf.mxu0
        %v4341 = vadd.f32 %v4292, %v4340
        %v4342 = vpop.f32.mrf.mxu0
        %v4343 = vadd.f32 %v4294, %v4342
        %4344 = vdwg.mxu0
        %4345 = vmatpush.bf16.msra.mxu0 %v4132
        %4346 = vmatpush.bf16.msra.mxu0 %v4130
        %4347 = vmatpush.bf16.msra.mxu0 %v4128
        %4348 = vmatpush.bf16.msra.mxu0 %v4126
        %4349 = vmatpush.bf16.msra.mxu0 %v4124
        %4350 = vmatpush.bf16.msra.mxu0 %v4122
        %4351 = vmatpush.bf16.msra.mxu0 %v4120
        %4352 = vmatpush.bf16.msra.mxu0 %v4118
        %4353 = vmatmul.bf16.gmra.mxu0 %v3779
        %v4354 = vpop.f32.mrf.mxu0
        %v4355 = vadd.f32 %v4306, %v4354
        %v4356 = vpop.f32.mrf.mxu0
        %v4357 = vadd.f32 %v4308, %v4356
        %4358 = vmatmul.bf16.gmra.mxu0 %v3783
        %v4359 = vpop.f32.mrf.mxu0
        %v4360 = vadd.f32 %v4311, %v4359
        %v4361 = vpop.f32.mrf.mxu0
        %v4362 = vadd.f32 %v4313, %v4361
        %4363 = vmatmul.bf16.gmra.mxu0 %v3787
        %v4364 = vpop.f32.mrf.mxu0
        %v4365 = vadd.f32 %v4316, %v4364
        %v4366 = vpop.f32.mrf.mxu0
        %v4367 = vadd.f32 %v4318, %v4366
        %4368 = vmatmul.bf16.gmra.mxu0 %v3791
        %v4369 = vpop.f32.mrf.mxu0
        %v4370 = vadd.f32 %v4321, %v4369
        %v4371 = vpop.f32.mrf.mxu0
        %v4372 = vadd.f32 %v4323, %v4371
        %4373 = vmatmul.bf16.gmra.mxu0 %v3795
        %v4374 = vpop.f32.mrf.mxu0
        %v4375 = vadd.f32 %v4326, %v4374
        %v4376 = vpop.f32.mrf.mxu0
        %v4377 = vadd.f32 %v4328, %v4376
        %4378 = vmatmul.bf16.gmra.mxu0 %v3799
        %v4379 = vpop.f32.mrf.mxu0
        %v4380 = vadd.f32 %v4331, %v4379
        %v4381 = vpop.f32.mrf.mxu0
        %v4382 = vadd.f32 %v4333, %v4381
        %4383 = vmatmul.bf16.gmra.mxu0 %v3803
        %v4384 = vpop.f32.mrf.mxu0
        %v4385 = vadd.f32 %v4336, %v4384
        %v4386 = vpop.f32.mrf.mxu0
        %v4387 = vadd.f32 %v4338, %v4386
        %4388 = vmatmul.bf16.gmra.mxu0 %v3807
        %v4389 = vpop.f32.mrf.mxu0
        %v4390 = vadd.f32 %v4341, %v4389
        %v4391 = vpop.f32.mrf.mxu0
        %v4392 = vadd.f32 %v4343, %v4391
        %4393 = vdwg.mxu0
        %4394 = vmatpush.bf16.msra.mxu0 %v4085
        %4395 = vmatpush.bf16.msra.mxu0 %v4083
        %4396 = vmatpush.bf16.msra.mxu0 %v4081
        %4397 = vmatpush.bf16.msra.mxu0 %v4079
        %4398 = vmatpush.bf16.msra.mxu0 %v4077
        %4399 = vmatpush.bf16.msra.mxu0 %v4075
        %4400 = vmatpush.bf16.msra.mxu0 %v4073
        %4401 = vmatpush.bf16.msra.mxu0 %v4071
        %4402 = vmatmul.bf16.gmra.mxu0 %v3776
        %v4403 = vpop.f32.mrf.mxu0
        %v4404 = vadd.f32 %v3875, %v4403
        %v4405 = vpop.f32.mrf.mxu0
        %v4406 = vadd.f32 %v3875, %v4405
        %4407 = vmatmul.bf16.gmra.mxu0 %v3780
        %v4408 = vpop.f32.mrf.mxu0
        %v4409 = vadd.f32 %v3875, %v4408
        %v4410 = vpop.f32.mrf.mxu0
        %v4411 = vadd.f32 %v3875, %v4410
        %4412 = vmatmul.bf16.gmra.mxu0 %v3784
        %v4413 = vpop.f32.mrf.mxu0
        %v4414 = vadd.f32 %v3875, %v4413
        %v4415 = vpop.f32.mrf.mxu0
        %v4416 = vadd.f32 %v3875, %v4415
        %4417 = vmatmul.bf16.gmra.mxu0 %v3788
        %v4418 = vpop.f32.mrf.mxu0
        %v4419 = vadd.f32 %v3875, %v4418
        %v4420 = vpop.f32.mrf.mxu0
        %v4421 = vadd.f32 %v3875, %v4420
        %4422 = vmatmul.bf16.gmra.mxu0 %v3792
        %v4423 = vpop.f32.mrf.mxu0
        %v4424 = vadd.f32 %v3875, %v4423
        %v4425 = vpop.f32.mrf.mxu0
        %v4426 = vadd.f32 %v3875, %v4425
        %4427 = vmatmul.bf16.gmra.mxu0 %v3796
        %v4428 = vpop.f32.mrf.mxu0
        %v4429 = vadd.f32 %v3875, %v4428
        %v4430 = vpop.f32.mrf.mxu0
        %v4431 = vadd.f32 %v3875, %v4430
        %4432 = vmatmul.bf16.gmra.mxu0 %v3800
        %v4433 = vpop.f32.mrf.mxu0
        %v4434 = vadd.f32 %v3875, %v4433
        %v4435 = vpop.f32.mrf.mxu0
        %v4436 = vadd.f32 %v3875, %v4435
        %4437 = vmatmul.bf16.gmra.mxu0 %v3804
        %v4438 = vpop.f32.mrf.mxu0
        %v4439 = vadd.f32 %v3875, %v4438
        %v4440 = vpop.f32.mrf.mxu0
        %v4441 = vadd.f32 %v3875, %v4440
        %4442 = vdwg.mxu0
        %4443 = vmatpush.bf16.msra.mxu0 %v4101
        %4444 = vmatpush.bf16.msra.mxu0 %v4099
        %4445 = vmatpush.bf16.msra.mxu0 %v4097
        %4446 = vmatpush.bf16.msra.mxu0 %v4095
        %4447 = vmatpush.bf16.msra.mxu0 %v4093
        %4448 = vmatpush.bf16.msra.mxu0 %v4091
        %4449 = vmatpush.bf16.msra.mxu0 %v4089
        %4450 = vmatpush.bf16.msra.mxu0 %v4087
        %4451 = vmatmul.bf16.gmra.mxu0 %v3777
        %v4452 = vpop.f32.mrf.mxu0
        %v4453 = vadd.f32 %v4404, %v4452
        %v4454 = vpop.f32.mrf.mxu0
        %v4455 = vadd.f32 %v4406, %v4454
        %4456 = vmatmul.bf16.gmra.mxu0 %v3781
        %v4457 = vpop.f32.mrf.mxu0
        %v4458 = vadd.f32 %v4409, %v4457
        %v4459 = vpop.f32.mrf.mxu0
        %v4460 = vadd.f32 %v4411, %v4459
        %4461 = vmatmul.bf16.gmra.mxu0 %v3785
        %v4462 = vpop.f32.mrf.mxu0
        %v4463 = vadd.f32 %v4414, %v4462
        %v4464 = vpop.f32.mrf.mxu0
        %v4465 = vadd.f32 %v4416, %v4464
        %4466 = vmatmul.bf16.gmra.mxu0 %v3789
        %v4467 = vpop.f32.mrf.mxu0
        %v4468 = vadd.f32 %v4419, %v4467
        %v4469 = vpop.f32.mrf.mxu0
        %v4470 = vadd.f32 %v4421, %v4469
        %4471 = vmatmul.bf16.gmra.mxu0 %v3793
        %v4472 = vpop.f32.mrf.mxu0
        %v4473 = vadd.f32 %v4424, %v4472
        %v4474 = vpop.f32.mrf.mxu0
        %v4475 = vadd.f32 %v4426, %v4474
        %4476 = vmatmul.bf16.gmra.mxu0 %v3797
        %v4477 = vpop.f32.mrf.mxu0
        %v4478 = vadd.f32 %v4429, %v4477
        %v4479 = vpop.f32.mrf.mxu0
        %v4480 = vadd.f32 %v4431, %v4479
        %4481 = vmatmul.bf16.gmra.mxu0 %v3801
        %v4482 = vpop.f32.mrf.mxu0
        %v4483 = vadd.f32 %v4434, %v4482
        %v4484 = vpop.f32.mrf.mxu0
        %v4485 = vadd.f32 %v4436, %v4484
        %4486 = vmatmul.bf16.gmra.mxu0 %v3805
        %v4487 = vpop.f32.mrf.mxu0
        %v4488 = vadd.f32 %v4439, %v4487
        %v4489 = vpop.f32.mrf.mxu0
        %v4490 = vadd.f32 %v4441, %v4489
        %4491 = vdwg.mxu0
        %4492 = vmatpush.bf16.msra.mxu0 %v4117
        %4493 = vmatpush.bf16.msra.mxu0 %v4115
        %4494 = vmatpush.bf16.msra.mxu0 %v4113
        %4495 = vmatpush.bf16.msra.mxu0 %v4111
        %4496 = vmatpush.bf16.msra.mxu0 %v4109
        %4497 = vmatpush.bf16.msra.mxu0 %v4107
        %4498 = vmatpush.bf16.msra.mxu0 %v4105
        %4499 = vmatpush.bf16.msra.mxu0 %v4103
        %4500 = vmatmul.bf16.gmra.mxu0 %v3778
        %v4501 = vpop.f32.mrf.mxu0
        %v4502 = vadd.f32 %v4453, %v4501
        %v4503 = vpop.f32.mrf.mxu0
        %v4504 = vadd.f32 %v4455, %v4503
        %4505 = vmatmul.bf16.gmra.mxu0 %v3782
        %v4506 = vpop.f32.mrf.mxu0
        %v4507 = vadd.f32 %v4458, %v4506
        %v4508 = vpop.f32.mrf.mxu0
        %v4509 = vadd.f32 %v4460, %v4508
        %4510 = vmatmul.bf16.gmra.mxu0 %v3786
        %v4511 = vpop.f32.mrf.mxu0
        %v4512 = vadd.f32 %v4463, %v4511
        %v4513 = vpop.f32.mrf.mxu0
        %v4514 = vadd.f32 %v4465, %v4513
        %4515 = vmatmul.bf16.gmra.mxu0 %v3790
        %v4516 = vpop.f32.mrf.mxu0
        %v4517 = vadd.f32 %v4468, %v4516
        %v4518 = vpop.f32.mrf.mxu0
        %v4519 = vadd.f32 %v4470, %v4518
        %4520 = vmatmul.bf16.gmra.mxu0 %v3794
        %v4521 = vpop.f32.mrf.mxu0
        %v4522 = vadd.f32 %v4473, %v4521
        %v4523 = vpop.f32.mrf.mxu0
        %v4524 = vadd.f32 %v4475, %v4523
        %4525 = vmatmul.bf16.gmra.mxu0 %v3798
        %v4526 = vpop.f32.mrf.mxu0
        %v4527 = vadd.f32 %v4478, %v4526
        %v4528 = vpop.f32.mrf.mxu0
        %v4529 = vadd.f32 %v4480, %v4528
        %4530 = vmatmul.bf16.gmra.mxu0 %v3802
        %v4531 = vpop.f32.mrf.mxu0
        %v4532 = vadd.f32 %v4483, %v4531
        %v4533 = vpop.f32.mrf.mxu0
        %v4534 = vadd.f32 %v4485, %v4533
        %4535 = vmatmul.bf16.gmra.mxu0 %v3806
        %v4536 = vpop.f32.mrf.mxu0
        %v4537 = vadd.f32 %v4488, %v4536
        %v4538 = vpop.f32.mrf.mxu0
        %v4539 = vadd.f32 %v4490, %v4538
        %4540 = vdwg.mxu0
        %4541 = vmatpush.bf16.msra.mxu0 %v4133
        %4542 = vmatpush.bf16.msra.mxu0 %v4131
        %4543 = vmatpush.bf16.msra.mxu0 %v4129
        %4544 = vmatpush.bf16.msra.mxu0 %v4127
        %4545 = vmatpush.bf16.msra.mxu0 %v4125
        %4546 = vmatpush.bf16.msra.mxu0 %v4123
        %4547 = vmatpush.bf16.msra.mxu0 %v4121
        %4548 = vmatpush.bf16.msra.mxu0 %v4119
        %4549 = vmatmul.bf16.gmra.mxu0 %v3779
        %v4550 = vpop.f32.mrf.mxu0
        %v4551 = vadd.f32 %v4502, %v4550
        %v4552 = vpop.f32.mrf.mxu0
        %v4553 = vadd.f32 %v4504, %v4552
        %4554 = vmatmul.bf16.gmra.mxu0 %v3783
        %v4555 = vpop.f32.mrf.mxu0
        %v4556 = vadd.f32 %v4507, %v4555
        %v4557 = vpop.f32.mrf.mxu0
        %v4558 = vadd.f32 %v4509, %v4557
        %4559 = vmatmul.bf16.gmra.mxu0 %v3787
        %v4560 = vpop.f32.mrf.mxu0
        %v4561 = vadd.f32 %v4512, %v4560
        %v4562 = vpop.f32.mrf.mxu0
        %v4563 = vadd.f32 %v4514, %v4562
        %4564 = vmatmul.bf16.gmra.mxu0 %v3791
        %v4565 = vpop.f32.mrf.mxu0
        %v4566 = vadd.f32 %v4517, %v4565
        %v4567 = vpop.f32.mrf.mxu0
        %v4568 = vadd.f32 %v4519, %v4567
        %4569 = vmatmul.bf16.gmra.mxu0 %v3795
        %v4570 = vpop.f32.mrf.mxu0
        %v4571 = vadd.f32 %v4522, %v4570
        %v4572 = vpop.f32.mrf.mxu0
        %v4573 = vadd.f32 %v4524, %v4572
        %4574 = vmatmul.bf16.gmra.mxu0 %v3799
        %v4575 = vpop.f32.mrf.mxu0
        %v4576 = vadd.f32 %v4527, %v4575
        %v4577 = vpop.f32.mrf.mxu0
        %v4578 = vadd.f32 %v4529, %v4577
        %4579 = vmatmul.bf16.gmra.mxu0 %v3803
        %v4580 = vpop.f32.mrf.mxu0
        %v4581 = vadd.f32 %v4532, %v4580
        %v4582 = vpop.f32.mrf.mxu0
        %v4583 = vadd.f32 %v4534, %v4582
        %4584 = vmatmul.bf16.gmra.mxu0 %v3807
        %v4585 = vpop.f32.mrf.mxu0
        %v4586 = vadd.f32 %v4537, %v4585
        %v4587 = vpop.f32.mrf.mxu0
        %v4588 = vadd.f32 %v4539, %v4587
        %4589 = vdwg.mxu0
        %v4590 = vmax.f32 %v4355, 0.0
        %v4591 = vmax.f32 %v4551, 0.0
        %v4592 = vmax.f32 %v4357, 0.0
        %v4593 = vmax.f32 %v4553, 0.0
        %v4594 = vmax.f32 %v4360, 0.0
        %v4595 = vmax.f32 %v4556, 0.0
        %v4596 = vmax.f32 %v4362, 0.0
        %v4597 = vmax.f32 %v4558, 0.0
        %v4598 = vmax.f32 %v4365, 0.0
        %v4599 = vmax.f32 %v4561, 0.0
        %v4600 = vmax.f32 %v4367, 0.0
        %v4601 = vmax.f32 %v4563, 0.0
        %v4602 = vmax.f32 %v4370, 0.0
        %v4603 = vmax.f32 %v4566, 0.0
        %v4604 = vmax.f32 %v4372, 0.0
        %v4605 = vmax.f32 %v4568, 0.0
        %v4606 = vmax.f32 %v4375, 0.0
        %v4607 = vmax.f32 %v4571, 0.0
        %v4608 = vmax.f32 %v4377, 0.0
        %v4609 = vmax.f32 %v4573, 0.0
        %v4610 = vmax.f32 %v4380, 0.0
        %v4611 = vmax.f32 %v4576, 0.0
        %v4612 = vmax.f32 %v4382, 0.0
        %v4613 = vmax.f32 %v4578, 0.0
        %v4614 = vmax.f32 %v4385, 0.0
        %v4615 = vmax.f32 %v4581, 0.0
        %v4616 = vmax.f32 %v4387, 0.0
        %v4617 = vmax.f32 %v4583, 0.0
        %v4618 = vmax.f32 %v4390, 0.0
        %v4619 = vmax.f32 %v4586, 0.0
        %v4620 = vmax.f32 %v4392, 0.0
        %v4621 = vmax.f32 %v4588, 0.0
        %v4622 = vadd.f32 %v4590, %v4591
        %4623 = vadd.xlane.f32.xlu0 %v4622
        %v4624 = vpop.xlane.xlu0 %4623
        %v4625 = vadd.f32 %v4592, %v4593
        %4626 = vadd.xlane.f32.xlu0 %v4625
        %v4627 = vpop.xlane.xlu0 %4626
        %v4628 = vadd.f32 %v4594, %v4595
        %4629 = vadd.xlane.f32.xlu0 %v4628
        %v4630 = vpop.xlane.xlu0 %4629
        %v4631 = vadd.f32 %v4596, %v4597
        %4632 = vadd.xlane.f32.xlu0 %v4631
        %v4633 = vpop.xlane.xlu0 %4632
        %v4634 = vadd.f32 %v4598, %v4599
        %4635 = vadd.xlane.f32.xlu0 %v4634
        %v4636 = vpop.xlane.xlu0 %4635
        %v4637 = vadd.f32 %v4600, %v4601
        %4638 = vadd.xlane.f32.xlu0 %v4637
        %v4639 = vpop.xlane.xlu0 %4638
        %v4640 = vadd.f32 %v4602, %v4603
        %4641 = vadd.xlane.f32.xlu0 %v4640
        %v4642 = vpop.xlane.xlu0 %4641
        %v4643 = vadd.f32 %v4604, %v4605
        %4644 = vadd.xlane.f32.xlu0 %v4643
        %v4645 = vpop.xlane.xlu0 %4644
        %v4646 = vadd.f32 %v4606, %v4607
        %4647 = vadd.xlane.f32.xlu0 %v4646
        %v4648 = vpop.xlane.xlu0 %4647
        %v4649 = vadd.f32 %v4608, %v4609
        %4650 = vadd.xlane.f32.xlu0 %v4649
        %v4651 = vpop.xlane.xlu0 %4650
        %v4652 = vadd.f32 %v4610, %v4611
        %4653 = vadd.xlane.f32.xlu0 %v4652
        %v4654 = vpop.xlane.xlu0 %4653
        %v4655 = vadd.f32 %v4612, %v4613
        %4656 = vadd.xlane.f32.xlu0 %v4655
        %v4657 = vpop.xlane.xlu0 %4656
        %v4658 = vadd.f32 %v4614, %v4615
        %4659 = vadd.xlane.f32.xlu0 %v4658
        %v4660 = vpop.xlane.xlu0 %4659
        %v4661 = vadd.f32 %v4616, %v4617
        %4662 = vadd.xlane.f32.xlu0 %v4661
        %v4663 = vpop.xlane.xlu0 %4662
        %v4664 = vadd.f32 %v4618, %v4619
        %4665 = vadd.xlane.f32.xlu0 %v4664
        %v4666 = vpop.xlane.xlu0 %4665
        %v4667 = vadd.f32 %v4620, %v4621
        %4668 = vadd.xlane.f32.xlu0 %v4667
        %v4669 = vpop.xlane.xlu0 %4668
        %v4670 = vmul.f32 %v4624, %v3375
        %v4671 = vmul.f32 %v4627, %v3375
        %v4672 = vmul.f32 %v4630, %v3375
        %v4673 = vmul.f32 %v4633, %v3375
        %v4674 = vmul.f32 %v4636, %v3375
        %v4675 = vmul.f32 %v4639, %v3375
        %v4676 = vmul.f32 %v4642, %v3375
        %v4677 = vmul.f32 %v4645, %v3375
        %v4678 = vmul.f32 %v4648, %v3375
        %v4679 = vmul.f32 %v4651, %v3375
        %v4680 = vmul.f32 %v4654, %v3375
        %v4681 = vmul.f32 %v4657, %v3375
        %v4682 = vmul.f32 %v4660, %v3375
        %v4683 = vmul.f32 %v4663, %v3375
        %v4684 = vmul.f32 %v4666, %v3375
        %v4685 = vmul.f32 %v4669, %v3375
        %v4686 = vmul.f32 %v4590, %v4590
        %v4687 = vmul.f32 %v4591, %v4591
        %v4688 = vmul.f32 %v4592, %v4592
        %v4689 = vmul.f32 %v4593, %v4593
        %v4690 = vmul.f32 %v4594, %v4594
        %v4691 = vmul.f32 %v4595, %v4595
        %v4692 = vmul.f32 %v4596, %v4596
        %v4693 = vmul.f32 %v4597, %v4597
        %v4694 = vmul.f32 %v4598, %v4598
        %v4695 = vmul.f32 %v4599, %v4599
        %v4696 = vmul.f32 %v4600, %v4600
        %v4697 = vmul.f32 %v4601, %v4601
        %v4698 = vmul.f32 %v4602, %v4602
        %v4699 = vmul.f32 %v4603, %v4603
        %v4700 = vmul.f32 %v4604, %v4604
        %v4701 = vmul.f32 %v4605, %v4605
        %v4702 = vmul.f32 %v4606, %v4606
        %v4703 = vmul.f32 %v4607, %v4607
        %v4704 = vmul.f32 %v4608, %v4608
        %v4705 = vmul.f32 %v4609, %v4609
        %v4706 = vmul.f32 %v4610, %v4610
        %v4707 = vmul.f32 %v4611, %v4611
        %v4708 = vmul.f32 %v4612, %v4612
        %v4709 = vmul.f32 %v4613, %v4613
        %v4710 = vmul.f32 %v4614, %v4614
        %v4711 = vmul.f32 %v4615, %v4615
        %v4712 = vmul.f32 %v4616, %v4616
        %v4713 = vmul.f32 %v4617, %v4617
        %v4714 = vmul.f32 %v4618, %v4618
        %v4715 = vmul.f32 %v4619, %v4619
        %v4716 = vmul.f32 %v4620, %v4620
        %v4717 = vmul.f32 %v4621, %v4621
        %v4718 = vadd.f32 %v4686, %v4687
        %4719 = vadd.xlane.f32.xlu0 %v4718
        %v4720 = vpop.xlane.xlu0 %4719
        %v4721 = vadd.f32 %v4688, %v4689
        %4722 = vadd.xlane.f32.xlu0 %v4721
        %v4723 = vpop.xlane.xlu0 %4722
        %v4724 = vadd.f32 %v4690, %v4691
        %4725 = vadd.xlane.f32.xlu0 %v4724
        %v4726 = vpop.xlane.xlu0 %4725
        %v4727 = vadd.f32 %v4692, %v4693
        %4728 = vadd.xlane.f32.xlu0 %v4727
        %v4729 = vpop.xlane.xlu0 %4728
        %v4730 = vadd.f32 %v4694, %v4695
        %4731 = vadd.xlane.f32.xlu0 %v4730
        %v4732 = vpop.xlane.xlu0 %4731
        %v4733 = vadd.f32 %v4696, %v4697
        %4734 = vadd.xlane.f32.xlu0 %v4733
        %v4735 = vpop.xlane.xlu0 %4734
        %v4736 = vadd.f32 %v4698, %v4699
        %4737 = vadd.xlane.f32.xlu0 %v4736
        %v4738 = vpop.xlane.xlu0 %4737
        %v4739 = vadd.f32 %v4700, %v4701
        %4740 = vadd.xlane.f32.xlu0 %v4739
        %v4741 = vpop.xlane.xlu0 %4740
        %v4742 = vadd.f32 %v4702, %v4703
        %4743 = vadd.xlane.f32.xlu0 %v4742
        %v4744 = vpop.xlane.xlu0 %4743
        %v4745 = vadd.f32 %v4704, %v4705
        %4746 = vadd.xlane.f32.xlu0 %v4745
        %v4747 = vpop.xlane.xlu0 %4746
        %v4748 = vadd.f32 %v4706, %v4707
        %4749 = vadd.xlane.f32.xlu0 %v4748
        %v4750 = vpop.xlane.xlu0 %4749
        %v4751 = vadd.f32 %v4708, %v4709
        %4752 = vadd.xlane.f32.xlu0 %v4751
        %v4753 = vpop.xlane.xlu0 %4752
        %v4754 = vadd.f32 %v4710, %v4711
        %4755 = vadd.xlane.f32.xlu0 %v4754
        %v4756 = vpop.xlane.xlu0 %4755
        %v4757 = vadd.f32 %v4712, %v4713
        %4758 = vadd.xlane.f32.xlu0 %v4757
        %v4759 = vpop.xlane.xlu0 %4758
        %v4760 = vadd.f32 %v4714, %v4715
        %4761 = vadd.xlane.f32.xlu0 %v4760
        %v4762 = vpop.xlane.xlu0 %4761
        %v4763 = vadd.f32 %v4716, %v4717
        %4764 = vadd.xlane.f32.xlu0 %v4763
        %v4765 = vpop.xlane.xlu0 %4764
        %v4766 = vmul.f32 %v4720, %v3375
        %v4767 = vmul.f32 %v4723, %v3375
        %v4768 = vmul.f32 %v4726, %v3375
        %v4769 = vmul.f32 %v4729, %v3375
        %v4770 = vmul.f32 %v4732, %v3375
        %v4771 = vmul.f32 %v4735, %v3375
        %v4772 = vmul.f32 %v4738, %v3375
        %v4773 = vmul.f32 %v4741, %v3375
        %v4774 = vmul.f32 %v4744, %v3375
        %v4775 = vmul.f32 %v4747, %v3375
        %v4776 = vmul.f32 %v4750, %v3375
        %v4777 = vmul.f32 %v4753, %v3375
        %v4778 = vmul.f32 %v4756, %v3375
        %v4779 = vmul.f32 %v4759, %v3375
        %v4780 = vmul.f32 %v4762, %v3375
        %v4781 = vmul.f32 %v4765, %v3375
        %v4782 = vmul.f32 %v4670, %v4670
        %v4783 = vmul.f32 %v4671, %v4671
        %v4784 = vmul.f32 %v4672, %v4672
        %v4785 = vmul.f32 %v4673, %v4673
        %v4786 = vmul.f32 %v4674, %v4674
        %v4787 = vmul.f32 %v4675, %v4675
        %v4788 = vmul.f32 %v4676, %v4676
        %v4789 = vmul.f32 %v4677, %v4677
        %v4790 = vmul.f32 %v4678, %v4678
        %v4791 = vmul.f32 %v4679, %v4679
        %v4792 = vmul.f32 %v4680, %v4680
        %v4793 = vmul.f32 %v4681, %v4681
        %v4794 = vmul.f32 %v4682, %v4682
        %v4795 = vmul.f32 %v4683, %v4683
        %v4796 = vmul.f32 %v4684, %v4684
        %v4797 = vmul.f32 %v4685, %v4685
        %v4798 = vsub.f32 %v4766, %v4782
        %v4799 = vsub.f32 %v4767, %v4783
        %v4800 = vsub.f32 %v4768, %v4784
        %v4801 = vsub.f32 %v4769, %v4785
        %v4802 = vsub.f32 %v4770, %v4786
        %v4803 = vsub.f32 %v4771, %v4787
        %v4804 = vsub.f32 %v4772, %v4788
        %v4805 = vsub.f32 %v4773, %v4789
        %v4806 = vsub.f32 %v4774, %v4790
        %v4807 = vsub.f32 %v4775, %v4791
        %v4808 = vsub.f32 %v4776, %v4792
        %v4809 = vsub.f32 %v4777, %v4793
        %v4810 = vsub.f32 %v4778, %v4794
        %v4811 = vsub.f32 %v4779, %v4795
        %v4812 = vsub.f32 %v4780, %v4796
        %v4813 = vsub.f32 %v4781, %v4797
        %v4814 = vmax.f32 %v4798, 0.0
        %v4815 = vmax.f32 %v4799, 0.0
        %v4816 = vmax.f32 %v4800, 0.0
        %v4817 = vmax.f32 %v4801, 0.0
        %v4818 = vmax.f32 %v4802, 0.0
        %v4819 = vmax.f32 %v4803, 0.0
        %v4820 = vmax.f32 %v4804, 0.0
        %v4821 = vmax.f32 %v4805, 0.0
        %v4822 = vmax.f32 %v4806, 0.0
        %v4823 = vmax.f32 %v4807, 0.0
        %v4824 = vmax.f32 %v4808, 0.0
        %v4825 = vmax.f32 %v4809, 0.0
        %v4826 = vmax.f32 %v4810, 0.0
        %v4827 = vmax.f32 %v4811, 0.0
        %v4828 = vmax.f32 %v4812, 0.0
        %v4829 = vmax.f32 %v4813, 0.0
        %v4830 = vsub.f32 %v4590, %v4670
        %v4831 = vsub.f32 %v4591, %v4670
        %v4832 = vsub.f32 %v4592, %v4671
        %v4833 = vsub.f32 %v4593, %v4671
        %v4834 = vsub.f32 %v4594, %v4672
        %v4835 = vsub.f32 %v4595, %v4672
        %v4836 = vsub.f32 %v4596, %v4673
        %v4837 = vsub.f32 %v4597, %v4673
        %v4838 = vsub.f32 %v4598, %v4674
        %v4839 = vsub.f32 %v4599, %v4674
        %v4840 = vsub.f32 %v4600, %v4675
        %v4841 = vsub.f32 %v4601, %v4675
        %v4842 = vsub.f32 %v4602, %v4676
        %v4843 = vsub.f32 %v4603, %v4676
        %v4844 = vsub.f32 %v4604, %v4677
        %v4845 = vsub.f32 %v4605, %v4677
        %v4846 = vsub.f32 %v4606, %v4678
        %v4847 = vsub.f32 %v4607, %v4678
        %v4848 = vsub.f32 %v4608, %v4679
        %v4849 = vsub.f32 %v4609, %v4679
        %v4850 = vsub.f32 %v4610, %v4680
        %v4851 = vsub.f32 %v4611, %v4680
        %v4852 = vsub.f32 %v4612, %v4681
        %v4853 = vsub.f32 %v4613, %v4681
        %v4854 = vsub.f32 %v4614, %v4682
        %v4855 = vsub.f32 %v4615, %v4682
        %v4856 = vsub.f32 %v4616, %v4683
        %v4857 = vsub.f32 %v4617, %v4683
        %v4858 = vsub.f32 %v4618, %v4684
        %v4859 = vsub.f32 %v4619, %v4684
        %v4860 = vsub.f32 %v4620, %v4685
        %v4861 = vsub.f32 %v4621, %v4685
        %v4862 = vadd.f32 %v4814, 1e-05
        %v4863 = vadd.f32 %v4815, 1e-05
        %v4864 = vadd.f32 %v4816, 1e-05
        %v4865 = vadd.f32 %v4817, 1e-05
        %v4866 = vadd.f32 %v4818, 1e-05
        %v4867 = vadd.f32 %v4819, 1e-05
        %v4868 = vadd.f32 %v4820, 1e-05
        %v4869 = vadd.f32 %v4821, 1e-05
        %v4870 = vadd.f32 %v4822, 1e-05
        %v4871 = vadd.f32 %v4823, 1e-05
        %v4872 = vadd.f32 %v4824, 1e-05
        %v4873 = vadd.f32 %v4825, 1e-05
        %v4874 = vadd.f32 %v4826, 1e-05
        %v4875 = vadd.f32 %v4827, 1e-05
        %v4876 = vadd.f32 %v4828, 1e-05
        %v4877 = vadd.f32 %v4829, 1e-05
        %v4878 = vrsqrt.pop %v4862
        %v4879 = vmul.f32 %v4878, %v4862
        %v4880 = vmul.f32 %v4879, %v4878
        %v4881 = vmul.f32 0.5, %v4880
        %v4882 = vsub.f32 1.5, %v4881
        %v4883 = vmul.f32 %v4878, %v4882
        %vm4884 = vweird.f32 %v4862
        %vm4885 = vweird.f32 %v4878
        %vm4886 = vmor %vm4884, %vm4885
        %v4887 = vsel %vm4886, %v4878, %v4883
        %v4888 = vrsqrt.pop %v4863
        %v4889 = vmul.f32 %v4888, %v4863
        %v4890 = vmul.f32 %v4889, %v4888
        %v4891 = vmul.f32 0.5, %v4890
        %v4892 = vsub.f32 1.5, %v4891
        %v4893 = vmul.f32 %v4888, %v4892
        %vm4894 = vweird.f32 %v4863
        %vm4895 = vweird.f32 %v4888
        %vm4896 = vmor %vm4894, %vm4895
        %v4897 = vsel %vm4896, %v4888, %v4893
        %v4898 = vrsqrt.pop %v4864
        %v4899 = vmul.f32 %v4898, %v4864
        %v4900 = vmul.f32 %v4899, %v4898
        %v4901 = vmul.f32 0.5, %v4900
        %v4902 = vsub.f32 1.5, %v4901
        %v4903 = vmul.f32 %v4898, %v4902
        %vm4904 = vweird.f32 %v4864
        %vm4905 = vweird.f32 %v4898
        %vm4906 = vmor %vm4904, %vm4905
        %v4907 = vsel %vm4906, %v4898, %v4903
        %v4908 = vrsqrt.pop %v4865
        %v4909 = vmul.f32 %v4908, %v4865
        %v4910 = vmul.f32 %v4909, %v4908
        %v4911 = vmul.f32 0.5, %v4910
        %v4912 = vsub.f32 1.5, %v4911
        %v4913 = vmul.f32 %v4908, %v4912
        %vm4914 = vweird.f32 %v4865
        %vm4915 = vweird.f32 %v4908
        %vm4916 = vmor %vm4914, %vm4915
        %v4917 = vsel %vm4916, %v4908, %v4913
        %v4918 = vrsqrt.pop %v4866
        %v4919 = vmul.f32 %v4918, %v4866
        %v4920 = vmul.f32 %v4919, %v4918
        %v4921 = vmul.f32 0.5, %v4920
        %v4922 = vsub.f32 1.5, %v4921
        %v4923 = vmul.f32 %v4918, %v4922
        %vm4924 = vweird.f32 %v4866
        %vm4925 = vweird.f32 %v4918
        %vm4926 = vmor %vm4924, %vm4925
        %v4927 = vsel %vm4926, %v4918, %v4923
        %v4928 = vrsqrt.pop %v4867
        %v4929 = vmul.f32 %v4928, %v4867
        %v4930 = vmul.f32 %v4929, %v4928
        %v4931 = vmul.f32 0.5, %v4930
        %v4932 = vsub.f32 1.5, %v4931
        %v4933 = vmul.f32 %v4928, %v4932
        %vm4934 = vweird.f32 %v4867
        %vm4935 = vweird.f32 %v4928
        %vm4936 = vmor %vm4934, %vm4935
        %v4937 = vsel %vm4936, %v4928, %v4933
        %v4938 = vrsqrt.pop %v4868
        %v4939 = vmul.f32 %v4938, %v4868
        %v4940 = vmul.f32 %v4939, %v4938
        %v4941 = vmul.f32 0.5, %v4940
        %v4942 = vsub.f32 1.5, %v4941
        %v4943 = vmul.f32 %v4938, %v4942
        %vm4944 = vweird.f32 %v4868
        %vm4945 = vweird.f32 %v4938
        %vm4946 = vmor %vm4944, %vm4945
        %v4947 = vsel %vm4946, %v4938, %v4943
        %v4948 = vrsqrt.pop %v4869
        %v4949 = vmul.f32 %v4948, %v4869
        %v4950 = vmul.f32 %v4949, %v4948
        %v4951 = vmul.f32 0.5, %v4950
        %v4952 = vsub.f32 1.5, %v4951
        %v4953 = vmul.f32 %v4948, %v4952
        %vm4954 = vweird.f32 %v4869
        %vm4955 = vweird.f32 %v4948
        %vm4956 = vmor %vm4954, %vm4955
        %v4957 = vsel %vm4956, %v4948, %v4953
        %v4958 = vrsqrt.pop %v4870
        %v4959 = vmul.f32 %v4958, %v4870
        %v4960 = vmul.f32 %v4959, %v4958
        %v4961 = vmul.f32 0.5, %v4960
        %v4962 = vsub.f32 1.5, %v4961
        %v4963 = vmul.f32 %v4958, %v4962
        %vm4964 = vweird.f32 %v4870
        %vm4965 = vweird.f32 %v4958
        %vm4966 = vmor %vm4964, %vm4965
        %v4967 = vsel %vm4966, %v4958, %v4963
        %v4968 = vrsqrt.pop %v4871
        %v4969 = vmul.f32 %v4968, %v4871
        %v4970 = vmul.f32 %v4969, %v4968
        %v4971 = vmul.f32 0.5, %v4970
        %v4972 = vsub.f32 1.5, %v4971
        %v4973 = vmul.f32 %v4968, %v4972
        %vm4974 = vweird.f32 %v4871
        %vm4975 = vweird.f32 %v4968
        %vm4976 = vmor %vm4974, %vm4975
        %v4977 = vsel %vm4976, %v4968, %v4973
        %v4978 = vrsqrt.pop %v4872
        %v4979 = vmul.f32 %v4978, %v4872
        %v4980 = vmul.f32 %v4979, %v4978
        %v4981 = vmul.f32 0.5, %v4980
        %v4982 = vsub.f32 1.5, %v4981
        %v4983 = vmul.f32 %v4978, %v4982
        %vm4984 = vweird.f32 %v4872
        %vm4985 = vweird.f32 %v4978
        %vm4986 = vmor %vm4984, %vm4985
        %v4987 = vsel %vm4986, %v4978, %v4983
        %v4988 = vrsqrt.pop %v4873
        %v4989 = vmul.f32 %v4988, %v4873
        %v4990 = vmul.f32 %v4989, %v4988
        %v4991 = vmul.f32 0.5, %v4990
        %v4992 = vsub.f32 1.5, %v4991
        %v4993 = vmul.f32 %v4988, %v4992
        %vm4994 = vweird.f32 %v4873
        %vm4995 = vweird.f32 %v4988
        %vm4996 = vmor %vm4994, %vm4995
        %v4997 = vsel %vm4996, %v4988, %v4993
        %v4998 = vrsqrt.pop %v4874
        %v4999 = vmul.f32 %v4998, %v4874
        %v5000 = vmul.f32 %v4999, %v4998
        %v5001 = vmul.f32 0.5, %v5000
        %v5002 = vsub.f32 1.5, %v5001
        %v5003 = vmul.f32 %v4998, %v5002
        %vm5004 = vweird.f32 %v4874
        %vm5005 = vweird.f32 %v4998
        %vm5006 = vmor %vm5004, %vm5005
        %v5007 = vsel %vm5006, %v4998, %v5003
        %v5008 = vrsqrt.pop %v4875
        %v5009 = vmul.f32 %v5008, %v4875
        %v5010 = vmul.f32 %v5009, %v5008
        %v5011 = vmul.f32 0.5, %v5010
        %v5012 = vsub.f32 1.5, %v5011
        %v5013 = vmul.f32 %v5008, %v5012
        %vm5014 = vweird.f32 %v4875
        %vm5015 = vweird.f32 %v5008
        %vm5016 = vmor %vm5014, %vm5015
        %v5017 = vsel %vm5016, %v5008, %v5013
        %v5018 = vrsqrt.pop %v4876
        %v5019 = vmul.f32 %v5018, %v4876
        %v5020 = vmul.f32 %v5019, %v5018
        %v5021 = vmul.f32 0.5, %v5020
        %v5022 = vsub.f32 1.5, %v5021
        %v5023 = vmul.f32 %v5018, %v5022
        %vm5024 = vweird.f32 %v4876
        %vm5025 = vweird.f32 %v5018
        %vm5026 = vmor %vm5024, %vm5025
        %v5027 = vsel %vm5026, %v5018, %v5023
        %v5028 = vrsqrt.pop %v4877
        %v5029 = vmul.f32 %v5028, %v4877
        %v5030 = vmul.f32 %v5029, %v5028
        %v5031 = vmul.f32 0.5, %v5030
        %v5032 = vsub.f32 1.5, %v5031
        %v5033 = vmul.f32 %v5028, %v5032
        %vm5034 = vweird.f32 %v4877
        %vm5035 = vweird.f32 %v5028
        %vm5036 = vmor %vm5034, %vm5035
        %v5037 = vsel %vm5036, %v5028, %v5033
        %v5038 = vmul.f32 %v4830, %v4887
        %v5039 = vmul.f32 %v4831, %v4887
        %v5040 = vmul.f32 %v4832, %v4897
        %v5041 = vmul.f32 %v4833, %v4897
        %v5042 = vmul.f32 %v4834, %v4907
        %v5043 = vmul.f32 %v4835, %v4907
        %v5044 = vmul.f32 %v4836, %v4917
        %v5045 = vmul.f32 %v4837, %v4917
        %v5046 = vmul.f32 %v4838, %v4927
        %v5047 = vmul.f32 %v4839, %v4927
        %v5048 = vmul.f32 %v4840, %v4937
        %v5049 = vmul.f32 %v4841, %v4937
        %v5050 = vmul.f32 %v4842, %v4947
        %v5051 = vmul.f32 %v4843, %v4947
        %v5052 = vmul.f32 %v4844, %v4957
        %v5053 = vmul.f32 %v4845, %v4957
        %v5054 = vmul.f32 %v4846, %v4967
        %v5055 = vmul.f32 %v4847, %v4967
        %v5056 = vmul.f32 %v4848, %v4977
        %v5057 = vmul.f32 %v4849, %v4977
        %v5058 = vmul.f32 %v4850, %v4987
        %v5059 = vmul.f32 %v4851, %v4987
        %v5060 = vmul.f32 %v4852, %v4997
        %v5061 = vmul.f32 %v4853, %v4997
        %v5062 = vmul.f32 %v4854, %v5007
        %v5063 = vmul.f32 %v4855, %v5007
        %v5064 = vmul.f32 %v4856, %v5017
        %v5065 = vmul.f32 %v4857, %v5017
        %v5066 = vmul.f32 %v4858, %v5027
        %v5067 = vmul.f32 %v4859, %v5027
        %v5068 = vmul.f32 %v4860, %v5037
        %v5069 = vmul.f32 %v4861, %v5037
        %v5070 = vpack.c.bf16 %v3746, %v3744
        %v5071 = vpack.c.bf16 %v3747, %v3745
        %v5072 = vpack.c.bf16 %v3750, %v3748
        %v5073 = vpack.c.bf16 %v3751, %v3749
        %v5074 = vpack.c.bf16 %v3754, %v3752
        %v5075 = vpack.c.bf16 %v3755, %v3753
        %v5076 = vpack.c.bf16 %v3758, %v3756
        %v5077 = vpack.c.bf16 %v3759, %v3757
        %v5078 = vpack.c.bf16 %v3762, %v3760
        %v5079 = vpack.c.bf16 %v3763, %v3761
        %v5080 = vpack.c.bf16 %v3766, %v3764
        %v5081 = vpack.c.bf16 %v3767, %v3765
        %v5082 = vpack.c.bf16 %v3770, %v3768
        %v5083 = vpack.c.bf16 %v3771, %v3769
        %v5084 = vpack.c.bf16 %v3774, %v3772
        %v5085 = vpack.c.bf16 %v3775, %v3773
        %v5086 = vld [vmem:[%s5] sm:$0xf]
        %v5087 = vld [vmem:[%s5 + $0x4] sm:$0xf]
        %v5088 = vld [vmem:[%s5 + $0x8] sm:$0xf]
        %v5089 = vld [vmem:[%s5 + $0xc] sm:$0xf]
        %v5090 = vld [vmem:[%s5 + $0x10] sm:$0xf]
        %v5091 = vld [vmem:[%s5 + $0x14] sm:$0xf]
        %v5092 = vld [vmem:[%s5 + $0x18] sm:$0xf]
        %v5093 = vld [vmem:[%s5 + $0x1c] sm:$0xf]
        %v5094 = vld [vmem:[%s5 + $0x20] sm:$0xf]
        %v5095 = vld [vmem:[%s5 + $0x24] sm:$0xf]
        %v5096 = vld [vmem:[%s5 + $0x28] sm:$0xf]
        %v5097 = vld [vmem:[%s5 + $0x2c] sm:$0xf]
        %v5098 = vld [vmem:[%s5 + $0x30] sm:$0xf]
        %v5099 = vld [vmem:[%s5 + $0x34] sm:$0xf]
        %v5100 = vld [vmem:[%s5 + $0x38] sm:$0xf]
        %v5101 = vld [vmem:[%s5 + $0x3c] sm:$0xf]
        %v5102 = vld [vmem:[%s5 + $0x40] sm:$0xf]
        %v5103 = vld [vmem:[%s5 + $0x44] sm:$0xf]
        %v5104 = vld [vmem:[%s5 + $0x48] sm:$0xf]
        %v5105 = vld [vmem:[%s5 + $0x4c] sm:$0xf]
        %v5106 = vld [vmem:[%s5 + $0x50] sm:$0xf]
        %v5107 = vld [vmem:[%s5 + $0x54] sm:$0xf]
        %v5108 = vld [vmem:[%s5 + $0x58] sm:$0xf]
        %v5109 = vld [vmem:[%s5 + $0x5c] sm:$0xf]
        %v5110 = vld [vmem:[%s5 + $0x60] sm:$0xf]
        %v5111 = vld [vmem:[%s5 + $0x64] sm:$0xf]
        %v5112 = vld [vmem:[%s5 + $0x68] sm:$0xf]
        %v5113 = vld [vmem:[%s5 + $0x6c] sm:$0xf]
        %v5114 = vld [vmem:[%s5 + $0x70] sm:$0xf]
        %v5115 = vld [vmem:[%s5 + $0x74] sm:$0xf]
        %v5116 = vld [vmem:[%s5 + $0x78] sm:$0xf]
        %v5117 = vld [vmem:[%s5 + $0x7c] sm:$0xf]
        %v5118 = vld [vmem:[%s6] sm:$0x1]
        %v5120 = vperm.slane %v5118, 0
        %v5154 = vunpack.c.l.b16 %v5086
        %v5155 = vunpack.c.l.b16 %v5087
        %v5156 = vunpack.c.l.b16 %v5088
        %v5157 = vunpack.c.l.b16 %v5089
        %v5158 = vunpack.c.l.b16 %v5090
        %v5159 = vunpack.c.l.b16 %v5091
        %v5160 = vunpack.c.l.b16 %v5092
        %v5161 = vunpack.c.l.b16 %v5093
        %v5162 = vunpack.c.l.b16 %v5094
        %v5163 = vunpack.c.l.b16 %v5095
        %v5164 = vunpack.c.l.b16 %v5096
        %v5165 = vunpack.c.l.b16 %v5097
        %v5166 = vunpack.c.l.b16 %v5098
        %v5167 = vunpack.c.l.b16 %v5099
        %v5168 = vunpack.c.l.b16 %v5100
        %v5169 = vunpack.c.l.b16 %v5101
        %v5170 = vunpack.c.l.b16 %v5102
        %v5171 = vunpack.c.l.b16 %v5103
        %v5172 = vunpack.c.l.b16 %v5104
        %v5173 = vunpack.c.l.b16 %v5105
        %v5174 = vunpack.c.l.b16 %v5106
        %v5175 = vunpack.c.l.b16 %v5107
        %v5176 = vunpack.c.l.b16 %v5108
        %v5177 = vunpack.c.l.b16 %v5109
        %v5178 = vunpack.c.l.b16 %v5110
        %v5179 = vunpack.c.l.b16 %v5111
        %v5180 = vunpack.c.l.b16 %v5112
        %v5181 = vunpack.c.l.b16 %v5113
        %v5182 = vunpack.c.l.b16 %v5114
        %v5183 = vunpack.c.l.b16 %v5115
        %v5184 = vunpack.c.l.b16 %v5116
        %v5185 = vunpack.c.l.b16 %v5117
        %v5186 = vpack.c.b16 %v5155, %v5154
        %v5187 = vpack.c.b16 %v5157, %v5156
        %v5188 = vpack.c.b16 %v5159, %v5158
        %v5189 = vpack.c.b16 %v5161, %v5160
        %v5190 = vpack.c.b16 %v5163, %v5162
        %v5191 = vpack.c.b16 %v5165, %v5164
        %v5192 = vpack.c.b16 %v5167, %v5166
        %v5193 = vpack.c.b16 %v5169, %v5168
        %v5194 = vpack.c.b16 %v5171, %v5170
        %v5195 = vpack.c.b16 %v5173, %v5172
        %v5196 = vpack.c.b16 %v5175, %v5174
        %v5197 = vpack.c.b16 %v5177, %v5176
        %v5198 = vpack.c.b16 %v5179, %v5178
        %v5199 = vpack.c.b16 %v5181, %v5180
        %v5200 = vpack.c.b16 %v5183, %v5182
        %v5201 = vpack.c.b16 %v5185, %v5184
        %5218 = vmatpush.bf16.msra.mxu0 %v5193
        %5219 = vmatpush.bf16.msra.mxu0 %v5192
        %5220 = vmatpush.bf16.msra.mxu0 %v5191
        %5221 = vmatpush.bf16.msra.mxu0 %v5190
        %5222 = vmatpush.bf16.msra.mxu0 %v5189
        %5223 = vmatpush.bf16.msra.mxu0 %v5188
        %5224 = vmatpush.bf16.msra.mxu0 %v5187
        %5225 = vmatpush.bf16.msra.mxu0 %v5186
        %5226 = vmatmul.bf16.gmra.mxu0 %v5070
        %v5227 = vpop.f32.mrf.mxu0
        %v5228 = vadd.f32 %v5120, %v5227
        %v5229 = vpop.f32.mrf.mxu0
        %v5230 = vadd.f32 %v5120, %v5229
        %5231 = vmatmul.bf16.gmra.mxu0 %v5072
        %v5232 = vpop.f32.mrf.mxu0
        %v5233 = vadd.f32 %v5120, %v5232
        %v5234 = vpop.f32.mrf.mxu0
        %v5235 = vadd.f32 %v5120, %v5234
        %5236 = vmatmul.bf16.gmra.mxu0 %v5074
        %v5237 = vpop.f32.mrf.mxu0
        %v5238 = vadd.f32 %v5120, %v5237
        %v5239 = vpop.f32.mrf.mxu0
        %v5240 = vadd.f32 %v5120, %v5239
        %5241 = vmatmul.bf16.gmra.mxu0 %v5076
        %v5242 = vpop.f32.mrf.mxu0
        %v5243 = vadd.f32 %v5120, %v5242
        %v5244 = vpop.f32.mrf.mxu0
        %v5245 = vadd.f32 %v5120, %v5244
        %5246 = vmatmul.bf16.gmra.mxu0 %v5078
        %v5247 = vpop.f32.mrf.mxu0
        %v5248 = vadd.f32 %v5120, %v5247
        %v5249 = vpop.f32.mrf.mxu0
        %v5250 = vadd.f32 %v5120, %v5249
        %5251 = vmatmul.bf16.gmra.mxu0 %v5080
        %v5252 = vpop.f32.mrf.mxu0
        %v5253 = vadd.f32 %v5120, %v5252
        %v5254 = vpop.f32.mrf.mxu0
        %v5255 = vadd.f32 %v5120, %v5254
        %5256 = vmatmul.bf16.gmra.mxu0 %v5082
        %v5257 = vpop.f32.mrf.mxu0
        %v5258 = vadd.f32 %v5120, %v5257
        %v5259 = vpop.f32.mrf.mxu0
        %v5260 = vadd.f32 %v5120, %v5259
        %5261 = vmatmul.bf16.gmra.mxu0 %v5084
        %v5262 = vpop.f32.mrf.mxu0
        %v5263 = vadd.f32 %v5120, %v5262
        %v5264 = vpop.f32.mrf.mxu0
        %v5265 = vadd.f32 %v5120, %v5264
        %5266 = vdwg.mxu0
        %5267 = vmatpush.bf16.msra.mxu0 %v5201
        %5268 = vmatpush.bf16.msra.mxu0 %v5200
        %5269 = vmatpush.bf16.msra.mxu0 %v5199
        %5270 = vmatpush.bf16.msra.mxu0 %v5198
        %5271 = vmatpush.bf16.msra.mxu0 %v5197
        %5272 = vmatpush.bf16.msra.mxu0 %v5196
        %5273 = vmatpush.bf16.msra.mxu0 %v5195
        %5274 = vmatpush.bf16.msra.mxu0 %v5194
        %5275 = vmatmul.bf16.gmra.mxu0 %v5071
        %v5276 = vpop.f32.mrf.mxu0
        %v5277 = vadd.f32 %v5228, %v5276
        %v5278 = vpop.f32.mrf.mxu0
        %v5279 = vadd.f32 %v5230, %v5278
        %5280 = vmatmul.bf16.gmra.mxu0 %v5073
        %v5281 = vpop.f32.mrf.mxu0
        %v5282 = vadd.f32 %v5233, %v5281
        %v5283 = vpop.f32.mrf.mxu0
        %v5284 = vadd.f32 %v5235, %v5283
        %5285 = vmatmul.bf16.gmra.mxu0 %v5075
        %v5286 = vpop.f32.mrf.mxu0
        %v5287 = vadd.f32 %v5238, %v5286
        %v5288 = vpop.f32.mrf.mxu0
        %v5289 = vadd.f32 %v5240, %v5288
        %5290 = vmatmul.bf16.gmra.mxu0 %v5077
        %v5291 = vpop.f32.mrf.mxu0
        %v5292 = vadd.f32 %v5243, %v5291
        %v5293 = vpop.f32.mrf.mxu0
        %v5294 = vadd.f32 %v5245, %v5293
        %5295 = vmatmul.bf16.gmra.mxu0 %v5079
        %v5296 = vpop.f32.mrf.mxu0
        %v5297 = vadd.f32 %v5248, %v5296
        %v5298 = vpop.f32.mrf.mxu0
        %v5299 = vadd.f32 %v5250, %v5298
        %5300 = vmatmul.bf16.gmra.mxu0 %v5081
        %v5301 = vpop.f32.mrf.mxu0
        %v5302 = vadd.f32 %v5253, %v5301
        %v5303 = vpop.f32.mrf.mxu0
        %v5304 = vadd.f32 %v5255, %v5303
        %5305 = vmatmul.bf16.gmra.mxu0 %v5083
        %v5306 = vpop.f32.mrf.mxu0
        %v5307 = vadd.f32 %v5258, %v5306
        %v5308 = vpop.f32.mrf.mxu0
        %v5309 = vadd.f32 %v5260, %v5308
        %5310 = vmatmul.bf16.gmra.mxu0 %v5085
        %v5311 = vpop.f32.mrf.mxu0
        %v5312 = vadd.f32 %v5263, %v5311
        %v5313 = vpop.f32.mrf.mxu0
        %v5314 = vadd.f32 %v5265, %v5313
        %5315 = vdwg.mxu0
        %v5316 = vmax.f32 %v5277, 0.0
        %v5317 = vmax.f32 %v5279, 0.0
        %v5318 = vmax.f32 %v5282, 0.0
        %v5319 = vmax.f32 %v5284, 0.0
        %v5320 = vmax.f32 %v5287, 0.0
        %v5321 = vmax.f32 %v5289, 0.0
        %v5322 = vmax.f32 %v5292, 0.0
        %v5323 = vmax.f32 %v5294, 0.0
        %v5324 = vmax.f32 %v5297, 0.0
        %v5325 = vmax.f32 %v5299, 0.0
        %v5326 = vmax.f32 %v5302, 0.0
        %v5327 = vmax.f32 %v5304, 0.0
        %v5328 = vmax.f32 %v5307, 0.0
        %v5329 = vmax.f32 %v5309, 0.0
        %v5330 = vmax.f32 %v5312, 0.0
        %v5331 = vmax.f32 %v5314, 0.0
        %5332 = vadd.xlane.f32.xlu0 %v5316
        %v5333 = vpop.xlane.xlu0 %5332
        %5334 = vadd.xlane.f32.xlu0 %v5317
        %v5335 = vpop.xlane.xlu0 %5334
        %5336 = vadd.xlane.f32.xlu0 %v5318
        %v5337 = vpop.xlane.xlu0 %5336
        %5338 = vadd.xlane.f32.xlu0 %v5319
        %v5339 = vpop.xlane.xlu0 %5338
        %5340 = vadd.xlane.f32.xlu0 %v5320
        %v5341 = vpop.xlane.xlu0 %5340
        %5342 = vadd.xlane.f32.xlu0 %v5321
        %v5343 = vpop.xlane.xlu0 %5342
        %5344 = vadd.xlane.f32.xlu0 %v5322
        %v5345 = vpop.xlane.xlu0 %5344
        %5346 = vadd.xlane.f32.xlu0 %v5323
        %v5347 = vpop.xlane.xlu0 %5346
        %5348 = vadd.xlane.f32.xlu0 %v5324
        %v5349 = vpop.xlane.xlu0 %5348
        %5350 = vadd.xlane.f32.xlu0 %v5325
        %v5351 = vpop.xlane.xlu0 %5350
        %5352 = vadd.xlane.f32.xlu0 %v5326
        %v5353 = vpop.xlane.xlu0 %5352
        %5354 = vadd.xlane.f32.xlu0 %v5327
        %v5355 = vpop.xlane.xlu0 %5354
        %5356 = vadd.xlane.f32.xlu0 %v5328
        %v5357 = vpop.xlane.xlu0 %5356
        %5358 = vadd.xlane.f32.xlu0 %v5329
        %v5359 = vpop.xlane.xlu0 %5358
        %5360 = vadd.xlane.f32.xlu0 %v5330
        %v5361 = vpop.xlane.xlu0 %5360
        %5362 = vadd.xlane.f32.xlu0 %v5331
        %v5363 = vpop.xlane.xlu0 %5362
        %v5364 = vrcp.pop 128.0
        %v5365 = vmul.f32 128.0, %v5364
        %v5366 = vsub.f32 1.0, %v5365
        %v5367 = vmul.f32 %v5364, %v5366
        %v5368 = vadd.f32 %v5364, %v5367
        %vm5369 = vweird.f32 %v5364
        %v5370 = vsel %vm5369, %v5364, %v5368
        %v5371 = vmul.f32 %v5333, %v5370
        %v5372 = vmul.f32 %v5335, %v5370
        %v5373 = vmul.f32 %v5337, %v5370
        %v5374 = vmul.f32 %v5339, %v5370
        %v5375 = vmul.f32 %v5341, %v5370
        %v5376 = vmul.f32 %v5343, %v5370
        %v5377 = vmul.f32 %v5345, %v5370
        %v5378 = vmul.f32 %v5347, %v5370
        %v5379 = vmul.f32 %v5349, %v5370
        %v5380 = vmul.f32 %v5351, %v5370
        %v5381 = vmul.f32 %v5353, %v5370
        %v5382 = vmul.f32 %v5355, %v5370
        %v5383 = vmul.f32 %v5357, %v5370
        %v5384 = vmul.f32 %v5359, %v5370
        %v5385 = vmul.f32 %v5361, %v5370
        %v5386 = vmul.f32 %v5363, %v5370
        %v5387 = vmul.f32 %v5316, %v5316
        %v5388 = vmul.f32 %v5317, %v5317
        %v5389 = vmul.f32 %v5318, %v5318
        %v5390 = vmul.f32 %v5319, %v5319
        %v5391 = vmul.f32 %v5320, %v5320
        %v5392 = vmul.f32 %v5321, %v5321
        %v5393 = vmul.f32 %v5322, %v5322
        %v5394 = vmul.f32 %v5323, %v5323
        %v5395 = vmul.f32 %v5324, %v5324
        %v5396 = vmul.f32 %v5325, %v5325
        %v5397 = vmul.f32 %v5326, %v5326
        %v5398 = vmul.f32 %v5327, %v5327
        %v5399 = vmul.f32 %v5328, %v5328
        %v5400 = vmul.f32 %v5329, %v5329
        %v5401 = vmul.f32 %v5330, %v5330
        %v5402 = vmul.f32 %v5331, %v5331
        %5403 = vadd.xlane.f32.xlu0 %v5387
        %v5404 = vpop.xlane.xlu0 %5403
        %5405 = vadd.xlane.f32.xlu0 %v5388
        %v5406 = vpop.xlane.xlu0 %5405
        %5407 = vadd.xlane.f32.xlu0 %v5389
        %v5408 = vpop.xlane.xlu0 %5407
        %5409 = vadd.xlane.f32.xlu0 %v5390
        %v5410 = vpop.xlane.xlu0 %5409
        %5411 = vadd.xlane.f32.xlu0 %v5391
        %v5412 = vpop.xlane.xlu0 %5411
        %5413 = vadd.xlane.f32.xlu0 %v5392
        %v5414 = vpop.xlane.xlu0 %5413
        %5415 = vadd.xlane.f32.xlu0 %v5393
        %v5416 = vpop.xlane.xlu0 %5415
        %5417 = vadd.xlane.f32.xlu0 %v5394
        %v5418 = vpop.xlane.xlu0 %5417
        %5419 = vadd.xlane.f32.xlu0 %v5395
        %v5420 = vpop.xlane.xlu0 %5419
        %5421 = vadd.xlane.f32.xlu0 %v5396
        %v5422 = vpop.xlane.xlu0 %5421
        %5423 = vadd.xlane.f32.xlu0 %v5397
        %v5424 = vpop.xlane.xlu0 %5423
        %5425 = vadd.xlane.f32.xlu0 %v5398
        %v5426 = vpop.xlane.xlu0 %5425
        %5427 = vadd.xlane.f32.xlu0 %v5399
        %v5428 = vpop.xlane.xlu0 %5427
        %5429 = vadd.xlane.f32.xlu0 %v5400
        %v5430 = vpop.xlane.xlu0 %5429
        %5431 = vadd.xlane.f32.xlu0 %v5401
        %v5432 = vpop.xlane.xlu0 %5431
        %5433 = vadd.xlane.f32.xlu0 %v5402
        %v5434 = vpop.xlane.xlu0 %5433
        %v5435 = vmul.f32 %v5404, %v5370
        %v5436 = vmul.f32 %v5406, %v5370
        %v5437 = vmul.f32 %v5408, %v5370
        %v5438 = vmul.f32 %v5410, %v5370
        %v5439 = vmul.f32 %v5412, %v5370
        %v5440 = vmul.f32 %v5414, %v5370
        %v5441 = vmul.f32 %v5416, %v5370
        %v5442 = vmul.f32 %v5418, %v5370
        %v5443 = vmul.f32 %v5420, %v5370
        %v5444 = vmul.f32 %v5422, %v5370
        %v5445 = vmul.f32 %v5424, %v5370
        %v5446 = vmul.f32 %v5426, %v5370
        %v5447 = vmul.f32 %v5428, %v5370
        %v5448 = vmul.f32 %v5430, %v5370
        %v5449 = vmul.f32 %v5432, %v5370
        %v5450 = vmul.f32 %v5434, %v5370
        %v5451 = vmul.f32 %v5371, %v5371
        %v5452 = vmul.f32 %v5372, %v5372
        %v5453 = vmul.f32 %v5373, %v5373
        %v5454 = vmul.f32 %v5374, %v5374
        %v5455 = vmul.f32 %v5375, %v5375
        %v5456 = vmul.f32 %v5376, %v5376
        %v5457 = vmul.f32 %v5377, %v5377
        %v5458 = vmul.f32 %v5378, %v5378
        %v5459 = vmul.f32 %v5379, %v5379
        %v5460 = vmul.f32 %v5380, %v5380
        %v5461 = vmul.f32 %v5381, %v5381
        %v5462 = vmul.f32 %v5382, %v5382
        %v5463 = vmul.f32 %v5383, %v5383
        %v5464 = vmul.f32 %v5384, %v5384
        %v5465 = vmul.f32 %v5385, %v5385
        %v5466 = vmul.f32 %v5386, %v5386
        %v5467 = vsub.f32 %v5435, %v5451
        %v5468 = vsub.f32 %v5436, %v5452
        %v5469 = vsub.f32 %v5437, %v5453
        %v5470 = vsub.f32 %v5438, %v5454
        %v5471 = vsub.f32 %v5439, %v5455
        %v5472 = vsub.f32 %v5440, %v5456
        %v5473 = vsub.f32 %v5441, %v5457
        %v5474 = vsub.f32 %v5442, %v5458
        %v5475 = vsub.f32 %v5443, %v5459
        %v5476 = vsub.f32 %v5444, %v5460
        %v5477 = vsub.f32 %v5445, %v5461
        %v5478 = vsub.f32 %v5446, %v5462
        %v5479 = vsub.f32 %v5447, %v5463
        %v5480 = vsub.f32 %v5448, %v5464
        %v5481 = vsub.f32 %v5449, %v5465
        %v5482 = vsub.f32 %v5450, %v5466
        %v5483 = vmax.f32 %v5467, 0.0
        %v5484 = vmax.f32 %v5468, 0.0
        %v5485 = vmax.f32 %v5469, 0.0
        %v5486 = vmax.f32 %v5470, 0.0
        %v5487 = vmax.f32 %v5471, 0.0
        %v5488 = vmax.f32 %v5472, 0.0
        %v5489 = vmax.f32 %v5473, 0.0
        %v5490 = vmax.f32 %v5474, 0.0
        %v5491 = vmax.f32 %v5475, 0.0
        %v5492 = vmax.f32 %v5476, 0.0
        %v5493 = vmax.f32 %v5477, 0.0
        %v5494 = vmax.f32 %v5478, 0.0
        %v5495 = vmax.f32 %v5479, 0.0
        %v5496 = vmax.f32 %v5480, 0.0
        %v5497 = vmax.f32 %v5481, 0.0
        %v5498 = vmax.f32 %v5482, 0.0
        %v5499 = vsub.f32 %v5316, %v5371
        %v5500 = vsub.f32 %v5317, %v5372
        %v5501 = vsub.f32 %v5318, %v5373
        %v5502 = vsub.f32 %v5319, %v5374
        %v5503 = vsub.f32 %v5320, %v5375
        %v5504 = vsub.f32 %v5321, %v5376
        %v5505 = vsub.f32 %v5322, %v5377
        %v5506 = vsub.f32 %v5323, %v5378
        %v5507 = vsub.f32 %v5324, %v5379
        %v5508 = vsub.f32 %v5325, %v5380
        %v5509 = vsub.f32 %v5326, %v5381
        %v5510 = vsub.f32 %v5327, %v5382
        %v5511 = vsub.f32 %v5328, %v5383
        %v5512 = vsub.f32 %v5329, %v5384
        %v5513 = vsub.f32 %v5330, %v5385
        %v5514 = vsub.f32 %v5331, %v5386
        %v5515 = vadd.f32 %v5483, 1e-05
        %v5516 = vadd.f32 %v5484, 1e-05
        %v5517 = vadd.f32 %v5485, 1e-05
        %v5518 = vadd.f32 %v5486, 1e-05
        %v5519 = vadd.f32 %v5487, 1e-05
        %v5520 = vadd.f32 %v5488, 1e-05
        %v5521 = vadd.f32 %v5489, 1e-05
        %v5522 = vadd.f32 %v5490, 1e-05
        %v5523 = vadd.f32 %v5491, 1e-05
        %v5524 = vadd.f32 %v5492, 1e-05
        %v5525 = vadd.f32 %v5493, 1e-05
        %v5526 = vadd.f32 %v5494, 1e-05
        %v5527 = vadd.f32 %v5495, 1e-05
        %v5528 = vadd.f32 %v5496, 1e-05
        %v5529 = vadd.f32 %v5497, 1e-05
        %v5530 = vadd.f32 %v5498, 1e-05
        %v5531 = vrsqrt.pop %v5515
        %v5532 = vmul.f32 %v5531, %v5515
        %v5533 = vmul.f32 %v5532, %v5531
        %v5534 = vmul.f32 0.5, %v5533
        %v5535 = vsub.f32 1.5, %v5534
        %v5536 = vmul.f32 %v5531, %v5535
        %vm5537 = vweird.f32 %v5515
        %vm5538 = vweird.f32 %v5531
        %vm5539 = vmor %vm5537, %vm5538
        %v5540 = vsel %vm5539, %v5531, %v5536
        %v5541 = vrsqrt.pop %v5516
        %v5542 = vmul.f32 %v5541, %v5516
        %v5543 = vmul.f32 %v5542, %v5541
        %v5544 = vmul.f32 0.5, %v5543
        %v5545 = vsub.f32 1.5, %v5544
        %v5546 = vmul.f32 %v5541, %v5545
        %vm5547 = vweird.f32 %v5516
        %vm5548 = vweird.f32 %v5541
        %vm5549 = vmor %vm5547, %vm5548
        %v5550 = vsel %vm5549, %v5541, %v5546
        %v5551 = vrsqrt.pop %v5517
        %v5552 = vmul.f32 %v5551, %v5517
        %v5553 = vmul.f32 %v5552, %v5551
        %v5554 = vmul.f32 0.5, %v5553
        %v5555 = vsub.f32 1.5, %v5554
        %v5556 = vmul.f32 %v5551, %v5555
        %vm5557 = vweird.f32 %v5517
        %vm5558 = vweird.f32 %v5551
        %vm5559 = vmor %vm5557, %vm5558
        %v5560 = vsel %vm5559, %v5551, %v5556
        %v5561 = vrsqrt.pop %v5518
        %v5562 = vmul.f32 %v5561, %v5518
        %v5563 = vmul.f32 %v5562, %v5561
        %v5564 = vmul.f32 0.5, %v5563
        %v5565 = vsub.f32 1.5, %v5564
        %v5566 = vmul.f32 %v5561, %v5565
        %vm5567 = vweird.f32 %v5518
        %vm5568 = vweird.f32 %v5561
        %vm5569 = vmor %vm5567, %vm5568
        %v5570 = vsel %vm5569, %v5561, %v5566
        %v5571 = vrsqrt.pop %v5519
        %v5572 = vmul.f32 %v5571, %v5519
        %v5573 = vmul.f32 %v5572, %v5571
        %v5574 = vmul.f32 0.5, %v5573
        %v5575 = vsub.f32 1.5, %v5574
        %v5576 = vmul.f32 %v5571, %v5575
        %vm5577 = vweird.f32 %v5519
        %vm5578 = vweird.f32 %v5571
        %vm5579 = vmor %vm5577, %vm5578
        %v5580 = vsel %vm5579, %v5571, %v5576
        %v5581 = vrsqrt.pop %v5520
        %v5582 = vmul.f32 %v5581, %v5520
        %v5583 = vmul.f32 %v5582, %v5581
        %v5584 = vmul.f32 0.5, %v5583
        %v5585 = vsub.f32 1.5, %v5584
        %v5586 = vmul.f32 %v5581, %v5585
        %vm5587 = vweird.f32 %v5520
        %vm5588 = vweird.f32 %v5581
        %vm5589 = vmor %vm5587, %vm5588
        %v5590 = vsel %vm5589, %v5581, %v5586
        %v5591 = vrsqrt.pop %v5521
        %v5592 = vmul.f32 %v5591, %v5521
        %v5593 = vmul.f32 %v5592, %v5591
        %v5594 = vmul.f32 0.5, %v5593
        %v5595 = vsub.f32 1.5, %v5594
        %v5596 = vmul.f32 %v5591, %v5595
        %vm5597 = vweird.f32 %v5521
        %vm5598 = vweird.f32 %v5591
        %vm5599 = vmor %vm5597, %vm5598
        %v5600 = vsel %vm5599, %v5591, %v5596
        %v5601 = vrsqrt.pop %v5522
        %v5602 = vmul.f32 %v5601, %v5522
        %v5603 = vmul.f32 %v5602, %v5601
        %v5604 = vmul.f32 0.5, %v5603
        %v5605 = vsub.f32 1.5, %v5604
        %v5606 = vmul.f32 %v5601, %v5605
        %vm5607 = vweird.f32 %v5522
        %vm5608 = vweird.f32 %v5601
        %vm5609 = vmor %vm5607, %vm5608
        %v5610 = vsel %vm5609, %v5601, %v5606
        %v5611 = vrsqrt.pop %v5523
        %v5612 = vmul.f32 %v5611, %v5523
        %v5613 = vmul.f32 %v5612, %v5611
        %v5614 = vmul.f32 0.5, %v5613
        %v5615 = vsub.f32 1.5, %v5614
        %v5616 = vmul.f32 %v5611, %v5615
        %vm5617 = vweird.f32 %v5523
        %vm5618 = vweird.f32 %v5611
        %vm5619 = vmor %vm5617, %vm5618
        %v5620 = vsel %vm5619, %v5611, %v5616
        %v5621 = vrsqrt.pop %v5524
        %v5622 = vmul.f32 %v5621, %v5524
        %v5623 = vmul.f32 %v5622, %v5621
        %v5624 = vmul.f32 0.5, %v5623
        %v5625 = vsub.f32 1.5, %v5624
        %v5626 = vmul.f32 %v5621, %v5625
        %vm5627 = vweird.f32 %v5524
        %vm5628 = vweird.f32 %v5621
        %vm5629 = vmor %vm5627, %vm5628
        %v5630 = vsel %vm5629, %v5621, %v5626
        %v5631 = vrsqrt.pop %v5525
        %v5632 = vmul.f32 %v5631, %v5525
        %v5633 = vmul.f32 %v5632, %v5631
        %v5634 = vmul.f32 0.5, %v5633
        %v5635 = vsub.f32 1.5, %v5634
        %v5636 = vmul.f32 %v5631, %v5635
        %vm5637 = vweird.f32 %v5525
        %vm5638 = vweird.f32 %v5631
        %vm5639 = vmor %vm5637, %vm5638
        %v5640 = vsel %vm5639, %v5631, %v5636
        %v5641 = vrsqrt.pop %v5526
        %v5642 = vmul.f32 %v5641, %v5526
        %v5643 = vmul.f32 %v5642, %v5641
        %v5644 = vmul.f32 0.5, %v5643
        %v5645 = vsub.f32 1.5, %v5644
        %v5646 = vmul.f32 %v5641, %v5645
        %vm5647 = vweird.f32 %v5526
        %vm5648 = vweird.f32 %v5641
        %vm5649 = vmor %vm5647, %vm5648
        %v5650 = vsel %vm5649, %v5641, %v5646
        %v5651 = vrsqrt.pop %v5527
        %v5652 = vmul.f32 %v5651, %v5527
        %v5653 = vmul.f32 %v5652, %v5651
        %v5654 = vmul.f32 0.5, %v5653
        %v5655 = vsub.f32 1.5, %v5654
        %v5656 = vmul.f32 %v5651, %v5655
        %vm5657 = vweird.f32 %v5527
        %vm5658 = vweird.f32 %v5651
        %vm5659 = vmor %vm5657, %vm5658
        %v5660 = vsel %vm5659, %v5651, %v5656
        %v5661 = vrsqrt.pop %v5528
        %v5662 = vmul.f32 %v5661, %v5528
        %v5663 = vmul.f32 %v5662, %v5661
        %v5664 = vmul.f32 0.5, %v5663
        %v5665 = vsub.f32 1.5, %v5664
        %v5666 = vmul.f32 %v5661, %v5665
        %vm5667 = vweird.f32 %v5528
        %vm5668 = vweird.f32 %v5661
        %vm5669 = vmor %vm5667, %vm5668
        %v5670 = vsel %vm5669, %v5661, %v5666
        %v5671 = vrsqrt.pop %v5529
        %v5672 = vmul.f32 %v5671, %v5529
        %v5673 = vmul.f32 %v5672, %v5671
        %v5674 = vmul.f32 0.5, %v5673
        %v5675 = vsub.f32 1.5, %v5674
        %v5676 = vmul.f32 %v5671, %v5675
        %vm5677 = vweird.f32 %v5529
        %vm5678 = vweird.f32 %v5671
        %vm5679 = vmor %vm5677, %vm5678
        %v5680 = vsel %vm5679, %v5671, %v5676
        %v5681 = vrsqrt.pop %v5530
        %v5682 = vmul.f32 %v5681, %v5530
        %v5683 = vmul.f32 %v5682, %v5681
        %v5684 = vmul.f32 0.5, %v5683
        %v5685 = vsub.f32 1.5, %v5684
        %v5686 = vmul.f32 %v5681, %v5685
        %vm5687 = vweird.f32 %v5530
        %vm5688 = vweird.f32 %v5681
        %vm5689 = vmor %vm5687, %vm5688
        %v5690 = vsel %vm5689, %v5681, %v5686
        %v5691 = vmul.f32 %v5499, %v5540
        %v5692 = vmul.f32 %v5500, %v5550
        %v5693 = vmul.f32 %v5501, %v5560
        %v5694 = vmul.f32 %v5502, %v5570
        %v5695 = vmul.f32 %v5503, %v5580
        %v5696 = vmul.f32 %v5504, %v5590
        %v5697 = vmul.f32 %v5505, %v5600
        %v5698 = vmul.f32 %v5506, %v5610
        %v5699 = vmul.f32 %v5507, %v5620
        %v5700 = vmul.f32 %v5508, %v5630
        %v5701 = vmul.f32 %v5509, %v5640
        %v5702 = vmul.f32 %v5510, %v5650
        %v5703 = vmul.f32 %v5511, %v5660
        %v5704 = vmul.f32 %v5512, %v5670
        %v5705 = vmul.f32 %v5513, %v5680
        %v5706 = vmul.f32 %v5514, %v5690
        %v5707 = vpack.c.bf16 %v5040, %v5038
        %v5708 = vpack.c.bf16 %v5041, %v5039
        %v5709 = vpack.c.bf16 %v5044, %v5042
        %v5710 = vpack.c.bf16 %v5045, %v5043
        %v5711 = vpack.c.bf16 %v5048, %v5046
        %v5712 = vpack.c.bf16 %v5049, %v5047
        %v5713 = vpack.c.bf16 %v5052, %v5050
        %v5714 = vpack.c.bf16 %v5053, %v5051
        %v5715 = vpack.c.bf16 %v5056, %v5054
        %v5716 = vpack.c.bf16 %v5057, %v5055
        %v5717 = vpack.c.bf16 %v5060, %v5058
        %v5718 = vpack.c.bf16 %v5061, %v5059
        %v5719 = vpack.c.bf16 %v5064, %v5062
        %v5720 = vpack.c.bf16 %v5065, %v5063
        %v5721 = vpack.c.bf16 %v5068, %v5066
        %v5722 = vpack.c.bf16 %v5069, %v5067
        %v5723 = vld [vmem:[%s11] sm:$0xf]
        %v5724 = vld [vmem:[%s11 + $0x4] sm:$0xf]
        %v5725 = vld [vmem:[%s11 + $0x8] sm:$0xf]
        %v5726 = vld [vmem:[%s11 + $0xc] sm:$0xf]
        %v5727 = vld [vmem:[%s11 + $0x10] sm:$0xf]
        %v5728 = vld [vmem:[%s11 + $0x14] sm:$0xf]
        %v5729 = vld [vmem:[%s11 + $0x18] sm:$0xf]
        %v5730 = vld [vmem:[%s11 + $0x1c] sm:$0xf]
        %v5731 = vld [vmem:[%s11 + $0x20] sm:$0xf]
        %v5732 = vld [vmem:[%s11 + $0x24] sm:$0xf]
        %v5733 = vld [vmem:[%s11 + $0x28] sm:$0xf]
        %v5734 = vld [vmem:[%s11 + $0x2c] sm:$0xf]
        %v5735 = vld [vmem:[%s11 + $0x30] sm:$0xf]
        %v5736 = vld [vmem:[%s11 + $0x34] sm:$0xf]
        %v5737 = vld [vmem:[%s11 + $0x38] sm:$0xf]
        %v5738 = vld [vmem:[%s11 + $0x3c] sm:$0xf]
        %v5739 = vld [vmem:[%s11 + $0x40] sm:$0xf]
        %v5740 = vld [vmem:[%s11 + $0x44] sm:$0xf]
        %v5741 = vld [vmem:[%s11 + $0x48] sm:$0xf]
        %v5742 = vld [vmem:[%s11 + $0x4c] sm:$0xf]
        %v5743 = vld [vmem:[%s11 + $0x50] sm:$0xf]
        %v5744 = vld [vmem:[%s11 + $0x54] sm:$0xf]
        %v5745 = vld [vmem:[%s11 + $0x58] sm:$0xf]
        %v5746 = vld [vmem:[%s11 + $0x5c] sm:$0xf]
        %v5747 = vld [vmem:[%s11 + $0x60] sm:$0xf]
        %v5748 = vld [vmem:[%s11 + $0x64] sm:$0xf]
        %v5749 = vld [vmem:[%s11 + $0x68] sm:$0xf]
        %v5750 = vld [vmem:[%s11 + $0x6c] sm:$0xf]
        %v5751 = vld [vmem:[%s11 + $0x70] sm:$0xf]
        %v5752 = vld [vmem:[%s11 + $0x74] sm:$0xf]
        %v5753 = vld [vmem:[%s11 + $0x78] sm:$0xf]
        %v5754 = vld [vmem:[%s11 + $0x7c] sm:$0xf]
        %v5755 = vld [vmem:[%s12] sm:$0x1]
        %v5757 = vperm.slane %v5755, 0
        %v5791 = vunpack.c.l.b16 %v5723
        %v5792 = vunpack.c.l.b16 %v5724
        %v5793 = vunpack.c.l.b16 %v5725
        %v5794 = vunpack.c.l.b16 %v5726
        %v5795 = vunpack.c.l.b16 %v5727
        %v5796 = vunpack.c.l.b16 %v5728
        %v5797 = vunpack.c.l.b16 %v5729
        %v5798 = vunpack.c.l.b16 %v5730
        %v5799 = vunpack.c.l.b16 %v5731
        %v5800 = vunpack.c.l.b16 %v5732
        %v5801 = vunpack.c.l.b16 %v5733
        %v5802 = vunpack.c.l.b16 %v5734
        %v5803 = vunpack.c.l.b16 %v5735
        %v5804 = vunpack.c.l.b16 %v5736
        %v5805 = vunpack.c.l.b16 %v5737
        %v5806 = vunpack.c.l.b16 %v5738
        %v5807 = vunpack.c.l.b16 %v5739
        %v5808 = vunpack.c.l.b16 %v5740
        %v5809 = vunpack.c.l.b16 %v5741
        %v5810 = vunpack.c.l.b16 %v5742
        %v5811 = vunpack.c.l.b16 %v5743
        %v5812 = vunpack.c.l.b16 %v5744
        %v5813 = vunpack.c.l.b16 %v5745
        %v5814 = vunpack.c.l.b16 %v5746
        %v5815 = vunpack.c.l.b16 %v5747
        %v5816 = vunpack.c.l.b16 %v5748
        %v5817 = vunpack.c.l.b16 %v5749
        %v5818 = vunpack.c.l.b16 %v5750
        %v5819 = vunpack.c.l.b16 %v5751
        %v5820 = vunpack.c.l.b16 %v5752
        %v5821 = vunpack.c.l.b16 %v5753
        %v5822 = vunpack.c.l.b16 %v5754
        %v5823 = vpack.c.b16 %v5792, %v5791
        %v5824 = vpack.c.b16 %v5794, %v5793
        %v5825 = vpack.c.b16 %v5796, %v5795
        %v5826 = vpack.c.b16 %v5798, %v5797
        %v5827 = vpack.c.b16 %v5800, %v5799
        %v5828 = vpack.c.b16 %v5802, %v5801
        %v5829 = vpack.c.b16 %v5804, %v5803
        %v5830 = vpack.c.b16 %v5806, %v5805
        %v5831 = vpack.c.b16 %v5808, %v5807
        %v5832 = vpack.c.b16 %v5810, %v5809
        %v5833 = vpack.c.b16 %v5812, %v5811
        %v5834 = vpack.c.b16 %v5814, %v5813
        %v5835 = vpack.c.b16 %v5816, %v5815
        %v5836 = vpack.c.b16 %v5818, %v5817
        %v5837 = vpack.c.b16 %v5820, %v5819
        %v5838 = vpack.c.b16 %v5822, %v5821
        %5855 = vmatpush.bf16.msra.mxu0 %v5830
        %5856 = vmatpush.bf16.msra.mxu0 %v5829
        %5857 = vmatpush.bf16.msra.mxu0 %v5828
        %5858 = vmatpush.bf16.msra.mxu0 %v5827
        %5859 = vmatpush.bf16.msra.mxu0 %v5826
        %5860 = vmatpush.bf16.msra.mxu0 %v5825
        %5861 = vmatpush.bf16.msra.mxu0 %v5824
        %5862 = vmatpush.bf16.msra.mxu0 %v5823
        %5863 = vmatmul.bf16.gmra.mxu0 %v5707
        %v5864 = vpop.f32.mrf.mxu0
        %v5865 = vadd.f32 %v5757, %v5864
        %v5866 = vpop.f32.mrf.mxu0
        %v5867 = vadd.f32 %v5757, %v5866
        %5868 = vmatmul.bf16.gmra.mxu0 %v5709
        %v5869 = vpop.f32.mrf.mxu0
        %v5870 = vadd.f32 %v5757, %v5869
        %v5871 = vpop.f32.mrf.mxu0
        %v5872 = vadd.f32 %v5757, %v5871
        %5873 = vmatmul.bf16.gmra.mxu0 %v5711
        %v5874 = vpop.f32.mrf.mxu0
        %v5875 = vadd.f32 %v5757, %v5874
        %v5876 = vpop.f32.mrf.mxu0
        %v5877 = vadd.f32 %v5757, %v5876
        %5878 = vmatmul.bf16.gmra.mxu0 %v5713
        %v5879 = vpop.f32.mrf.mxu0
        %v5880 = vadd.f32 %v5757, %v5879
        %v5881 = vpop.f32.mrf.mxu0
        %v5882 = vadd.f32 %v5757, %v5881
        %5883 = vmatmul.bf16.gmra.mxu0 %v5715
        %v5884 = vpop.f32.mrf.mxu0
        %v5885 = vadd.f32 %v5757, %v5884
        %v5886 = vpop.f32.mrf.mxu0
        %v5887 = vadd.f32 %v5757, %v5886
        %5888 = vmatmul.bf16.gmra.mxu0 %v5717
        %v5889 = vpop.f32.mrf.mxu0
        %v5890 = vadd.f32 %v5757, %v5889
        %v5891 = vpop.f32.mrf.mxu0
        %v5892 = vadd.f32 %v5757, %v5891
        %5893 = vmatmul.bf16.gmra.mxu0 %v5719
        %v5894 = vpop.f32.mrf.mxu0
        %v5895 = vadd.f32 %v5757, %v5894
        %v5896 = vpop.f32.mrf.mxu0
        %v5897 = vadd.f32 %v5757, %v5896
        %5898 = vmatmul.bf16.gmra.mxu0 %v5721
        %v5899 = vpop.f32.mrf.mxu0
        %v5900 = vadd.f32 %v5757, %v5899
        %v5901 = vpop.f32.mrf.mxu0
        %v5902 = vadd.f32 %v5757, %v5901
        %5903 = vdwg.mxu0
        %5904 = vmatpush.bf16.msra.mxu0 %v5838
        %5905 = vmatpush.bf16.msra.mxu0 %v5837
        %5906 = vmatpush.bf16.msra.mxu0 %v5836
        %5907 = vmatpush.bf16.msra.mxu0 %v5835
        %5908 = vmatpush.bf16.msra.mxu0 %v5834
        %5909 = vmatpush.bf16.msra.mxu0 %v5833
        %5910 = vmatpush.bf16.msra.mxu0 %v5832
        %5911 = vmatpush.bf16.msra.mxu0 %v5831
        %5912 = vmatmul.bf16.gmra.mxu0 %v5708
        %v5913 = vpop.f32.mrf.mxu0
        %v5914 = vadd.f32 %v5865, %v5913
        %v5915 = vpop.f32.mrf.mxu0
        %v5916 = vadd.f32 %v5867, %v5915
        %5917 = vmatmul.bf16.gmra.mxu0 %v5710
        %v5918 = vpop.f32.mrf.mxu0
        %v5919 = vadd.f32 %v5870, %v5918
        %v5920 = vpop.f32.mrf.mxu0
        %v5921 = vadd.f32 %v5872, %v5920
        %5922 = vmatmul.bf16.gmra.mxu0 %v5712
        %v5923 = vpop.f32.mrf.mxu0
        %v5924 = vadd.f32 %v5875, %v5923
        %v5925 = vpop.f32.mrf.mxu0
        %v5926 = vadd.f32 %v5877, %v5925
        %5927 = vmatmul.bf16.gmra.mxu0 %v5714
        %v5928 = vpop.f32.mrf.mxu0
        %v5929 = vadd.f32 %v5880, %v5928
        %v5930 = vpop.f32.mrf.mxu0
        %v5931 = vadd.f32 %v5882, %v5930
        %5932 = vmatmul.bf16.gmra.mxu0 %v5716
        %v5933 = vpop.f32.mrf.mxu0
        %v5934 = vadd.f32 %v5885, %v5933
        %v5935 = vpop.f32.mrf.mxu0
        %v5936 = vadd.f32 %v5887, %v5935
        %5937 = vmatmul.bf16.gmra.mxu0 %v5718
        %v5938 = vpop.f32.mrf.mxu0
        %v5939 = vadd.f32 %v5890, %v5938
        %v5940 = vpop.f32.mrf.mxu0
        %v5941 = vadd.f32 %v5892, %v5940
        %5942 = vmatmul.bf16.gmra.mxu0 %v5720
        %v5943 = vpop.f32.mrf.mxu0
        %v5944 = vadd.f32 %v5895, %v5943
        %v5945 = vpop.f32.mrf.mxu0
        %v5946 = vadd.f32 %v5897, %v5945
        %5947 = vmatmul.bf16.gmra.mxu0 %v5722
        %v5948 = vpop.f32.mrf.mxu0
        %v5949 = vadd.f32 %v5900, %v5948
        %v5950 = vpop.f32.mrf.mxu0
        %v5951 = vadd.f32 %v5902, %v5950
        %5952 = vdwg.mxu0
        %v5953 = vmax.f32 %v5914, 0.0
        %v5954 = vmax.f32 %v5916, 0.0
        %v5955 = vmax.f32 %v5919, 0.0
        %v5956 = vmax.f32 %v5921, 0.0
        %v5957 = vmax.f32 %v5924, 0.0
        %v5958 = vmax.f32 %v5926, 0.0
        %v5959 = vmax.f32 %v5929, 0.0
        %v5960 = vmax.f32 %v5931, 0.0
        %v5961 = vmax.f32 %v5934, 0.0
        %v5962 = vmax.f32 %v5936, 0.0
        %v5963 = vmax.f32 %v5939, 0.0
        %v5964 = vmax.f32 %v5941, 0.0
        %v5965 = vmax.f32 %v5944, 0.0
        %v5966 = vmax.f32 %v5946, 0.0
        %v5967 = vmax.f32 %v5949, 0.0
        %v5968 = vmax.f32 %v5951, 0.0
        %5969 = vadd.xlane.f32.xlu0 %v5953
        %v5970 = vpop.xlane.xlu0 %5969
        %5971 = vadd.xlane.f32.xlu0 %v5954
        %v5972 = vpop.xlane.xlu0 %5971
        %5973 = vadd.xlane.f32.xlu0 %v5955
        %v5974 = vpop.xlane.xlu0 %5973
        %5975 = vadd.xlane.f32.xlu0 %v5956
        %v5976 = vpop.xlane.xlu0 %5975
        %5977 = vadd.xlane.f32.xlu0 %v5957
        %v5978 = vpop.xlane.xlu0 %5977
        %5979 = vadd.xlane.f32.xlu0 %v5958
        %v5980 = vpop.xlane.xlu0 %5979
        %5981 = vadd.xlane.f32.xlu0 %v5959
        %v5982 = vpop.xlane.xlu0 %5981
        %5983 = vadd.xlane.f32.xlu0 %v5960
        %v5984 = vpop.xlane.xlu0 %5983
        %5985 = vadd.xlane.f32.xlu0 %v5961
        %v5986 = vpop.xlane.xlu0 %5985
        %5987 = vadd.xlane.f32.xlu0 %v5962
        %v5988 = vpop.xlane.xlu0 %5987
        %5989 = vadd.xlane.f32.xlu0 %v5963
        %v5990 = vpop.xlane.xlu0 %5989
        %5991 = vadd.xlane.f32.xlu0 %v5964
        %v5992 = vpop.xlane.xlu0 %5991
        %5993 = vadd.xlane.f32.xlu0 %v5965
        %v5994 = vpop.xlane.xlu0 %5993
        %5995 = vadd.xlane.f32.xlu0 %v5966
        %v5996 = vpop.xlane.xlu0 %5995
        %5997 = vadd.xlane.f32.xlu0 %v5967
        %v5998 = vpop.xlane.xlu0 %5997
        %5999 = vadd.xlane.f32.xlu0 %v5968
        %v6000 = vpop.xlane.xlu0 %5999
        %v6001 = vmul.f32 %v5970, %v5370
        %v6002 = vmul.f32 %v5972, %v5370
        %v6003 = vmul.f32 %v5974, %v5370
        %v6004 = vmul.f32 %v5976, %v5370
        %v6005 = vmul.f32 %v5978, %v5370
        %v6006 = vmul.f32 %v5980, %v5370
        %v6007 = vmul.f32 %v5982, %v5370
        %v6008 = vmul.f32 %v5984, %v5370
        %v6009 = vmul.f32 %v5986, %v5370
        %v6010 = vmul.f32 %v5988, %v5370
        %v6011 = vmul.f32 %v5990, %v5370
        %v6012 = vmul.f32 %v5992, %v5370
        %v6013 = vmul.f32 %v5994, %v5370
        %v6014 = vmul.f32 %v5996, %v5370
        %v6015 = vmul.f32 %v5998, %v5370
        %v6016 = vmul.f32 %v6000, %v5370
        %v6017 = vmul.f32 %v5953, %v5953
        %v6018 = vmul.f32 %v5954, %v5954
        %v6019 = vmul.f32 %v5955, %v5955
        %v6020 = vmul.f32 %v5956, %v5956
        %v6021 = vmul.f32 %v5957, %v5957
        %v6022 = vmul.f32 %v5958, %v5958
        %v6023 = vmul.f32 %v5959, %v5959
        %v6024 = vmul.f32 %v5960, %v5960
        %v6025 = vmul.f32 %v5961, %v5961
        %v6026 = vmul.f32 %v5962, %v5962
        %v6027 = vmul.f32 %v5963, %v5963
        %v6028 = vmul.f32 %v5964, %v5964
        %v6029 = vmul.f32 %v5965, %v5965
        %v6030 = vmul.f32 %v5966, %v5966
        %v6031 = vmul.f32 %v5967, %v5967
        %v6032 = vmul.f32 %v5968, %v5968
        %6033 = vadd.xlane.f32.xlu0 %v6017
        %v6034 = vpop.xlane.xlu0 %6033
        %6035 = vadd.xlane.f32.xlu0 %v6018
        %v6036 = vpop.xlane.xlu0 %6035
        %6037 = vadd.xlane.f32.xlu0 %v6019
        %v6038 = vpop.xlane.xlu0 %6037
        %6039 = vadd.xlane.f32.xlu0 %v6020
        %v6040 = vpop.xlane.xlu0 %6039
        %6041 = vadd.xlane.f32.xlu0 %v6021
        %v6042 = vpop.xlane.xlu0 %6041
        %6043 = vadd.xlane.f32.xlu0 %v6022
        %v6044 = vpop.xlane.xlu0 %6043
        %6045 = vadd.xlane.f32.xlu0 %v6023
        %v6046 = vpop.xlane.xlu0 %6045
        %6047 = vadd.xlane.f32.xlu0 %v6024
        %v6048 = vpop.xlane.xlu0 %6047
        %6049 = vadd.xlane.f32.xlu0 %v6025
        %v6050 = vpop.xlane.xlu0 %6049
        %6051 = vadd.xlane.f32.xlu0 %v6026
        %v6052 = vpop.xlane.xlu0 %6051
        %6053 = vadd.xlane.f32.xlu0 %v6027
        %v6054 = vpop.xlane.xlu0 %6053
        %6055 = vadd.xlane.f32.xlu0 %v6028
        %v6056 = vpop.xlane.xlu0 %6055
        %6057 = vadd.xlane.f32.xlu0 %v6029
        %v6058 = vpop.xlane.xlu0 %6057
        %6059 = vadd.xlane.f32.xlu0 %v6030
        %v6060 = vpop.xlane.xlu0 %6059
        %6061 = vadd.xlane.f32.xlu0 %v6031
        %v6062 = vpop.xlane.xlu0 %6061
        %6063 = vadd.xlane.f32.xlu0 %v6032
        %v6064 = vpop.xlane.xlu0 %6063
        %v6065 = vmul.f32 %v6034, %v5370
        %v6066 = vmul.f32 %v6036, %v5370
        %v6067 = vmul.f32 %v6038, %v5370
        %v6068 = vmul.f32 %v6040, %v5370
        %v6069 = vmul.f32 %v6042, %v5370
        %v6070 = vmul.f32 %v6044, %v5370
        %v6071 = vmul.f32 %v6046, %v5370
        %v6072 = vmul.f32 %v6048, %v5370
        %v6073 = vmul.f32 %v6050, %v5370
        %v6074 = vmul.f32 %v6052, %v5370
        %v6075 = vmul.f32 %v6054, %v5370
        %v6076 = vmul.f32 %v6056, %v5370
        %v6077 = vmul.f32 %v6058, %v5370
        %v6078 = vmul.f32 %v6060, %v5370
        %v6079 = vmul.f32 %v6062, %v5370
        %v6080 = vmul.f32 %v6064, %v5370
        %v6081 = vmul.f32 %v6001, %v6001
        %v6082 = vmul.f32 %v6002, %v6002
        %v6083 = vmul.f32 %v6003, %v6003
        %v6084 = vmul.f32 %v6004, %v6004
        %v6085 = vmul.f32 %v6005, %v6005
        %v6086 = vmul.f32 %v6006, %v6006
        %v6087 = vmul.f32 %v6007, %v6007
        %v6088 = vmul.f32 %v6008, %v6008
        %v6089 = vmul.f32 %v6009, %v6009
        %v6090 = vmul.f32 %v6010, %v6010
        %v6091 = vmul.f32 %v6011, %v6011
        %v6092 = vmul.f32 %v6012, %v6012
        %v6093 = vmul.f32 %v6013, %v6013
        %v6094 = vmul.f32 %v6014, %v6014
        %v6095 = vmul.f32 %v6015, %v6015
        %v6096 = vmul.f32 %v6016, %v6016
        %v6097 = vsub.f32 %v6065, %v6081
        %v6098 = vsub.f32 %v6066, %v6082
        %v6099 = vsub.f32 %v6067, %v6083
        %v6100 = vsub.f32 %v6068, %v6084
        %v6101 = vsub.f32 %v6069, %v6085
        %v6102 = vsub.f32 %v6070, %v6086
        %v6103 = vsub.f32 %v6071, %v6087
        %v6104 = vsub.f32 %v6072, %v6088
        %v6105 = vsub.f32 %v6073, %v6089
        %v6106 = vsub.f32 %v6074, %v6090
        %v6107 = vsub.f32 %v6075, %v6091
        %v6108 = vsub.f32 %v6076, %v6092
        %v6109 = vsub.f32 %v6077, %v6093
        %v6110 = vsub.f32 %v6078, %v6094
        %v6111 = vsub.f32 %v6079, %v6095
        %v6112 = vsub.f32 %v6080, %v6096
        %v6113 = vmax.f32 %v6097, 0.0
        %v6114 = vmax.f32 %v6098, 0.0
        %v6115 = vmax.f32 %v6099, 0.0
        %v6116 = vmax.f32 %v6100, 0.0
        %v6117 = vmax.f32 %v6101, 0.0
        %v6118 = vmax.f32 %v6102, 0.0
        %v6119 = vmax.f32 %v6103, 0.0
        %v6120 = vmax.f32 %v6104, 0.0
        %v6121 = vmax.f32 %v6105, 0.0
        %v6122 = vmax.f32 %v6106, 0.0
        %v6123 = vmax.f32 %v6107, 0.0
        %v6124 = vmax.f32 %v6108, 0.0
        %v6125 = vmax.f32 %v6109, 0.0
        %v6126 = vmax.f32 %v6110, 0.0
        %v6127 = vmax.f32 %v6111, 0.0
        %v6128 = vmax.f32 %v6112, 0.0
        %v6129 = vsub.f32 %v5953, %v6001
        %v6130 = vsub.f32 %v5954, %v6002
        %v6131 = vsub.f32 %v5955, %v6003
        %v6132 = vsub.f32 %v5956, %v6004
        %v6133 = vsub.f32 %v5957, %v6005
        %v6134 = vsub.f32 %v5958, %v6006
        %v6135 = vsub.f32 %v5959, %v6007
        %v6136 = vsub.f32 %v5960, %v6008
        %v6137 = vsub.f32 %v5961, %v6009
        %v6138 = vsub.f32 %v5962, %v6010
        %v6139 = vsub.f32 %v5963, %v6011
        %v6140 = vsub.f32 %v5964, %v6012
        %v6141 = vsub.f32 %v5965, %v6013
        %v6142 = vsub.f32 %v5966, %v6014
        %v6143 = vsub.f32 %v5967, %v6015
        %v6144 = vsub.f32 %v5968, %v6016
        %v6145 = vadd.f32 %v6113, 1e-05
        %v6146 = vadd.f32 %v6114, 1e-05
        %v6147 = vadd.f32 %v6115, 1e-05
        %v6148 = vadd.f32 %v6116, 1e-05
        %v6149 = vadd.f32 %v6117, 1e-05
        %v6150 = vadd.f32 %v6118, 1e-05
        %v6151 = vadd.f32 %v6119, 1e-05
        %v6152 = vadd.f32 %v6120, 1e-05
        %v6153 = vadd.f32 %v6121, 1e-05
        %v6154 = vadd.f32 %v6122, 1e-05
        %v6155 = vadd.f32 %v6123, 1e-05
        %v6156 = vadd.f32 %v6124, 1e-05
        %v6157 = vadd.f32 %v6125, 1e-05
        %v6158 = vadd.f32 %v6126, 1e-05
        %v6159 = vadd.f32 %v6127, 1e-05
        %v6160 = vadd.f32 %v6128, 1e-05
        %v6161 = vrsqrt.pop %v6145
        %v6162 = vmul.f32 %v6161, %v6145
        %v6163 = vmul.f32 %v6162, %v6161
        %v6164 = vmul.f32 0.5, %v6163
        %v6165 = vsub.f32 1.5, %v6164
        %v6166 = vmul.f32 %v6161, %v6165
        %vm6167 = vweird.f32 %v6145
        %vm6168 = vweird.f32 %v6161
        %vm6169 = vmor %vm6167, %vm6168
        %v6170 = vsel %vm6169, %v6161, %v6166
        %v6171 = vrsqrt.pop %v6146
        %v6172 = vmul.f32 %v6171, %v6146
        %v6173 = vmul.f32 %v6172, %v6171
        %v6174 = vmul.f32 0.5, %v6173
        %v6175 = vsub.f32 1.5, %v6174
        %v6176 = vmul.f32 %v6171, %v6175
        %vm6177 = vweird.f32 %v6146
        %vm6178 = vweird.f32 %v6171
        %vm6179 = vmor %vm6177, %vm6178
        %v6180 = vsel %vm6179, %v6171, %v6176
        %v6181 = vrsqrt.pop %v6147
        %v6182 = vmul.f32 %v6181, %v6147
        %v6183 = vmul.f32 %v6182, %v6181
        %v6184 = vmul.f32 0.5, %v6183
        %v6185 = vsub.f32 1.5, %v6184
        %v6186 = vmul.f32 %v6181, %v6185
        %vm6187 = vweird.f32 %v6147
        %vm6188 = vweird.f32 %v6181
        %vm6189 = vmor %vm6187, %vm6188
        %v6190 = vsel %vm6189, %v6181, %v6186
        %v6191 = vrsqrt.pop %v6148
        %v6192 = vmul.f32 %v6191, %v6148
        %v6193 = vmul.f32 %v6192, %v6191
        %v6194 = vmul.f32 0.5, %v6193
        %v6195 = vsub.f32 1.5, %v6194
        %v6196 = vmul.f32 %v6191, %v6195
        %vm6197 = vweird.f32 %v6148
        %vm6198 = vweird.f32 %v6191
        %vm6199 = vmor %vm6197, %vm6198
        %v6200 = vsel %vm6199, %v6191, %v6196
        %v6201 = vrsqrt.pop %v6149
        %v6202 = vmul.f32 %v6201, %v6149
        %v6203 = vmul.f32 %v6202, %v6201
        %v6204 = vmul.f32 0.5, %v6203
        %v6205 = vsub.f32 1.5, %v6204
        %v6206 = vmul.f32 %v6201, %v6205
        %vm6207 = vweird.f32 %v6149
        %vm6208 = vweird.f32 %v6201
        %vm6209 = vmor %vm6207, %vm6208
        %v6210 = vsel %vm6209, %v6201, %v6206
        %v6211 = vrsqrt.pop %v6150
        %v6212 = vmul.f32 %v6211, %v6150
        %v6213 = vmul.f32 %v6212, %v6211
        %v6214 = vmul.f32 0.5, %v6213
        %v6215 = vsub.f32 1.5, %v6214
        %v6216 = vmul.f32 %v6211, %v6215
        %vm6217 = vweird.f32 %v6150
        %vm6218 = vweird.f32 %v6211
        %vm6219 = vmor %vm6217, %vm6218
        %v6220 = vsel %vm6219, %v6211, %v6216
        %v6221 = vrsqrt.pop %v6151
        %v6222 = vmul.f32 %v6221, %v6151
        %v6223 = vmul.f32 %v6222, %v6221
        %v6224 = vmul.f32 0.5, %v6223
        %v6225 = vsub.f32 1.5, %v6224
        %v6226 = vmul.f32 %v6221, %v6225
        %vm6227 = vweird.f32 %v6151
        %vm6228 = vweird.f32 %v6221
        %vm6229 = vmor %vm6227, %vm6228
        %v6230 = vsel %vm6229, %v6221, %v6226
        %v6231 = vrsqrt.pop %v6152
        %v6232 = vmul.f32 %v6231, %v6152
        %v6233 = vmul.f32 %v6232, %v6231
        %v6234 = vmul.f32 0.5, %v6233
        %v6235 = vsub.f32 1.5, %v6234
        %v6236 = vmul.f32 %v6231, %v6235
        %vm6237 = vweird.f32 %v6152
        %vm6238 = vweird.f32 %v6231
        %vm6239 = vmor %vm6237, %vm6238
        %v6240 = vsel %vm6239, %v6231, %v6236
        %v6241 = vrsqrt.pop %v6153
        %v6242 = vmul.f32 %v6241, %v6153
        %v6243 = vmul.f32 %v6242, %v6241
        %v6244 = vmul.f32 0.5, %v6243
        %v6245 = vsub.f32 1.5, %v6244
        %v6246 = vmul.f32 %v6241, %v6245
        %vm6247 = vweird.f32 %v6153
        %vm6248 = vweird.f32 %v6241
        %vm6249 = vmor %vm6247, %vm6248
        %v6250 = vsel %vm6249, %v6241, %v6246
        %v6251 = vrsqrt.pop %v6154
        %v6252 = vmul.f32 %v6251, %v6154
        %v6253 = vmul.f32 %v6252, %v6251
        %v6254 = vmul.f32 0.5, %v6253
        %v6255 = vsub.f32 1.5, %v6254
        %v6256 = vmul.f32 %v6251, %v6255
        %vm6257 = vweird.f32 %v6154
        %vm6258 = vweird.f32 %v6251
        %vm6259 = vmor %vm6257, %vm6258
        %v6260 = vsel %vm6259, %v6251, %v6256
        %v6261 = vrsqrt.pop %v6155
        %v6262 = vmul.f32 %v6261, %v6155
        %v6263 = vmul.f32 %v6262, %v6261
        %v6264 = vmul.f32 0.5, %v6263
        %v6265 = vsub.f32 1.5, %v6264
        %v6266 = vmul.f32 %v6261, %v6265
        %vm6267 = vweird.f32 %v6155
        %vm6268 = vweird.f32 %v6261
        %vm6269 = vmor %vm6267, %vm6268
        %v6270 = vsel %vm6269, %v6261, %v6266
        %v6271 = vrsqrt.pop %v6156
        %v6272 = vmul.f32 %v6271, %v6156
        %v6273 = vmul.f32 %v6272, %v6271
        %v6274 = vmul.f32 0.5, %v6273
        %v6275 = vsub.f32 1.5, %v6274
        %v6276 = vmul.f32 %v6271, %v6275
        %vm6277 = vweird.f32 %v6156
        %vm6278 = vweird.f32 %v6271
        %vm6279 = vmor %vm6277, %vm6278
        %v6280 = vsel %vm6279, %v6271, %v6276
        %v6281 = vrsqrt.pop %v6157
        %v6282 = vmul.f32 %v6281, %v6157
        %v6283 = vmul.f32 %v6282, %v6281
        %v6284 = vmul.f32 0.5, %v6283
        %v6285 = vsub.f32 1.5, %v6284
        %v6286 = vmul.f32 %v6281, %v6285
        %vm6287 = vweird.f32 %v6157
        %vm6288 = vweird.f32 %v6281
        %vm6289 = vmor %vm6287, %vm6288
        %v6290 = vsel %vm6289, %v6281, %v6286
        %v6291 = vrsqrt.pop %v6158
        %v6292 = vmul.f32 %v6291, %v6158
        %v6293 = vmul.f32 %v6292, %v6291
        %v6294 = vmul.f32 0.5, %v6293
        %v6295 = vsub.f32 1.5, %v6294
        %v6296 = vmul.f32 %v6291, %v6295
        %vm6297 = vweird.f32 %v6158
        %vm6298 = vweird.f32 %v6291
        %vm6299 = vmor %vm6297, %vm6298
        %v6300 = vsel %vm6299, %v6291, %v6296
        %v6301 = vrsqrt.pop %v6159
        %v6302 = vmul.f32 %v6301, %v6159
        %v6303 = vmul.f32 %v6302, %v6301
        %v6304 = vmul.f32 0.5, %v6303
        %v6305 = vsub.f32 1.5, %v6304
        %v6306 = vmul.f32 %v6301, %v6305
        %vm6307 = vweird.f32 %v6159
        %vm6308 = vweird.f32 %v6301
        %vm6309 = vmor %vm6307, %vm6308
        %v6310 = vsel %vm6309, %v6301, %v6306
        %v6311 = vrsqrt.pop %v6160
        %v6312 = vmul.f32 %v6311, %v6160
        %v6313 = vmul.f32 %v6312, %v6311
        %v6314 = vmul.f32 0.5, %v6313
        %v6315 = vsub.f32 1.5, %v6314
        %v6316 = vmul.f32 %v6311, %v6315
        %vm6317 = vweird.f32 %v6160
        %vm6318 = vweird.f32 %v6311
        %vm6319 = vmor %vm6317, %vm6318
        %v6320 = vsel %vm6319, %v6311, %v6316
        %v6321 = vmul.f32 %v6129, %v6170
        %v6322 = vmul.f32 %v6130, %v6180
        %v6323 = vmul.f32 %v6131, %v6190
        %v6324 = vmul.f32 %v6132, %v6200
        %v6325 = vmul.f32 %v6133, %v6210
        %v6326 = vmul.f32 %v6134, %v6220
        %v6327 = vmul.f32 %v6135, %v6230
        %v6328 = vmul.f32 %v6136, %v6240
        %v6329 = vmul.f32 %v6137, %v6250
        %v6330 = vmul.f32 %v6138, %v6260
        %v6331 = vmul.f32 %v6139, %v6270
        %v6332 = vmul.f32 %v6140, %v6280
        %v6333 = vmul.f32 %v6141, %v6290
        %v6334 = vmul.f32 %v6142, %v6300
        %v6335 = vmul.f32 %v6143, %v6310
        %v6336 = vmul.f32 %v6144, %v6320
        %v6337 = vpack.c.bf16 %v5692, %v5691
        %v6338 = vpack.c.bf16 %v5694, %v5693
        %v6339 = vpack.c.bf16 %v5696, %v5695
        %v6340 = vpack.c.bf16 %v5698, %v5697
        %v6341 = vpack.c.bf16 %v5700, %v5699
        %v6342 = vpack.c.bf16 %v5702, %v5701
        %v6343 = vpack.c.bf16 %v5704, %v5703
        %v6344 = vpack.c.bf16 %v5706, %v5705
        %v6345 = vld [vmem:[#allocation7] sm:$0xf]
        %v6346 = vld [vmem:[#allocation7 + $0x4] sm:$0xf]
        %v6347 = vld [vmem:[#allocation7 + $0x8] sm:$0xf]
        %v6348 = vld [vmem:[#allocation7 + $0xc] sm:$0xf]
        %v6349 = vld [vmem:[#allocation7 + $0x10] sm:$0xf]
        %v6350 = vld [vmem:[#allocation7 + $0x14] sm:$0xf]
        %v6351 = vld [vmem:[#allocation7 + $0x18] sm:$0xf]
        %v6352 = vld [vmem:[#allocation7 + $0x1c] sm:$0xf]
        %v6353 = vld [vmem:[#allocation7 + $0x20] sm:$0xf]
        %v6354 = vld [vmem:[#allocation7 + $0x24] sm:$0xf]
        %v6355 = vld [vmem:[#allocation7 + $0x28] sm:$0xf]
        %v6356 = vld [vmem:[#allocation7 + $0x2c] sm:$0xf]
        %v6357 = vld [vmem:[#allocation7 + $0x30] sm:$0xf]
        %v6358 = vld [vmem:[#allocation7 + $0x34] sm:$0xf]
        %v6359 = vld [vmem:[#allocation7 + $0x38] sm:$0xf]
        %v6360 = vld [vmem:[#allocation7 + $0x3c] sm:$0xf]
        %v6361 = vld [vmem:[%s8] sm:$0x1]
        %v6363 = vperm.slane %v6361, 0
        %v6381 = vunpack.c.l.b16 %v6345
        %v6382 = vunpack.c.l.b16 %v6346
        %v6383 = vunpack.c.l.b16 %v6347
        %v6384 = vunpack.c.l.b16 %v6348
        %v6385 = vunpack.c.l.b16 %v6349
        %v6386 = vunpack.c.l.b16 %v6350
        %v6387 = vunpack.c.l.b16 %v6351
        %v6388 = vunpack.c.l.b16 %v6352
        %v6389 = vunpack.c.l.b16 %v6353
        %v6390 = vunpack.c.l.b16 %v6354
        %v6391 = vunpack.c.l.b16 %v6355
        %v6392 = vunpack.c.l.b16 %v6356
        %v6393 = vunpack.c.l.b16 %v6357
        %v6394 = vunpack.c.l.b16 %v6358
        %v6395 = vunpack.c.l.b16 %v6359
        %v6396 = vunpack.c.l.b16 %v6360
        %v6397 = vpack.c.b16 %v6382, %v6381
        %v6398 = vpack.c.b16 %v6384, %v6383
        %v6399 = vpack.c.b16 %v6386, %v6385
        %v6400 = vpack.c.b16 %v6388, %v6387
        %v6401 = vpack.c.b16 %v6390, %v6389
        %v6402 = vpack.c.b16 %v6392, %v6391
        %v6403 = vpack.c.b16 %v6394, %v6393
        %v6404 = vpack.c.b16 %v6396, %v6395
        %6413 = vmatpush.bf16.msra.mxu0 %v6404
        %6414 = vmatpush.bf16.msra.mxu0 %v6403
        %6415 = vmatpush.bf16.msra.mxu0 %v6402
        %6416 = vmatpush.bf16.msra.mxu0 %v6401
        %6417 = vmatpush.bf16.msra.mxu0 %v6400
        %6418 = vmatpush.bf16.msra.mxu0 %v6399
        %6419 = vmatpush.bf16.msra.mxu0 %v6398
        %6420 = vmatpush.bf16.msra.mxu0 %v6397
        %6421 = vmatmul.bf16.gmra.mxu0 %v6337
        %v6422 = vpop.f32.mrf.mxu0
        %v6423 = vadd.f32 %v6363, %v6422
        %v6424 = vpop.f32.mrf.mxu0
        %v6425 = vadd.f32 %v6363, %v6424
        %6426 = vmatmul.bf16.gmra.mxu0 %v6338
        %v6427 = vpop.f32.mrf.mxu0
        %v6428 = vadd.f32 %v6363, %v6427
        %v6429 = vpop.f32.mrf.mxu0
        %v6430 = vadd.f32 %v6363, %v6429
        %6431 = vmatmul.bf16.gmra.mxu0 %v6339
        %v6432 = vpop.f32.mrf.mxu0
        %v6433 = vadd.f32 %v6363, %v6432
        %v6434 = vpop.f32.mrf.mxu0
        %v6435 = vadd.f32 %v6363, %v6434
        %6436 = vmatmul.bf16.gmra.mxu0 %v6340
        %v6437 = vpop.f32.mrf.mxu0
        %v6438 = vadd.f32 %v6363, %v6437
        %v6439 = vpop.f32.mrf.mxu0
        %v6440 = vadd.f32 %v6363, %v6439
        %6441 = vmatmul.bf16.gmra.mxu0 %v6341
        %v6442 = vpop.f32.mrf.mxu0
        %v6443 = vadd.f32 %v6363, %v6442
        %v6444 = vpop.f32.mrf.mxu0
        %v6445 = vadd.f32 %v6363, %v6444
        %6446 = vmatmul.bf16.gmra.mxu0 %v6342
        %v6447 = vpop.f32.mrf.mxu0
        %v6448 = vadd.f32 %v6363, %v6447
        %v6449 = vpop.f32.mrf.mxu0
        %v6450 = vadd.f32 %v6363, %v6449
        %6451 = vmatmul.bf16.gmra.mxu0 %v6343
        %v6452 = vpop.f32.mrf.mxu0
        %v6453 = vadd.f32 %v6363, %v6452
        %v6454 = vpop.f32.mrf.mxu0
        %v6455 = vadd.f32 %v6363, %v6454
        %6456 = vmatmul.bf16.gmra.mxu0 %v6344
        %v6457 = vpop.f32.mrf.mxu0
        %v6458 = vadd.f32 %v6363, %v6457
        %v6459 = vpop.f32.mrf.mxu0
        %v6460 = vadd.f32 %v6363, %v6459
        %6461 = vdwg.mxu0
        %6462 = vmax.xlane.f32.xlu0 %v6423
        %v6463 = vpop.xlane.xlu0 %6462
        %6464 = vmax.xlane.f32.xlu0 %v6425
        %v6465 = vpop.xlane.xlu0 %6464
        %6466 = vmax.xlane.f32.xlu0 %v6428
        %v6467 = vpop.xlane.xlu0 %6466
        %6468 = vmax.xlane.f32.xlu0 %v6430
        %v6469 = vpop.xlane.xlu0 %6468
        %6470 = vmax.xlane.f32.xlu0 %v6433
        %v6471 = vpop.xlane.xlu0 %6470
        %6472 = vmax.xlane.f32.xlu0 %v6435
        %v6473 = vpop.xlane.xlu0 %6472
        %6474 = vmax.xlane.f32.xlu0 %v6438
        %v6475 = vpop.xlane.xlu0 %6474
        %6476 = vmax.xlane.f32.xlu0 %v6440
        %v6477 = vpop.xlane.xlu0 %6476
        %6478 = vmax.xlane.f32.xlu0 %v6443
        %v6479 = vpop.xlane.xlu0 %6478
        %6480 = vmax.xlane.f32.xlu0 %v6445
        %v6481 = vpop.xlane.xlu0 %6480
        %6482 = vmax.xlane.f32.xlu0 %v6448
        %v6483 = vpop.xlane.xlu0 %6482
        %6484 = vmax.xlane.f32.xlu0 %v6450
        %v6485 = vpop.xlane.xlu0 %6484
        %6486 = vmax.xlane.f32.xlu0 %v6453
        %v6487 = vpop.xlane.xlu0 %6486
        %6488 = vmax.xlane.f32.xlu0 %v6455
        %v6489 = vpop.xlane.xlu0 %6488
        %6490 = vmax.xlane.f32.xlu0 %v6458
        %v6491 = vpop.xlane.xlu0 %6490
        %6492 = vmax.xlane.f32.xlu0 %v6460
        %v6493 = vpop.xlane.xlu0 %6492
        %v6494 = vsub.f32 %v6423, %v6463
        %v6495 = vsub.f32 %v6425, %v6465
        %v6496 = vsub.f32 %v6428, %v6467
        %v6497 = vsub.f32 %v6430, %v6469
        %v6498 = vsub.f32 %v6433, %v6471
        %v6499 = vsub.f32 %v6435, %v6473
        %v6500 = vsub.f32 %v6438, %v6475
        %v6501 = vsub.f32 %v6440, %v6477
        %v6502 = vsub.f32 %v6443, %v6479
        %v6503 = vsub.f32 %v6445, %v6481
        %v6504 = vsub.f32 %v6448, %v6483
        %v6505 = vsub.f32 %v6450, %v6485
        %v6506 = vsub.f32 %v6453, %v6487
        %v6507 = vsub.f32 %v6455, %v6489
        %v6508 = vsub.f32 %v6458, %v6491
        %v6509 = vsub.f32 %v6460, %v6493
        %v6510 = vmul.f32 %v6494, 1.442695
        %v6511 = vpow.pop %v6510
        %v6512 = vmul.f32 %v6495, 1.442695
        %v6513 = vpow.pop %v6512
        %v6514 = vmul.f32 %v6496, 1.442695
        %v6515 = vpow.pop %v6514
        %v6516 = vmul.f32 %v6497, 1.442695
        %v6517 = vpow.pop %v6516
        %v6518 = vmul.f32 %v6498, 1.442695
        %v6519 = vpow.pop %v6518
        %v6520 = vmul.f32 %v6499, 1.442695
        %v6521 = vpow.pop %v6520
        %v6522 = vmul.f32 %v6500, 1.442695
        %v6523 = vpow.pop %v6522
        %v6524 = vmul.f32 %v6501, 1.442695
        %v6525 = vpow.pop %v6524
        %v6526 = vmul.f32 %v6502, 1.442695
        %v6527 = vpow.pop %v6526
        %v6528 = vmul.f32 %v6503, 1.442695
        %v6529 = vpow.pop %v6528
        %v6530 = vmul.f32 %v6504, 1.442695
        %v6531 = vpow.pop %v6530
        %v6532 = vmul.f32 %v6505, 1.442695
        %v6533 = vpow.pop %v6532
        %v6534 = vmul.f32 %v6506, 1.442695
        %v6535 = vpow.pop %v6534
        %v6536 = vmul.f32 %v6507, 1.442695
        %v6537 = vpow.pop %v6536
        %v6538 = vmul.f32 %v6508, 1.442695
        %v6539 = vpow.pop %v6538
        %v6540 = vmul.f32 %v6509, 1.442695
        %v6541 = vpow.pop %v6540
        %6542 = vadd.xlane.f32.xlu0 %v6511
        %v6543 = vpop.xlane.xlu0 %6542
        %6544 = vadd.xlane.f32.xlu0 %v6513
        %v6545 = vpop.xlane.xlu0 %6544
        %6546 = vadd.xlane.f32.xlu0 %v6515
        %v6547 = vpop.xlane.xlu0 %6546
        %6548 = vadd.xlane.f32.xlu0 %v6517
        %v6549 = vpop.xlane.xlu0 %6548
        %6550 = vadd.xlane.f32.xlu0 %v6519
        %v6551 = vpop.xlane.xlu0 %6550
        %6552 = vadd.xlane.f32.xlu0 %v6521
        %v6553 = vpop.xlane.xlu0 %6552
        %6554 = vadd.xlane.f32.xlu0 %v6523
        %v6555 = vpop.xlane.xlu0 %6554
        %6556 = vadd.xlane.f32.xlu0 %v6525
        %v6557 = vpop.xlane.xlu0 %6556
        %6558 = vadd.xlane.f32.xlu0 %v6527
        %v6559 = vpop.xlane.xlu0 %6558
        %6560 = vadd.xlane.f32.xlu0 %v6529
        %v6561 = vpop.xlane.xlu0 %6560
        %6562 = vadd.xlane.f32.xlu0 %v6531
        %v6563 = vpop.xlane.xlu0 %6562
        %6564 = vadd.xlane.f32.xlu0 %v6533
        %v6565 = vpop.xlane.xlu0 %6564
        %6566 = vadd.xlane.f32.xlu0 %v6535
        %v6567 = vpop.xlane.xlu0 %6566
        %6568 = vadd.xlane.f32.xlu0 %v6537
        %v6569 = vpop.xlane.xlu0 %6568
        %6570 = vadd.xlane.f32.xlu0 %v6539
        %v6571 = vpop.xlane.xlu0 %6570
        %6572 = vadd.xlane.f32.xlu0 %v6541
        %v6573 = vpop.xlane.xlu0 %6572
        %v6574 = vrcp.pop %v6543
        %v6575 = vmul.f32 %v6543, %v6574
        %v6576 = vsub.f32 1.0, %v6575
        %v6577 = vmul.f32 %v6574, %v6576
        %v6578 = vadd.f32 %v6574, %v6577
        %vm6579 = vweird.f32 %v6543
        %vm6580 = vweird.f32 %v6574
        %vm6581 = vmor %vm6579, %vm6580
        %v6582 = vsel %vm6581, %v6574, %v6578
        %v6583 = vand.u32 2147483647, %v6543
        %vm6584 = vcmp.eq.f32.partialorder %v6583, 8.507059e+37
        %v6585 = vand.u32 %v6543, 2147483648
        %v6586 = vor.u32 1.1754944e-38, %v6585
        %v6587 = vsel %vm6584, %v6586, %v6582
        %v6588 = vmul.f32 1.0, %v6587
        %v6589 = vrcp.pop %v6545
        %v6590 = vmul.f32 %v6545, %v6589
        %v6591 = vsub.f32 1.0, %v6590
        %v6592 = vmul.f32 %v6589, %v6591
        %v6593 = vadd.f32 %v6589, %v6592
        %vm6594 = vweird.f32 %v6545
        %vm6595 = vweird.f32 %v6589
        %vm6596 = vmor %vm6594, %vm6595
        %v6597 = vsel %vm6596, %v6589, %v6593
        %v6598 = vand.u32 2147483647, %v6545
        %vm6599 = vcmp.eq.f32.partialorder %v6598, 8.507059e+37
        %v6600 = vand.u32 %v6545, 2147483648
        %v6601 = vor.u32 1.1754944e-38, %v6600
        %v6602 = vsel %vm6599, %v6601, %v6597
        %v6603 = vmul.f32 1.0, %v6602
        %v6604 = vrcp.pop %v6547
        %v6605 = vmul.f32 %v6547, %v6604
        %v6606 = vsub.f32 1.0, %v6605
        %v6607 = vmul.f32 %v6604, %v6606
        %v6608 = vadd.f32 %v6604, %v6607
        %vm6609 = vweird.f32 %v6547
        %vm6610 = vweird.f32 %v6604
        %vm6611 = vmor %vm6609, %vm6610
        %v6612 = vsel %vm6611, %v6604, %v6608
        %v6613 = vand.u32 2147483647, %v6547
        %vm6614 = vcmp.eq.f32.partialorder %v6613, 8.507059e+37
        %v6615 = vand.u32 %v6547, 2147483648
        %v6616 = vor.u32 1.1754944e-38, %v6615
        %v6617 = vsel %vm6614, %v6616, %v6612
        %v6618 = vmul.f32 1.0, %v6617
        %v6619 = vrcp.pop %v6549
        %v6620 = vmul.f32 %v6549, %v6619
        %v6621 = vsub.f32 1.0, %v6620
        %v6622 = vmul.f32 %v6619, %v6621
        %v6623 = vadd.f32 %v6619, %v6622
        %vm6624 = vweird.f32 %v6549
        %vm6625 = vweird.f32 %v6619
        %vm6626 = vmor %vm6624, %vm6625
        %v6627 = vsel %vm6626, %v6619, %v6623
        %v6628 = vand.u32 2147483647, %v6549
        %vm6629 = vcmp.eq.f32.partialorder %v6628, 8.507059e+37
        %v6630 = vand.u32 %v6549, 2147483648
        %v6631 = vor.u32 1.1754944e-38, %v6630
        %v6632 = vsel %vm6629, %v6631, %v6627
        %v6633 = vmul.f32 1.0, %v6632
        %v6634 = vrcp.pop %v6551
        %v6635 = vmul.f32 %v6551, %v6634
        %v6636 = vsub.f32 1.0, %v6635
        %v6637 = vmul.f32 %v6634, %v6636
        %v6638 = vadd.f32 %v6634, %v6637
        %vm6639 = vweird.f32 %v6551
        %vm6640 = vweird.f32 %v6634
        %vm6641 = vmor %vm6639, %vm6640
        %v6642 = vsel %vm6641, %v6634, %v6638
        %v6643 = vand.u32 2147483647, %v6551
        %vm6644 = vcmp.eq.f32.partialorder %v6643, 8.507059e+37
        %v6645 = vand.u32 %v6551, 2147483648
        %v6646 = vor.u32 1.1754944e-38, %v6645
        %v6647 = vsel %vm6644, %v6646, %v6642
        %v6648 = vmul.f32 1.0, %v6647
        %v6649 = vrcp.pop %v6553
        %v6650 = vmul.f32 %v6553, %v6649
        %v6651 = vsub.f32 1.0, %v6650
        %v6652 = vmul.f32 %v6649, %v6651
        %v6653 = vadd.f32 %v6649, %v6652
        %vm6654 = vweird.f32 %v6553
        %vm6655 = vweird.f32 %v6649
        %vm6656 = vmor %vm6654, %vm6655
        %v6657 = vsel %vm6656, %v6649, %v6653
        %v6658 = vand.u32 2147483647, %v6553
        %vm6659 = vcmp.eq.f32.partialorder %v6658, 8.507059e+37
        %v6660 = vand.u32 %v6553, 2147483648
        %v6661 = vor.u32 1.1754944e-38, %v6660
        %v6662 = vsel %vm6659, %v6661, %v6657
        %v6663 = vmul.f32 1.0, %v6662
        %v6664 = vrcp.pop %v6555
        %v6665 = vmul.f32 %v6555, %v6664
        %v6666 = vsub.f32 1.0, %v6665
        %v6667 = vmul.f32 %v6664, %v6666
        %v6668 = vadd.f32 %v6664, %v6667
        %vm6669 = vweird.f32 %v6555
        %vm6670 = vweird.f32 %v6664
        %vm6671 = vmor %vm6669, %vm6670
        %v6672 = vsel %vm6671, %v6664, %v6668
        %v6673 = vand.u32 2147483647, %v6555
        %vm6674 = vcmp.eq.f32.partialorder %v6673, 8.507059e+37
        %v6675 = vand.u32 %v6555, 2147483648
        %v6676 = vor.u32 1.1754944e-38, %v6675
        %v6677 = vsel %vm6674, %v6676, %v6672
        %v6678 = vmul.f32 1.0, %v6677
        %v6679 = vrcp.pop %v6557
        %v6680 = vmul.f32 %v6557, %v6679
        %v6681 = vsub.f32 1.0, %v6680
        %v6682 = vmul.f32 %v6679, %v6681
        %v6683 = vadd.f32 %v6679, %v6682
        %vm6684 = vweird.f32 %v6557
        %vm6685 = vweird.f32 %v6679
        %vm6686 = vmor %vm6684, %vm6685
        %v6687 = vsel %vm6686, %v6679, %v6683
        %v6688 = vand.u32 2147483647, %v6557
        %vm6689 = vcmp.eq.f32.partialorder %v6688, 8.507059e+37
        %v6690 = vand.u32 %v6557, 2147483648
        %v6691 = vor.u32 1.1754944e-38, %v6690
        %v6692 = vsel %vm6689, %v6691, %v6687
        %v6693 = vmul.f32 1.0, %v6692
        %v6694 = vrcp.pop %v6559
        %v6695 = vmul.f32 %v6559, %v6694
        %v6696 = vsub.f32 1.0, %v6695
        %v6697 = vmul.f32 %v6694, %v6696
        %v6698 = vadd.f32 %v6694, %v6697
        %vm6699 = vweird.f32 %v6559
        %vm6700 = vweird.f32 %v6694
        %vm6701 = vmor %vm6699, %vm6700
        %v6702 = vsel %vm6701, %v6694, %v6698
        %v6703 = vand.u32 2147483647, %v6559
        %vm6704 = vcmp.eq.f32.partialorder %v6703, 8.507059e+37
        %v6705 = vand.u32 %v6559, 2147483648
        %v6706 = vor.u32 1.1754944e-38, %v6705
        %v6707 = vsel %vm6704, %v6706, %v6702
        %v6708 = vmul.f32 1.0, %v6707
        %v6709 = vrcp.pop %v6561
        %v6710 = vmul.f32 %v6561, %v6709
        %v6711 = vsub.f32 1.0, %v6710
        %v6712 = vmul.f32 %v6709, %v6711
        %v6713 = vadd.f32 %v6709, %v6712
        %vm6714 = vweird.f32 %v6561
        %vm6715 = vweird.f32 %v6709
        %vm6716 = vmor %vm6714, %vm6715
        %v6717 = vsel %vm6716, %v6709, %v6713
        %v6718 = vand.u32 2147483647, %v6561
        %vm6719 = vcmp.eq.f32.partialorder %v6718, 8.507059e+37
        %v6720 = vand.u32 %v6561, 2147483648
        %v6721 = vor.u32 1.1754944e-38, %v6720
        %v6722 = vsel %vm6719, %v6721, %v6717
        %v6723 = vmul.f32 1.0, %v6722
        %v6724 = vrcp.pop %v6563
        %v6725 = vmul.f32 %v6563, %v6724
        %v6726 = vsub.f32 1.0, %v6725
        %v6727 = vmul.f32 %v6724, %v6726
        %v6728 = vadd.f32 %v6724, %v6727
        %vm6729 = vweird.f32 %v6563
        %vm6730 = vweird.f32 %v6724
        %vm6731 = vmor %vm6729, %vm6730
        %v6732 = vsel %vm6731, %v6724, %v6728
        %v6733 = vand.u32 2147483647, %v6563
        %vm6734 = vcmp.eq.f32.partialorder %v6733, 8.507059e+37
        %v6735 = vand.u32 %v6563, 2147483648
        %v6736 = vor.u32 1.1754944e-38, %v6735
        %v6737 = vsel %vm6734, %v6736, %v6732
        %v6738 = vmul.f32 1.0, %v6737
        %v6739 = vrcp.pop %v6565
        %v6740 = vmul.f32 %v6565, %v6739
        %v6741 = vsub.f32 1.0, %v6740
        %v6742 = vmul.f32 %v6739, %v6741
        %v6743 = vadd.f32 %v6739, %v6742
        %vm6744 = vweird.f32 %v6565
        %vm6745 = vweird.f32 %v6739
        %vm6746 = vmor %vm6744, %vm6745
        %v6747 = vsel %vm6746, %v6739, %v6743
        %v6748 = vand.u32 2147483647, %v6565
        %vm6749 = vcmp.eq.f32.partialorder %v6748, 8.507059e+37
        %v6750 = vand.u32 %v6565, 2147483648
        %v6751 = vor.u32 1.1754944e-38, %v6750
        %v6752 = vsel %vm6749, %v6751, %v6747
        %v6753 = vmul.f32 1.0, %v6752
        %v6754 = vrcp.pop %v6567
        %v6755 = vmul.f32 %v6567, %v6754
        %v6756 = vsub.f32 1.0, %v6755
        %v6757 = vmul.f32 %v6754, %v6756
        %v6758 = vadd.f32 %v6754, %v6757
        %vm6759 = vweird.f32 %v6567
        %vm6760 = vweird.f32 %v6754
        %vm6761 = vmor %vm6759, %vm6760
        %v6762 = vsel %vm6761, %v6754, %v6758
        %v6763 = vand.u32 2147483647, %v6567
        %vm6764 = vcmp.eq.f32.partialorder %v6763, 8.507059e+37
        %v6765 = vand.u32 %v6567, 2147483648
        %v6766 = vor.u32 1.1754944e-38, %v6765
        %v6767 = vsel %vm6764, %v6766, %v6762
        %v6768 = vmul.f32 1.0, %v6767
        %v6769 = vrcp.pop %v6569
        %v6770 = vmul.f32 %v6569, %v6769
        %v6771 = vsub.f32 1.0, %v6770
        %v6772 = vmul.f32 %v6769, %v6771
        %v6773 = vadd.f32 %v6769, %v6772
        %vm6774 = vweird.f32 %v6569
        %vm6775 = vweird.f32 %v6769
        %vm6776 = vmor %vm6774, %vm6775
        %v6777 = vsel %vm6776, %v6769, %v6773
        %v6778 = vand.u32 2147483647, %v6569
        %vm6779 = vcmp.eq.f32.partialorder %v6778, 8.507059e+37
        %v6780 = vand.u32 %v6569, 2147483648
        %v6781 = vor.u32 1.1754944e-38, %v6780
        %v6782 = vsel %vm6779, %v6781, %v6777
        %v6783 = vmul.f32 1.0, %v6782
        %v6784 = vrcp.pop %v6571
        %v6785 = vmul.f32 %v6571, %v6784
        %v6786 = vsub.f32 1.0, %v6785
        %v6787 = vmul.f32 %v6784, %v6786
        %v6788 = vadd.f32 %v6784, %v6787
        %vm6789 = vweird.f32 %v6571
        %vm6790 = vweird.f32 %v6784
        %vm6791 = vmor %vm6789, %vm6790
        %v6792 = vsel %vm6791, %v6784, %v6788
        %v6793 = vand.u32 2147483647, %v6571
        %vm6794 = vcmp.eq.f32.partialorder %v6793, 8.507059e+37
        %v6795 = vand.u32 %v6571, 2147483648
        %v6796 = vor.u32 1.1754944e-38, %v6795
        %v6797 = vsel %vm6794, %v6796, %v6792
        %v6798 = vmul.f32 1.0, %v6797
        %v6799 = vrcp.pop %v6573
        %v6800 = vmul.f32 %v6573, %v6799
        %v6801 = vsub.f32 1.0, %v6800
        %v6802 = vmul.f32 %v6799, %v6801
        %v6803 = vadd.f32 %v6799, %v6802
        %vm6804 = vweird.f32 %v6573
        %vm6805 = vweird.f32 %v6799
        %vm6806 = vmor %vm6804, %vm6805
        %v6807 = vsel %vm6806, %v6799, %v6803
        %v6808 = vand.u32 2147483647, %v6573
        %vm6809 = vcmp.eq.f32.partialorder %v6808, 8.507059e+37
        %v6810 = vand.u32 %v6573, 2147483648
        %v6811 = vor.u32 1.1754944e-38, %v6810
        %v6812 = vsel %vm6809, %v6811, %v6807
        %v6813 = vmul.f32 1.0, %v6812
        %v6814 = vmul.f32 %v6511, %v6588
        %v6815 = vmul.f32 %v6513, %v6603
        %v6816 = vmul.f32 %v6515, %v6618
        %v6817 = vmul.f32 %v6517, %v6633
        %v6818 = vmul.f32 %v6519, %v6648
        %v6819 = vmul.f32 %v6521, %v6663
        %v6820 = vmul.f32 %v6523, %v6678
        %v6821 = vmul.f32 %v6525, %v6693
        %v6822 = vmul.f32 %v6527, %v6708
        %v6823 = vmul.f32 %v6529, %v6723
        %v6824 = vmul.f32 %v6531, %v6738
        %v6825 = vmul.f32 %v6533, %v6753
        %v6826 = vmul.f32 %v6535, %v6768
        %v6827 = vmul.f32 %v6537, %v6783
        %v6828 = vmul.f32 %v6539, %v6798
        %v6829 = vmul.f32 %v6541, %v6813
        %v6830 = vld [vmem:[%s13] sm:$0x1]
        %v6832 = vperm.slane %v6830, 0
        %v6834 = vmul.f32 %v6321, %v6832
        %v6835 = vmul.f32 %v6322, %v6832
        %v6836 = vmul.f32 %v6323, %v6832
        %v6837 = vmul.f32 %v6324, %v6832
        %v6838 = vmul.f32 %v6325, %v6832
        %v6839 = vmul.f32 %v6326, %v6832
        %v6840 = vmul.f32 %v6327, %v6832
        %v6841 = vmul.f32 %v6328, %v6832
        %v6842 = vmul.f32 %v6329, %v6832
        %v6843 = vmul.f32 %v6330, %v6832
        %v6844 = vmul.f32 %v6331, %v6832
        %v6845 = vmul.f32 %v6332, %v6832
        %v6846 = vmul.f32 %v6333, %v6832
        %v6847 = vmul.f32 %v6334, %v6832
        %v6848 = vmul.f32 %v6335, %v6832
        %v6849 = vmul.f32 %v6336, %v6832
        %6850 = vadd.xlane.f32.xlu0 %v6834
        %v6851 = vpop.xlane.xlu0 %6850
        %6852 = vadd.xlane.f32.xlu0 %v6835
        %v6853 = vpop.xlane.xlu0 %6852
        %6854 = vadd.xlane.f32.xlu0 %v6836
        %v6855 = vpop.xlane.xlu0 %6854
        %6856 = vadd.xlane.f32.xlu0 %v6837
        %v6857 = vpop.xlane.xlu0 %6856
        %6858 = vadd.xlane.f32.xlu0 %v6838
        %v6859 = vpop.xlane.xlu0 %6858
        %6860 = vadd.xlane.f32.xlu0 %v6839
        %v6861 = vpop.xlane.xlu0 %6860
        %6862 = vadd.xlane.f32.xlu0 %v6840
        %v6863 = vpop.xlane.xlu0 %6862
        %6864 = vadd.xlane.f32.xlu0 %v6841
        %v6865 = vpop.xlane.xlu0 %6864
        %6866 = vadd.xlane.f32.xlu0 %v6842
        %v6867 = vpop.xlane.xlu0 %6866
        %6868 = vadd.xlane.f32.xlu0 %v6843
        %v6869 = vpop.xlane.xlu0 %6868
        %6870 = vadd.xlane.f32.xlu0 %v6844
        %v6871 = vpop.xlane.xlu0 %6870
        %6872 = vadd.xlane.f32.xlu0 %v6845
        %v6873 = vpop.xlane.xlu0 %6872
        %6874 = vadd.xlane.f32.xlu0 %v6846
        %v6875 = vpop.xlane.xlu0 %6874
        %6876 = vadd.xlane.f32.xlu0 %v6847
        %v6877 = vpop.xlane.xlu0 %6876
        %6878 = vadd.xlane.f32.xlu0 %v6848
        %v6879 = vpop.xlane.xlu0 %6878
        %6880 = vadd.xlane.f32.xlu0 %v6849
        %v6881 = vpop.xlane.xlu0 %6880
        %v6882 = vld [vmem:[#allocation2] sm:$0x1]
        %v6884 = vperm.slane %v6882, 0
        %v6886 = vadd.f32 %v6851, %v6884
        %v6887 = vadd.f32 %v6853, %v6884
        %v6888 = vadd.f32 %v6855, %v6884
        %v6889 = vadd.f32 %v6857, %v6884
        %v6890 = vadd.f32 %v6859, %v6884
        %v6891 = vadd.f32 %v6861, %v6884
        %v6892 = vadd.f32 %v6863, %v6884
        %v6893 = vadd.f32 %v6865, %v6884
        %v6894 = vadd.f32 %v6867, %v6884
        %v6895 = vadd.f32 %v6869, %v6884
        %v6896 = vadd.f32 %v6871, %v6884
        %v6897 = vadd.f32 %v6873, %v6884
        %v6898 = vadd.f32 %v6875, %v6884
        %v6899 = vadd.f32 %v6877, %v6884
        %v6900 = vadd.f32 %v6879, %v6884
        %v6901 = vadd.f32 %v6881, %v6884
        %v6902 = vlaneseq
        %v6903 = vand.u32 %v6902, 127
        %vm6904 = vcmp.eq.s32.totalorder %v6903, 127
        %6906 = vset.pattern.permute.xlu0 0
        %6907 = vperm.xlu0 %6906, %v6886
        %v6908 = vpop.permute.xlu0 %6907
        %6911 = vset.pattern.permute.xlu0 0
        %6912 = vperm.xlu0 %6911, %v6887
        %v6913 = vpop.permute.xlu0 %6912
        %6916 = vset.pattern.permute.xlu0 0
        %6917 = vperm.xlu0 %6916, %v6888
        %v6918 = vpop.permute.xlu0 %6917
        %6921 = vset.pattern.permute.xlu0 0
        %6922 = vperm.xlu0 %6921, %v6889
        %v6923 = vpop.permute.xlu0 %6922
        %6926 = vset.pattern.permute.xlu0 0
        %6927 = vperm.xlu0 %6926, %v6890
        %v6928 = vpop.permute.xlu0 %6927
        %6931 = vset.pattern.permute.xlu0 0
        %6932 = vperm.xlu0 %6931, %v6891
        %v6933 = vpop.permute.xlu0 %6932
        %6936 = vset.pattern.permute.xlu0 0
        %6937 = vperm.xlu0 %6936, %v6892
        %v6938 = vpop.permute.xlu0 %6937
        %6941 = vset.pattern.permute.xlu0 0
        %6942 = vperm.xlu0 %6941, %v6893
        %v6943 = vpop.permute.xlu0 %6942
        %6946 = vset.pattern.permute.xlu0 0
        %6947 = vperm.xlu0 %6946, %v6894
        %v6948 = vpop.permute.xlu0 %6947
        %6951 = vset.pattern.permute.xlu0 0
        %6952 = vperm.xlu0 %6951, %v6895
        %v6953 = vpop.permute.xlu0 %6952
        %6956 = vset.pattern.permute.xlu0 0
        %6957 = vperm.xlu0 %6956, %v6896
        %v6958 = vpop.permute.xlu0 %6957
        %6961 = vset.pattern.permute.xlu0 0
        %6962 = vperm.xlu0 %6961, %v6897
        %v6963 = vpop.permute.xlu0 %6962
        %6966 = vset.pattern.permute.xlu0 0
        %6967 = vperm.xlu0 %6966, %v6898
        %v6968 = vpop.permute.xlu0 %6967
        %6971 = vset.pattern.permute.xlu0 0
        %6972 = vperm.xlu0 %6971, %v6899
        %v6973 = vpop.permute.xlu0 %6972
        %6976 = vset.pattern.permute.xlu0 0
        %6977 = vperm.xlu0 %6976, %v6900
        %v6978 = vpop.permute.xlu0 %6977
        %6981 = vset.pattern.permute.xlu0 0
        %6982 = vperm.xlu0 %6981, %v6901
        %v6983 = vpop.permute.xlu0 %6982
        %v6985 = vsel %vm6904, %v6908, %v6814
        %v6986 = vsel %vm6904, %v6913, %v6815
        %v6987 = vsel %vm6904, %v6918, %v6816
        %v6988 = vsel %vm6904, %v6923, %v6817
        %v6989 = vsel %vm6904, %v6928, %v6818
        %v6990 = vsel %vm6904, %v6933, %v6819
        %v6991 = vsel %vm6904, %v6938, %v6820
        %v6992 = vsel %vm6904, %v6943, %v6821
        %v6993 = vsel %vm6904, %v6948, %v6822
        %v6994 = vsel %vm6904, %v6953, %v6823
        %v6995 = vsel %vm6904, %v6958, %v6824
        %v6996 = vsel %vm6904, %v6963, %v6825
        %v6997 = vsel %vm6904, %v6968, %v6826
        %v6998 = vsel %vm6904, %v6973, %v6827
        %v6999 = vsel %vm6904, %v6978, %v6828
        %v7000 = vsel %vm6904, %v6983, %v6829
        %7001 = vst [vmem:[%s565] sm:$0xff] %v6985
        %7002 = vst [vmem:[%s565 + $0x8] sm:$0xff] %v6986
        %7003 = vst [vmem:[%s565 + $0x10] sm:$0xff] %v6987
        %7004 = vst [vmem:[%s565 + $0x18] sm:$0xff] %v6988
        %7005 = vst [vmem:[%s565 + $0x20] sm:$0xff] %v6989
        %7006 = vst [vmem:[%s565 + $0x28] sm:$0xff] %v6990
        %7007 = vst [vmem:[%s565 + $0x30] sm:$0xff] %v6991
        %7008 = vst [vmem:[%s565 + $0x38] sm:$0xff] %v6992
        %7009 = vst [vmem:[%s565 + $0x40] sm:$0xff] %v6993
        %7010 = vst [vmem:[%s565 + $0x48] sm:$0xff] %v6994
        %7011 = vst [vmem:[%s565 + $0x50] sm:$0xff] %v6995
        %7012 = vst [vmem:[%s565 + $0x58] sm:$0xff] %v6996
        %7013 = vst [vmem:[%s565 + $0x60] sm:$0xff] %v6997
        %7014 = vst [vmem:[%s565 + $0x68] sm:$0xff] %v6998
        %7015 = vst [vmem:[%s565 + $0x70] sm:$0xff] %v6999
        %7016 = vst [vmem:[%s565 + $0x78] sm:$0xff] %v7000
        %s7017 = smul.u32 16, %s31
        %p7018 = scmp.lt.s32.totalorder %s7017, 31
        %s7019 = scalar_select %p7018, %s7017, 31
        %s7020 = smul.addr %s7019, 8
        %s7021 = scalar_lea.vmem %s15, %s7020
        // Predicated region
        $region97: #{actor_critic_forward.1} parent=79 // pred_check
          %p7022 = pneg %p369
        $region98: #{actor_critic_forward.1} parent=79 // pred_check_branch
          %7024 = sbr.rel (%p7022) target = $region100
        $region99: #{actor_critic_forward.1} parent=79 // pred_region
          %s7025 = smul.u32 16, %s31
        $region100: #{actor_critic_forward.1} parent=79 // pred_fallthru
          _
      $region80: #{actor_critic_forward.1} parent=5 // pred_fallthru
        _
      %p7026 = scmp.le.s32.totalorder 2, %s26
      // Predicated region
      $region101: #{actor_critic_forward.1} parent=5 // pred_check
        %p7027 = pneg %p7026
      $region102: #{actor_critic_forward.1} parent=5 // pred_check_branch
        %7029 = sbr.rel (%p7027) target = $region104
      $region103: #{actor_critic_forward.1} parent=5 // pred_region
        %s7030 = ssub.s32 %s26, 2
        // Predicated region
        $region105: #{actor_critic_forward.1} parent=103 // pred_check
          %p7031 = pneg %p375
        $region106: #{actor_critic_forward.1} parent=103 // pred_check_branch
          %7033 = sbr.rel (%p7031) target = $region108
        $region107: #{actor_critic_forward.1} parent=103 // pred_region
          %s7034 = smul.u32 16, %s32
          %p7035 = scmp.lt.s32.totalorder %s7034, 31
          %s7036 = scalar_select %p7035, %s7034, 31
          %s7037 = smul.addr %s7036, 8
          %s7038 = scalar_lea.vmem %s15, %s7037
        $region108: #{actor_critic_forward.1} parent=103 // pred_fallthru
          _
      $region104: #{actor_critic_forward.1} parent=5 // pred_fallthru
        _
    $region6: #{actor_critic_forward.1} parent=1 // loop_footer
      %s30 = sadd.s32 1, %s26
    $region7: #{actor_critic_forward.1} parent=1 // loop_footer_branch
      %25 = sbr.rel target = $region3
    $region8: #{actor_critic_forward.1} parent=1 // loop_exit
      _
    %7039 = vsyncpa [#allocation4], 1
    %s7040 = scalar_lea.sflag [#allocation4], 1
    %7041 = vsyncpa %s7040, 1
    %7042 = vsyncpa [#allocation6], 1
    %7043 = vsyncpa [#allocation9], 1

</llo_original>
